<compile_context>
chip_gen: v7x
topology: tpu7x:2x2x1
jax: 0.10.0
libtpu: 0.0.40
codegen_flags: <defaults>
</compile_context>

<pallas_src>
from functools import lru_cache

import numpy as np
import jax
import jax.numpy as jnp
from jax.experimental import pallas as pl
from jax.experimental.pallas import tpu as pltpu


# ----------------------------------------------------------------------------- #
# Pallas kernel
# ----------------------------------------------------------------------------- #
def _magnet_kernel(x_ref, w1_ref, b1_ref, l2w_ref, l2b_ref, i1w_ref, i2w_ref,
                   i3_ref, gint_ref, s2w_ref, gself_ref, s2b_ref, o_ref):
    f32 = jnp.float32
    n_obj, ts, in_size = x_ref.shape
    rows = n_obj * ts
    width1 = w1_ref.shape[1]           # hidden + self_f (fused L1|S1 width)
    hidden = l2w_ref.shape[1]
    int_f = i2w_ref.shape[1]
    out_size = o_ref.shape[2]
    mm_dt = l2w_ref.dtype              # matmul operand dtype (bf16 or f32)

    x = x_ref[...].reshape(rows, in_size)          # object-major rows: obj*ts + t

    # fused L1|S1:  y = [ relu(L1 x + L1b) | relu(S1 x + S1b) ]   (rows, width1)
    y = jnp.dot(x.astype(mm_dt), w1_ref[...], preferred_element_type=f32) + b1_ref[...]
    y = jnp.maximum(y, 0.0)

    # interaction trunk: relu(L2(.)); L2 weight is zero-padded over the S1 columns.
    h = jnp.dot(y.astype(mm_dt), l2w_ref[...], preferred_element_type=f32) + l2b_ref[...]
    h = jnp.maximum(h, 0.0)                        # (rows, hidden), f32

    i1w = i1w_ref[...]
    i2w = i2w_ref[...]
    g_int = gint_ref[...]                          # (int_f, out), f32 0/1 group-sum
    i3 = i3_ref[...]                               # (n_obj-1, n_obj, int_f), roll order

    # Per-shift pair loop.  For shift s the diff row obj*ts+t is
    #   h_obj[t] - h_{(obj+s) mod n_obj}[t]
    # obtained with a cyclic sublane roll (shift multiple of ts, hence of 8).
    # Each shift is reduced to its (n_obj, ts, out) contribution and accumulated;
    # no (n_pairs*TS, .) intermediate is ever materialized.
    int_comp = jnp.zeros((n_obj, ts, out_size), f32)
    for s in range(1, n_obj):
        shifted = pltpu.roll(h, shift=(n_obj - s) * ts, axis=0)   # h_{(obj+s) mod n}
        diff = (h - shifted).astype(mm_dt)
        pw = jnp.tanh(jnp.dot(diff, i1w, preferred_element_type=f32))
        pw = jnp.tanh(jnp.dot(pw.astype(mm_dt), i2w, preferred_element_type=f32))
        # per-pair I3 readout (broadcast the (n_obj, int_f) slice over ts) + group sum
        scaled = pw.reshape(n_obj, ts, int_f) * i3[s - 1][:, None, :]
        icp = jnp.dot(scaled.reshape(rows, int_f), g_int, preferred_element_type=f32)
        int_comp = int_comp + icp.reshape(n_obj, ts, out_size)

    # self branch: S2W / G_self are zero-padded over the L1 columns of y.
    scaled_self = y.reshape(n_obj, ts, width1) * s2w_ref[...][:, None, :]
    self_comp = jnp.dot(scaled_self.reshape(rows, width1), gself_ref[...],
                        preferred_element_type=f32).reshape(n_obj, ts, out_size)
    self_comp = self_comp + s2b_ref[...][:, None, :]

    o_ref[...] = (int_comp + self_comp).astype(o_ref.dtype)


# ----------------------------------------------------------------------------- #
# Host-side constants (cached per configuration)
# ----------------------------------------------------------------------------- #
@lru_cache(maxsize=None)
def _roll_pair_perm(n_objects):
    """Maps roll-order pair index q=(s-1)*n_obj+i  ->  torch DM column index."""
    perm = []
    for s in range(1, n_objects):
        for i in range(n_objects):
            j = (i + s) % n_objects
            perm.append(i * (n_objects - 1) + (j if j < i else j - 1))
    return np.asarray(perm, np.int32)


@lru_cache(maxsize=None)
def _group_sum_matrices(int_f, self_f, hidden, out_size):
    int_fpd = int_f // out_size
    self_fpd = self_f // out_size
    g_int = np.zeros((int_f, out_size), np.float32)
    g_self = np.zeros((hidden + self_f, out_size), np.float32)
    for d in range(out_size):
        g_int[d * int_fpd:(d + 1) * int_fpd, d] = 1.0
        g_self[hidden + d * self_fpd: hidden + (d + 1) * self_fpd, d] = 1.0
    return g_int, g_self


def difference_matrix(n_objects):
    n_pairs = n_objects * (n_objects - 1)
    DM = np.zeros((n_objects, n_pairs), np.float32)
    count = 0
    for i in range(n_objects):
        for j in range(n_objects):
            if i == j:
                continue
            DM[i, count] = 1.0
            DM[j, count] = -1.0
            count += 1
    return jnp.asarray(DM)


# ----------------------------------------------------------------------------- #
# Builder: precompute constants once, return a jitted forward(x)
# ----------------------------------------------------------------------------- #
def build_magnet_forward(params, *, n_objects, out_size, seq_len, seq_tile,
                         matmul_dtype=jnp.bfloat16):
    assert n_objects >= 2
    in_size, hidden = params["L1w"].shape
    self_f = params["S1w"].shape[1]
    int_f = params["I2w"].shape[1]
    int_fpd = int_f // out_size
    self_fpd = self_f // out_size
    n_pairs = n_objects * (n_objects - 1)

    TS = seq_tile
    assert seq_len % TS == 0, "seq_len must be divisible by seq_tile"
    assert TS % 8 == 0, "seq_tile must be a multiple of 8 (sublane rolls / tiling)"
    width1 = hidden + self_f
    mm = matmul_dtype
    f32 = jnp.float32

    # ---- constants (built once, reused every call; none scale with TS) ----
    w1 = jnp.concatenate([params["L1w"], params["S1w"]], axis=1).astype(mm)   # (in, width1)
    b1 = jnp.concatenate([params["L1b"], params["S1b"]], axis=1).astype(f32)  # (1, width1)
    l2w = jnp.concatenate([params["L2w"],
                           jnp.zeros((self_f, hidden), f32)], axis=0).astype(mm)  # (width1, hidden)
    l2b = params["L2b"].astype(f32)                                            # (1, hidden)
    i1w = params["I1w"].astype(mm)                                             # (hidden, hidden)
    i2w = params["I2w"].astype(mm)                                             # (hidden, int_f)

    perm = _roll_pair_perm(n_objects)
    i3_roll = (params["I3"].reshape(n_pairs, out_size * int_fpd).astype(f32)
               )[perm].reshape(n_objects - 1, n_objects, int_f)                # roll order

    s2w_flat = params["S2W"].reshape(n_objects, out_size * self_fpd).astype(f32)
    s2w_pad = jnp.concatenate([jnp.zeros((n_objects, hidden), f32), s2w_flat], axis=1)
    s2b = params["S2b"].astype(f32)                                            # (n_obj, out)

    g_int_np, g_self_np = _group_sum_matrices(int_f, self_f, hidden, out_size)
    g_int = jnp.asarray(g_int_np, f32)        # group-sum matmuls keep f32 operands
    g_self = jnp.asarray(g_self_np, f32)

    def full(shape):
        return pl.BlockSpec(shape, lambda i: (0,) * len(shape))

    call = pl.pallas_call(
        _magnet_kernel,
        out_shape=jax.ShapeDtypeStruct((n_objects, seq_len, out_size), f32),
        grid_spec=pltpu.PrefetchScalarGridSpec(
            num_scalar_prefetch=0,
            grid=(seq_len // TS,),
            in_specs=[
                pl.BlockSpec((n_objects, TS, in_size), lambda i: (0, i, 0)),   # x (object-major)
                full((in_size, width1)),              # fused [L1|S1] weight
                full((1, width1)),                    # fused [L1|S1] bias
                full((width1, hidden)),               # L2 weight (zero-padded rows)
                full((1, hidden)),                    # L2 bias
                full((hidden, hidden)),               # I1
                full((hidden, int_f)),                # I2
                full((n_objects - 1, n_objects, int_f)),  # I3 (roll order, not TS-tiled)
                full((int_f, out_size)),              # group-sum (interaction)
                full((n_objects, width1)),            # S2W (zero-padded, not TS-tiled)
                full((width1, out_size)),             # group-sum (self, padded)
                full((n_objects, out_size)),          # S2b
            ],
            out_specs=pl.BlockSpec((n_objects, TS, out_size), lambda i: (0, i, 0)),
        ),
        compiler_params=pltpu.CompilerParams(
            dimension_semantics=("parallel",),
            vmem_limit_bytes=32 * 1024 * 1024,
        ),
    )

    @jax.jit
    def forward(x):
        # x: (seq_len, n_objects, in_size)  ->  object-major (n_objects, seq_len, in_size)
        x_om = jnp.transpose(x, (1, 0, 2))
        out = call(x_om, w1, b1, l2w, l2b, i1w, i2w,
                   i3_roll, g_int, s2w_pad, g_self, s2b)
        return jnp.transpose(out, (1, 0, 2))     # (seq_len, n_objects, out_size)

    return forward


# ----------------------------------------------------------------------------- #
# Plain-JAX reference (mirrors the PyTorch forward exactly)
# ----------------------------------------------------------------------------- #
def magnet_forward_ref(x, params, *, n_objects, out_size):
    seq_len = x.shape[0]
    n_pairs = n_objects * (n_objects - 1)
    int_f = params["I2w"].shape[1]
    self_f = params["S1w"].shape[1]
    int_fpd = int_f // out_size
    self_fpd = self_f // out_size
    DM = params["DM"]
    SM = jnp.where(DM.T == -1.0, 0.0, DM.T)

    h = jax.nn.relu(x @ params["L1w"] + params["L1b"])
    h = jax.nn.relu(h @ params["L2w"] + params["L2b"])
    hs = jax.nn.relu(x @ params["S1w"] + params["S1b"])

    pw = jnp.einsum("soh,op->sph", h, DM)
    pw = jnp.tanh(pw @ params["I1w"])
    pw = jnp.tanh(pw @ params["I2w"])

    pw4 = pw.reshape(seq_len, n_pairs, out_size, int_fpd)
    icp = jnp.einsum("spdf,pdf->spd", pw4, params["I3"])
    int_comp = jnp.einsum("spd,pn->snd", icp, SM)

    hs4 = hs.reshape(seq_len, n_objects, out_size, self_fpd)
    self_comp = jnp.einsum("sndf,ndf->snd", hs4, params["S2W"]) + params["S2b"][None]
    return int_comp + self_comp


# ----------------------------------------------------------------------------- #
if __name__ == "__main__":
    # shapes consistent with the module (in=4, hidden=64, int_f=8, self_f=4, out=2);
    # seq_len chosen so one grid step covers 512 rows and the grid has 2 steps.
    seq_len, n_objects, in_size = 256, 4, 4
    hidden, int_f, self_f, out_size = 64, 8, 4, 2
    seq_tile = 128
    n_pairs = n_objects * (n_objects - 1)
    int_fpd = int_f // out_size
    self_fpd = self_f // out_size

    key = jax.random.PRNGKey(0)
    kx, *kw = jax.random.split(key, 11)
    norm = lambda k, shape, std: (std * jax.random.normal(k, shape, jnp.float32))

    params = dict(
        L1w=norm(kw[0], (in_size, hidden), 0.3),
        L1b=norm(kw[1], (1, hidden), 0.1),
        L2w=norm(kw[2], (hidden, hidden), 0.1),
        L2b=norm(kw[3], (1, hidden), 0.1),
        S1w=norm(kw[4], (in_size, self_f), 0.3),
        S1b=norm(kw[5], (1, self_f), 0.1),
        I1w=norm(kw[6], (hidden, hidden), 0.1),
        I2w=norm(kw[7], (hidden, int_f), 0.1),
        I3=norm(kw[8], (n_pairs, out_size, int_fpd), 0.1),    # torch trailing 1 squeezed
        S2W=norm(kw[9], (n_objects, out_size, self_fpd), 0.1),
        S2b=jnp.zeros((n_objects, out_size), jnp.float32),
        DM=difference_matrix(n_objects),
    )

    x = jax.random.normal(kx, (seq_len, n_objects, in_size), jnp.float32)
    y_ref = magnet_forward_ref(x, params, n_objects=n_objects, out_size=out_size)
    ref_scale = float(jnp.max(jnp.abs(y_ref))) + 1e-8

    # f32 matmul operands: tight tolerance (validates the roll/accumulate restructuring)
    fwd_f32 = build_magnet_forward(params, n_objects=n_objects, out_size=out_size,
                                   seq_len=seq_len, seq_tile=seq_tile,
                                   matmul_dtype=jnp.float32)
    y32 = jax.block_until_ready(fwd_f32(x))
    err32 = float(jnp.max(jnp.abs(y32 - y_ref))) / ref_scale
    assert y32.shape == (seq_len, n_objects, out_size)
    assert err32 < 1e-4, f"f32 mismatch vs reference, rel_err={err32}"

    # default path: bf16 MXU operands (native on v5e/v6e/v7x), f32 accumulation/elementwise
    fwd_bf16 = build_magnet_forward(params, n_objects=n_objects, out_size=out_size,
                                    seq_len=seq_len, seq_tile=seq_tile)
    ybf = jax.block_until_ready(fwd_bf16(x))
    errbf = float(jnp.max(jnp.abs(ybf - y_ref))) / ref_scale
    assert errbf < 5e-2, f"bf16 mismatch vs reference, rel_err={errbf}"

    print("KERNEL_OK")
</pallas_src>

<mosaic_0001>
module attributes {stable_mosaic.version = 11 : i64} {
  func.func @_magnet_kernel(%arg0: i32, %arg1: memref<4x128x4xf32, #tpu.memory_space<vmem>>, %arg2: memref<4x68xf32, #tpu.memory_space<vmem>>, %arg3: memref<1x68xf32, #tpu.memory_space<vmem>>, %arg4: memref<68x64xf32, #tpu.memory_space<vmem>>, %arg5: memref<1x64xf32, #tpu.memory_space<vmem>>, %arg6: memref<64x64xf32, #tpu.memory_space<vmem>>, %arg7: memref<64x8xf32, #tpu.memory_space<vmem>>, %arg8: memref<3x4x8xf32, #tpu.memory_space<vmem>>, %arg9: memref<8x2xf32, #tpu.memory_space<vmem>>, %arg10: memref<4x68xf32, #tpu.memory_space<vmem>>, %arg11: memref<68x2xf32, #tpu.memory_space<vmem>>, %arg12: memref<4x2xf32, #tpu.memory_space<vmem>>, %arg13: memref<4x128x2xf32, #tpu.memory_space<vmem>>) attributes {dimension_semantics = [#tpu.dimension_semantics<parallel>], iteration_bounds = array<i64: 2>, scalar_prefetch = 0 : i64, scratch_operands = 0 : i64, tpu.core_type = #tpu.core_type<tc>, window_params = [{transform_indices = @transform_0, window_bounds = array<i64: 4, 128, 4>}, {pipeline_mode = #tpu.pipeline_mode<synchronous>, transform_indices = @transform_1, window_bounds = array<i64: 4, 68>}, {pipeline_mode = #tpu.pipeline_mode<synchronous>, transform_indices = @transform_2, window_bounds = array<i64: 1, 68>}, {pipeline_mode = #tpu.pipeline_mode<synchronous>, transform_indices = @transform_3, window_bounds = array<i64: 68, 64>}, {pipeline_mode = #tpu.pipeline_mode<synchronous>, transform_indices = @transform_4, window_bounds = array<i64: 1, 64>}, {pipeline_mode = #tpu.pipeline_mode<synchronous>, transform_indices = @transform_5, window_bounds = array<i64: 64, 64>}, {pipeline_mode = #tpu.pipeline_mode<synchronous>, transform_indices = @transform_6, window_bounds = array<i64: 64, 8>}, {pipeline_mode = #tpu.pipeline_mode<synchronous>, transform_indices = @transform_7, window_bounds = array<i64: 3, 4, 8>}, {pipeline_mode = #tpu.pipeline_mode<synchronous>, transform_indices = @transform_8, window_bounds = array<i64: 8, 2>}, {pipeline_mode = #tpu.pipeline_mode<synchronous>, transform_indices = @transform_9, window_bounds = array<i64: 4, 68>}, {pipeline_mode = #tpu.pipeline_mode<synchronous>, transform_indices = @transform_10, window_bounds = array<i64: 68, 2>}, {pipeline_mode = #tpu.pipeline_mode<synchronous>, transform_indices = @transform_11, window_bounds = array<i64: 4, 2>}, {transform_indices = @transform_12, window_bounds = array<i64: 4, 128, 2>}]} {
    %c0 = arith.constant 0 : index
    %c0_0 = arith.constant 0 : index
    %c0_1 = arith.constant 0 : index
    %0 = vector.load %arg1[%c0, %c0_0, %c0_1] : memref<4x128x4xf32, #tpu.memory_space<vmem>>, vector<4x128x4xf32>
    %1 = vector.shape_cast %0 : vector<4x128x4xf32> to vector<512x4xf32>
    %c0_2 = arith.constant 0 : index
    %c0_3 = arith.constant 0 : index
    %2 = vector.load %arg2[%c0_2, %c0_3] : memref<4x68xf32, #tpu.memory_space<vmem>>, vector<4x68xf32>
    %cst = arith.constant dense<0.000000e+00> : vector<512x68xf32>
    %3 = tpu.matmul %1, %2, %cst {dimension_numbers = #tpu.dot_dimension_numbers<[1], [0], [0], [1], [0, 0, 1, 1], [], []>} : vector<512x4xf32>, vector<4x68xf32>, vector<512x68xf32> -> vector<512x68xf32>
    %c0_4 = arith.constant 0 : index
    %c0_5 = arith.constant 0 : index
    %4 = vector.load %arg3[%c0_4, %c0_5] : memref<1x68xf32, #tpu.memory_space<vmem>>, vector<1x68xf32>
    %5 = vector.broadcast %4 : vector<1x68xf32> to vector<512x68xf32>
    %6 = arith.addf %3, %5 : vector<512x68xf32>
    %cst_6 = arith.constant 0.000000e+00 : f32
    %7 = vector.broadcast %cst_6 : f32 to vector<512x68xf32>
    %8 = arith.maximumf %6, %7 : vector<512x68xf32>
    %c0_7 = arith.constant 0 : index
    %c0_8 = arith.constant 0 : index
    %9 = vector.load %arg4[%c0_7, %c0_8] : memref<68x64xf32, #tpu.memory_space<vmem>>, vector<68x64xf32>
    %cst_9 = arith.constant dense<0.000000e+00> : vector<512x64xf32>
    %10 = tpu.matmul %8, %9, %cst_9 {dimension_numbers = #tpu.dot_dimension_numbers<[1], [0], [0], [1], [0, 0, 1, 1], [], []>} : vector<512x68xf32>, vector<68x64xf32>, vector<512x64xf32> -> vector<512x64xf32>
    %c0_10 = arith.constant 0 : index
    %c0_11 = arith.constant 0 : index
    %11 = vector.load %arg5[%c0_10, %c0_11] : memref<1x64xf32, #tpu.memory_space<vmem>>, vector<1x64xf32>
    %12 = vector.broadcast %11 : vector<1x64xf32> to vector<512x64xf32>
    %13 = arith.addf %10, %12 : vector<512x64xf32>
    %cst_12 = arith.constant 0.000000e+00 : f32
    %14 = vector.broadcast %cst_12 : f32 to vector<512x64xf32>
    %15 = arith.maximumf %13, %14 : vector<512x64xf32>
    %c0_13 = arith.constant 0 : index
    %c0_14 = arith.constant 0 : index
    %16 = vector.load %arg6[%c0_13, %c0_14] : memref<64x64xf32, #tpu.memory_space<vmem>>, vector<64x64xf32>
    %c0_15 = arith.constant 0 : index
    %c0_16 = arith.constant 0 : index
    %17 = vector.load %arg7[%c0_15, %c0_16] : memref<64x8xf32, #tpu.memory_space<vmem>>, vector<64x8xf32>
    %c0_17 = arith.constant 0 : index
    %c0_18 = arith.constant 0 : index
    %18 = vector.load %arg9[%c0_17, %c0_18] : memref<8x2xf32, #tpu.memory_space<vmem>>, vector<8x2xf32>
    %c0_19 = arith.constant 0 : index
    %c0_20 = arith.constant 0 : index
    %c0_21 = arith.constant 0 : index
    %19 = vector.load %arg8[%c0_19, %c0_20, %c0_21] : memref<3x4x8xf32, #tpu.memory_space<vmem>>, vector<3x4x8xf32>
    %cst_22 = arith.constant 0.000000e+00 : f32
    %20 = vector.broadcast %cst_22 : f32 to vector<4x128x2xf32>
    %c384_i32 = arith.constant 384 : i32
    %21 = tpu.dynamic_rotate %15 by %c384_i32 dim 0 : vector<512x64xf32>, i32 -> vector<512x64xf32>
    %22 = arith.subf %15, %21 : vector<512x64xf32>
    %cst_23 = arith.constant dense<0.000000e+00> : vector<512x64xf32>
    %23 = tpu.matmul %22, %16, %cst_23 {dimension_numbers = #tpu.dot_dimension_numbers<[1], [0], [0], [1], [0, 0, 1, 1], [], []>} : vector<512x64xf32>, vector<64x64xf32>, vector<512x64xf32> -> vector<512x64xf32>
    %24 = math.tanh %23 : vector<512x64xf32>
    %cst_24 = arith.constant dense<0.000000e+00> : vector<512x8xf32>
    %25 = tpu.matmul %24, %17, %cst_24 {dimension_numbers = #tpu.dot_dimension_numbers<[1], [0], [0], [1], [0, 0, 1, 1], [], []>} : vector<512x64xf32>, vector<64x8xf32>, vector<512x8xf32> -> vector<512x8xf32>
    %26 = math.tanh %25 : vector<512x8xf32>
    %27 = vector.shape_cast %26 : vector<512x8xf32> to vector<4x128x8xf32>
    %28 = vector.extract_strided_slice %19 {offsets = [0, 0, 0], sizes = [1, 4, 8], strides = [1, 1, 1]} : vector<3x4x8xf32> to vector<1x4x8xf32>
    %29 = vector.shape_cast %28 : vector<1x4x8xf32> to vector<4x8xf32>
    %30 = vector.shape_cast %29 : vector<4x8xf32> to vector<4x1x8xf32>
    %31 = vector.broadcast %30 : vector<4x1x8xf32> to vector<4x128x8xf32>
    %32 = arith.mulf %27, %31 : vector<4x128x8xf32>
    %33 = vector.shape_cast %32 : vector<4x128x8xf32> to vector<512x8xf32>
    %cst_25 = arith.constant dense<0.000000e+00> : vector<512x2xf32>
    %34 = tpu.matmul %33, %18, %cst_25 {dimension_numbers = #tpu.dot_dimension_numbers<[1], [0], [0], [1], [0, 0, 1, 1], [], []>} : vector<512x8xf32>, vector<8x2xf32>, vector<512x2xf32> -> vector<512x2xf32>
    %35 = vector.shape_cast %34 : vector<512x2xf32> to vector<4x128x2xf32>
    %36 = arith.addf %20, %35 : vector<4x128x2xf32>
    %c256_i32 = arith.constant 256 : i32
    %37 = tpu.dynamic_rotate %15 by %c256_i32 dim 0 : vector<512x64xf32>, i32 -> vector<512x64xf32>
    %38 = arith.subf %15, %37 : vector<512x64xf32>
    %cst_26 = arith.constant dense<0.000000e+00> : vector<512x64xf32>
    %39 = tpu.matmul %38, %16, %cst_26 {dimension_numbers = #tpu.dot_dimension_numbers<[1], [0], [0], [1], [0, 0, 1, 1], [], []>} : vector<512x64xf32>, vector<64x64xf32>, vector<512x64xf32> -> vector<512x64xf32>
    %40 = math.tanh %39 : vector<512x64xf32>
    %cst_27 = arith.constant dense<0.000000e+00> : vector<512x8xf32>
    %41 = tpu.matmul %40, %17, %cst_27 {dimension_numbers = #tpu.dot_dimension_numbers<[1], [0], [0], [1], [0, 0, 1, 1], [], []>} : vector<512x64xf32>, vector<64x8xf32>, vector<512x8xf32> -> vector<512x8xf32>
    %42 = math.tanh %41 : vector<512x8xf32>
    %43 = vector.shape_cast %42 : vector<512x8xf32> to vector<4x128x8xf32>
    %44 = vector.extract_strided_slice %19 {offsets = [1, 0, 0], sizes = [1, 4, 8], strides = [1, 1, 1]} : vector<3x4x8xf32> to vector<1x4x8xf32>
    %45 = vector.shape_cast %44 : vector<1x4x8xf32> to vector<4x8xf32>
    %46 = vector.shape_cast %45 : vector<4x8xf32> to vector<4x1x8xf32>
    %47 = vector.broadcast %46 : vector<4x1x8xf32> to vector<4x128x8xf32>
    %48 = arith.mulf %43, %47 : vector<4x128x8xf32>
    %49 = vector.shape_cast %48 : vector<4x128x8xf32> to vector<512x8xf32>
    %cst_28 = arith.constant dense<0.000000e+00> : vector<512x2xf32>
    %50 = tpu.matmul %49, %18, %cst_28 {dimension_numbers = #tpu.dot_dimension_numbers<[1], [0], [0], [1], [0, 0, 1, 1], [], []>} : vector<512x8xf32>, vector<8x2xf32>, vector<512x2xf32> -> vector<512x2xf32>
    %51 = vector.shape_cast %50 : vector<512x2xf32> to vector<4x128x2xf32>
    %52 = arith.addf %36, %51 : vector<4x128x2xf32>
    %c128_i32 = arith.constant 128 : i32
    %53 = tpu.dynamic_rotate %15 by %c128_i32 dim 0 : vector<512x64xf32>, i32 -> vector<512x64xf32>
    %54 = arith.subf %15, %53 : vector<512x64xf32>
    %cst_29 = arith.constant dense<0.000000e+00> : vector<512x64xf32>
    %55 = tpu.matmul %54, %16, %cst_29 {dimension_numbers = #tpu.dot_dimension_numbers<[1], [0], [0], [1], [0, 0, 1, 1], [], []>} : vector<512x64xf32>, vector<64x64xf32>, vector<512x64xf32> -> vector<512x64xf32>
    %56 = math.tanh %55 : vector<512x64xf32>
    %cst_30 = arith.constant dense<0.000000e+00> : vector<512x8xf32>
    %57 = tpu.matmul %56, %17, %cst_30 {dimension_numbers = #tpu.dot_dimension_numbers<[1], [0], [0], [1], [0, 0, 1, 1], [], []>} : vector<512x64xf32>, vector<64x8xf32>, vector<512x8xf32> -> vector<512x8xf32>
    %58 = math.tanh %57 : vector<512x8xf32>
    %59 = vector.shape_cast %58 : vector<512x8xf32> to vector<4x128x8xf32>
    %60 = vector.extract_strided_slice %19 {offsets = [2, 0, 0], sizes = [1, 4, 8], strides = [1, 1, 1]} : vector<3x4x8xf32> to vector<1x4x8xf32>
    %61 = vector.shape_cast %60 : vector<1x4x8xf32> to vector<4x8xf32>
    %62 = vector.shape_cast %61 : vector<4x8xf32> to vector<4x1x8xf32>
    %63 = vector.broadcast %62 : vector<4x1x8xf32> to vector<4x128x8xf32>
    %64 = arith.mulf %59, %63 : vector<4x128x8xf32>
    %65 = vector.shape_cast %64 : vector<4x128x8xf32> to vector<512x8xf32>
    %cst_31 = arith.constant dense<0.000000e+00> : vector<512x2xf32>
    %66 = tpu.matmul %65, %18, %cst_31 {dimension_numbers = #tpu.dot_dimension_numbers<[1], [0], [0], [1], [0, 0, 1, 1], [], []>} : vector<512x8xf32>, vector<8x2xf32>, vector<512x2xf32> -> vector<512x2xf32>
    %67 = vector.shape_cast %66 : vector<512x2xf32> to vector<4x128x2xf32>
    %68 = arith.addf %52, %67 : vector<4x128x2xf32>
    %69 = vector.shape_cast %8 : vector<512x68xf32> to vector<4x128x68xf32>
    %c0_32 = arith.constant 0 : index
    %c0_33 = arith.constant 0 : index
    %70 = vector.load %arg10[%c0_32, %c0_33] : memref<4x68xf32, #tpu.memory_space<vmem>>, vector<4x68xf32>
    %71 = vector.shape_cast %70 : vector<4x68xf32> to vector<4x1x68xf32>
    %72 = vector.broadcast %71 : vector<4x1x68xf32> to vector<4x128x68xf32>
    %73 = arith.mulf %69, %72 : vector<4x128x68xf32>
    %74 = vector.shape_cast %73 : vector<4x128x68xf32> to vector<512x68xf32>
    %c0_34 = arith.constant 0 : index
    %c0_35 = arith.constant 0 : index
    %75 = vector.load %arg11[%c0_34, %c0_35] : memref<68x2xf32, #tpu.memory_space<vmem>>, vector<68x2xf32>
    %cst_36 = arith.constant dense<0.000000e+00> : vector<512x2xf32>
    %76 = tpu.matmul %74, %75, %cst_36 {dimension_numbers = #tpu.dot_dimension_numbers<[1], [0], [0], [1], [0, 0, 1, 1], [], []>} : vector<512x68xf32>, vector<68x2xf32>, vector<512x2xf32> -> vector<512x2xf32>
    %77 = vector.shape_cast %76 : vector<512x2xf32> to vector<4x128x2xf32>
    %c0_37 = arith.constant 0 : index
    %c0_38 = arith.constant 0 : index
    %78 = vector.load %arg12[%c0_37, %c0_38] : memref<4x2xf32, #tpu.memory_space<vmem>>, vector<4x2xf32>
    %79 = vector.shape_cast %78 : vector<4x2xf32> to vector<4x1x2xf32>
    %80 = vector.broadcast %79 : vector<4x1x2xf32> to vector<4x128x2xf32>
    %81 = arith.addf %77, %80 : vector<4x128x2xf32>
    %82 = arith.addf %68, %81 : vector<4x128x2xf32>
    %c0_39 = arith.constant 0 : index
    %c0_40 = arith.constant 0 : index
    %c0_41 = arith.constant 0 : index
    %83 = vector.load %arg13[%c0_39, %c0_40, %c0_41] : memref<4x128x2xf32, #tpu.memory_space<vmem>>, vector<4x128x2xf32>
    tpu.vector_store %arg13[%c0_39, %c0_40, %c0_41], %82 {strides = array<i32>} : memref<4x128x2xf32, #tpu.memory_space<vmem>>, vector<4x128x2xf32>,
    return
  }
  func.func @transform_0(%arg0: i32) -> (i32, i32, i32) {
    %c0_i32 = arith.constant 0 : i32
    %c0_i32_0 = arith.constant 0 : i32
    %c0_i32_1 = arith.constant 0 : i32
    return %c0_i32, %arg0, %c0_i32_0 : i32, i32, i32
  }
  func.func @transform_1(%arg0: i32) -> (i32, i32) {
    %c0_i32 = arith.constant 0 : i32
    %c0_i32_0 = arith.constant 0 : i32
    %c0_i32_1 = arith.constant 0 : i32
    return %c0_i32, %c0_i32_0 : i32, i32
  }
  func.func @transform_2(%arg0: i32) -> (i32, i32) {
    %c0_i32 = arith.constant 0 : i32
    %c0_i32_0 = arith.constant 0 : i32
    %c0_i32_1 = arith.constant 0 : i32
    return %c0_i32, %c0_i32_0 : i32, i32
  }
  func.func @transform_3(%arg0: i32) -> (i32, i32) {
    %c0_i32 = arith.constant 0 : i32
    %c0_i32_0 = arith.constant 0 : i32
    %c0_i32_1 = arith.constant 0 : i32
    return %c0_i32, %c0_i32_0 : i32, i32
  }
  func.func @transform_4(%arg0: i32) -> (i32, i32) {
    %c0_i32 = arith.constant 0 : i32
    %c0_i32_0 = arith.constant 0 : i32
    %c0_i32_1 = arith.constant 0 : i32
    return %c0_i32, %c0_i32_0 : i32, i32
  }
  func.func @transform_5(%arg0: i32) -> (i32, i32) {
    %c0_i32 = arith.constant 0 : i32
    %c0_i32_0 = arith.constant 0 : i32
    %c0_i32_1 = arith.constant 0 : i32
    return %c0_i32, %c0_i32_0 : i32, i32
  }
  func.func @transform_6(%arg0: i32) -> (i32, i32) {
    %c0_i32 = arith.constant 0 : i32
    %c0_i32_0 = arith.constant 0 : i32
    %c0_i32_1 = arith.constant 0 : i32
    return %c0_i32, %c0_i32_0 : i32, i32
  }
  func.func @transform_7(%arg0: i32) -> (i32, i32, i32) {
    %c0_i32 = arith.constant 0 : i32
    %c0_i32_0 = arith.constant 0 : i32
    %c0_i32_1 = arith.constant 0 : i32
    %c0_i32_2 = arith.constant 0 : i32
    return %c0_i32, %c0_i32_0, %c0_i32_1 : i32, i32, i32
  }
  func.func @transform_8(%arg0: i32) -> (i32, i32) {
    %c0_i32 = arith.constant 0 : i32
    %c0_i32_0 = arith.constant 0 : i32
    %c0_i32_1 = arith.constant 0 : i32
    return %c0_i32, %c0_i32_0 : i32, i32
  }
  func.func @transform_9(%arg0: i32) -> (i32, i32) {
    %c0_i32 = arith.constant 0 : i32
    %c0_i32_0 = arith.constant 0 : i32
    %c0_i32_1 = arith.constant 0 : i32
    return %c0_i32, %c0_i32_0 : i32, i32
  }
  func.func @transform_10(%arg0: i32) -> (i32, i32) {
    %c0_i32 = arith.constant 0 : i32
    %c0_i32_0 = arith.constant 0 : i32
    %c0_i32_1 = arith.constant 0 : i32
    return %c0_i32, %c0_i32_0 : i32, i32
  }
  func.func @transform_11(%arg0: i32) -> (i32, i32) {
    %c0_i32 = arith.constant 0 : i32
    %c0_i32_0 = arith.constant 0 : i32
    %c0_i32_1 = arith.constant 0 : i32
    return %c0_i32, %c0_i32_0 : i32, i32
  }
  func.func @transform_12(%arg0: i32) -> (i32, i32, i32) {
    %c0_i32 = arith.constant 0 : i32
    %c0_i32_0 = arith.constant 0 : i32
    %c0_i32_1 = arith.constant 0 : i32
    return %c0_i32, %arg0, %c0_i32_0 : i32, i32, i32
  }
}

</mosaic_0001>

<llo_original>
// kernel: forward.1
$region0: #{forward.1}
  #allocation0 [shape = 'u32[]', space=smem, size = 0x4, offset = 0x4, fixed_abs, tag = 'smem constant byte address 0x4 - core index']
  #allocation1 [shape = 'u32[144,128]{1,0:T(1,128)}', space=vmem, size = 0x12000, scoped, tag = 'internal scratch']
  %s0 = inlined_call_operand.vmem [shape: f32[4,256,4], index: 0, kind: input, shape index: {}]
  %s1 = inlined_call_operand.vmem [shape: f32[4,68], index: 1, kind: input, shape index: {}]
  %s2 = inlined_call_operand.vmem [shape: f32[1,68], index: 2, kind: input, shape index: {}]
  %s3 = inlined_call_operand.vmem [shape: f32[68,64], index: 3, kind: input, shape index: {}]
  %s4 = inlined_call_operand.vmem [shape: f32[1,64], index: 4, kind: input, shape index: {}]
  %s5 = inlined_call_operand.vmem [shape: f32[64,64], index: 5, kind: input, shape index: {}]
  %s6 = inlined_call_operand.vmem [shape: f32[64,8], index: 6, kind: input, shape index: {}]
  %s7 = inlined_call_operand.vmem [shape: f32[3,4,8], index: 7, kind: input, shape index: {}]
  %s8 = inlined_call_operand.vmem [shape: f32[8,2], index: 8, kind: input, shape index: {}]
  %s9 = inlined_call_operand.vmem [shape: f32[4,68], index: 9, kind: input, shape index: {}]
  %s10 = inlined_call_operand.vmem [shape: f32[68,2], index: 10, kind: input, shape index: {}]
  %s11 = inlined_call_operand.vmem [shape: f32[4,2], index: 11, kind: input, shape index: {}]
  %s12 = inlined_call_operand.vmem [shape: f32[4,256,2], index: 12, kind: output, shape index: {}]
  %s13 = sld [smem:[#allocation0]]
  $region153: #{forward.1} parent=0
    _
  %s15 = ssub.s32 1, %s13
  %s16 = scalar_select 0, %s15, %s13
  $region1: #{forward.1} parent=0
    #allocation2 [shape = 'u8[524288]{0}', space=vmem, size = 0x80000, scoped, tag = 'input window, operand 0']
    #allocation3 [shape = 'u8[524288]{0}', space=vmem, size = 0x80000, scoped, tag = 'output window, operand 0']
    loop: start=0, step=1, limit=4
    $region2: #{forward.1} parent=1 // loop_pre_header
      _
    $region3: #{forward.1} parent=1 // loop_header
      %s18 = sphi 0, %s22
      %p19 = scmp.ge.s32.totalorder %s18, 4
      %s28 = sphi 0, %s30
      %s31 = sphi 0, %s28
      %s32 = sphi 0, %s31
      %s48 = sphi 0, %s32
      %s52 = sphi 0, %s52
      %s54 = sphi 0, %s52
      %s55 = sphi 0, %s54
      %s69 = sphi 0, %s55
      %s73 = sphi 0, %s73
      %s75 = sphi 0, %s73
      %s76 = sphi 0, %s75
      %s90 = sphi 0, %s76
      %s94 = sphi 0, %s94
      %s96 = sphi 0, %s94
      %s97 = sphi 0, %s96
      %s111 = sphi 0, %s97
      %s115 = sphi 0, %s115
      %s117 = sphi 0, %s115
      %s118 = sphi 0, %s117
      %s132 = sphi 0, %s118
      %s136 = sphi 0, %s136
      %s138 = sphi 0, %s136
      %s139 = sphi 0, %s138
      %s153 = sphi 0, %s139
      %s157 = sphi 0, %s157
      %s159 = sphi 0, %s157
      %s160 = sphi 0, %s159
      %s174 = sphi 0, %s160
      %s178 = sphi 0, %s178
      %s180 = sphi 0, %s178
      %s181 = sphi 0, %s180
      %s195 = sphi 0, %s181
      %s199 = sphi 0, %s199
      %s201 = sphi 0, %s199
      %s202 = sphi 0, %s201
      %s216 = sphi 0, %s202
      %s220 = sphi 0, %s220
      %s222 = sphi 0, %s220
      %s223 = sphi 0, %s222
      %s237 = sphi 0, %s223
      %s241 = sphi 0, %s241
      %s243 = sphi 0, %s241
      %s244 = sphi 0, %s243
      %s258 = sphi 0, %s244
      %s262 = sphi 0, %s262
      %s264 = sphi 0, %s262
      %s265 = sphi 0, %s264
      %s279 = sphi 0, %s265
      %s285 = sphi 0, %s287
      %s288 = sphi 0, %s285
      %s289 = sphi 0, %s288
      %s305 = sphi 0, %s289
    $region4: #{forward.1} parent=1 // loop_header_branch
      %21 = sbr.rel (%p19) target = $region8
    $region5: #{forward.1} parent=1 // loop_body
      %s23 = ssub.s32 %s18, 1
      %s24 = ssub.s32 %s18, 2
      %s25 = sadd.s32 %s18, 1
      %s26 = ssub.s32 %s18, %s25
      %p27 = scmp.eq.s32.totalorder %s26, 0
      %s29 = sadd.s32 %s28, 1
      %s30 = scalar_select %p27, %s28, %s29
      %p33 = pneg %p27
      %p34 = scmp.eq.s32.totalorder %s18, 1
      %p35 = por %p33, %p34
      %p36 = scmp.ne.s32.totalorder %s28, %s31
      %p37 = scmp.eq.s32.totalorder %s18, 0
      %p38 = por %p36, %p37
      %p39 = scmp.ne.s32.totalorder %s28, %s31
      %p40 = scmp.eq.s32.totalorder %s23, 1
      %p41 = por %p39, %p40
      %p42 = scmp.ne.s32.totalorder %s31, %s32
      %p43 = scmp.eq.s32.totalorder %s23, 0
      %p44 = por %p42, %p43
      %p45 = scmp.ne.s32.totalorder %s31, %s32
      %p46 = scmp.eq.s32.totalorder %s24, 1
      %p47 = por %p45, %p46
      %p49 = scmp.ne.s32.totalorder %s32, %s48
      %p50 = scmp.eq.s32.totalorder %s24, 0
      %p51 = por %p49, %p50
      %s53 = sadd.s32 %s52, 1
      %p56 = scmp.eq.s32.totalorder %s18, 1
      %p57 = scmp.ne.s32.totalorder %s52, %s54
      %p58 = scmp.eq.s32.totalorder %s18, 0
      %p59 = por %p57, %p58
      %p60 = scmp.ne.s32.totalorder %s52, %s54
      %p61 = scmp.eq.s32.totalorder %s23, 1
      %p62 = por %p60, %p61
      %p63 = scmp.ne.s32.totalorder %s54, %s55
      %p64 = scmp.eq.s32.totalorder %s23, 0
      %p65 = por %p63, %p64
      %p66 = scmp.ne.s32.totalorder %s54, %s55
      %p67 = scmp.eq.s32.totalorder %s24, 1
      %p68 = por %p66, %p67
      %p70 = scmp.ne.s32.totalorder %s55, %s69
      %p71 = scmp.eq.s32.totalorder %s24, 0
      %p72 = por %p70, %p71
      %s74 = sadd.s32 %s73, 1
      %p77 = scmp.eq.s32.totalorder %s18, 1
      %p78 = scmp.ne.s32.totalorder %s73, %s75
      %p79 = scmp.eq.s32.totalorder %s18, 0
      %p80 = por %p78, %p79
      %p81 = scmp.ne.s32.totalorder %s73, %s75
      %p82 = scmp.eq.s32.totalorder %s23, 1
      %p83 = por %p81, %p82
      %p84 = scmp.ne.s32.totalorder %s75, %s76
      %p85 = scmp.eq.s32.totalorder %s23, 0
      %p86 = por %p84, %p85
      %p87 = scmp.ne.s32.totalorder %s75, %s76
      %p88 = scmp.eq.s32.totalorder %s24, 1
      %p89 = por %p87, %p88
      %p91 = scmp.ne.s32.totalorder %s76, %s90
      %p92 = scmp.eq.s32.totalorder %s24, 0
      %p93 = por %p91, %p92
      %s95 = sadd.s32 %s94, 1
      %p98 = scmp.eq.s32.totalorder %s18, 1
      %p99 = scmp.ne.s32.totalorder %s94, %s96
      %p100 = scmp.eq.s32.totalorder %s18, 0
      %p101 = por %p99, %p100
      %p102 = scmp.ne.s32.totalorder %s94, %s96
      %p103 = scmp.eq.s32.totalorder %s23, 1
      %p104 = por %p102, %p103
      %p105 = scmp.ne.s32.totalorder %s96, %s97
      %p106 = scmp.eq.s32.totalorder %s23, 0
      %p107 = por %p105, %p106
      %p108 = scmp.ne.s32.totalorder %s96, %s97
      %p109 = scmp.eq.s32.totalorder %s24, 1
      %p110 = por %p108, %p109
      %p112 = scmp.ne.s32.totalorder %s97, %s111
      %p113 = scmp.eq.s32.totalorder %s24, 0
      %p114 = por %p112, %p113
      %s116 = sadd.s32 %s115, 1
      %p119 = scmp.eq.s32.totalorder %s18, 1
      %p120 = scmp.ne.s32.totalorder %s115, %s117
      %p121 = scmp.eq.s32.totalorder %s18, 0
      %p122 = por %p120, %p121
      %p123 = scmp.ne.s32.totalorder %s115, %s117
      %p124 = scmp.eq.s32.totalorder %s23, 1
      %p125 = por %p123, %p124
      %p126 = scmp.ne.s32.totalorder %s117, %s118
      %p127 = scmp.eq.s32.totalorder %s23, 0
      %p128 = por %p126, %p127
      %p129 = scmp.ne.s32.totalorder %s117, %s118
      %p130 = scmp.eq.s32.totalorder %s24, 1
      %p131 = por %p129, %p130
      %p133 = scmp.ne.s32.totalorder %s118, %s132
      %p134 = scmp.eq.s32.totalorder %s24, 0
      %p135 = por %p133, %p134
      %s137 = sadd.s32 %s136, 1
      %p140 = scmp.eq.s32.totalorder %s18, 1
      %p141 = scmp.ne.s32.totalorder %s136, %s138
      %p142 = scmp.eq.s32.totalorder %s18, 0
      %p143 = por %p141, %p142
      %p144 = scmp.ne.s32.totalorder %s136, %s138
      %p145 = scmp.eq.s32.totalorder %s23, 1
      %p146 = por %p144, %p145
      %p147 = scmp.ne.s32.totalorder %s138, %s139
      %p148 = scmp.eq.s32.totalorder %s23, 0
      %p149 = por %p147, %p148
      %p150 = scmp.ne.s32.totalorder %s138, %s139
      %p151 = scmp.eq.s32.totalorder %s24, 1
      %p152 = por %p150, %p151
      %p154 = scmp.ne.s32.totalorder %s139, %s153
      %p155 = scmp.eq.s32.totalorder %s24, 0
      %p156 = por %p154, %p155
      %s158 = sadd.s32 %s157, 1
      %p161 = scmp.eq.s32.totalorder %s18, 1
      %p162 = scmp.ne.s32.totalorder %s157, %s159
      %p163 = scmp.eq.s32.totalorder %s18, 0
      %p164 = por %p162, %p163
      %p165 = scmp.ne.s32.totalorder %s157, %s159
      %p166 = scmp.eq.s32.totalorder %s23, 1
      %p167 = por %p165, %p166
      %p168 = scmp.ne.s32.totalorder %s159, %s160
      %p169 = scmp.eq.s32.totalorder %s23, 0
      %p170 = por %p168, %p169
      %p171 = scmp.ne.s32.totalorder %s159, %s160
      %p172 = scmp.eq.s32.totalorder %s24, 1
      %p173 = por %p171, %p172
      %p175 = scmp.ne.s32.totalorder %s160, %s174
      %p176 = scmp.eq.s32.totalorder %s24, 0
      %p177 = por %p175, %p176
      %s179 = sadd.s32 %s178, 1
      %p182 = scmp.eq.s32.totalorder %s18, 1
      %p183 = scmp.ne.s32.totalorder %s178, %s180
      %p184 = scmp.eq.s32.totalorder %s18, 0
      %p185 = por %p183, %p184
      %p186 = scmp.ne.s32.totalorder %s178, %s180
      %p187 = scmp.eq.s32.totalorder %s23, 1
      %p188 = por %p186, %p187
      %p189 = scmp.ne.s32.totalorder %s180, %s181
      %p190 = scmp.eq.s32.totalorder %s23, 0
      %p191 = por %p189, %p190
      %p192 = scmp.ne.s32.totalorder %s180, %s181
      %p193 = scmp.eq.s32.totalorder %s24, 1
      %p194 = por %p192, %p193
      %p196 = scmp.ne.s32.totalorder %s181, %s195
      %p197 = scmp.eq.s32.totalorder %s24, 0
      %p198 = por %p196, %p197
      %s200 = sadd.s32 %s199, 1
      %p203 = scmp.eq.s32.totalorder %s18, 1
      %p204 = scmp.ne.s32.totalorder %s199, %s201
      %p205 = scmp.eq.s32.totalorder %s18, 0
      %p206 = por %p204, %p205
      %p207 = scmp.ne.s32.totalorder %s199, %s201
      %p208 = scmp.eq.s32.totalorder %s23, 1
      %p209 = por %p207, %p208
      %p210 = scmp.ne.s32.totalorder %s201, %s202
      %p211 = scmp.eq.s32.totalorder %s23, 0
      %p212 = por %p210, %p211
      %p213 = scmp.ne.s32.totalorder %s201, %s202
      %p214 = scmp.eq.s32.totalorder %s24, 1
      %p215 = por %p213, %p214
      %p217 = scmp.ne.s32.totalorder %s202, %s216
      %p218 = scmp.eq.s32.totalorder %s24, 0
      %p219 = por %p217, %p218
      %s221 = sadd.s32 %s220, 1
      %p224 = scmp.eq.s32.totalorder %s18, 1
      %p225 = scmp.ne.s32.totalorder %s220, %s222
      %p226 = scmp.eq.s32.totalorder %s18, 0
      %p227 = por %p225, %p226
      %p228 = scmp.ne.s32.totalorder %s220, %s222
      %p229 = scmp.eq.s32.totalorder %s23, 1
      %p230 = por %p228, %p229
      %p231 = scmp.ne.s32.totalorder %s222, %s223
      %p232 = scmp.eq.s32.totalorder %s23, 0
      %p233 = por %p231, %p232
      %p234 = scmp.ne.s32.totalorder %s222, %s223
      %p235 = scmp.eq.s32.totalorder %s24, 1
      %p236 = por %p234, %p235
      %p238 = scmp.ne.s32.totalorder %s223, %s237
      %p239 = scmp.eq.s32.totalorder %s24, 0
      %p240 = por %p238, %p239
      %s242 = sadd.s32 %s241, 1
      %p245 = scmp.eq.s32.totalorder %s18, 1
      %p246 = scmp.ne.s32.totalorder %s241, %s243
      %p247 = scmp.eq.s32.totalorder %s18, 0
      %p248 = por %p246, %p247
      %p249 = scmp.ne.s32.totalorder %s241, %s243
      %p250 = scmp.eq.s32.totalorder %s23, 1
      %p251 = por %p249, %p250
      %p252 = scmp.ne.s32.totalorder %s243, %s244
      %p253 = scmp.eq.s32.totalorder %s23, 0
      %p254 = por %p252, %p253
      %p255 = scmp.ne.s32.totalorder %s243, %s244
      %p256 = scmp.eq.s32.totalorder %s24, 1
      %p257 = por %p255, %p256
      %p259 = scmp.ne.s32.totalorder %s244, %s258
      %p260 = scmp.eq.s32.totalorder %s24, 0
      %p261 = por %p259, %p260
      %s263 = sadd.s32 %s262, 1
      %p266 = scmp.eq.s32.totalorder %s18, 1
      %p267 = scmp.ne.s32.totalorder %s262, %s264
      %p268 = scmp.eq.s32.totalorder %s18, 0
      %p269 = por %p267, %p268
      %p270 = scmp.ne.s32.totalorder %s262, %s264
      %p271 = scmp.eq.s32.totalorder %s23, 1
      %p272 = por %p270, %p271
      %p273 = scmp.ne.s32.totalorder %s264, %s265
      %p274 = scmp.eq.s32.totalorder %s23, 0
      %p275 = por %p273, %p274
      %p276 = scmp.ne.s32.totalorder %s264, %s265
      %p277 = scmp.eq.s32.totalorder %s24, 1
      %p278 = por %p276, %p277
      %p280 = scmp.ne.s32.totalorder %s265, %s279
      %p281 = scmp.eq.s32.totalorder %s24, 0
      %p282 = por %p280, %p281
      %s283 = ssub.s32 %s18, %s25
      %p284 = scmp.eq.s32.totalorder %s283, 0
      %s286 = sadd.s32 %s285, 1
      %s287 = scalar_select %p284, %s285, %s286
      %p290 = pneg %p284
      %p291 = scmp.eq.s32.totalorder %s18, 1
      %p292 = por %p290, %p291
      %p293 = scmp.ne.s32.totalorder %s285, %s288
      %p294 = scmp.eq.s32.totalorder %s18, 0
      %p295 = por %p293, %p294
      %p296 = scmp.ne.s32.totalorder %s285, %s288
      %p297 = scmp.eq.s32.totalorder %s23, 1
      %p298 = por %p296, %p297
      %p299 = scmp.ne.s32.totalorder %s288, %s289
      %p300 = scmp.eq.s32.totalorder %s23, 0
      %p301 = por %p299, %p300
      %p302 = scmp.ne.s32.totalorder %s288, %s289
      %p303 = scmp.eq.s32.totalorder %s24, 1
      %p304 = por %p302, %p303
      %p306 = scmp.ne.s32.totalorder %s289, %s305
      %p307 = scmp.eq.s32.totalorder %s24, 0
      %p308 = por %p306, %p307
      %p309 = scmp.le.s32.totalorder 1, %s18
      %p310 = scmp.lt.s32.totalorder %s18, 3
      %p311 = pnand %p309, %p310
      %p312 = pneg %p311
      // Predicated region
      $region9: #{forward.1} parent=5 // pred_check
        _
      $region10: #{forward.1} parent=5 // pred_check_branch
        %314 = sbr.rel (%p311) target = $region12
      $region11: #{forward.1} parent=5 // pred_region
        %s315 = ssub.s32 %s18, 1
        // Predicated region
        $region13: #{forward.1} parent=11 // pred_check
          %p316 = pneg %p65
        $region14: #{forward.1} parent=11 // pred_check_branch
          %318 = sbr.rel (%p316) target = $region16
        $region15: #{forward.1} parent=11 // pred_region
          _
        $region16: #{forward.1} parent=11 // pred_fallthru
          _
        // Predicated region
        $region17: #{forward.1} parent=11 // pred_check
          %p319 = pneg %p86
        $region18: #{forward.1} parent=11 // pred_check_branch
          %321 = sbr.rel (%p319) target = $region20
        $region19: #{forward.1} parent=11 // pred_region
          _
        $region20: #{forward.1} parent=11 // pred_fallthru
          _
        // Predicated region
        $region21: #{forward.1} parent=11 // pred_check
          %p322 = pneg %p107
        $region22: #{forward.1} parent=11 // pred_check_branch
          %324 = sbr.rel (%p322) target = $region24
        $region23: #{forward.1} parent=11 // pred_region
          _
        $region24: #{forward.1} parent=11 // pred_fallthru
          _
        // Predicated region
        $region25: #{forward.1} parent=11 // pred_check
          %p325 = pneg %p128
        $region26: #{forward.1} parent=11 // pred_check_branch
          %327 = sbr.rel (%p325) target = $region28
        $region27: #{forward.1} parent=11 // pred_region
          _
        $region28: #{forward.1} parent=11 // pred_fallthru
          _
        // Predicated region
        $region29: #{forward.1} parent=11 // pred_check
          %p328 = pneg %p149
        $region30: #{forward.1} parent=11 // pred_check_branch
          %330 = sbr.rel (%p328) target = $region32
        $region31: #{forward.1} parent=11 // pred_region
          _
        $region32: #{forward.1} parent=11 // pred_fallthru
          _
        // Predicated region
        $region33: #{forward.1} parent=11 // pred_check
          %p331 = pneg %p170
        $region34: #{forward.1} parent=11 // pred_check_branch
          %333 = sbr.rel (%p331) target = $region36
        $region35: #{forward.1} parent=11 // pred_region
          _
        $region36: #{forward.1} parent=11 // pred_fallthru
          _
        // Predicated region
        $region37: #{forward.1} parent=11 // pred_check
          %p334 = pneg %p191
        $region38: #{forward.1} parent=11 // pred_check_branch
          %336 = sbr.rel (%p334) target = $region40
        $region39: #{forward.1} parent=11 // pred_region
          _
        $region40: #{forward.1} parent=11 // pred_fallthru
          _
        // Predicated region
        $region41: #{forward.1} parent=11 // pred_check
          %p337 = pneg %p212
        $region42: #{forward.1} parent=11 // pred_check_branch
          %339 = sbr.rel (%p337) target = $region44
        $region43: #{forward.1} parent=11 // pred_region
          _
        $region44: #{forward.1} parent=11 // pred_fallthru
          _
        // Predicated region
        $region45: #{forward.1} parent=11 // pred_check
          %p340 = pneg %p233
        $region46: #{forward.1} parent=11 // pred_check_branch
          %342 = sbr.rel (%p340) target = $region48
        $region47: #{forward.1} parent=11 // pred_region
          _
        $region48: #{forward.1} parent=11 // pred_fallthru
          _
        // Predicated region
        $region49: #{forward.1} parent=11 // pred_check
          %p343 = pneg %p254
        $region50: #{forward.1} parent=11 // pred_check_branch
          %345 = sbr.rel (%p343) target = $region52
        $region51: #{forward.1} parent=11 // pred_region
          _
        $region52: #{forward.1} parent=11 // pred_fallthru
          _
        // Predicated region
        $region53: #{forward.1} parent=11 // pred_check
          %p346 = pneg %p275
        $region54: #{forward.1} parent=11 // pred_check_branch
          %348 = sbr.rel (%p346) target = $region56
        $region55: #{forward.1} parent=11 // pred_region
          _
        $region56: #{forward.1} parent=11 // pred_fallthru
          _
      $region12: #{forward.1} parent=5 // pred_fallthru
        _
      %p349 = scmp.lt.s32.totalorder %s18, 2
      // Predicated region
      $region57: #{forward.1} parent=5 // pred_check
        %p350 = pneg %p349
      $region58: #{forward.1} parent=5 // pred_check_branch
        %352 = sbr.rel (%p350) target = $region60
      $region59: #{forward.1} parent=5 // pred_region
        // Predicated region
        $region61: #{forward.1} parent=59 // pred_check
          %p353 = pneg %p38
        $region62: #{forward.1} parent=59 // pred_check_branch
          %355 = sbr.rel (%p353) target = $region64
        $region63: #{forward.1} parent=59 // pred_region
          %s356 = sand.u32 %s28, 1
          %s357 = sand.u32 %s28, 1
          %s358 = smul.addr %s357, 512
          %s359 = scalar_lea.vmem [#allocation2], %s358
          %s360 = smul.u32 16, %s18
          %s361 = smul.addr %s360, 8
          %s362 = scalar_lea.vmem %s0, %s361
          // Predicated region
          $region65: #{forward.1} parent=63 // pred_check
            _
          $region66: #{forward.1} parent=63 // pred_check_branch
            %364 = sbr.rel (0) target = $region68
          $region67: #{forward.1} parent=63 // pred_region
            // Predicated region
            $region69: #{forward.1} parent=67 // pred_check
              _
            $region70: #{forward.1} parent=67 // pred_check_branch
              %366 = sbr.rel (0) target = $region72
            $region71: #{forward.1} parent=67 // pred_region
              // Predicated region
              $region84: #{forward.1} parent=71 // pred_check
                _
              $region85: #{forward.1} parent=71 // pred_check_branch
                %507 = sbr.rel (0) target = $region87
              $region86: #{forward.1} parent=71 // pred_region
                loop: start=0, step=1, limit=1
                $region88: #{forward.1} parent=86 // loop_pre_header
                  _
                $region89: #{forward.1} parent=86 // loop_header
                  %s509 = sphi 0, %s513
                  %p510 = scmp.ge.s32.totalorder %s509, 1
                  %s514 = sphi %s362, %s362
                  %s515 = sphi %s359, %s359
                $region90: #{forward.1} parent=86 // loop_header_branch
                  %512 = sbr.rel (%p510) target = $region94
                $region91: #{forward.1} parent=86 // loop_body
                  %v516 = vld [vmem:[%s514] sm:$0xff]
                  %517 = vst [vmem:[%s515] sm:$0xff] %v516
                  %v518 = vld [vmem:[%s514 + $0x8] sm:$0xff]
                  %519 = vst [vmem:[%s515 + $0x8] sm:$0xff] %v518
                  %v520 = vld [vmem:[%s514 + $0x10] sm:$0xff]
                  %521 = vst [vmem:[%s515 + $0x10] sm:$0xff] %v520
                  %v522 = vld [vmem:[%s514 + $0x18] sm:$0xff]
                  %523 = vst [vmem:[%s515 + $0x18] sm:$0xff] %v522
                  %v524 = vld [vmem:[%s514 + $0x20] sm:$0xff]
                  %525 = vst [vmem:[%s515 + $0x20] sm:$0xff] %v524
                  %v526 = vld [vmem:[%s514 + $0x28] sm:$0xff]
                  %527 = vst [vmem:[%s515 + $0x28] sm:$0xff] %v526
                  %v528 = vld [vmem:[%s514 + $0x30] sm:$0xff]
                  %529 = vst [vmem:[%s515 + $0x30] sm:$0xff] %v528
                  %v530 = vld [vmem:[%s514 + $0x38] sm:$0xff]
                  %531 = vst [vmem:[%s515 + $0x38] sm:$0xff] %v530
                  %v532 = vld [vmem:[%s514 + $0x40] sm:$0xff]
                  %533 = vst [vmem:[%s515 + $0x40] sm:$0xff] %v532
                  %v534 = vld [vmem:[%s514 + $0x48] sm:$0xff]
                  %535 = vst [vmem:[%s515 + $0x48] sm:$0xff] %v534
                  %v536 = vld [vmem:[%s514 + $0x50] sm:$0xff]
                  %537 = vst [vmem:[%s515 + $0x50] sm:$0xff] %v536
                  %v538 = vld [vmem:[%s514 + $0x58] sm:$0xff]
                  %539 = vst [vmem:[%s515 + $0x58] sm:$0xff] %v538
                  %v540 = vld [vmem:[%s514 + $0x60] sm:$0xff]
                  %541 = vst [vmem:[%s515 + $0x60] sm:$0xff] %v540
                  %v542 = vld [vmem:[%s514 + $0x68] sm:$0xff]
                  %543 = vst [vmem:[%s515 + $0x68] sm:$0xff] %v542
                  %v544 = vld [vmem:[%s514 + $0x70] sm:$0xff]
                  %545 = vst [vmem:[%s515 + $0x70] sm:$0xff] %v544
                  %v546 = vld [vmem:[%s514 + $0x78] sm:$0xff]
                  %547 = vst [vmem:[%s515 + $0x78] sm:$0xff] %v546
                  %v548 = vld [vmem:[%s514 + $0x100] sm:$0xff]
                  %549 = vst [vmem:[%s515 + $0x80] sm:$0xff] %v548
                  %v550 = vld [vmem:[%s514 + $0x108] sm:$0xff]
                  %551 = vst [vmem:[%s515 + $0x88] sm:$0xff] %v550
                  %v552 = vld [vmem:[%s514 + $0x110] sm:$0xff]
                  %553 = vst [vmem:[%s515 + $0x90] sm:$0xff] %v552
                  %v554 = vld [vmem:[%s514 + $0x118] sm:$0xff]
                  %555 = vst [vmem:[%s515 + $0x98] sm:$0xff] %v554
                  %v556 = vld [vmem:[%s514 + $0x120] sm:$0xff]
                  %557 = vst [vmem:[%s515 + $0xa0] sm:$0xff] %v556
                  %v558 = vld [vmem:[%s514 + $0x128] sm:$0xff]
                  %559 = vst [vmem:[%s515 + $0xa8] sm:$0xff] %v558
                  %v560 = vld [vmem:[%s514 + $0x130] sm:$0xff]
                  %561 = vst [vmem:[%s515 + $0xb0] sm:$0xff] %v560
                  %v562 = vld [vmem:[%s514 + $0x138] sm:$0xff]
                  %563 = vst [vmem:[%s515 + $0xb8] sm:$0xff] %v562
                  %v564 = vld [vmem:[%s514 + $0x140] sm:$0xff]
                  %565 = vst [vmem:[%s515 + $0xc0] sm:$0xff] %v564
                  %v566 = vld [vmem:[%s514 + $0x148] sm:$0xff]
                  %567 = vst [vmem:[%s515 + $0xc8] sm:$0xff] %v566
                  %v568 = vld [vmem:[%s514 + $0x150] sm:$0xff]
                  %569 = vst [vmem:[%s515 + $0xd0] sm:$0xff] %v568
                  %v570 = vld [vmem:[%s514 + $0x158] sm:$0xff]
                  %571 = vst [vmem:[%s515 + $0xd8] sm:$0xff] %v570
                  %v572 = vld [vmem:[%s514 + $0x160] sm:$0xff]
                  %573 = vst [vmem:[%s515 + $0xe0] sm:$0xff] %v572
                  %v574 = vld [vmem:[%s514 + $0x168] sm:$0xff]
                  %575 = vst [vmem:[%s515 + $0xe8] sm:$0xff] %v574
                  %v576 = vld [vmem:[%s514 + $0x170] sm:$0xff]
                  %577 = vst [vmem:[%s515 + $0xf0] sm:$0xff] %v576
                  %v578 = vld [vmem:[%s514 + $0x178] sm:$0xff]
                  %579 = vst [vmem:[%s515 + $0xf8] sm:$0xff] %v578
                  %v580 = vld [vmem:[%s514 + $0x200] sm:$0xff]
                  %581 = vst [vmem:[%s515 + $0x100] sm:$0xff] %v580
                  %v582 = vld [vmem:[%s514 + $0x208] sm:$0xff]
                  %583 = vst [vmem:[%s515 + $0x108] sm:$0xff] %v582
                  %v584 = vld [vmem:[%s514 + $0x210] sm:$0xff]
                  %585 = vst [vmem:[%s515 + $0x110] sm:$0xff] %v584
                  %v586 = vld [vmem:[%s514 + $0x218] sm:$0xff]
                  %587 = vst [vmem:[%s515 + $0x118] sm:$0xff] %v586
                  %v588 = vld [vmem:[%s514 + $0x220] sm:$0xff]
                  %589 = vst [vmem:[%s515 + $0x120] sm:$0xff] %v588
                  %v590 = vld [vmem:[%s514 + $0x228] sm:$0xff]
                  %591 = vst [vmem:[%s515 + $0x128] sm:$0xff] %v590
                  %v592 = vld [vmem:[%s514 + $0x230] sm:$0xff]
                  %593 = vst [vmem:[%s515 + $0x130] sm:$0xff] %v592
                  %v594 = vld [vmem:[%s514 + $0x238] sm:$0xff]
                  %595 = vst [vmem:[%s515 + $0x138] sm:$0xff] %v594
                  %v596 = vld [vmem:[%s514 + $0x240] sm:$0xff]
                  %597 = vst [vmem:[%s515 + $0x140] sm:$0xff] %v596
                  %v598 = vld [vmem:[%s514 + $0x248] sm:$0xff]
                  %599 = vst [vmem:[%s515 + $0x148] sm:$0xff] %v598
                  %v600 = vld [vmem:[%s514 + $0x250] sm:$0xff]
                  %601 = vst [vmem:[%s515 + $0x150] sm:$0xff] %v600
                  %v602 = vld [vmem:[%s514 + $0x258] sm:$0xff]
                  %603 = vst [vmem:[%s515 + $0x158] sm:$0xff] %v602
                  %v604 = vld [vmem:[%s514 + $0x260] sm:$0xff]
                  %605 = vst [vmem:[%s515 + $0x160] sm:$0xff] %v604
                  %v606 = vld [vmem:[%s514 + $0x268] sm:$0xff]
                  %607 = vst [vmem:[%s515 + $0x168] sm:$0xff] %v606
                  %v608 = vld [vmem:[%s514 + $0x270] sm:$0xff]
                  %609 = vst [vmem:[%s515 + $0x170] sm:$0xff] %v608
                  %v610 = vld [vmem:[%s514 + $0x278] sm:$0xff]
                  %611 = vst [vmem:[%s515 + $0x178] sm:$0xff] %v610
                  %v612 = vld [vmem:[%s514 + $0x300] sm:$0xff]
                  %613 = vst [vmem:[%s515 + $0x180] sm:$0xff] %v612
                  %v614 = vld [vmem:[%s514 + $0x308] sm:$0xff]
                  %615 = vst [vmem:[%s515 + $0x188] sm:$0xff] %v614
                  %v616 = vld [vmem:[%s514 + $0x310] sm:$0xff]
                  %617 = vst [vmem:[%s515 + $0x190] sm:$0xff] %v616
                  %v618 = vld [vmem:[%s514 + $0x318] sm:$0xff]
                  %619 = vst [vmem:[%s515 + $0x198] sm:$0xff] %v618
                  %v620 = vld [vmem:[%s514 + $0x320] sm:$0xff]
                  %621 = vst [vmem:[%s515 + $0x1a0] sm:$0xff] %v620
                  %v622 = vld [vmem:[%s514 + $0x328] sm:$0xff]
                  %623 = vst [vmem:[%s515 + $0x1a8] sm:$0xff] %v622
                  %v624 = vld [vmem:[%s514 + $0x330] sm:$0xff]
                  %625 = vst [vmem:[%s515 + $0x1b0] sm:$0xff] %v624
                  %v626 = vld [vmem:[%s514 + $0x338] sm:$0xff]
                  %627 = vst [vmem:[%s515 + $0x1b8] sm:$0xff] %v626
                  %v628 = vld [vmem:[%s514 + $0x340] sm:$0xff]
                  %629 = vst [vmem:[%s515 + $0x1c0] sm:$0xff] %v628
                  %v630 = vld [vmem:[%s514 + $0x348] sm:$0xff]
                  %631 = vst [vmem:[%s515 + $0x1c8] sm:$0xff] %v630
                  %v632 = vld [vmem:[%s514 + $0x350] sm:$0xff]
                  %633 = vst [vmem:[%s515 + $0x1d0] sm:$0xff] %v632
                  %v634 = vld [vmem:[%s514 + $0x358] sm:$0xff]
                  %635 = vst [vmem:[%s515 + $0x1d8] sm:$0xff] %v634
                  %v636 = vld [vmem:[%s514 + $0x360] sm:$0xff]
                  %637 = vst [vmem:[%s515 + $0x1e0] sm:$0xff] %v636
                  %v638 = vld [vmem:[%s514 + $0x368] sm:$0xff]
                  %639 = vst [vmem:[%s515 + $0x1e8] sm:$0xff] %v638
                  %v640 = vld [vmem:[%s514 + $0x370] sm:$0xff]
                  %641 = vst [vmem:[%s515 + $0x1f0] sm:$0xff] %v640
                  %v642 = vld [vmem:[%s514 + $0x378] sm:$0xff]
                  %643 = vst [vmem:[%s515 + $0x1f8] sm:$0xff] %v642
                $region92: #{forward.1} parent=86 // loop_footer
                  %s513 = sadd.s32 1, %s509
                $region93: #{forward.1} parent=86 // loop_footer_branch
                  %508 = sbr.rel target = $region89
                $region94: #{forward.1} parent=86 // loop_exit
                  _
              $region87: #{forward.1} parent=71 // pred_fallthru
                _
              // Predicated region
              $region95: #{forward.1} parent=71 // pred_check
                _
              $region96: #{forward.1} parent=71 // pred_check_branch
                %645 = sbr.rel target = $region98
              $region97: #{forward.1} parent=71 // pred_region
                _
              $region98: #{forward.1} parent=71 // pred_fallthru
                _
            $region72: #{forward.1} parent=67 // pred_fallthru
              _
            // Predicated region
            $region73: #{forward.1} parent=67 // pred_check
              _
            $region74: #{forward.1} parent=67 // pred_check_branch
              %368 = sbr.rel target = $region76
            $region75: #{forward.1} parent=67 // pred_region
              loop: start=0, step=1, limit=1
              $region77: #{forward.1} parent=75 // loop_pre_header
                _
              $region78: #{forward.1} parent=75 // loop_header
                %s371 = sphi 0, %s375
                %p372 = scmp.ge.s32.totalorder %s371, 1
                %s376 = sphi %s362, %s362
                %s377 = sphi %s359, %s359
              $region79: #{forward.1} parent=75 // loop_header_branch
                %374 = sbr.rel (%p372) target = $region83
              $region80: #{forward.1} parent=75 // loop_body
                %v378 = vld [vmem:[%s376] sm:$0xff]
                %379 = vst [vmem:[%s377] sm:$0xff] %v378
                %v380 = vld [vmem:[%s376 + $0x8] sm:$0xff]
                %381 = vst [vmem:[%s377 + $0x8] sm:$0xff] %v380
                %v382 = vld [vmem:[%s376 + $0x10] sm:$0xff]
                %383 = vst [vmem:[%s377 + $0x10] sm:$0xff] %v382
                %v384 = vld [vmem:[%s376 + $0x18] sm:$0xff]
                %385 = vst [vmem:[%s377 + $0x18] sm:$0xff] %v384
                %v386 = vld [vmem:[%s376 + $0x20] sm:$0xff]
                %387 = vst [vmem:[%s377 + $0x20] sm:$0xff] %v386
                %v388 = vld [vmem:[%s376 + $0x28] sm:$0xff]
                %389 = vst [vmem:[%s377 + $0x28] sm:$0xff] %v388
                %v390 = vld [vmem:[%s376 + $0x30] sm:$0xff]
                %391 = vst [vmem:[%s377 + $0x30] sm:$0xff] %v390
                %v392 = vld [vmem:[%s376 + $0x38] sm:$0xff]
                %393 = vst [vmem:[%s377 + $0x38] sm:$0xff] %v392
                %v394 = vld [vmem:[%s376 + $0x40] sm:$0xff]
                %395 = vst [vmem:[%s377 + $0x40] sm:$0xff] %v394
                %v396 = vld [vmem:[%s376 + $0x48] sm:$0xff]
                %397 = vst [vmem:[%s377 + $0x48] sm:$0xff] %v396
                %v398 = vld [vmem:[%s376 + $0x50] sm:$0xff]
                %399 = vst [vmem:[%s377 + $0x50] sm:$0xff] %v398
                %v400 = vld [vmem:[%s376 + $0x58] sm:$0xff]
                %401 = vst [vmem:[%s377 + $0x58] sm:$0xff] %v400
                %v402 = vld [vmem:[%s376 + $0x60] sm:$0xff]
                %403 = vst [vmem:[%s377 + $0x60] sm:$0xff] %v402
                %v404 = vld [vmem:[%s376 + $0x68] sm:$0xff]
                %405 = vst [vmem:[%s377 + $0x68] sm:$0xff] %v404
                %v406 = vld [vmem:[%s376 + $0x70] sm:$0xff]
                %407 = vst [vmem:[%s377 + $0x70] sm:$0xff] %v406
                %v408 = vld [vmem:[%s376 + $0x78] sm:$0xff]
                %409 = vst [vmem:[%s377 + $0x78] sm:$0xff] %v408
                %v410 = vld [vmem:[%s376 + $0x100] sm:$0xff]
                %411 = vst [vmem:[%s377 + $0x80] sm:$0xff] %v410
                %v412 = vld [vmem:[%s376 + $0x108] sm:$0xff]
                %413 = vst [vmem:[%s377 + $0x88] sm:$0xff] %v412
                %v414 = vld [vmem:[%s376 + $0x110] sm:$0xff]
                %415 = vst [vmem:[%s377 + $0x90] sm:$0xff] %v414
                %v416 = vld [vmem:[%s376 + $0x118] sm:$0xff]
                %417 = vst [vmem:[%s377 + $0x98] sm:$0xff] %v416
                %v418 = vld [vmem:[%s376 + $0x120] sm:$0xff]
                %419 = vst [vmem:[%s377 + $0xa0] sm:$0xff] %v418
                %v420 = vld [vmem:[%s376 + $0x128] sm:$0xff]
                %421 = vst [vmem:[%s377 + $0xa8] sm:$0xff] %v420
                %v422 = vld [vmem:[%s376 + $0x130] sm:$0xff]
                %423 = vst [vmem:[%s377 + $0xb0] sm:$0xff] %v422
                %v424 = vld [vmem:[%s376 + $0x138] sm:$0xff]
                %425 = vst [vmem:[%s377 + $0xb8] sm:$0xff] %v424
                %v426 = vld [vmem:[%s376 + $0x140] sm:$0xff]
                %427 = vst [vmem:[%s377 + $0xc0] sm:$0xff] %v426
                %v428 = vld [vmem:[%s376 + $0x148] sm:$0xff]
                %429 = vst [vmem:[%s377 + $0xc8] sm:$0xff] %v428
                %v430 = vld [vmem:[%s376 + $0x150] sm:$0xff]
                %431 = vst [vmem:[%s377 + $0xd0] sm:$0xff] %v430
                %v432 = vld [vmem:[%s376 + $0x158] sm:$0xff]
                %433 = vst [vmem:[%s377 + $0xd8] sm:$0xff] %v432
                %v434 = vld [vmem:[%s376 + $0x160] sm:$0xff]
                %435 = vst [vmem:[%s377 + $0xe0] sm:$0xff] %v434
                %v436 = vld [vmem:[%s376 + $0x168] sm:$0xff]
                %437 = vst [vmem:[%s377 + $0xe8] sm:$0xff] %v436
                %v438 = vld [vmem:[%s376 + $0x170] sm:$0xff]
                %439 = vst [vmem:[%s377 + $0xf0] sm:$0xff] %v438
                %v440 = vld [vmem:[%s376 + $0x178] sm:$0xff]
                %441 = vst [vmem:[%s377 + $0xf8] sm:$0xff] %v440
                %v442 = vld [vmem:[%s376 + $0x200] sm:$0xff]
                %443 = vst [vmem:[%s377 + $0x100] sm:$0xff] %v442
                %v444 = vld [vmem:[%s376 + $0x208] sm:$0xff]
                %445 = vst [vmem:[%s377 + $0x108] sm:$0xff] %v444
                %v446 = vld [vmem:[%s376 + $0x210] sm:$0xff]
                %447 = vst [vmem:[%s377 + $0x110] sm:$0xff] %v446
                %v448 = vld [vmem:[%s376 + $0x218] sm:$0xff]
                %449 = vst [vmem:[%s377 + $0x118] sm:$0xff] %v448
                %v450 = vld [vmem:[%s376 + $0x220] sm:$0xff]
                %451 = vst [vmem:[%s377 + $0x120] sm:$0xff] %v450
                %v452 = vld [vmem:[%s376 + $0x228] sm:$0xff]
                %453 = vst [vmem:[%s377 + $0x128] sm:$0xff] %v452
                %v454 = vld [vmem:[%s376 + $0x230] sm:$0xff]
                %455 = vst [vmem:[%s377 + $0x130] sm:$0xff] %v454
                %v456 = vld [vmem:[%s376 + $0x238] sm:$0xff]
                %457 = vst [vmem:[%s377 + $0x138] sm:$0xff] %v456
                %v458 = vld [vmem:[%s376 + $0x240] sm:$0xff]
                %459 = vst [vmem:[%s377 + $0x140] sm:$0xff] %v458
                %v460 = vld [vmem:[%s376 + $0x248] sm:$0xff]
                %461 = vst [vmem:[%s377 + $0x148] sm:$0xff] %v460
                %v462 = vld [vmem:[%s376 + $0x250] sm:$0xff]
                %463 = vst [vmem:[%s377 + $0x150] sm:$0xff] %v462
                %v464 = vld [vmem:[%s376 + $0x258] sm:$0xff]
                %465 = vst [vmem:[%s377 + $0x158] sm:$0xff] %v464
                %v466 = vld [vmem:[%s376 + $0x260] sm:$0xff]
                %467 = vst [vmem:[%s377 + $0x160] sm:$0xff] %v466
                %v468 = vld [vmem:[%s376 + $0x268] sm:$0xff]
                %469 = vst [vmem:[%s377 + $0x168] sm:$0xff] %v468
                %v470 = vld [vmem:[%s376 + $0x270] sm:$0xff]
                %471 = vst [vmem:[%s377 + $0x170] sm:$0xff] %v470
                %v472 = vld [vmem:[%s376 + $0x278] sm:$0xff]
                %473 = vst [vmem:[%s377 + $0x178] sm:$0xff] %v472
                %v474 = vld [vmem:[%s376 + $0x300] sm:$0xff]
                %475 = vst [vmem:[%s377 + $0x180] sm:$0xff] %v474
                %v476 = vld [vmem:[%s376 + $0x308] sm:$0xff]
                %477 = vst [vmem:[%s377 + $0x188] sm:$0xff] %v476
                %v478 = vld [vmem:[%s376 + $0x310] sm:$0xff]
                %479 = vst [vmem:[%s377 + $0x190] sm:$0xff] %v478
                %v480 = vld [vmem:[%s376 + $0x318] sm:$0xff]
                %481 = vst [vmem:[%s377 + $0x198] sm:$0xff] %v480
                %v482 = vld [vmem:[%s376 + $0x320] sm:$0xff]
                %483 = vst [vmem:[%s377 + $0x1a0] sm:$0xff] %v482
                %v484 = vld [vmem:[%s376 + $0x328] sm:$0xff]
                %485 = vst [vmem:[%s377 + $0x1a8] sm:$0xff] %v484
                %v486 = vld [vmem:[%s376 + $0x330] sm:$0xff]
                %487 = vst [vmem:[%s377 + $0x1b0] sm:$0xff] %v486
                %v488 = vld [vmem:[%s376 + $0x338] sm:$0xff]
                %489 = vst [vmem:[%s377 + $0x1b8] sm:$0xff] %v488
                %v490 = vld [vmem:[%s376 + $0x340] sm:$0xff]
                %491 = vst [vmem:[%s377 + $0x1c0] sm:$0xff] %v490
                %v492 = vld [vmem:[%s376 + $0x348] sm:$0xff]
                %493 = vst [vmem:[%s377 + $0x1c8] sm:$0xff] %v492
                %v494 = vld [vmem:[%s376 + $0x350] sm:$0xff]
                %495 = vst [vmem:[%s377 + $0x1d0] sm:$0xff] %v494
                %v496 = vld [vmem:[%s376 + $0x358] sm:$0xff]
                %497 = vst [vmem:[%s377 + $0x1d8] sm:$0xff] %v496
                %v498 = vld [vmem:[%s376 + $0x360] sm:$0xff]
                %499 = vst [vmem:[%s377 + $0x1e0] sm:$0xff] %v498
                %v500 = vld [vmem:[%s376 + $0x368] sm:$0xff]
                %501 = vst [vmem:[%s377 + $0x1e8] sm:$0xff] %v500
                %v502 = vld [vmem:[%s376 + $0x370] sm:$0xff]
                %503 = vst [vmem:[%s377 + $0x1f0] sm:$0xff] %v502
                %v504 = vld [vmem:[%s376 + $0x378] sm:$0xff]
                %505 = vst [vmem:[%s377 + $0x1f8] sm:$0xff] %v504
              $region81: #{forward.1} parent=75 // loop_footer
                %s375 = sadd.s32 1, %s371
              $region82: #{forward.1} parent=75 // loop_footer_branch
                %370 = sbr.rel target = $region78
              $region83: #{forward.1} parent=75 // loop_exit
                _
            $region76: #{forward.1} parent=67 // pred_fallthru
              _
          $region68: #{forward.1} parent=63 // pred_fallthru
            _
          %646 = vnop
        $region64: #{forward.1} parent=59 // pred_fallthru
          _
      $region60: #{forward.1} parent=5 // pred_fallthru
        _
      %p647 = scmp.le.s32.totalorder 1, %s18
      %p648 = scmp.lt.s32.totalorder %s18, 3
      %p649 = pnand %p647, %p648
      %p650 = pneg %p649
      // Predicated region
      $region99: #{forward.1} parent=5 // pred_check
        _
      $region100: #{forward.1} parent=5 // pred_check_branch
        %652 = sbr.rel (%p649) target = $region102
      $region101: #{forward.1} parent=5 // pred_region
        %s653 = ssub.s32 %s18, 1
        %s654 = sand.u32 %s31, 1
        %s655 = sand.u32 %s31, 1
        %s656 = smul.addr %s655, 512
        %s657 = scalar_lea.vmem [#allocation2], %s656
        // Predicated region
        $region103: #{forward.1} parent=101 // pred_check
          %p658 = pneg %p44
        $region104: #{forward.1} parent=101 // pred_check_branch
          %660 = sbr.rel (%p658) target = $region106
        $region105: #{forward.1} parent=101 // pred_region
          _
        $region106: #{forward.1} parent=101 // pred_fallthru
          _
        %s661 = sand.u32 %s31, 1
        %s662 = sand.u32 %s31, 1
        %s663 = smul.addr %s662, 512
        %s664 = scalar_lea.vmem [#allocation2], %s663
        %p665 = pneg %p44
        %p666 = pneg %p41
        %p667 = pneg %p65
        %p668 = pneg %p62
        %p669 = pneg %p86
        %p670 = pneg %p83
        %p671 = pneg %p107
        %p672 = pneg %p104
        %p673 = pneg %p128
        %p674 = pneg %p125
        %p675 = pneg %p149
        %p676 = pneg %p146
        %p677 = pneg %p170
        %p678 = pneg %p167
        %p679 = pneg %p191
        %p680 = pneg %p188
        %p681 = pneg %p212
        %p682 = pneg %p209
        %p683 = pneg %p233
        %p684 = pneg %p230
        %p685 = pneg %p254
        %p686 = pneg %p251
        %p687 = pneg %p275
        %p688 = pneg %p272
        %p689 = pneg %p301
        %p690 = pneg %p298
        %s691 = sand.u32 %s288, 1
        %s692 = sand.u32 %s288, 1
        %s693 = smul.addr %s692, 512
        %s694 = scalar_lea.vmem [#allocation3], %s693
        %s695 = smul.u32 16, %s23
        %s696 = smul.u32 16, %s23
        %v697 = vld [vmem:[%s657] sm:$0xff]
        %v698 = vld [vmem:[%s657 + $0x8] sm:$0xff]
        %v699 = vld [vmem:[%s657 + $0x10] sm:$0xff]
        %v700 = vld [vmem:[%s657 + $0x18] sm:$0xff]
        %v701 = vld [vmem:[%s657 + $0x20] sm:$0xff]
        %v702 = vld [vmem:[%s657 + $0x28] sm:$0xff]
        %v703 = vld [vmem:[%s657 + $0x30] sm:$0xff]
        %v704 = vld [vmem:[%s657 + $0x38] sm:$0xff]
        %v705 = vld [vmem:[%s657 + $0x40] sm:$0xff]
        %v706 = vld [vmem:[%s657 + $0x48] sm:$0xff]
        %v707 = vld [vmem:[%s657 + $0x50] sm:$0xff]
        %v708 = vld [vmem:[%s657 + $0x58] sm:$0xff]
        %v709 = vld [vmem:[%s657 + $0x60] sm:$0xff]
        %v710 = vld [vmem:[%s657 + $0x68] sm:$0xff]
        %v711 = vld [vmem:[%s657 + $0x70] sm:$0xff]
        %v712 = vld [vmem:[%s657 + $0x78] sm:$0xff]
        %v713 = vld [vmem:[%s657 + $0x80] sm:$0xff]
        %v714 = vld [vmem:[%s657 + $0x88] sm:$0xff]
        %v715 = vld [vmem:[%s657 + $0x90] sm:$0xff]
        %v716 = vld [vmem:[%s657 + $0x98] sm:$0xff]
        %v717 = vld [vmem:[%s657 + $0xa0] sm:$0xff]
        %v718 = vld [vmem:[%s657 + $0xa8] sm:$0xff]
        %v719 = vld [vmem:[%s657 + $0xb0] sm:$0xff]
        %v720 = vld [vmem:[%s657 + $0xb8] sm:$0xff]
        %v721 = vld [vmem:[%s657 + $0xc0] sm:$0xff]
        %v722 = vld [vmem:[%s657 + $0xc8] sm:$0xff]
        %v723 = vld [vmem:[%s657 + $0xd0] sm:$0xff]
        %v724 = vld [vmem:[%s657 + $0xd8] sm:$0xff]
        %v725 = vld [vmem:[%s657 + $0xe0] sm:$0xff]
        %v726 = vld [vmem:[%s657 + $0xe8] sm:$0xff]
        %v727 = vld [vmem:[%s657 + $0xf0] sm:$0xff]
        %v728 = vld [vmem:[%s657 + $0xf8] sm:$0xff]
        %v729 = vld [vmem:[%s657 + $0x100] sm:$0xff]
        %v730 = vld [vmem:[%s657 + $0x108] sm:$0xff]
        %v731 = vld [vmem:[%s657 + $0x110] sm:$0xff]
        %v732 = vld [vmem:[%s657 + $0x118] sm:$0xff]
        %v733 = vld [vmem:[%s657 + $0x120] sm:$0xff]
        %v734 = vld [vmem:[%s657 + $0x128] sm:$0xff]
        %v735 = vld [vmem:[%s657 + $0x130] sm:$0xff]
        %v736 = vld [vmem:[%s657 + $0x138] sm:$0xff]
        %v737 = vld [vmem:[%s657 + $0x140] sm:$0xff]
        %v738 = vld [vmem:[%s657 + $0x148] sm:$0xff]
        %v739 = vld [vmem:[%s657 + $0x150] sm:$0xff]
        %v740 = vld [vmem:[%s657 + $0x158] sm:$0xff]
        %v741 = vld [vmem:[%s657 + $0x160] sm:$0xff]
        %v742 = vld [vmem:[%s657 + $0x168] sm:$0xff]
        %v743 = vld [vmem:[%s657 + $0x170] sm:$0xff]
        %v744 = vld [vmem:[%s657 + $0x178] sm:$0xff]
        %v745 = vld [vmem:[%s657 + $0x180] sm:$0xff]
        %v746 = vld [vmem:[%s657 + $0x188] sm:$0xff]
        %v747 = vld [vmem:[%s657 + $0x190] sm:$0xff]
        %v748 = vld [vmem:[%s657 + $0x198] sm:$0xff]
        %v749 = vld [vmem:[%s657 + $0x1a0] sm:$0xff]
        %v750 = vld [vmem:[%s657 + $0x1a8] sm:$0xff]
        %v751 = vld [vmem:[%s657 + $0x1b0] sm:$0xff]
        %v752 = vld [vmem:[%s657 + $0x1b8] sm:$0xff]
        %v753 = vld [vmem:[%s657 + $0x1c0] sm:$0xff]
        %v754 = vld [vmem:[%s657 + $0x1c8] sm:$0xff]
        %v755 = vld [vmem:[%s657 + $0x1d0] sm:$0xff]
        %v756 = vld [vmem:[%s657 + $0x1d8] sm:$0xff]
        %v757 = vld [vmem:[%s657 + $0x1e0] sm:$0xff]
        %v758 = vld [vmem:[%s657 + $0x1e8] sm:$0xff]
        %v759 = vld [vmem:[%s657 + $0x1f0] sm:$0xff]
        %v760 = vld [vmem:[%s657 + $0x1f8] sm:$0xff]
        %v761 = vld [vmem:[%s1] sm:$0xf]
        %v762 = vld [vmem:[%s2] sm:$0x1]
        %v764 = vlaneseq
        %v765 = vshrl.u32 %v764, 7
        %v766 = vsub.s32 0, %v765
        %v767 = vrot.slane %v762, %v766
        %vm769 = vcmask 31744
        %v771 = vsel %vm769, %v697, 0
        %v774 = vsel %vm769, %v698, 0
        %v777 = vsel %vm769, %v699, 0
        %v780 = vsel %vm769, %v700, 0
        %v783 = vsel %vm769, %v701, 0
        %v786 = vsel %vm769, %v702, 0
        %v789 = vsel %vm769, %v703, 0
        %v792 = vsel %vm769, %v704, 0
        %v795 = vsel %vm769, %v705, 0
        %v798 = vsel %vm769, %v706, 0
        %v801 = vsel %vm769, %v707, 0
        %v804 = vsel %vm769, %v708, 0
        %v807 = vsel %vm769, %v709, 0
        %v810 = vsel %vm769, %v710, 0
        %v813 = vsel %vm769, %v711, 0
        %v816 = vsel %vm769, %v712, 0
        %v819 = vsel %vm769, %v713, 0
        %v822 = vsel %vm769, %v714, 0
        %v825 = vsel %vm769, %v715, 0
        %v828 = vsel %vm769, %v716, 0
        %v831 = vsel %vm769, %v717, 0
        %v834 = vsel %vm769, %v718, 0
        %v837 = vsel %vm769, %v719, 0
        %v840 = vsel %vm769, %v720, 0
        %v843 = vsel %vm769, %v721, 0
        %v846 = vsel %vm769, %v722, 0
        %v849 = vsel %vm769, %v723, 0
        %v852 = vsel %vm769, %v724, 0
        %v855 = vsel %vm769, %v725, 0
        %v858 = vsel %vm769, %v726, 0
        %v861 = vsel %vm769, %v727, 0
        %v864 = vsel %vm769, %v728, 0
        %v867 = vsel %vm769, %v729, 0
        %v870 = vsel %vm769, %v730, 0
        %v873 = vsel %vm769, %v731, 0
        %v876 = vsel %vm769, %v732, 0
        %v879 = vsel %vm769, %v733, 0
        %v882 = vsel %vm769, %v734, 0
        %v885 = vsel %vm769, %v735, 0
        %v888 = vsel %vm769, %v736, 0
        %v891 = vsel %vm769, %v737, 0
        %v894 = vsel %vm769, %v738, 0
        %v897 = vsel %vm769, %v739, 0
        %v900 = vsel %vm769, %v740, 0
        %v903 = vsel %vm769, %v741, 0
        %v906 = vsel %vm769, %v742, 0
        %v909 = vsel %vm769, %v743, 0
        %v912 = vsel %vm769, %v744, 0
        %v915 = vsel %vm769, %v745, 0
        %v918 = vsel %vm769, %v746, 0
        %v921 = vsel %vm769, %v747, 0
        %v924 = vsel %vm769, %v748, 0
        %v927 = vsel %vm769, %v749, 0
        %v930 = vsel %vm769, %v750, 0
        %v933 = vsel %vm769, %v751, 0
        %v936 = vsel %vm769, %v752, 0
        %v939 = vsel %vm769, %v753, 0
        %v942 = vsel %vm769, %v754, 0
        %v945 = vsel %vm769, %v755, 0
        %v948 = vsel %vm769, %v756, 0
        %v951 = vsel %vm769, %v757, 0
        %v954 = vsel %vm769, %v758, 0
        %v957 = vsel %vm769, %v759, 0
        %v960 = vsel %vm769, %v760, 0
        %vm962 = vcmask 1043456
        %v964 = vsel %vm962, %v761, 0
        %966 = vmatprep.subr.mxu0 0.0
        %967 = vmatpush1.msra.mxu0 %v964
        %968 = vmatprep.subr.mxu0 0.0
        %969 = vmatpush1.msra.mxu0 0.0
        %970 = vmatprep.subr.mxu0 0.0
        %971 = vmatpush1.msra.mxu0 0.0
        %972 = vmatprep.subr.mxu0 0.0
        %973 = vmatpush1.msra.mxu0 0.0
        %974 = vmatprep.subr.mxu0 0.0
        %975 = vmatpush1.msra.mxu0 0.0
        %976 = vmatprep.subr.mxu0 0.0
        %977 = vmatpush1.msra.mxu0 0.0
        %978 = vmatprep.subr.mxu0 0.0
        %979 = vmatpush1.msra.mxu0 0.0
        %980 = vmatprep.subr.mxu0 0.0
        %981 = vmatpush1.msra.mxu0 0.0
        %982 = vmatprep.subr.mxu0 0.0
        %983 = vmatpush1.msra.mxu0 0.0
        %984 = vmatprep.subr.mxu0 0.0
        %985 = vmatpush1.msra.mxu0 0.0
        %986 = vmatprep.subr.mxu0 0.0
        %987 = vmatpush1.msra.mxu0 0.0
        %988 = vmatprep.subr.mxu0 0.0
        %989 = vmatpush1.msra.mxu0 0.0
        %990 = vmatprep.subr.mxu0 0.0
        %991 = vmatpush1.msra.mxu0 0.0
        %992 = vmatprep.subr.mxu0 0.0
        %993 = vmatpush1.msra.mxu0 0.0
        %994 = vmatprep.subr.mxu0 0.0
        %995 = vmatpush1.msra.mxu0 0.0
        %996 = vmatprep.subr.mxu0 0.0
        %997 = vmatpush1.msra.mxu0 0.0
        %998 = vmatprep.subr.mxu0 0.0
        %999 = vmatpush1.msra.mxu0 0.0
        %1000 = vmatprep.subr.mxu0 0.0
        %1001 = vmatpush1.msra.mxu0 0.0
        %1002 = vmatprep.subr.mxu0 0.0
        %1003 = vmatpush1.msra.mxu0 0.0
        %1004 = vmatprep.subr.mxu0 0.0
        %1005 = vmatpush1.msra.mxu0 0.0
        %1006 = vmatprep.subr.mxu0 0.0
        %1007 = vmatpush1.msra.mxu0 0.0
        %1008 = vmatprep.subr.mxu0 0.0
        %1009 = vmatpush1.msra.mxu0 0.0
        %1010 = vmatprep.subr.mxu0 0.0
        %1011 = vmatpush1.msra.mxu0 0.0
        %1012 = vmatprep.subr.mxu0 0.0
        %1013 = vmatpush1.msra.mxu0 0.0
        %1014 = vmatprep.subr.mxu0 0.0
        %1015 = vmatpush1.msra.mxu0 0.0
        %1016 = vmatprep.subr.mxu0 0.0
        %1017 = vmatpush1.msra.mxu0 0.0
        %1018 = vmatprep.subr.mxu0 0.0
        %1019 = vmatpush1.msra.mxu0 0.0
        %1020 = vmatprep.subr.mxu0 0.0
        %1021 = vmatpush1.msra.mxu0 0.0
        %1022 = vmatprep.subr.mxu0 0.0
        %1023 = vmatpush1.msra.mxu0 0.0
        %1024 = vmatprep.subr.mxu0 0.0
        %1025 = vmatpush1.msra.mxu0 0.0
        %1026 = vmatprep.subr.mxu0 0.0
        %1027 = vmatpush1.msra.mxu0 0.0
        %1028 = vmatprep.subr.mxu0 0.0
        %1029 = vmatpush1.msra.mxu0 0.0
        %1030 = vmatprep.mubr.f32.mxu0 0.0
        %1031 = vmatmul.mubr.f32.gmra.mrb[0].mxu0 %v771
        %v1032 = vpop.f32.mrb[0].mxu0
        %v1033 = vadd.f32 %v767, %v1032
        %v1034 = vpop.f32.mrb[0].mxu0
        %1035 = vmatprep.mubr.f32.mxu0 0.0
        %1036 = vmatmul.mubr.f32.gmra.mrb[0].mxu0 %v774
        %v1037 = vpop.f32.mrb[0].mxu0
        %v1038 = vadd.f32 %v767, %v1037
        %v1039 = vpop.f32.mrb[0].mxu0
        %1040 = vmatprep.mubr.f32.mxu0 0.0
        %1041 = vmatmul.mubr.f32.gmra.mrb[0].mxu0 %v777
        %v1042 = vpop.f32.mrb[0].mxu0
        %v1043 = vadd.f32 %v767, %v1042
        %v1044 = vpop.f32.mrb[0].mxu0
        %1045 = vmatprep.mubr.f32.mxu0 0.0
        %1046 = vmatmul.mubr.f32.gmra.mrb[0].mxu0 %v780
        %v1047 = vpop.f32.mrb[0].mxu0
        %v1048 = vadd.f32 %v767, %v1047
        %v1049 = vpop.f32.mrb[0].mxu0
        %1050 = vmatprep.mubr.f32.mxu0 0.0
        %1051 = vmatmul.mubr.f32.gmra.mrb[0].mxu0 %v783
        %v1052 = vpop.f32.mrb[0].mxu0
        %v1053 = vadd.f32 %v767, %v1052
        %v1054 = vpop.f32.mrb[0].mxu0
        %1055 = vmatprep.mubr.f32.mxu0 0.0
        %1056 = vmatmul.mubr.f32.gmra.mrb[0].mxu0 %v786
        %v1057 = vpop.f32.mrb[0].mxu0
        %v1058 = vadd.f32 %v767, %v1057
        %v1059 = vpop.f32.mrb[0].mxu0
        %1060 = vmatprep.mubr.f32.mxu0 0.0
        %1061 = vmatmul.mubr.f32.gmra.mrb[0].mxu0 %v789
        %v1062 = vpop.f32.mrb[0].mxu0
        %v1063 = vadd.f32 %v767, %v1062
        %v1064 = vpop.f32.mrb[0].mxu0
        %1065 = vmatprep.mubr.f32.mxu0 0.0
        %1066 = vmatmul.mubr.f32.gmra.mrb[0].mxu0 %v792
        %v1067 = vpop.f32.mrb[0].mxu0
        %v1068 = vadd.f32 %v767, %v1067
        %v1069 = vpop.f32.mrb[0].mxu0
        %1070 = vmatprep.mubr.f32.mxu0 0.0
        %1071 = vmatmul.mubr.f32.gmra.mrb[0].mxu0 %v795
        %v1072 = vpop.f32.mrb[0].mxu0
        %v1073 = vadd.f32 %v767, %v1072
        %v1074 = vpop.f32.mrb[0].mxu0
        %1075 = vmatprep.mubr.f32.mxu0 0.0
        %1076 = vmatmul.mubr.f32.gmra.mrb[0].mxu0 %v798
        %v1077 = vpop.f32.mrb[0].mxu0
        %v1078 = vadd.f32 %v767, %v1077
        %v1079 = vpop.f32.mrb[0].mxu0
        %1080 = vmatprep.mubr.f32.mxu0 0.0
        %1081 = vmatmul.mubr.f32.gmra.mrb[0].mxu0 %v801
        %v1082 = vpop.f32.mrb[0].mxu0
        %v1083 = vadd.f32 %v767, %v1082
        %v1084 = vpop.f32.mrb[0].mxu0
        %1085 = vmatprep.mubr.f32.mxu0 0.0
        %1086 = vmatmul.mubr.f32.gmra.mrb[0].mxu0 %v804
        %v1087 = vpop.f32.mrb[0].mxu0
        %v1088 = vadd.f32 %v767, %v1087
        %v1089 = vpop.f32.mrb[0].mxu0
        %1090 = vmatprep.mubr.f32.mxu0 0.0
        %1091 = vmatmul.mubr.f32.gmra.mrb[0].mxu0 %v807
        %v1092 = vpop.f32.mrb[0].mxu0
        %v1093 = vadd.f32 %v767, %v1092
        %v1094 = vpop.f32.mrb[0].mxu0
        %1095 = vmatprep.mubr.f32.mxu0 0.0
        %1096 = vmatmul.mubr.f32.gmra.mrb[0].mxu0 %v810
        %v1097 = vpop.f32.mrb[0].mxu0
        %v1098 = vadd.f32 %v767, %v1097
        %v1099 = vpop.f32.mrb[0].mxu0
        %1100 = vmatprep.mubr.f32.mxu0 0.0
        %1101 = vmatmul.mubr.f32.gmra.mrb[0].mxu0 %v813
        %v1102 = vpop.f32.mrb[0].mxu0
        %v1103 = vadd.f32 %v767, %v1102
        %v1104 = vpop.f32.mrb[0].mxu0
        %1105 = vmatprep.mubr.f32.mxu0 0.0
        %1106 = vmatmul.mubr.f32.gmra.mrb[0].mxu0 %v816
        %v1107 = vpop.f32.mrb[0].mxu0
        %v1108 = vadd.f32 %v767, %v1107
        %v1109 = vpop.f32.mrb[0].mxu0
        %1110 = vmatprep.mubr.f32.mxu0 0.0
        %1111 = vmatmul.mubr.f32.gmra.mrb[0].mxu0 %v819
        %v1112 = vpop.f32.mrb[0].mxu0
        %v1113 = vadd.f32 %v767, %v1112
        %v1114 = vpop.f32.mrb[0].mxu0
        %1115 = vmatprep.mubr.f32.mxu0 0.0
        %1116 = vmatmul.mubr.f32.gmra.mrb[0].mxu0 %v822
        %v1117 = vpop.f32.mrb[0].mxu0
        %v1118 = vadd.f32 %v767, %v1117
        %v1119 = vpop.f32.mrb[0].mxu0
        %1120 = vmatprep.mubr.f32.mxu0 0.0
        %1121 = vmatmul.mubr.f32.gmra.mrb[0].mxu0 %v825
        %v1122 = vpop.f32.mrb[0].mxu0
        %v1123 = vadd.f32 %v767, %v1122
        %v1124 = vpop.f32.mrb[0].mxu0
        %1125 = vmatprep.mubr.f32.mxu0 0.0
        %1126 = vmatmul.mubr.f32.gmra.mrb[0].mxu0 %v828
        %v1127 = vpop.f32.mrb[0].mxu0
        %v1128 = vadd.f32 %v767, %v1127
        %v1129 = vpop.f32.mrb[0].mxu0
        %1130 = vmatprep.mubr.f32.mxu0 0.0
        %1131 = vmatmul.mubr.f32.gmra.mrb[0].mxu0 %v831
        %v1132 = vpop.f32.mrb[0].mxu0
        %v1133 = vadd.f32 %v767, %v1132
        %v1134 = vpop.f32.mrb[0].mxu0
        %1135 = vmatprep.mubr.f32.mxu0 0.0
        %1136 = vmatmul.mubr.f32.gmra.mrb[0].mxu0 %v834
        %v1137 = vpop.f32.mrb[0].mxu0
        %v1138 = vadd.f32 %v767, %v1137
        %v1139 = vpop.f32.mrb[0].mxu0
        %1140 = vmatprep.mubr.f32.mxu0 0.0
        %1141 = vmatmul.mubr.f32.gmra.mrb[0].mxu0 %v837
        %v1142 = vpop.f32.mrb[0].mxu0
        %v1143 = vadd.f32 %v767, %v1142
        %v1144 = vpop.f32.mrb[0].mxu0
        %1145 = vmatprep.mubr.f32.mxu0 0.0
        %1146 = vmatmul.mubr.f32.gmra.mrb[0].mxu0 %v840
        %v1147 = vpop.f32.mrb[0].mxu0
        %v1148 = vadd.f32 %v767, %v1147
        %v1149 = vpop.f32.mrb[0].mxu0
        %1150 = vmatprep.mubr.f32.mxu0 0.0
        %1151 = vmatmul.mubr.f32.gmra.mrb[0].mxu0 %v843
        %v1152 = vpop.f32.mrb[0].mxu0
        %v1153 = vadd.f32 %v767, %v1152
        %v1154 = vpop.f32.mrb[0].mxu0
        %1155 = vmatprep.mubr.f32.mxu0 0.0
        %1156 = vmatmul.mubr.f32.gmra.mrb[0].mxu0 %v846
        %v1157 = vpop.f32.mrb[0].mxu0
        %v1158 = vadd.f32 %v767, %v1157
        %v1159 = vpop.f32.mrb[0].mxu0
        %1160 = vmatprep.mubr.f32.mxu0 0.0
        %1161 = vmatmul.mubr.f32.gmra.mrb[0].mxu0 %v849
        %v1162 = vpop.f32.mrb[0].mxu0
        %v1163 = vadd.f32 %v767, %v1162
        %v1164 = vpop.f32.mrb[0].mxu0
        %1165 = vmatprep.mubr.f32.mxu0 0.0
        %1166 = vmatmul.mubr.f32.gmra.mrb[0].mxu0 %v852
        %v1167 = vpop.f32.mrb[0].mxu0
        %v1168 = vadd.f32 %v767, %v1167
        %v1169 = vpop.f32.mrb[0].mxu0
        %1170 = vmatprep.mubr.f32.mxu0 0.0
        %1171 = vmatmul.mubr.f32.gmra.mrb[0].mxu0 %v855
        %v1172 = vpop.f32.mrb[0].mxu0
        %v1173 = vadd.f32 %v767, %v1172
        %v1174 = vpop.f32.mrb[0].mxu0
        %1175 = vmatprep.mubr.f32.mxu0 0.0
        %1176 = vmatmul.mubr.f32.gmra.mrb[0].mxu0 %v858
        %v1177 = vpop.f32.mrb[0].mxu0
        %v1178 = vadd.f32 %v767, %v1177
        %v1179 = vpop.f32.mrb[0].mxu0
        %1180 = vmatprep.mubr.f32.mxu0 0.0
        %1181 = vmatmul.mubr.f32.gmra.mrb[0].mxu0 %v861
        %v1182 = vpop.f32.mrb[0].mxu0
        %v1183 = vadd.f32 %v767, %v1182
        %v1184 = vpop.f32.mrb[0].mxu0
        %1185 = vmatprep.mubr.f32.mxu0 0.0
        %1186 = vmatmul.mubr.f32.gmra.mrb[0].mxu0 %v864
        %v1187 = vpop.f32.mrb[0].mxu0
        %v1188 = vadd.f32 %v767, %v1187
        %v1189 = vpop.f32.mrb[0].mxu0
        %1190 = vmatprep.mubr.f32.mxu0 0.0
        %1191 = vmatmul.mubr.f32.gmra.mrb[0].mxu0 %v867
        %v1192 = vpop.f32.mrb[0].mxu0
        %v1193 = vadd.f32 %v767, %v1192
        %v1194 = vpop.f32.mrb[0].mxu0
        %1195 = vmatprep.mubr.f32.mxu0 0.0
        %1196 = vmatmul.mubr.f32.gmra.mrb[0].mxu0 %v870
        %v1197 = vpop.f32.mrb[0].mxu0
        %v1198 = vadd.f32 %v767, %v1197
        %v1199 = vpop.f32.mrb[0].mxu0
        %1200 = vmatprep.mubr.f32.mxu0 0.0
        %1201 = vmatmul.mubr.f32.gmra.mrb[0].mxu0 %v873
        %v1202 = vpop.f32.mrb[0].mxu0
        %v1203 = vadd.f32 %v767, %v1202
        %v1204 = vpop.f32.mrb[0].mxu0
        %1205 = vmatprep.mubr.f32.mxu0 0.0
        %1206 = vmatmul.mubr.f32.gmra.mrb[0].mxu0 %v876
        %v1207 = vpop.f32.mrb[0].mxu0
        %v1208 = vadd.f32 %v767, %v1207
        %v1209 = vpop.f32.mrb[0].mxu0
        %1210 = vmatprep.mubr.f32.mxu0 0.0
        %1211 = vmatmul.mubr.f32.gmra.mrb[0].mxu0 %v879
        %v1212 = vpop.f32.mrb[0].mxu0
        %v1213 = vadd.f32 %v767, %v1212
        %v1214 = vpop.f32.mrb[0].mxu0
        %1215 = vmatprep.mubr.f32.mxu0 0.0
        %1216 = vmatmul.mubr.f32.gmra.mrb[0].mxu0 %v882
        %v1217 = vpop.f32.mrb[0].mxu0
        %v1218 = vadd.f32 %v767, %v1217
        %v1219 = vpop.f32.mrb[0].mxu0
        %1220 = vmatprep.mubr.f32.mxu0 0.0
        %1221 = vmatmul.mubr.f32.gmra.mrb[0].mxu0 %v885
        %v1222 = vpop.f32.mrb[0].mxu0
        %v1223 = vadd.f32 %v767, %v1222
        %v1224 = vpop.f32.mrb[0].mxu0
        %1225 = vmatprep.mubr.f32.mxu0 0.0
        %1226 = vmatmul.mubr.f32.gmra.mrb[0].mxu0 %v888
        %v1227 = vpop.f32.mrb[0].mxu0
        %v1228 = vadd.f32 %v767, %v1227
        %v1229 = vpop.f32.mrb[0].mxu0
        %1230 = vmatprep.mubr.f32.mxu0 0.0
        %1231 = vmatmul.mubr.f32.gmra.mrb[0].mxu0 %v891
        %v1232 = vpop.f32.mrb[0].mxu0
        %v1233 = vadd.f32 %v767, %v1232
        %v1234 = vpop.f32.mrb[0].mxu0
        %1235 = vmatprep.mubr.f32.mxu0 0.0
        %1236 = vmatmul.mubr.f32.gmra.mrb[0].mxu0 %v894
        %v1237 = vpop.f32.mrb[0].mxu0
        %v1238 = vadd.f32 %v767, %v1237
        %v1239 = vpop.f32.mrb[0].mxu0
        %1240 = vmatprep.mubr.f32.mxu0 0.0
        %1241 = vmatmul.mubr.f32.gmra.mrb[0].mxu0 %v897
        %v1242 = vpop.f32.mrb[0].mxu0
        %v1243 = vadd.f32 %v767, %v1242
        %v1244 = vpop.f32.mrb[0].mxu0
        %1245 = vmatprep.mubr.f32.mxu0 0.0
        %1246 = vmatmul.mubr.f32.gmra.mrb[0].mxu0 %v900
        %v1247 = vpop.f32.mrb[0].mxu0
        %v1248 = vadd.f32 %v767, %v1247
        %v1249 = vpop.f32.mrb[0].mxu0
        %1250 = vmatprep.mubr.f32.mxu0 0.0
        %1251 = vmatmul.mubr.f32.gmra.mrb[0].mxu0 %v903
        %v1252 = vpop.f32.mrb[0].mxu0
        %v1253 = vadd.f32 %v767, %v1252
        %v1254 = vpop.f32.mrb[0].mxu0
        %1255 = vmatprep.mubr.f32.mxu0 0.0
        %1256 = vmatmul.mubr.f32.gmra.mrb[0].mxu0 %v906
        %v1257 = vpop.f32.mrb[0].mxu0
        %v1258 = vadd.f32 %v767, %v1257
        %v1259 = vpop.f32.mrb[0].mxu0
        %1260 = vmatprep.mubr.f32.mxu0 0.0
        %1261 = vmatmul.mubr.f32.gmra.mrb[0].mxu0 %v909
        %v1262 = vpop.f32.mrb[0].mxu0
        %v1263 = vadd.f32 %v767, %v1262
        %v1264 = vpop.f32.mrb[0].mxu0
        %1265 = vmatprep.mubr.f32.mxu0 0.0
        %1266 = vmatmul.mubr.f32.gmra.mrb[0].mxu0 %v912
        %v1267 = vpop.f32.mrb[0].mxu0
        %v1268 = vadd.f32 %v767, %v1267
        %v1269 = vpop.f32.mrb[0].mxu0
        %1270 = vmatprep.mubr.f32.mxu0 0.0
        %1271 = vmatmul.mubr.f32.gmra.mrb[0].mxu0 %v915
        %v1272 = vpop.f32.mrb[0].mxu0
        %v1273 = vadd.f32 %v767, %v1272
        %v1274 = vpop.f32.mrb[0].mxu0
        %1275 = vmatprep.mubr.f32.mxu0 0.0
        %1276 = vmatmul.mubr.f32.gmra.mrb[0].mxu0 %v918
        %v1277 = vpop.f32.mrb[0].mxu0
        %v1278 = vadd.f32 %v767, %v1277
        %v1279 = vpop.f32.mrb[0].mxu0
        %1280 = vmatprep.mubr.f32.mxu0 0.0
        %1281 = vmatmul.mubr.f32.gmra.mrb[0].mxu0 %v921
        %v1282 = vpop.f32.mrb[0].mxu0
        %v1283 = vadd.f32 %v767, %v1282
        %v1284 = vpop.f32.mrb[0].mxu0
        %1285 = vmatprep.mubr.f32.mxu0 0.0
        %1286 = vmatmul.mubr.f32.gmra.mrb[0].mxu0 %v924
        %v1287 = vpop.f32.mrb[0].mxu0
        %v1288 = vadd.f32 %v767, %v1287
        %v1289 = vpop.f32.mrb[0].mxu0
        %1290 = vmatprep.mubr.f32.mxu0 0.0
        %1291 = vmatmul.mubr.f32.gmra.mrb[0].mxu0 %v927
        %v1292 = vpop.f32.mrb[0].mxu0
        %v1293 = vadd.f32 %v767, %v1292
        %v1294 = vpop.f32.mrb[0].mxu0
        %1295 = vmatprep.mubr.f32.mxu0 0.0
        %1296 = vmatmul.mubr.f32.gmra.mrb[0].mxu0 %v930
        %v1297 = vpop.f32.mrb[0].mxu0
        %v1298 = vadd.f32 %v767, %v1297
        %v1299 = vpop.f32.mrb[0].mxu0
        %1300 = vmatprep.mubr.f32.mxu0 0.0
        %1301 = vmatmul.mubr.f32.gmra.mrb[0].mxu0 %v933
        %v1302 = vpop.f32.mrb[0].mxu0
        %v1303 = vadd.f32 %v767, %v1302
        %v1304 = vpop.f32.mrb[0].mxu0
        %1305 = vmatprep.mubr.f32.mxu0 0.0
        %1306 = vmatmul.mubr.f32.gmra.mrb[0].mxu0 %v936
        %v1307 = vpop.f32.mrb[0].mxu0
        %v1308 = vadd.f32 %v767, %v1307
        %v1309 = vpop.f32.mrb[0].mxu0
        %1310 = vmatprep.mubr.f32.mxu0 0.0
        %1311 = vmatmul.mubr.f32.gmra.mrb[0].mxu0 %v939
        %v1312 = vpop.f32.mrb[0].mxu0
        %v1313 = vadd.f32 %v767, %v1312
        %v1314 = vpop.f32.mrb[0].mxu0
        %1315 = vmatprep.mubr.f32.mxu0 0.0
        %1316 = vmatmul.mubr.f32.gmra.mrb[0].mxu0 %v942
        %v1317 = vpop.f32.mrb[0].mxu0
        %v1318 = vadd.f32 %v767, %v1317
        %v1319 = vpop.f32.mrb[0].mxu0
        %1320 = vmatprep.mubr.f32.mxu0 0.0
        %1321 = vmatmul.mubr.f32.gmra.mrb[0].mxu0 %v945
        %v1322 = vpop.f32.mrb[0].mxu0
        %v1323 = vadd.f32 %v767, %v1322
        %v1324 = vpop.f32.mrb[0].mxu0
        %1325 = vmatprep.mubr.f32.mxu0 0.0
        %1326 = vmatmul.mubr.f32.gmra.mrb[0].mxu0 %v948
        %v1327 = vpop.f32.mrb[0].mxu0
        %v1328 = vadd.f32 %v767, %v1327
        %v1329 = vpop.f32.mrb[0].mxu0
        %1330 = vmatprep.mubr.f32.mxu0 0.0
        %1331 = vmatmul.mubr.f32.gmra.mrb[0].mxu0 %v951
        %v1332 = vpop.f32.mrb[0].mxu0
        %v1333 = vadd.f32 %v767, %v1332
        %v1334 = vpop.f32.mrb[0].mxu0
        %1335 = vmatprep.mubr.f32.mxu0 0.0
        %1336 = vmatmul.mubr.f32.gmra.mrb[0].mxu0 %v954
        %v1337 = vpop.f32.mrb[0].mxu0
        %v1338 = vadd.f32 %v767, %v1337
        %v1339 = vpop.f32.mrb[0].mxu0
        %1340 = vmatprep.mubr.f32.mxu0 0.0
        %1341 = vmatmul.mubr.f32.gmra.mrb[0].mxu0 %v957
        %v1342 = vpop.f32.mrb[0].mxu0
        %v1343 = vadd.f32 %v767, %v1342
        %v1344 = vpop.f32.mrb[0].mxu0
        %1345 = vmatprep.mubr.f32.mxu0 0.0
        %1346 = vmatmul.mubr.f32.gmra.mrb[0].mxu0 %v960
        %v1347 = vpop.f32.mrb[0].mxu0
        %v1348 = vadd.f32 %v767, %v1347
        %v1349 = vpop.f32.mrb[0].mxu0
        %1350 = vdwg.mxu0
        %v1351 = vmax.f32 %v1033, 0.0
        %v1352 = vmax.f32 %v1038, 0.0
        %v1353 = vmax.f32 %v1043, 0.0
        %v1354 = vmax.f32 %v1048, 0.0
        %v1355 = vmax.f32 %v1053, 0.0
        %v1356 = vmax.f32 %v1058, 0.0
        %v1357 = vmax.f32 %v1063, 0.0
        %v1358 = vmax.f32 %v1068, 0.0
        %v1359 = vmax.f32 %v1073, 0.0
        %v1360 = vmax.f32 %v1078, 0.0
        %v1361 = vmax.f32 %v1083, 0.0
        %v1362 = vmax.f32 %v1088, 0.0
        %v1363 = vmax.f32 %v1093, 0.0
        %v1364 = vmax.f32 %v1098, 0.0
        %v1365 = vmax.f32 %v1103, 0.0
        %v1366 = vmax.f32 %v1108, 0.0
        %v1367 = vmax.f32 %v1113, 0.0
        %v1368 = vmax.f32 %v1118, 0.0
        %v1369 = vmax.f32 %v1123, 0.0
        %v1370 = vmax.f32 %v1128, 0.0
        %v1371 = vmax.f32 %v1133, 0.0
        %v1372 = vmax.f32 %v1138, 0.0
        %v1373 = vmax.f32 %v1143, 0.0
        %v1374 = vmax.f32 %v1148, 0.0
        %v1375 = vmax.f32 %v1153, 0.0
        %v1376 = vmax.f32 %v1158, 0.0
        %v1377 = vmax.f32 %v1163, 0.0
        %v1378 = vmax.f32 %v1168, 0.0
        %v1379 = vmax.f32 %v1173, 0.0
        %v1380 = vmax.f32 %v1178, 0.0
        %v1381 = vmax.f32 %v1183, 0.0
        %v1382 = vmax.f32 %v1188, 0.0
        %v1383 = vmax.f32 %v1193, 0.0
        %v1384 = vmax.f32 %v1198, 0.0
        %v1385 = vmax.f32 %v1203, 0.0
        %v1386 = vmax.f32 %v1208, 0.0
        %v1387 = vmax.f32 %v1213, 0.0
        %v1388 = vmax.f32 %v1218, 0.0
        %v1389 = vmax.f32 %v1223, 0.0
        %v1390 = vmax.f32 %v1228, 0.0
        %v1391 = vmax.f32 %v1233, 0.0
        %v1392 = vmax.f32 %v1238, 0.0
        %v1393 = vmax.f32 %v1243, 0.0
        %v1394 = vmax.f32 %v1248, 0.0
        %v1395 = vmax.f32 %v1253, 0.0
        %v1396 = vmax.f32 %v1258, 0.0
        %v1397 = vmax.f32 %v1263, 0.0
        %v1398 = vmax.f32 %v1268, 0.0
        %v1399 = vmax.f32 %v1273, 0.0
        %v1400 = vmax.f32 %v1278, 0.0
        %v1401 = vmax.f32 %v1283, 0.0
        %v1402 = vmax.f32 %v1288, 0.0
        %v1403 = vmax.f32 %v1293, 0.0
        %v1404 = vmax.f32 %v1298, 0.0
        %v1405 = vmax.f32 %v1303, 0.0
        %v1406 = vmax.f32 %v1308, 0.0
        %v1407 = vmax.f32 %v1313, 0.0
        %v1408 = vmax.f32 %v1318, 0.0
        %v1409 = vmax.f32 %v1323, 0.0
        %v1410 = vmax.f32 %v1328, 0.0
        %v1411 = vmax.f32 %v1333, 0.0
        %v1412 = vmax.f32 %v1338, 0.0
        %v1413 = vmax.f32 %v1343, 0.0
        %v1414 = vmax.f32 %v1348, 0.0
        %v1415 = vld [vmem:[%s3] sm:$0xff]
        %v1416 = vld [vmem:[%s3 + $0x8] sm:$0xff]
        %v1417 = vld [vmem:[%s3 + $0x10] sm:$0xff]
        %v1418 = vld [vmem:[%s3 + $0x18] sm:$0xff]
        %v1419 = vld [vmem:[%s3 + $0x20] sm:$0xff]
        %v1420 = vld [vmem:[%s3 + $0x28] sm:$0xff]
        %v1421 = vld [vmem:[%s3 + $0x30] sm:$0xff]
        %v1422 = vld [vmem:[%s3 + $0x38] sm:$0xff]
        %v1423 = vld [vmem:[%s3 + $0x40] sm:$0xf]
        %v1424 = vld [vmem:[%s4] sm:$0x1]
        %v1426 = vlaneseq
        %v1427 = vshrl.u32 %v1426, 7
        %v1428 = vsub.s32 0, %v1427
        %v1429 = vrot.slane %v1424, %v1428
        %vm1431 = vcmask 556032
        %v1433 = vsel %vm1431, %v1351, 0
        %v1436 = vsel %vm1431, %v1352, 0
        %v1439 = vsel %vm1431, %v1353, 0
        %v1442 = vsel %vm1431, %v1354, 0
        %v1445 = vsel %vm1431, %v1355, 0
        %v1448 = vsel %vm1431, %v1356, 0
        %v1451 = vsel %vm1431, %v1357, 0
        %v1454 = vsel %vm1431, %v1358, 0
        %v1457 = vsel %vm1431, %v1359, 0
        %v1460 = vsel %vm1431, %v1360, 0
        %v1463 = vsel %vm1431, %v1361, 0
        %v1466 = vsel %vm1431, %v1362, 0
        %v1469 = vsel %vm1431, %v1363, 0
        %v1472 = vsel %vm1431, %v1364, 0
        %v1475 = vsel %vm1431, %v1365, 0
        %v1478 = vsel %vm1431, %v1366, 0
        %v1481 = vsel %vm1431, %v1367, 0
        %v1484 = vsel %vm1431, %v1368, 0
        %v1487 = vsel %vm1431, %v1369, 0
        %v1490 = vsel %vm1431, %v1370, 0
        %v1493 = vsel %vm1431, %v1371, 0
        %v1496 = vsel %vm1431, %v1372, 0
        %v1499 = vsel %vm1431, %v1373, 0
        %v1502 = vsel %vm1431, %v1374, 0
        %v1505 = vsel %vm1431, %v1375, 0
        %v1508 = vsel %vm1431, %v1376, 0
        %v1511 = vsel %vm1431, %v1377, 0
        %v1514 = vsel %vm1431, %v1378, 0
        %v1517 = vsel %vm1431, %v1379, 0
        %v1520 = vsel %vm1431, %v1380, 0
        %v1523 = vsel %vm1431, %v1381, 0
        %v1526 = vsel %vm1431, %v1382, 0
        %v1529 = vsel %vm1431, %v1383, 0
        %v1532 = vsel %vm1431, %v1384, 0
        %v1535 = vsel %vm1431, %v1385, 0
        %v1538 = vsel %vm1431, %v1386, 0
        %v1541 = vsel %vm1431, %v1387, 0
        %v1544 = vsel %vm1431, %v1388, 0
        %v1547 = vsel %vm1431, %v1389, 0
        %v1550 = vsel %vm1431, %v1390, 0
        %v1553 = vsel %vm1431, %v1391, 0
        %v1556 = vsel %vm1431, %v1392, 0
        %v1559 = vsel %vm1431, %v1393, 0
        %v1562 = vsel %vm1431, %v1394, 0
        %v1565 = vsel %vm1431, %v1395, 0
        %v1568 = vsel %vm1431, %v1396, 0
        %v1571 = vsel %vm1431, %v1397, 0
        %v1574 = vsel %vm1431, %v1398, 0
        %v1577 = vsel %vm1431, %v1399, 0
        %v1580 = vsel %vm1431, %v1400, 0
        %v1583 = vsel %vm1431, %v1401, 0
        %v1586 = vsel %vm1431, %v1402, 0
        %v1589 = vsel %vm1431, %v1403, 0
        %v1592 = vsel %vm1431, %v1404, 0
        %v1595 = vsel %vm1431, %v1405, 0
        %v1598 = vsel %vm1431, %v1406, 0
        %v1601 = vsel %vm1431, %v1407, 0
        %v1604 = vsel %vm1431, %v1408, 0
        %v1607 = vsel %vm1431, %v1409, 0
        %v1610 = vsel %vm1431, %v1410, 0
        %v1613 = vsel %vm1431, %v1411, 0
        %v1616 = vsel %vm1431, %v1412, 0
        %v1619 = vsel %vm1431, %v1413, 0
        %v1622 = vsel %vm1431, %v1414, 0
        %v1625 = vsel %vm962, %v1423, 0
        %1627 = vmatprep.subr.mxu0 0.0
        %1628 = vmatpush1.msra.mxu0 %v1415
        %1629 = vmatprep.subr.mxu0 0.0
        %1630 = vmatpush1.msra.mxu0 %v1416
        %1631 = vmatprep.subr.mxu0 0.0
        %1632 = vmatpush1.msra.mxu0 %v1417
        %1633 = vmatprep.subr.mxu0 0.0
        %1634 = vmatpush1.msra.mxu0 %v1418
        %1635 = vmatprep.subr.mxu0 0.0
        %1636 = vmatpush1.msra.mxu0 %v1419
        %1637 = vmatprep.subr.mxu0 0.0
        %1638 = vmatpush1.msra.mxu0 %v1420
        %1639 = vmatprep.subr.mxu0 0.0
        %1640 = vmatpush1.msra.mxu0 %v1421
        %1641 = vmatprep.subr.mxu0 0.0
        %1642 = vmatpush1.msra.mxu0 %v1422
        %1643 = vmatprep.subr.mxu0 0.0
        %1644 = vmatpush1.msra.mxu0 %v1625
        %1645 = vmatprep.subr.mxu0 0.0
        %1646 = vmatpush1.msra.mxu0 0.0
        %1647 = vmatprep.subr.mxu0 0.0
        %1648 = vmatpush1.msra.mxu0 0.0
        %1649 = vmatprep.subr.mxu0 0.0
        %1650 = vmatpush1.msra.mxu0 0.0
        %1651 = vmatprep.subr.mxu0 0.0
        %1652 = vmatpush1.msra.mxu0 0.0
        %1653 = vmatprep.subr.mxu0 0.0
        %1654 = vmatpush1.msra.mxu0 0.0
        %1655 = vmatprep.subr.mxu0 0.0
        %1656 = vmatpush1.msra.mxu0 0.0
        %1657 = vmatprep.subr.mxu0 0.0
        %1658 = vmatpush1.msra.mxu0 0.0
        %1659 = vmatprep.subr.mxu0 0.0
        %1660 = vmatpush1.msra.mxu0 0.0
        %1661 = vmatprep.subr.mxu0 0.0
        %1662 = vmatpush1.msra.mxu0 0.0
        %1663 = vmatprep.subr.mxu0 0.0
        %1664 = vmatpush1.msra.mxu0 0.0
        %1665 = vmatprep.subr.mxu0 0.0
        %1666 = vmatpush1.msra.mxu0 0.0
        %1667 = vmatprep.subr.mxu0 0.0
        %1668 = vmatpush1.msra.mxu0 0.0
        %1669 = vmatprep.subr.mxu0 0.0
        %1670 = vmatpush1.msra.mxu0 0.0
        %1671 = vmatprep.subr.mxu0 0.0
        %1672 = vmatpush1.msra.mxu0 0.0
        %1673 = vmatprep.subr.mxu0 0.0
        %1674 = vmatpush1.msra.mxu0 0.0
        %1675 = vmatprep.subr.mxu0 0.0
        %1676 = vmatpush1.msra.mxu0 0.0
        %1677 = vmatprep.subr.mxu0 0.0
        %1678 = vmatpush1.msra.mxu0 0.0
        %1679 = vmatprep.subr.mxu0 0.0
        %1680 = vmatpush1.msra.mxu0 0.0
        %1681 = vmatprep.subr.mxu0 0.0
        %1682 = vmatpush1.msra.mxu0 0.0
        %1683 = vmatprep.subr.mxu0 0.0
        %1684 = vmatpush1.msra.mxu0 0.0
        %1685 = vmatprep.subr.mxu0 0.0
        %1686 = vmatpush1.msra.mxu0 0.0
        %1687 = vmatprep.subr.mxu0 0.0
        %1688 = vmatpush1.msra.mxu0 0.0
        %1689 = vmatprep.subr.mxu0 0.0
        %1690 = vmatpush1.msra.mxu0 0.0
        %1691 = vmatprep.mubr.f32.mxu0 0.0
        %1692 = vmatmul.mubr.f32.gmra.mrb[0].mxu0 %v1433
        %v1693 = vpop.f32.mrb[0].mxu0
        %v1694 = vadd.f32 %v1429, %v1693
        %v1695 = vpop.f32.mrb[0].mxu0
        %1696 = vmatprep.mubr.f32.mxu0 0.0
        %1697 = vmatmul.mubr.f32.gmra.mrb[0].mxu0 %v1436
        %v1698 = vpop.f32.mrb[0].mxu0
        %v1699 = vadd.f32 %v1429, %v1698
        %v1700 = vpop.f32.mrb[0].mxu0
        %1701 = vmatprep.mubr.f32.mxu0 0.0
        %1702 = vmatmul.mubr.f32.gmra.mrb[0].mxu0 %v1439
        %v1703 = vpop.f32.mrb[0].mxu0
        %v1704 = vadd.f32 %v1429, %v1703
        %v1705 = vpop.f32.mrb[0].mxu0
        %1706 = vmatprep.mubr.f32.mxu0 0.0
        %1707 = vmatmul.mubr.f32.gmra.mrb[0].mxu0 %v1442
        %v1708 = vpop.f32.mrb[0].mxu0
        %v1709 = vadd.f32 %v1429, %v1708
        %v1710 = vpop.f32.mrb[0].mxu0
        %1711 = vmatprep.mubr.f32.mxu0 0.0
        %1712 = vmatmul.mubr.f32.gmra.mrb[0].mxu0 %v1445
        %v1713 = vpop.f32.mrb[0].mxu0
        %v1714 = vadd.f32 %v1429, %v1713
        %v1715 = vpop.f32.mrb[0].mxu0
        %1716 = vmatprep.mubr.f32.mxu0 0.0
        %1717 = vmatmul.mubr.f32.gmra.mrb[0].mxu0 %v1448
        %v1718 = vpop.f32.mrb[0].mxu0
        %v1719 = vadd.f32 %v1429, %v1718
        %v1720 = vpop.f32.mrb[0].mxu0
        %1721 = vmatprep.mubr.f32.mxu0 0.0
        %1722 = vmatmul.mubr.f32.gmra.mrb[0].mxu0 %v1451
        %v1723 = vpop.f32.mrb[0].mxu0
        %v1724 = vadd.f32 %v1429, %v1723
        %v1725 = vpop.f32.mrb[0].mxu0
        %1726 = vmatprep.mubr.f32.mxu0 0.0
        %1727 = vmatmul.mubr.f32.gmra.mrb[0].mxu0 %v1454
        %v1728 = vpop.f32.mrb[0].mxu0
        %v1729 = vadd.f32 %v1429, %v1728
        %v1730 = vpop.f32.mrb[0].mxu0
        %1731 = vmatprep.mubr.f32.mxu0 0.0
        %1732 = vmatmul.mubr.f32.gmra.mrb[0].mxu0 %v1457
        %v1733 = vpop.f32.mrb[0].mxu0
        %v1734 = vadd.f32 %v1429, %v1733
        %v1735 = vpop.f32.mrb[0].mxu0
        %1736 = vmatprep.mubr.f32.mxu0 0.0
        %1737 = vmatmul.mubr.f32.gmra.mrb[0].mxu0 %v1460
        %v1738 = vpop.f32.mrb[0].mxu0
        %v1739 = vadd.f32 %v1429, %v1738
        %v1740 = vpop.f32.mrb[0].mxu0
        %1741 = vmatprep.mubr.f32.mxu0 0.0
        %1742 = vmatmul.mubr.f32.gmra.mrb[0].mxu0 %v1463
        %v1743 = vpop.f32.mrb[0].mxu0
        %v1744 = vadd.f32 %v1429, %v1743
        %v1745 = vpop.f32.mrb[0].mxu0
        %1746 = vmatprep.mubr.f32.mxu0 0.0
        %1747 = vmatmul.mubr.f32.gmra.mrb[0].mxu0 %v1466
        %v1748 = vpop.f32.mrb[0].mxu0
        %v1749 = vadd.f32 %v1429, %v1748
        %v1750 = vpop.f32.mrb[0].mxu0
        %1751 = vmatprep.mubr.f32.mxu0 0.0
        %1752 = vmatmul.mubr.f32.gmra.mrb[0].mxu0 %v1469
        %v1753 = vpop.f32.mrb[0].mxu0
        %v1754 = vadd.f32 %v1429, %v1753
        %v1755 = vpop.f32.mrb[0].mxu0
        %1756 = vmatprep.mubr.f32.mxu0 0.0
        %1757 = vmatmul.mubr.f32.gmra.mrb[0].mxu0 %v1472
        %v1758 = vpop.f32.mrb[0].mxu0
        %v1759 = vadd.f32 %v1429, %v1758
        %v1760 = vpop.f32.mrb[0].mxu0
        %1761 = vmatprep.mubr.f32.mxu0 0.0
        %1762 = vmatmul.mubr.f32.gmra.mrb[0].mxu0 %v1475
        %v1763 = vpop.f32.mrb[0].mxu0
        %v1764 = vadd.f32 %v1429, %v1763
        %v1765 = vpop.f32.mrb[0].mxu0
        %1766 = vmatprep.mubr.f32.mxu0 0.0
        %1767 = vmatmul.mubr.f32.gmra.mrb[0].mxu0 %v1478
        %v1768 = vpop.f32.mrb[0].mxu0
        %v1769 = vadd.f32 %v1429, %v1768
        %v1770 = vpop.f32.mrb[0].mxu0
        %1771 = vmatprep.mubr.f32.mxu0 0.0
        %1772 = vmatmul.mubr.f32.gmra.mrb[0].mxu0 %v1481
        %v1773 = vpop.f32.mrb[0].mxu0
        %v1774 = vadd.f32 %v1429, %v1773
        %v1775 = vpop.f32.mrb[0].mxu0
        %1776 = vmatprep.mubr.f32.mxu0 0.0
        %1777 = vmatmul.mubr.f32.gmra.mrb[0].mxu0 %v1484
        %v1778 = vpop.f32.mrb[0].mxu0
        %v1779 = vadd.f32 %v1429, %v1778
        %v1780 = vpop.f32.mrb[0].mxu0
        %1781 = vmatprep.mubr.f32.mxu0 0.0
        %1782 = vmatmul.mubr.f32.gmra.mrb[0].mxu0 %v1487
        %v1783 = vpop.f32.mrb[0].mxu0
        %v1784 = vadd.f32 %v1429, %v1783
        %v1785 = vpop.f32.mrb[0].mxu0
        %1786 = vmatprep.mubr.f32.mxu0 0.0
        %1787 = vmatmul.mubr.f32.gmra.mrb[0].mxu0 %v1490
        %v1788 = vpop.f32.mrb[0].mxu0
        %v1789 = vadd.f32 %v1429, %v1788
        %v1790 = vpop.f32.mrb[0].mxu0
        %1791 = vmatprep.mubr.f32.mxu0 0.0
        %1792 = vmatmul.mubr.f32.gmra.mrb[0].mxu0 %v1493
        %v1793 = vpop.f32.mrb[0].mxu0
        %v1794 = vadd.f32 %v1429, %v1793
        %v1795 = vpop.f32.mrb[0].mxu0
        %1796 = vmatprep.mubr.f32.mxu0 0.0
        %1797 = vmatmul.mubr.f32.gmra.mrb[0].mxu0 %v1496
        %v1798 = vpop.f32.mrb[0].mxu0
        %v1799 = vadd.f32 %v1429, %v1798
        %v1800 = vpop.f32.mrb[0].mxu0
        %1801 = vmatprep.mubr.f32.mxu0 0.0
        %1802 = vmatmul.mubr.f32.gmra.mrb[0].mxu0 %v1499
        %v1803 = vpop.f32.mrb[0].mxu0
        %v1804 = vadd.f32 %v1429, %v1803
        %v1805 = vpop.f32.mrb[0].mxu0
        %1806 = vmatprep.mubr.f32.mxu0 0.0
        %1807 = vmatmul.mubr.f32.gmra.mrb[0].mxu0 %v1502
        %v1808 = vpop.f32.mrb[0].mxu0
        %v1809 = vadd.f32 %v1429, %v1808
        %v1810 = vpop.f32.mrb[0].mxu0
        %1811 = vmatprep.mubr.f32.mxu0 0.0
        %1812 = vmatmul.mubr.f32.gmra.mrb[0].mxu0 %v1505
        %v1813 = vpop.f32.mrb[0].mxu0
        %v1814 = vadd.f32 %v1429, %v1813
        %v1815 = vpop.f32.mrb[0].mxu0
        %1816 = vmatprep.mubr.f32.mxu0 0.0
        %1817 = vmatmul.mubr.f32.gmra.mrb[0].mxu0 %v1508
        %v1818 = vpop.f32.mrb[0].mxu0
        %v1819 = vadd.f32 %v1429, %v1818
        %v1820 = vpop.f32.mrb[0].mxu0
        %1821 = vmatprep.mubr.f32.mxu0 0.0
        %1822 = vmatmul.mubr.f32.gmra.mrb[0].mxu0 %v1511
        %v1823 = vpop.f32.mrb[0].mxu0
        %v1824 = vadd.f32 %v1429, %v1823
        %v1825 = vpop.f32.mrb[0].mxu0
        %1826 = vmatprep.mubr.f32.mxu0 0.0
        %1827 = vmatmul.mubr.f32.gmra.mrb[0].mxu0 %v1514
        %v1828 = vpop.f32.mrb[0].mxu0
        %v1829 = vadd.f32 %v1429, %v1828
        %v1830 = vpop.f32.mrb[0].mxu0
        %1831 = vmatprep.mubr.f32.mxu0 0.0
        %1832 = vmatmul.mubr.f32.gmra.mrb[0].mxu0 %v1517
        %v1833 = vpop.f32.mrb[0].mxu0
        %v1834 = vadd.f32 %v1429, %v1833
        %v1835 = vpop.f32.mrb[0].mxu0
        %1836 = vmatprep.mubr.f32.mxu0 0.0
        %1837 = vmatmul.mubr.f32.gmra.mrb[0].mxu0 %v1520
        %v1838 = vpop.f32.mrb[0].mxu0
        %v1839 = vadd.f32 %v1429, %v1838
        %v1840 = vpop.f32.mrb[0].mxu0
        %1841 = vmatprep.mubr.f32.mxu0 0.0
        %1842 = vmatmul.mubr.f32.gmra.mrb[0].mxu0 %v1523
        %v1843 = vpop.f32.mrb[0].mxu0
        %v1844 = vadd.f32 %v1429, %v1843
        %v1845 = vpop.f32.mrb[0].mxu0
        %1846 = vmatprep.mubr.f32.mxu0 0.0
        %1847 = vmatmul.mubr.f32.gmra.mrb[0].mxu0 %v1526
        %v1848 = vpop.f32.mrb[0].mxu0
        %v1849 = vadd.f32 %v1429, %v1848
        %v1850 = vpop.f32.mrb[0].mxu0
        %1851 = vmatprep.mubr.f32.mxu0 0.0
        %1852 = vmatmul.mubr.f32.gmra.mrb[0].mxu0 %v1529
        %v1853 = vpop.f32.mrb[0].mxu0
        %v1854 = vadd.f32 %v1429, %v1853
        %v1855 = vpop.f32.mrb[0].mxu0
        %1856 = vmatprep.mubr.f32.mxu0 0.0
        %1857 = vmatmul.mubr.f32.gmra.mrb[0].mxu0 %v1532
        %v1858 = vpop.f32.mrb[0].mxu0
        %v1859 = vadd.f32 %v1429, %v1858
        %v1860 = vpop.f32.mrb[0].mxu0
        %1861 = vmatprep.mubr.f32.mxu0 0.0
        %1862 = vmatmul.mubr.f32.gmra.mrb[0].mxu0 %v1535
        %v1863 = vpop.f32.mrb[0].mxu0
        %v1864 = vadd.f32 %v1429, %v1863
        %v1865 = vpop.f32.mrb[0].mxu0
        %1866 = vmatprep.mubr.f32.mxu0 0.0
        %1867 = vmatmul.mubr.f32.gmra.mrb[0].mxu0 %v1538
        %v1868 = vpop.f32.mrb[0].mxu0
        %v1869 = vadd.f32 %v1429, %v1868
        %v1870 = vpop.f32.mrb[0].mxu0
        %1871 = vmatprep.mubr.f32.mxu0 0.0
        %1872 = vmatmul.mubr.f32.gmra.mrb[0].mxu0 %v1541
        %v1873 = vpop.f32.mrb[0].mxu0
        %v1874 = vadd.f32 %v1429, %v1873
        %v1875 = vpop.f32.mrb[0].mxu0
        %1876 = vmatprep.mubr.f32.mxu0 0.0
        %1877 = vmatmul.mubr.f32.gmra.mrb[0].mxu0 %v1544
        %v1878 = vpop.f32.mrb[0].mxu0
        %v1879 = vadd.f32 %v1429, %v1878
        %v1880 = vpop.f32.mrb[0].mxu0
        %1881 = vmatprep.mubr.f32.mxu0 0.0
        %1882 = vmatmul.mubr.f32.gmra.mrb[0].mxu0 %v1547
        %v1883 = vpop.f32.mrb[0].mxu0
        %v1884 = vadd.f32 %v1429, %v1883
        %v1885 = vpop.f32.mrb[0].mxu0
        %1886 = vmatprep.mubr.f32.mxu0 0.0
        %1887 = vmatmul.mubr.f32.gmra.mrb[0].mxu0 %v1550
        %v1888 = vpop.f32.mrb[0].mxu0
        %v1889 = vadd.f32 %v1429, %v1888
        %v1890 = vpop.f32.mrb[0].mxu0
        %1891 = vmatprep.mubr.f32.mxu0 0.0
        %1892 = vmatmul.mubr.f32.gmra.mrb[0].mxu0 %v1553
        %v1893 = vpop.f32.mrb[0].mxu0
        %v1894 = vadd.f32 %v1429, %v1893
        %v1895 = vpop.f32.mrb[0].mxu0
        %1896 = vmatprep.mubr.f32.mxu0 0.0
        %1897 = vmatmul.mubr.f32.gmra.mrb[0].mxu0 %v1556
        %v1898 = vpop.f32.mrb[0].mxu0
        %v1899 = vadd.f32 %v1429, %v1898
        %v1900 = vpop.f32.mrb[0].mxu0
        %1901 = vmatprep.mubr.f32.mxu0 0.0
        %1902 = vmatmul.mubr.f32.gmra.mrb[0].mxu0 %v1559
        %v1903 = vpop.f32.mrb[0].mxu0
        %v1904 = vadd.f32 %v1429, %v1903
        %v1905 = vpop.f32.mrb[0].mxu0
        %1906 = vmatprep.mubr.f32.mxu0 0.0
        %1907 = vmatmul.mubr.f32.gmra.mrb[0].mxu0 %v1562
        %v1908 = vpop.f32.mrb[0].mxu0
        %v1909 = vadd.f32 %v1429, %v1908
        %v1910 = vpop.f32.mrb[0].mxu0
        %1911 = vmatprep.mubr.f32.mxu0 0.0
        %1912 = vmatmul.mubr.f32.gmra.mrb[0].mxu0 %v1565
        %v1913 = vpop.f32.mrb[0].mxu0
        %v1914 = vadd.f32 %v1429, %v1913
        %v1915 = vpop.f32.mrb[0].mxu0
        %1916 = vmatprep.mubr.f32.mxu0 0.0
        %1917 = vmatmul.mubr.f32.gmra.mrb[0].mxu0 %v1568
        %v1918 = vpop.f32.mrb[0].mxu0
        %v1919 = vadd.f32 %v1429, %v1918
        %v1920 = vpop.f32.mrb[0].mxu0
        %1921 = vmatprep.mubr.f32.mxu0 0.0
        %1922 = vmatmul.mubr.f32.gmra.mrb[0].mxu0 %v1571
        %v1923 = vpop.f32.mrb[0].mxu0
        %v1924 = vadd.f32 %v1429, %v1923
        %v1925 = vpop.f32.mrb[0].mxu0
        %1926 = vmatprep.mubr.f32.mxu0 0.0
        %1927 = vmatmul.mubr.f32.gmra.mrb[0].mxu0 %v1574
        %v1928 = vpop.f32.mrb[0].mxu0
        %v1929 = vadd.f32 %v1429, %v1928
        %v1930 = vpop.f32.mrb[0].mxu0
        %1931 = vmatprep.mubr.f32.mxu0 0.0
        %1932 = vmatmul.mubr.f32.gmra.mrb[0].mxu0 %v1577
        %v1933 = vpop.f32.mrb[0].mxu0
        %v1934 = vadd.f32 %v1429, %v1933
        %v1935 = vpop.f32.mrb[0].mxu0
        %1936 = vmatprep.mubr.f32.mxu0 0.0
        %1937 = vmatmul.mubr.f32.gmra.mrb[0].mxu0 %v1580
        %v1938 = vpop.f32.mrb[0].mxu0
        %v1939 = vadd.f32 %v1429, %v1938
        %v1940 = vpop.f32.mrb[0].mxu0
        %1941 = vmatprep.mubr.f32.mxu0 0.0
        %1942 = vmatmul.mubr.f32.gmra.mrb[0].mxu0 %v1583
        %v1943 = vpop.f32.mrb[0].mxu0
        %v1944 = vadd.f32 %v1429, %v1943
        %v1945 = vpop.f32.mrb[0].mxu0
        %1946 = vmatprep.mubr.f32.mxu0 0.0
        %1947 = vmatmul.mubr.f32.gmra.mrb[0].mxu0 %v1586
        %v1948 = vpop.f32.mrb[0].mxu0
        %v1949 = vadd.f32 %v1429, %v1948
        %v1950 = vpop.f32.mrb[0].mxu0
        %1951 = vmatprep.mubr.f32.mxu0 0.0
        %1952 = vmatmul.mubr.f32.gmra.mrb[0].mxu0 %v1589
        %v1953 = vpop.f32.mrb[0].mxu0
        %v1954 = vadd.f32 %v1429, %v1953
        %v1955 = vpop.f32.mrb[0].mxu0
        %1956 = vmatprep.mubr.f32.mxu0 0.0
        %1957 = vmatmul.mubr.f32.gmra.mrb[0].mxu0 %v1592
        %v1958 = vpop.f32.mrb[0].mxu0
        %v1959 = vadd.f32 %v1429, %v1958
        %v1960 = vpop.f32.mrb[0].mxu0
        %1961 = vmatprep.mubr.f32.mxu0 0.0
        %1962 = vmatmul.mubr.f32.gmra.mrb[0].mxu0 %v1595
        %v1963 = vpop.f32.mrb[0].mxu0
        %v1964 = vadd.f32 %v1429, %v1963
        %v1965 = vpop.f32.mrb[0].mxu0
        %1966 = vmatprep.mubr.f32.mxu0 0.0
        %1967 = vmatmul.mubr.f32.gmra.mrb[0].mxu0 %v1598
        %v1968 = vpop.f32.mrb[0].mxu0
        %v1969 = vadd.f32 %v1429, %v1968
        %v1970 = vpop.f32.mrb[0].mxu0
        %1971 = vmatprep.mubr.f32.mxu0 0.0
        %1972 = vmatmul.mubr.f32.gmra.mrb[0].mxu0 %v1601
        %v1973 = vpop.f32.mrb[0].mxu0
        %v1974 = vadd.f32 %v1429, %v1973
        %v1975 = vpop.f32.mrb[0].mxu0
        %1976 = vmatprep.mubr.f32.mxu0 0.0
        %1977 = vmatmul.mubr.f32.gmra.mrb[0].mxu0 %v1604
        %v1978 = vpop.f32.mrb[0].mxu0
        %v1979 = vadd.f32 %v1429, %v1978
        %v1980 = vpop.f32.mrb[0].mxu0
        %1981 = vmatprep.mubr.f32.mxu0 0.0
        %1982 = vmatmul.mubr.f32.gmra.mrb[0].mxu0 %v1607
        %v1983 = vpop.f32.mrb[0].mxu0
        %v1984 = vadd.f32 %v1429, %v1983
        %v1985 = vpop.f32.mrb[0].mxu0
        %1986 = vmatprep.mubr.f32.mxu0 0.0
        %1987 = vmatmul.mubr.f32.gmra.mrb[0].mxu0 %v1610
        %v1988 = vpop.f32.mrb[0].mxu0
        %v1989 = vadd.f32 %v1429, %v1988
        %v1990 = vpop.f32.mrb[0].mxu0
        %1991 = vmatprep.mubr.f32.mxu0 0.0
        %1992 = vmatmul.mubr.f32.gmra.mrb[0].mxu0 %v1613
        %v1993 = vpop.f32.mrb[0].mxu0
        %v1994 = vadd.f32 %v1429, %v1993
        %v1995 = vpop.f32.mrb[0].mxu0
        %1996 = vmatprep.mubr.f32.mxu0 0.0
        %1997 = vmatmul.mubr.f32.gmra.mrb[0].mxu0 %v1616
        %v1998 = vpop.f32.mrb[0].mxu0
        %v1999 = vadd.f32 %v1429, %v1998
        %v2000 = vpop.f32.mrb[0].mxu0
        %2001 = vmatprep.mubr.f32.mxu0 0.0
        %2002 = vmatmul.mubr.f32.gmra.mrb[0].mxu0 %v1619
        %v2003 = vpop.f32.mrb[0].mxu0
        %v2004 = vadd.f32 %v1429, %v2003
        %v2005 = vpop.f32.mrb[0].mxu0
        %2006 = vmatprep.mubr.f32.mxu0 0.0
        %2007 = vmatmul.mubr.f32.gmra.mrb[0].mxu0 %v1622
        %v2008 = vpop.f32.mrb[0].mxu0
        %v2009 = vadd.f32 %v1429, %v2008
        %v2010 = vpop.f32.mrb[0].mxu0
        %2011 = vdwg.mxu0
        %v2012 = vmax.f32 %v1694, 0.0
        %v2013 = vmax.f32 %v1699, 0.0
        %v2014 = vmax.f32 %v1704, 0.0
        %v2015 = vmax.f32 %v1709, 0.0
        %v2016 = vmax.f32 %v1714, 0.0
        %v2017 = vmax.f32 %v1719, 0.0
        %v2018 = vmax.f32 %v1724, 0.0
        %v2019 = vmax.f32 %v1729, 0.0
        %v2020 = vmax.f32 %v1734, 0.0
        %v2021 = vmax.f32 %v1739, 0.0
        %v2022 = vmax.f32 %v1744, 0.0
        %v2023 = vmax.f32 %v1749, 0.0
        %v2024 = vmax.f32 %v1754, 0.0
        %v2025 = vmax.f32 %v1759, 0.0
        %v2026 = vmax.f32 %v1764, 0.0
        %v2027 = vmax.f32 %v1769, 0.0
        %v2028 = vmax.f32 %v1774, 0.0
        %v2029 = vmax.f32 %v1779, 0.0
        %v2030 = vmax.f32 %v1784, 0.0
        %v2031 = vmax.f32 %v1789, 0.0
        %v2032 = vmax.f32 %v1794, 0.0
        %v2033 = vmax.f32 %v1799, 0.0
        %v2034 = vmax.f32 %v1804, 0.0
        %v2035 = vmax.f32 %v1809, 0.0
        %v2036 = vmax.f32 %v1814, 0.0
        %v2037 = vmax.f32 %v1819, 0.0
        %v2038 = vmax.f32 %v1824, 0.0
        %v2039 = vmax.f32 %v1829, 0.0
        %v2040 = vmax.f32 %v1834, 0.0
        %v2041 = vmax.f32 %v1839, 0.0
        %v2042 = vmax.f32 %v1844, 0.0
        %v2043 = vmax.f32 %v1849, 0.0
        %v2044 = vmax.f32 %v1854, 0.0
        %v2045 = vmax.f32 %v1859, 0.0
        %v2046 = vmax.f32 %v1864, 0.0
        %v2047 = vmax.f32 %v1869, 0.0
        %v2048 = vmax.f32 %v1874, 0.0
        %v2049 = vmax.f32 %v1879, 0.0
        %v2050 = vmax.f32 %v1884, 0.0
        %v2051 = vmax.f32 %v1889, 0.0
        %v2052 = vmax.f32 %v1894, 0.0
        %v2053 = vmax.f32 %v1899, 0.0
        %v2054 = vmax.f32 %v1904, 0.0
        %v2055 = vmax.f32 %v1909, 0.0
        %v2056 = vmax.f32 %v1914, 0.0
        %v2057 = vmax.f32 %v1919, 0.0
        %v2058 = vmax.f32 %v1924, 0.0
        %v2059 = vmax.f32 %v1929, 0.0
        %v2060 = vmax.f32 %v1934, 0.0
        %v2061 = vmax.f32 %v1939, 0.0
        %v2062 = vmax.f32 %v1944, 0.0
        %v2063 = vmax.f32 %v1949, 0.0
        %v2064 = vmax.f32 %v1954, 0.0
        %v2065 = vmax.f32 %v1959, 0.0
        %v2066 = vmax.f32 %v1964, 0.0
        %v2067 = vmax.f32 %v1969, 0.0
        %v2068 = vmax.f32 %v1974, 0.0
        %v2069 = vmax.f32 %v1979, 0.0
        %v2070 = vmax.f32 %v1984, 0.0
        %v2071 = vmax.f32 %v1989, 0.0
        %v2072 = vmax.f32 %v1994, 0.0
        %v2073 = vmax.f32 %v1999, 0.0
        %v2074 = vmax.f32 %v2004, 0.0
        %v2075 = vmax.f32 %v2009, 0.0
        %v2076 = vld [vmem:[%s5] sm:$0xff]
        %v2077 = vld [vmem:[%s5 + $0x8] sm:$0xff]
        %v2078 = vld [vmem:[%s5 + $0x10] sm:$0xff]
        %v2079 = vld [vmem:[%s5 + $0x18] sm:$0xff]
        %v2080 = vld [vmem:[%s5 + $0x20] sm:$0xff]
        %v2081 = vld [vmem:[%s5 + $0x28] sm:$0xff]
        %v2082 = vld [vmem:[%s5 + $0x30] sm:$0xff]
        %v2083 = vld [vmem:[%s5 + $0x38] sm:$0xff]
        %v2084 = vld [vmem:[%s6] sm:$0xff]
        %v2085 = vld [vmem:[%s6 + $0x8] sm:$0xff]
        %v2086 = vld [vmem:[%s6 + $0x10] sm:$0xff]
        %v2087 = vld [vmem:[%s6 + $0x18] sm:$0xff]
        %v2088 = vld [vmem:[%s6 + $0x20] sm:$0xff]
        %v2089 = vld [vmem:[%s6 + $0x28] sm:$0xff]
        %v2090 = vld [vmem:[%s6 + $0x30] sm:$0xff]
        %v2091 = vld [vmem:[%s6 + $0x38] sm:$0xff]
        %v2092 = vld [vmem:[%s8] sm:$0xff]
        %v2093 = vld [vmem:[%s7] sm:$0xf]
        %v2094 = vld [vmem:[%s7 + $0x4] sm:$0xf]
        %v2095 = vld [vmem:[%s7 + $0x8] sm:$0xf]
        %v2096 = vsub.f32 %v2012, %v2028
        %v2097 = vsub.f32 %v2013, %v2029
        %v2098 = vsub.f32 %v2014, %v2030
        %v2099 = vsub.f32 %v2015, %v2031
        %v2100 = vsub.f32 %v2016, %v2032
        %v2101 = vsub.f32 %v2017, %v2033
        %v2102 = vsub.f32 %v2018, %v2034
        %v2103 = vsub.f32 %v2019, %v2035
        %v2104 = vsub.f32 %v2020, %v2036
        %v2105 = vsub.f32 %v2021, %v2037
        %v2106 = vsub.f32 %v2022, %v2038
        %v2107 = vsub.f32 %v2023, %v2039
        %v2108 = vsub.f32 %v2024, %v2040
        %v2109 = vsub.f32 %v2025, %v2041
        %v2110 = vsub.f32 %v2026, %v2042
        %v2111 = vsub.f32 %v2027, %v2043
        %v2112 = vsub.f32 %v2028, %v2044
        %v2113 = vsub.f32 %v2029, %v2045
        %v2114 = vsub.f32 %v2030, %v2046
        %v2115 = vsub.f32 %v2031, %v2047
        %v2116 = vsub.f32 %v2032, %v2048
        %v2117 = vsub.f32 %v2033, %v2049
        %v2118 = vsub.f32 %v2034, %v2050
        %v2119 = vsub.f32 %v2035, %v2051
        %v2120 = vsub.f32 %v2036, %v2052
        %v2121 = vsub.f32 %v2037, %v2053
        %v2122 = vsub.f32 %v2038, %v2054
        %v2123 = vsub.f32 %v2039, %v2055
        %v2124 = vsub.f32 %v2040, %v2056
        %v2125 = vsub.f32 %v2041, %v2057
        %v2126 = vsub.f32 %v2042, %v2058
        %v2127 = vsub.f32 %v2043, %v2059
        %v2128 = vsub.f32 %v2044, %v2060
        %v2129 = vsub.f32 %v2045, %v2061
        %v2130 = vsub.f32 %v2046, %v2062
        %v2131 = vsub.f32 %v2047, %v2063
        %v2132 = vsub.f32 %v2048, %v2064
        %v2133 = vsub.f32 %v2049, %v2065
        %v2134 = vsub.f32 %v2050, %v2066
        %v2135 = vsub.f32 %v2051, %v2067
        %v2136 = vsub.f32 %v2052, %v2068
        %v2137 = vsub.f32 %v2053, %v2069
        %v2138 = vsub.f32 %v2054, %v2070
        %v2139 = vsub.f32 %v2055, %v2071
        %v2140 = vsub.f32 %v2056, %v2072
        %v2141 = vsub.f32 %v2057, %v2073
        %v2142 = vsub.f32 %v2058, %v2074
        %v2143 = vsub.f32 %v2059, %v2075
        %v2144 = vsub.f32 %v2060, %v2012
        %v2145 = vsub.f32 %v2061, %v2013
        %v2146 = vsub.f32 %v2062, %v2014
        %v2147 = vsub.f32 %v2063, %v2015
        %v2148 = vsub.f32 %v2064, %v2016
        %v2149 = vsub.f32 %v2065, %v2017
        %v2150 = vsub.f32 %v2066, %v2018
        %v2151 = vsub.f32 %v2067, %v2019
        %v2152 = vsub.f32 %v2068, %v2020
        %v2153 = vsub.f32 %v2069, %v2021
        %v2154 = vsub.f32 %v2070, %v2022
        %v2155 = vsub.f32 %v2071, %v2023
        %v2156 = vsub.f32 %v2072, %v2024
        %v2157 = vsub.f32 %v2073, %v2025
        %v2158 = vsub.f32 %v2074, %v2026
        %v2159 = vsub.f32 %v2075, %v2027
        %vm2160 = vcmask 523264
        %v2162 = vsel %vm2160, %v2096, 0
        %v2165 = vsel %vm2160, %v2097, 0
        %v2168 = vsel %vm2160, %v2098, 0
        %v2171 = vsel %vm2160, %v2099, 0
        %v2174 = vsel %vm2160, %v2100, 0
        %v2177 = vsel %vm2160, %v2101, 0
        %v2180 = vsel %vm2160, %v2102, 0
        %v2183 = vsel %vm2160, %v2103, 0
        %v2186 = vsel %vm2160, %v2104, 0
        %v2189 = vsel %vm2160, %v2105, 0
        %v2192 = vsel %vm2160, %v2106, 0
        %v2195 = vsel %vm2160, %v2107, 0
        %v2198 = vsel %vm2160, %v2108, 0
        %v2201 = vsel %vm2160, %v2109, 0
        %v2204 = vsel %vm2160, %v2110, 0
        %v2207 = vsel %vm2160, %v2111, 0
        %v2210 = vsel %vm2160, %v2112, 0
        %v2213 = vsel %vm2160, %v2113, 0
        %v2216 = vsel %vm2160, %v2114, 0
        %v2219 = vsel %vm2160, %v2115, 0
        %v2222 = vsel %vm2160, %v2116, 0
        %v2225 = vsel %vm2160, %v2117, 0
        %v2228 = vsel %vm2160, %v2118, 0
        %v2231 = vsel %vm2160, %v2119, 0
        %v2234 = vsel %vm2160, %v2120, 0
        %v2237 = vsel %vm2160, %v2121, 0
        %v2240 = vsel %vm2160, %v2122, 0
        %v2243 = vsel %vm2160, %v2123, 0
        %v2246 = vsel %vm2160, %v2124, 0
        %v2249 = vsel %vm2160, %v2125, 0
        %v2252 = vsel %vm2160, %v2126, 0
        %v2255 = vsel %vm2160, %v2127, 0
        %v2258 = vsel %vm2160, %v2128, 0
        %v2261 = vsel %vm2160, %v2129, 0
        %v2264 = vsel %vm2160, %v2130, 0
        %v2267 = vsel %vm2160, %v2131, 0
        %v2270 = vsel %vm2160, %v2132, 0
        %v2273 = vsel %vm2160, %v2133, 0
        %v2276 = vsel %vm2160, %v2134, 0
        %v2279 = vsel %vm2160, %v2135, 0
        %v2282 = vsel %vm2160, %v2136, 0
        %v2285 = vsel %vm2160, %v2137, 0
        %v2288 = vsel %vm2160, %v2138, 0
        %v2291 = vsel %vm2160, %v2139, 0
        %v2294 = vsel %vm2160, %v2140, 0
        %v2297 = vsel %vm2160, %v2141, 0
        %v2300 = vsel %vm2160, %v2142, 0
        %v2303 = vsel %vm2160, %v2143, 0
        %v2306 = vsel %vm2160, %v2144, 0
        %v2309 = vsel %vm2160, %v2145, 0
        %v2312 = vsel %vm2160, %v2146, 0
        %v2315 = vsel %vm2160, %v2147, 0
        %v2318 = vsel %vm2160, %v2148, 0
        %v2321 = vsel %vm2160, %v2149, 0
        %v2324 = vsel %vm2160, %v2150, 0
        %v2327 = vsel %vm2160, %v2151, 0
        %v2330 = vsel %vm2160, %v2152, 0
        %v2333 = vsel %vm2160, %v2153, 0
        %v2336 = vsel %vm2160, %v2154, 0
        %v2339 = vsel %vm2160, %v2155, 0
        %v2342 = vsel %vm2160, %v2156, 0
        %v2345 = vsel %vm2160, %v2157, 0
        %v2348 = vsel %vm2160, %v2158, 0
        %v2351 = vsel %vm2160, %v2159, 0
        %2353 = vmatprep.subr.mxu0 0.0
        %2354 = vmatpush1.msra.mxu0 %v2076
        %2355 = vmatprep.subr.mxu0 0.0
        %2356 = vmatpush1.msra.mxu0 %v2077
        %2357 = vmatprep.subr.mxu0 0.0
        %2358 = vmatpush1.msra.mxu0 %v2078
        %2359 = vmatprep.subr.mxu0 0.0
        %2360 = vmatpush1.msra.mxu0 %v2079
        %2361 = vmatprep.subr.mxu0 0.0
        %2362 = vmatpush1.msra.mxu0 %v2080
        %2363 = vmatprep.subr.mxu0 0.0
        %2364 = vmatpush1.msra.mxu0 %v2081
        %2365 = vmatprep.subr.mxu0 0.0
        %2366 = vmatpush1.msra.mxu0 %v2082
        %2367 = vmatprep.subr.mxu0 0.0
        %2368 = vmatpush1.msra.mxu0 %v2083
        %2369 = vmatprep.subr.mxu0 0.0
        %2370 = vmatpush1.msra.mxu0 0.0
        %2371 = vmatprep.subr.mxu0 0.0
        %2372 = vmatpush1.msra.mxu0 0.0
        %2373 = vmatprep.subr.mxu0 0.0
        %2374 = vmatpush1.msra.mxu0 0.0
        %2375 = vmatprep.subr.mxu0 0.0
        %2376 = vmatpush1.msra.mxu0 0.0
        %2377 = vmatprep.subr.mxu0 0.0
        %2378 = vmatpush1.msra.mxu0 0.0
        %2379 = vmatprep.subr.mxu0 0.0
        %2380 = vmatpush1.msra.mxu0 0.0
        %2381 = vmatprep.subr.mxu0 0.0
        %2382 = vmatpush1.msra.mxu0 0.0
        %2383 = vmatprep.subr.mxu0 0.0
        %2384 = vmatpush1.msra.mxu0 0.0
        %2385 = vmatprep.subr.mxu0 0.0
        %2386 = vmatpush1.msra.mxu0 0.0
        %2387 = vmatprep.subr.mxu0 0.0
        %2388 = vmatpush1.msra.mxu0 0.0
        %2389 = vmatprep.subr.mxu0 0.0
        %2390 = vmatpush1.msra.mxu0 0.0
        %2391 = vmatprep.subr.mxu0 0.0
        %2392 = vmatpush1.msra.mxu0 0.0
        %2393 = vmatprep.subr.mxu0 0.0
        %2394 = vmatpush1.msra.mxu0 0.0
        %2395 = vmatprep.subr.mxu0 0.0
        %2396 = vmatpush1.msra.mxu0 0.0
        %2397 = vmatprep.subr.mxu0 0.0
        %2398 = vmatpush1.msra.mxu0 0.0
        %2399 = vmatprep.subr.mxu0 0.0
        %2400 = vmatpush1.msra.mxu0 0.0
        %2401 = vmatprep.subr.mxu0 0.0
        %2402 = vmatpush1.msra.mxu0 0.0
        %2403 = vmatprep.subr.mxu0 0.0
        %2404 = vmatpush1.msra.mxu0 0.0
        %2405 = vmatprep.subr.mxu0 0.0
        %2406 = vmatpush1.msra.mxu0 0.0
        %2407 = vmatprep.subr.mxu0 0.0
        %2408 = vmatpush1.msra.mxu0 0.0
        %2409 = vmatprep.subr.mxu0 0.0
        %2410 = vmatpush1.msra.mxu0 0.0
        %2411 = vmatprep.subr.mxu0 0.0
        %2412 = vmatpush1.msra.mxu0 0.0
        %2413 = vmatprep.subr.mxu0 0.0
        %2414 = vmatpush1.msra.mxu0 0.0
        %2415 = vmatprep.subr.mxu0 0.0
        %2416 = vmatpush1.msra.mxu0 0.0
        %2417 = vmatprep.mubr.f32.mxu0 0.0
        %2418 = vmatmul.mubr.f32.gmra.mrb[0].mxu0 %v2162
        %v2419 = vpop.f32.mrb[0].mxu0
        %v2420 = vadd.f32 0.0, %v2419
        %v2421 = vpop.f32.mrb[0].mxu0
        %2422 = vmatprep.mubr.f32.mxu0 0.0
        %2423 = vmatmul.mubr.f32.gmra.mrb[0].mxu0 %v2165
        %v2424 = vpop.f32.mrb[0].mxu0
        %v2425 = vadd.f32 0.0, %v2424
        %v2426 = vpop.f32.mrb[0].mxu0
        %2427 = vmatprep.mubr.f32.mxu0 0.0
        %2428 = vmatmul.mubr.f32.gmra.mrb[0].mxu0 %v2168
        %v2429 = vpop.f32.mrb[0].mxu0
        %v2430 = vadd.f32 0.0, %v2429
        %v2431 = vpop.f32.mrb[0].mxu0
        %2432 = vmatprep.mubr.f32.mxu0 0.0
        %2433 = vmatmul.mubr.f32.gmra.mrb[0].mxu0 %v2171
        %v2434 = vpop.f32.mrb[0].mxu0
        %v2435 = vadd.f32 0.0, %v2434
        %v2436 = vpop.f32.mrb[0].mxu0
        %2437 = vmatprep.mubr.f32.mxu0 0.0
        %2438 = vmatmul.mubr.f32.gmra.mrb[0].mxu0 %v2174
        %v2439 = vpop.f32.mrb[0].mxu0
        %v2440 = vadd.f32 0.0, %v2439
        %v2441 = vpop.f32.mrb[0].mxu0
        %2442 = vmatprep.mubr.f32.mxu0 0.0
        %2443 = vmatmul.mubr.f32.gmra.mrb[0].mxu0 %v2177
        %v2444 = vpop.f32.mrb[0].mxu0
        %v2445 = vadd.f32 0.0, %v2444
        %v2446 = vpop.f32.mrb[0].mxu0
        %2447 = vmatprep.mubr.f32.mxu0 0.0
        %2448 = vmatmul.mubr.f32.gmra.mrb[0].mxu0 %v2180
        %v2449 = vpop.f32.mrb[0].mxu0
        %v2450 = vadd.f32 0.0, %v2449
        %v2451 = vpop.f32.mrb[0].mxu0
        %2452 = vmatprep.mubr.f32.mxu0 0.0
        %2453 = vmatmul.mubr.f32.gmra.mrb[0].mxu0 %v2183
        %v2454 = vpop.f32.mrb[0].mxu0
        %v2455 = vadd.f32 0.0, %v2454
        %v2456 = vpop.f32.mrb[0].mxu0
        %2457 = vmatprep.mubr.f32.mxu0 0.0
        %2458 = vmatmul.mubr.f32.gmra.mrb[0].mxu0 %v2186
        %v2459 = vpop.f32.mrb[0].mxu0
        %v2460 = vadd.f32 0.0, %v2459
        %v2461 = vpop.f32.mrb[0].mxu0
        %2462 = vmatprep.mubr.f32.mxu0 0.0
        %2463 = vmatmul.mubr.f32.gmra.mrb[0].mxu0 %v2189
        %v2464 = vpop.f32.mrb[0].mxu0
        %v2465 = vadd.f32 0.0, %v2464
        %v2466 = vpop.f32.mrb[0].mxu0
        %2467 = vmatprep.mubr.f32.mxu0 0.0
        %2468 = vmatmul.mubr.f32.gmra.mrb[0].mxu0 %v2192
        %v2469 = vpop.f32.mrb[0].mxu0
        %v2470 = vadd.f32 0.0, %v2469
        %v2471 = vpop.f32.mrb[0].mxu0
        %2472 = vmatprep.mubr.f32.mxu0 0.0
        %2473 = vmatmul.mubr.f32.gmra.mrb[0].mxu0 %v2195
        %v2474 = vpop.f32.mrb[0].mxu0
        %v2475 = vadd.f32 0.0, %v2474
        %v2476 = vpop.f32.mrb[0].mxu0
        %2477 = vmatprep.mubr.f32.mxu0 0.0
        %2478 = vmatmul.mubr.f32.gmra.mrb[0].mxu0 %v2198
        %v2479 = vpop.f32.mrb[0].mxu0
        %v2480 = vadd.f32 0.0, %v2479
        %v2481 = vpop.f32.mrb[0].mxu0
        %2482 = vmatprep.mubr.f32.mxu0 0.0
        %2483 = vmatmul.mubr.f32.gmra.mrb[0].mxu0 %v2201
        %v2484 = vpop.f32.mrb[0].mxu0
        %v2485 = vadd.f32 0.0, %v2484
        %v2486 = vpop.f32.mrb[0].mxu0
        %2487 = vmatprep.mubr.f32.mxu0 0.0
        %2488 = vmatmul.mubr.f32.gmra.mrb[0].mxu0 %v2204
        %v2489 = vpop.f32.mrb[0].mxu0
        %v2490 = vadd.f32 0.0, %v2489
        %v2491 = vpop.f32.mrb[0].mxu0
        %2492 = vmatprep.mubr.f32.mxu0 0.0
        %2493 = vmatmul.mubr.f32.gmra.mrb[0].mxu0 %v2207
        %v2494 = vpop.f32.mrb[0].mxu0
        %v2495 = vadd.f32 0.0, %v2494
        %v2496 = vpop.f32.mrb[0].mxu0
        %2497 = vmatprep.mubr.f32.mxu0 0.0
        %2498 = vmatmul.mubr.f32.gmra.mrb[0].mxu0 %v2210
        %v2499 = vpop.f32.mrb[0].mxu0
        %v2500 = vadd.f32 0.0, %v2499
        %v2501 = vpop.f32.mrb[0].mxu0
        %2502 = vmatprep.mubr.f32.mxu0 0.0
        %2503 = vmatmul.mubr.f32.gmra.mrb[0].mxu0 %v2213
        %v2504 = vpop.f32.mrb[0].mxu0
        %v2505 = vadd.f32 0.0, %v2504
        %v2506 = vpop.f32.mrb[0].mxu0
        %2507 = vmatprep.mubr.f32.mxu0 0.0
        %2508 = vmatmul.mubr.f32.gmra.mrb[0].mxu0 %v2216
        %v2509 = vpop.f32.mrb[0].mxu0
        %v2510 = vadd.f32 0.0, %v2509
        %v2511 = vpop.f32.mrb[0].mxu0
        %2512 = vmatprep.mubr.f32.mxu0 0.0
        %2513 = vmatmul.mubr.f32.gmra.mrb[0].mxu0 %v2219
        %v2514 = vpop.f32.mrb[0].mxu0
        %v2515 = vadd.f32 0.0, %v2514
        %v2516 = vpop.f32.mrb[0].mxu0
        %2517 = vmatprep.mubr.f32.mxu0 0.0
        %2518 = vmatmul.mubr.f32.gmra.mrb[0].mxu0 %v2222
        %v2519 = vpop.f32.mrb[0].mxu0
        %v2520 = vadd.f32 0.0, %v2519
        %v2521 = vpop.f32.mrb[0].mxu0
        %2522 = vmatprep.mubr.f32.mxu0 0.0
        %2523 = vmatmul.mubr.f32.gmra.mrb[0].mxu0 %v2225
        %v2524 = vpop.f32.mrb[0].mxu0
        %v2525 = vadd.f32 0.0, %v2524
        %v2526 = vpop.f32.mrb[0].mxu0
        %2527 = vmatprep.mubr.f32.mxu0 0.0
        %2528 = vmatmul.mubr.f32.gmra.mrb[0].mxu0 %v2228
        %v2529 = vpop.f32.mrb[0].mxu0
        %v2530 = vadd.f32 0.0, %v2529
        %v2531 = vpop.f32.mrb[0].mxu0
        %2532 = vmatprep.mubr.f32.mxu0 0.0
        %2533 = vmatmul.mubr.f32.gmra.mrb[0].mxu0 %v2231
        %v2534 = vpop.f32.mrb[0].mxu0
        %v2535 = vadd.f32 0.0, %v2534
        %v2536 = vpop.f32.mrb[0].mxu0
        %2537 = vmatprep.mubr.f32.mxu0 0.0
        %2538 = vmatmul.mubr.f32.gmra.mrb[0].mxu0 %v2234
        %v2539 = vpop.f32.mrb[0].mxu0
        %v2540 = vadd.f32 0.0, %v2539
        %v2541 = vpop.f32.mrb[0].mxu0
        %2542 = vmatprep.mubr.f32.mxu0 0.0
        %2543 = vmatmul.mubr.f32.gmra.mrb[0].mxu0 %v2237
        %v2544 = vpop.f32.mrb[0].mxu0
        %v2545 = vadd.f32 0.0, %v2544
        %v2546 = vpop.f32.mrb[0].mxu0
        %2547 = vmatprep.mubr.f32.mxu0 0.0
        %2548 = vmatmul.mubr.f32.gmra.mrb[0].mxu0 %v2240
        %v2549 = vpop.f32.mrb[0].mxu0
        %v2550 = vadd.f32 0.0, %v2549
        %v2551 = vpop.f32.mrb[0].mxu0
        %2552 = vmatprep.mubr.f32.mxu0 0.0
        %2553 = vmatmul.mubr.f32.gmra.mrb[0].mxu0 %v2243
        %v2554 = vpop.f32.mrb[0].mxu0
        %v2555 = vadd.f32 0.0, %v2554
        %v2556 = vpop.f32.mrb[0].mxu0
        %2557 = vmatprep.mubr.f32.mxu0 0.0
        %2558 = vmatmul.mubr.f32.gmra.mrb[0].mxu0 %v2246
        %v2559 = vpop.f32.mrb[0].mxu0
        %v2560 = vadd.f32 0.0, %v2559
        %v2561 = vpop.f32.mrb[0].mxu0
        %2562 = vmatprep.mubr.f32.mxu0 0.0
        %2563 = vmatmul.mubr.f32.gmra.mrb[0].mxu0 %v2249
        %v2564 = vpop.f32.mrb[0].mxu0
        %v2565 = vadd.f32 0.0, %v2564
        %v2566 = vpop.f32.mrb[0].mxu0
        %2567 = vmatprep.mubr.f32.mxu0 0.0
        %2568 = vmatmul.mubr.f32.gmra.mrb[0].mxu0 %v2252
        %v2569 = vpop.f32.mrb[0].mxu0
        %v2570 = vadd.f32 0.0, %v2569
        %v2571 = vpop.f32.mrb[0].mxu0
        %2572 = vmatprep.mubr.f32.mxu0 0.0
        %2573 = vmatmul.mubr.f32.gmra.mrb[0].mxu0 %v2255
        %v2574 = vpop.f32.mrb[0].mxu0
        %v2575 = vadd.f32 0.0, %v2574
        %v2576 = vpop.f32.mrb[0].mxu0
        %2577 = vmatprep.mubr.f32.mxu0 0.0
        %2578 = vmatmul.mubr.f32.gmra.mrb[0].mxu0 %v2258
        %v2579 = vpop.f32.mrb[0].mxu0
        %v2580 = vadd.f32 0.0, %v2579
        %v2581 = vpop.f32.mrb[0].mxu0
        %2582 = vmatprep.mubr.f32.mxu0 0.0
        %2583 = vmatmul.mubr.f32.gmra.mrb[0].mxu0 %v2261
        %v2584 = vpop.f32.mrb[0].mxu0
        %v2585 = vadd.f32 0.0, %v2584
        %v2586 = vpop.f32.mrb[0].mxu0
        %2587 = vmatprep.mubr.f32.mxu0 0.0
        %2588 = vmatmul.mubr.f32.gmra.mrb[0].mxu0 %v2264
        %v2589 = vpop.f32.mrb[0].mxu0
        %v2590 = vadd.f32 0.0, %v2589
        %v2591 = vpop.f32.mrb[0].mxu0
        %2592 = vmatprep.mubr.f32.mxu0 0.0
        %2593 = vmatmul.mubr.f32.gmra.mrb[0].mxu0 %v2267
        %v2594 = vpop.f32.mrb[0].mxu0
        %v2595 = vadd.f32 0.0, %v2594
        %v2596 = vpop.f32.mrb[0].mxu0
        %2597 = vmatprep.mubr.f32.mxu0 0.0
        %2598 = vmatmul.mubr.f32.gmra.mrb[0].mxu0 %v2270
        %v2599 = vpop.f32.mrb[0].mxu0
        %v2600 = vadd.f32 0.0, %v2599
        %v2601 = vpop.f32.mrb[0].mxu0
        %2602 = vmatprep.mubr.f32.mxu0 0.0
        %2603 = vmatmul.mubr.f32.gmra.mrb[0].mxu0 %v2273
        %v2604 = vpop.f32.mrb[0].mxu0
        %v2605 = vadd.f32 0.0, %v2604
        %v2606 = vpop.f32.mrb[0].mxu0
        %2607 = vmatprep.mubr.f32.mxu0 0.0
        %2608 = vmatmul.mubr.f32.gmra.mrb[0].mxu0 %v2276
        %v2609 = vpop.f32.mrb[0].mxu0
        %v2610 = vadd.f32 0.0, %v2609
        %v2611 = vpop.f32.mrb[0].mxu0
        %2612 = vmatprep.mubr.f32.mxu0 0.0
        %2613 = vmatmul.mubr.f32.gmra.mrb[0].mxu0 %v2279
        %v2614 = vpop.f32.mrb[0].mxu0
        %v2615 = vadd.f32 0.0, %v2614
        %v2616 = vpop.f32.mrb[0].mxu0
        %2617 = vmatprep.mubr.f32.mxu0 0.0
        %2618 = vmatmul.mubr.f32.gmra.mrb[0].mxu0 %v2282
        %v2619 = vpop.f32.mrb[0].mxu0
        %v2620 = vadd.f32 0.0, %v2619
        %v2621 = vpop.f32.mrb[0].mxu0
        %2622 = vmatprep.mubr.f32.mxu0 0.0
        %2623 = vmatmul.mubr.f32.gmra.mrb[0].mxu0 %v2285
        %v2624 = vpop.f32.mrb[0].mxu0
        %v2625 = vadd.f32 0.0, %v2624
        %v2626 = vpop.f32.mrb[0].mxu0
        %2627 = vmatprep.mubr.f32.mxu0 0.0
        %2628 = vmatmul.mubr.f32.gmra.mrb[0].mxu0 %v2288
        %v2629 = vpop.f32.mrb[0].mxu0
        %v2630 = vadd.f32 0.0, %v2629
        %v2631 = vpop.f32.mrb[0].mxu0
        %2632 = vmatprep.mubr.f32.mxu0 0.0
        %2633 = vmatmul.mubr.f32.gmra.mrb[0].mxu0 %v2291
        %v2634 = vpop.f32.mrb[0].mxu0
        %v2635 = vadd.f32 0.0, %v2634
        %v2636 = vpop.f32.mrb[0].mxu0
        %2637 = vmatprep.mubr.f32.mxu0 0.0
        %2638 = vmatmul.mubr.f32.gmra.mrb[0].mxu0 %v2294
        %v2639 = vpop.f32.mrb[0].mxu0
        %v2640 = vadd.f32 0.0, %v2639
        %v2641 = vpop.f32.mrb[0].mxu0
        %2642 = vmatprep.mubr.f32.mxu0 0.0
        %2643 = vmatmul.mubr.f32.gmra.mrb[0].mxu0 %v2297
        %v2644 = vpop.f32.mrb[0].mxu0
        %v2645 = vadd.f32 0.0, %v2644
        %v2646 = vpop.f32.mrb[0].mxu0
        %2647 = vmatprep.mubr.f32.mxu0 0.0
        %2648 = vmatmul.mubr.f32.gmra.mrb[0].mxu0 %v2300
        %v2649 = vpop.f32.mrb[0].mxu0
        %v2650 = vadd.f32 0.0, %v2649
        %v2651 = vpop.f32.mrb[0].mxu0
        %2652 = vmatprep.mubr.f32.mxu0 0.0
        %2653 = vmatmul.mubr.f32.gmra.mrb[0].mxu0 %v2303
        %v2654 = vpop.f32.mrb[0].mxu0
        %v2655 = vadd.f32 0.0, %v2654
        %v2656 = vpop.f32.mrb[0].mxu0
        %2657 = vmatprep.mubr.f32.mxu0 0.0
        %2658 = vmatmul.mubr.f32.gmra.mrb[0].mxu0 %v2306
        %v2659 = vpop.f32.mrb[0].mxu0
        %v2660 = vadd.f32 0.0, %v2659
        %v2661 = vpop.f32.mrb[0].mxu0
        %2662 = vmatprep.mubr.f32.mxu0 0.0
        %2663 = vmatmul.mubr.f32.gmra.mrb[0].mxu0 %v2309
        %v2664 = vpop.f32.mrb[0].mxu0
        %v2665 = vadd.f32 0.0, %v2664
        %v2666 = vpop.f32.mrb[0].mxu0
        %2667 = vmatprep.mubr.f32.mxu0 0.0
        %2668 = vmatmul.mubr.f32.gmra.mrb[0].mxu0 %v2312
        %v2669 = vpop.f32.mrb[0].mxu0
        %v2670 = vadd.f32 0.0, %v2669
        %v2671 = vpop.f32.mrb[0].mxu0
        %2672 = vmatprep.mubr.f32.mxu0 0.0
        %2673 = vmatmul.mubr.f32.gmra.mrb[0].mxu0 %v2315
        %v2674 = vpop.f32.mrb[0].mxu0
        %v2675 = vadd.f32 0.0, %v2674
        %v2676 = vpop.f32.mrb[0].mxu0
        %2677 = vmatprep.mubr.f32.mxu0 0.0
        %2678 = vmatmul.mubr.f32.gmra.mrb[0].mxu0 %v2318
        %v2679 = vpop.f32.mrb[0].mxu0
        %v2680 = vadd.f32 0.0, %v2679
        %v2681 = vpop.f32.mrb[0].mxu0
        %2682 = vmatprep.mubr.f32.mxu0 0.0
        %2683 = vmatmul.mubr.f32.gmra.mrb[0].mxu0 %v2321
        %v2684 = vpop.f32.mrb[0].mxu0
        %v2685 = vadd.f32 0.0, %v2684
        %v2686 = vpop.f32.mrb[0].mxu0
        %2687 = vmatprep.mubr.f32.mxu0 0.0
        %2688 = vmatmul.mubr.f32.gmra.mrb[0].mxu0 %v2324
        %v2689 = vpop.f32.mrb[0].mxu0
        %v2690 = vadd.f32 0.0, %v2689
        %v2691 = vpop.f32.mrb[0].mxu0
        %2692 = vmatprep.mubr.f32.mxu0 0.0
        %2693 = vmatmul.mubr.f32.gmra.mrb[0].mxu0 %v2327
        %v2694 = vpop.f32.mrb[0].mxu0
        %v2695 = vadd.f32 0.0, %v2694
        %v2696 = vpop.f32.mrb[0].mxu0
        %2697 = vmatprep.mubr.f32.mxu0 0.0
        %2698 = vmatmul.mubr.f32.gmra.mrb[0].mxu0 %v2330
        %v2699 = vpop.f32.mrb[0].mxu0
        %v2700 = vadd.f32 0.0, %v2699
        %v2701 = vpop.f32.mrb[0].mxu0
        %2702 = vmatprep.mubr.f32.mxu0 0.0
        %2703 = vmatmul.mubr.f32.gmra.mrb[0].mxu0 %v2333
        %v2704 = vpop.f32.mrb[0].mxu0
        %v2705 = vadd.f32 0.0, %v2704
        %v2706 = vpop.f32.mrb[0].mxu0
        %2707 = vmatprep.mubr.f32.mxu0 0.0
        %2708 = vmatmul.mubr.f32.gmra.mrb[0].mxu0 %v2336
        %v2709 = vpop.f32.mrb[0].mxu0
        %v2710 = vadd.f32 0.0, %v2709
        %v2711 = vpop.f32.mrb[0].mxu0
        %2712 = vmatprep.mubr.f32.mxu0 0.0
        %2713 = vmatmul.mubr.f32.gmra.mrb[0].mxu0 %v2339
        %v2714 = vpop.f32.mrb[0].mxu0
        %v2715 = vadd.f32 0.0, %v2714
        %v2716 = vpop.f32.mrb[0].mxu0
        %2717 = vmatprep.mubr.f32.mxu0 0.0
        %2718 = vmatmul.mubr.f32.gmra.mrb[0].mxu0 %v2342
        %v2719 = vpop.f32.mrb[0].mxu0
        %v2720 = vadd.f32 0.0, %v2719
        %v2721 = vpop.f32.mrb[0].mxu0
        %2722 = vmatprep.mubr.f32.mxu0 0.0
        %2723 = vmatmul.mubr.f32.gmra.mrb[0].mxu0 %v2345
        %v2724 = vpop.f32.mrb[0].mxu0
        %v2725 = vadd.f32 0.0, %v2724
        %v2726 = vpop.f32.mrb[0].mxu0
        %2727 = vmatprep.mubr.f32.mxu0 0.0
        %2728 = vmatmul.mubr.f32.gmra.mrb[0].mxu0 %v2348
        %v2729 = vpop.f32.mrb[0].mxu0
        %v2730 = vadd.f32 0.0, %v2729
        %v2731 = vpop.f32.mrb[0].mxu0
        %2732 = vmatprep.mubr.f32.mxu0 0.0
        %2733 = vmatmul.mubr.f32.gmra.mrb[0].mxu0 %v2351
        %v2734 = vpop.f32.mrb[0].mxu0
        %v2735 = vadd.f32 0.0, %v2734
        %v2736 = vpop.f32.mrb[0].mxu0
        %2737 = vdwg.mxu0
        %v2738 = vtanh.pop %v2420
        %v2739 = vtanh.pop %v2425
        %v2740 = vtanh.pop %v2430
        %v2741 = vtanh.pop %v2435
        %v2742 = vtanh.pop %v2440
        %v2743 = vtanh.pop %v2445
        %v2744 = vtanh.pop %v2450
        %v2745 = vtanh.pop %v2455
        %v2746 = vtanh.pop %v2460
        %v2747 = vtanh.pop %v2465
        %v2748 = vtanh.pop %v2470
        %v2749 = vtanh.pop %v2475
        %v2750 = vtanh.pop %v2480
        %v2751 = vtanh.pop %v2485
        %v2752 = vtanh.pop %v2490
        %v2753 = vtanh.pop %v2495
        %v2754 = vtanh.pop %v2500
        %v2755 = vtanh.pop %v2505
        %v2756 = vtanh.pop %v2510
        %v2757 = vtanh.pop %v2515
        %v2758 = vtanh.pop %v2520
        %v2759 = vtanh.pop %v2525
        %v2760 = vtanh.pop %v2530
        %v2761 = vtanh.pop %v2535
        %v2762 = vtanh.pop %v2540
        %v2763 = vtanh.pop %v2545
        %v2764 = vtanh.pop %v2550
        %v2765 = vtanh.pop %v2555
        %v2766 = vtanh.pop %v2560
        %v2767 = vtanh.pop %v2565
        %v2768 = vtanh.pop %v2570
        %v2769 = vtanh.pop %v2575
        %v2770 = vtanh.pop %v2580
        %v2771 = vtanh.pop %v2585
        %v2772 = vtanh.pop %v2590
        %v2773 = vtanh.pop %v2595
        %v2774 = vtanh.pop %v2600
        %v2775 = vtanh.pop %v2605
        %v2776 = vtanh.pop %v2610
        %v2777 = vtanh.pop %v2615
        %v2778 = vtanh.pop %v2620
        %v2779 = vtanh.pop %v2625
        %v2780 = vtanh.pop %v2630
        %v2781 = vtanh.pop %v2635
        %v2782 = vtanh.pop %v2640
        %v2783 = vtanh.pop %v2645
        %v2784 = vtanh.pop %v2650
        %v2785 = vtanh.pop %v2655
        %v2786 = vtanh.pop %v2660
        %v2787 = vtanh.pop %v2665
        %v2788 = vtanh.pop %v2670
        %v2789 = vtanh.pop %v2675
        %v2790 = vtanh.pop %v2680
        %v2791 = vtanh.pop %v2685
        %v2792 = vtanh.pop %v2690
        %v2793 = vtanh.pop %v2695
        %v2794 = vtanh.pop %v2700
        %v2795 = vtanh.pop %v2705
        %v2796 = vtanh.pop %v2710
        %v2797 = vtanh.pop %v2715
        %v2798 = vtanh.pop %v2720
        %v2799 = vtanh.pop %v2725
        %v2800 = vtanh.pop %v2730
        %v2801 = vtanh.pop %v2735
        %v2803 = vsel %vm2160, %v2738, 0
        %v2806 = vsel %vm2160, %v2739, 0
        %v2809 = vsel %vm2160, %v2740, 0
        %v2812 = vsel %vm2160, %v2741, 0
        %v2815 = vsel %vm2160, %v2742, 0
        %v2818 = vsel %vm2160, %v2743, 0
        %v2821 = vsel %vm2160, %v2744, 0
        %v2824 = vsel %vm2160, %v2745, 0
        %v2827 = vsel %vm2160, %v2746, 0
        %v2830 = vsel %vm2160, %v2747, 0
        %v2833 = vsel %vm2160, %v2748, 0
        %v2836 = vsel %vm2160, %v2749, 0
        %v2839 = vsel %vm2160, %v2750, 0
        %v2842 = vsel %vm2160, %v2751, 0
        %v2845 = vsel %vm2160, %v2752, 0
        %v2848 = vsel %vm2160, %v2753, 0
        %v2851 = vsel %vm2160, %v2754, 0
        %v2854 = vsel %vm2160, %v2755, 0
        %v2857 = vsel %vm2160, %v2756, 0
        %v2860 = vsel %vm2160, %v2757, 0
        %v2863 = vsel %vm2160, %v2758, 0
        %v2866 = vsel %vm2160, %v2759, 0
        %v2869 = vsel %vm2160, %v2760, 0
        %v2872 = vsel %vm2160, %v2761, 0
        %v2875 = vsel %vm2160, %v2762, 0
        %v2878 = vsel %vm2160, %v2763, 0
        %v2881 = vsel %vm2160, %v2764, 0
        %v2884 = vsel %vm2160, %v2765, 0
        %v2887 = vsel %vm2160, %v2766, 0
        %v2890 = vsel %vm2160, %v2767, 0
        %v2893 = vsel %vm2160, %v2768, 0
        %v2896 = vsel %vm2160, %v2769, 0
        %v2899 = vsel %vm2160, %v2770, 0
        %v2902 = vsel %vm2160, %v2771, 0
        %v2905 = vsel %vm2160, %v2772, 0
        %v2908 = vsel %vm2160, %v2773, 0
        %v2911 = vsel %vm2160, %v2774, 0
        %v2914 = vsel %vm2160, %v2775, 0
        %v2917 = vsel %vm2160, %v2776, 0
        %v2920 = vsel %vm2160, %v2777, 0
        %v2923 = vsel %vm2160, %v2778, 0
        %v2926 = vsel %vm2160, %v2779, 0
        %v2929 = vsel %vm2160, %v2780, 0
        %v2932 = vsel %vm2160, %v2781, 0
        %v2935 = vsel %vm2160, %v2782, 0
        %v2938 = vsel %vm2160, %v2783, 0
        %v2941 = vsel %vm2160, %v2784, 0
        %v2944 = vsel %vm2160, %v2785, 0
        %v2947 = vsel %vm2160, %v2786, 0
        %v2950 = vsel %vm2160, %v2787, 0
        %v2953 = vsel %vm2160, %v2788, 0
        %v2956 = vsel %vm2160, %v2789, 0
        %v2959 = vsel %vm2160, %v2790, 0
        %v2962 = vsel %vm2160, %v2791, 0
        %v2965 = vsel %vm2160, %v2792, 0
        %v2968 = vsel %vm2160, %v2793, 0
        %v2971 = vsel %vm2160, %v2794, 0
        %v2974 = vsel %vm2160, %v2795, 0
        %v2977 = vsel %vm2160, %v2796, 0
        %v2980 = vsel %vm2160, %v2797, 0
        %v2983 = vsel %vm2160, %v2798, 0
        %v2986 = vsel %vm2160, %v2799, 0
        %v2989 = vsel %vm2160, %v2800, 0
        %v2992 = vsel %vm2160, %v2801, 0
        %2994 = vmatprep.subr.mxu0 0.0
        %2995 = vmatpush1.msra.mxu0 %v2084
        %2996 = vmatprep.subr.mxu0 0.0
        %2997 = vmatpush1.msra.mxu0 %v2085
        %2998 = vmatprep.subr.mxu0 0.0
        %2999 = vmatpush1.msra.mxu0 %v2086
        %3000 = vmatprep.subr.mxu0 0.0
        %3001 = vmatpush1.msra.mxu0 %v2087
        %3002 = vmatprep.subr.mxu0 0.0
        %3003 = vmatpush1.msra.mxu0 %v2088
        %3004 = vmatprep.subr.mxu0 0.0
        %3005 = vmatpush1.msra.mxu0 %v2089
        %3006 = vmatprep.subr.mxu0 0.0
        %3007 = vmatpush1.msra.mxu0 %v2090
        %3008 = vmatprep.subr.mxu0 0.0
        %3009 = vmatpush1.msra.mxu0 %v2091
        %3010 = vmatprep.subr.mxu0 0.0
        %3011 = vmatpush1.msra.mxu0 0.0
        %3012 = vmatprep.subr.mxu0 0.0
        %3013 = vmatpush1.msra.mxu0 0.0
        %3014 = vmatprep.subr.mxu0 0.0
        %3015 = vmatpush1.msra.mxu0 0.0
        %3016 = vmatprep.subr.mxu0 0.0
        %3017 = vmatpush1.msra.mxu0 0.0
        %3018 = vmatprep.subr.mxu0 0.0
        %3019 = vmatpush1.msra.mxu0 0.0
        %3020 = vmatprep.subr.mxu0 0.0
        %3021 = vmatpush1.msra.mxu0 0.0
        %3022 = vmatprep.subr.mxu0 0.0
        %3023 = vmatpush1.msra.mxu0 0.0
        %3024 = vmatprep.subr.mxu0 0.0
        %3025 = vmatpush1.msra.mxu0 0.0
        %3026 = vmatprep.subr.mxu0 0.0
        %3027 = vmatpush1.msra.mxu0 0.0
        %3028 = vmatprep.subr.mxu0 0.0
        %3029 = vmatpush1.msra.mxu0 0.0
        %3030 = vmatprep.subr.mxu0 0.0
        %3031 = vmatpush1.msra.mxu0 0.0
        %3032 = vmatprep.subr.mxu0 0.0
        %3033 = vmatpush1.msra.mxu0 0.0
        %3034 = vmatprep.subr.mxu0 0.0
        %3035 = vmatpush1.msra.mxu0 0.0
        %3036 = vmatprep.subr.mxu0 0.0
        %3037 = vmatpush1.msra.mxu0 0.0
        %3038 = vmatprep.subr.mxu0 0.0
        %3039 = vmatpush1.msra.mxu0 0.0
        %3040 = vmatprep.subr.mxu0 0.0
        %3041 = vmatpush1.msra.mxu0 0.0
        %3042 = vmatprep.subr.mxu0 0.0
        %3043 = vmatpush1.msra.mxu0 0.0
        %3044 = vmatprep.subr.mxu0 0.0
        %3045 = vmatpush1.msra.mxu0 0.0
        %3046 = vmatprep.subr.mxu0 0.0
        %3047 = vmatpush1.msra.mxu0 0.0
        %3048 = vmatprep.subr.mxu0 0.0
        %3049 = vmatpush1.msra.mxu0 0.0
        %3050 = vmatprep.subr.mxu0 0.0
        %3051 = vmatpush1.msra.mxu0 0.0
        %3052 = vmatprep.subr.mxu0 0.0
        %3053 = vmatpush1.msra.mxu0 0.0
        %3054 = vmatprep.subr.mxu0 0.0
        %3055 = vmatpush1.msra.mxu0 0.0
        %3056 = vmatprep.subr.mxu0 0.0
        %3057 = vmatpush1.msra.mxu0 0.0
        %3058 = vmatprep.mubr.f32.mxu0 0.0
        %3059 = vmatmul.mubr.f32.gmra.mrb[0].mxu0 %v2803
        %v3060 = vpop.f32.mrb[0].mxu0
        %v3061 = vadd.f32 0.0, %v3060
        %v3062 = vpop.f32.mrb[0].mxu0
        %3063 = vmatprep.mubr.f32.mxu0 0.0
        %3064 = vmatmul.mubr.f32.gmra.mrb[0].mxu0 %v2806
        %v3065 = vpop.f32.mrb[0].mxu0
        %v3066 = vadd.f32 0.0, %v3065
        %v3067 = vpop.f32.mrb[0].mxu0
        %3068 = vmatprep.mubr.f32.mxu0 0.0
        %3069 = vmatmul.mubr.f32.gmra.mrb[0].mxu0 %v2809
        %v3070 = vpop.f32.mrb[0].mxu0
        %v3071 = vadd.f32 0.0, %v3070
        %v3072 = vpop.f32.mrb[0].mxu0
        %3073 = vmatprep.mubr.f32.mxu0 0.0
        %3074 = vmatmul.mubr.f32.gmra.mrb[0].mxu0 %v2812
        %v3075 = vpop.f32.mrb[0].mxu0
        %v3076 = vadd.f32 0.0, %v3075
        %v3077 = vpop.f32.mrb[0].mxu0
        %3078 = vmatprep.mubr.f32.mxu0 0.0
        %3079 = vmatmul.mubr.f32.gmra.mrb[0].mxu0 %v2815
        %v3080 = vpop.f32.mrb[0].mxu0
        %v3081 = vadd.f32 0.0, %v3080
        %v3082 = vpop.f32.mrb[0].mxu0
        %3083 = vmatprep.mubr.f32.mxu0 0.0
        %3084 = vmatmul.mubr.f32.gmra.mrb[0].mxu0 %v2818
        %v3085 = vpop.f32.mrb[0].mxu0
        %v3086 = vadd.f32 0.0, %v3085
        %v3087 = vpop.f32.mrb[0].mxu0
        %3088 = vmatprep.mubr.f32.mxu0 0.0
        %3089 = vmatmul.mubr.f32.gmra.mrb[0].mxu0 %v2821
        %v3090 = vpop.f32.mrb[0].mxu0
        %v3091 = vadd.f32 0.0, %v3090
        %v3092 = vpop.f32.mrb[0].mxu0
        %3093 = vmatprep.mubr.f32.mxu0 0.0
        %3094 = vmatmul.mubr.f32.gmra.mrb[0].mxu0 %v2824
        %v3095 = vpop.f32.mrb[0].mxu0
        %v3096 = vadd.f32 0.0, %v3095
        %v3097 = vpop.f32.mrb[0].mxu0
        %3098 = vmatprep.mubr.f32.mxu0 0.0
        %3099 = vmatmul.mubr.f32.gmra.mrb[0].mxu0 %v2827
        %v3100 = vpop.f32.mrb[0].mxu0
        %v3101 = vadd.f32 0.0, %v3100
        %v3102 = vpop.f32.mrb[0].mxu0
        %3103 = vmatprep.mubr.f32.mxu0 0.0
        %3104 = vmatmul.mubr.f32.gmra.mrb[0].mxu0 %v2830
        %v3105 = vpop.f32.mrb[0].mxu0
        %v3106 = vadd.f32 0.0, %v3105
        %v3107 = vpop.f32.mrb[0].mxu0
        %3108 = vmatprep.mubr.f32.mxu0 0.0
        %3109 = vmatmul.mubr.f32.gmra.mrb[0].mxu0 %v2833
        %v3110 = vpop.f32.mrb[0].mxu0
        %v3111 = vadd.f32 0.0, %v3110
        %v3112 = vpop.f32.mrb[0].mxu0
        %3113 = vmatprep.mubr.f32.mxu0 0.0
        %3114 = vmatmul.mubr.f32.gmra.mrb[0].mxu0 %v2836
        %v3115 = vpop.f32.mrb[0].mxu0
        %v3116 = vadd.f32 0.0, %v3115
        %v3117 = vpop.f32.mrb[0].mxu0
        %3118 = vmatprep.mubr.f32.mxu0 0.0
        %3119 = vmatmul.mubr.f32.gmra.mrb[0].mxu0 %v2839
        %v3120 = vpop.f32.mrb[0].mxu0
        %v3121 = vadd.f32 0.0, %v3120
        %v3122 = vpop.f32.mrb[0].mxu0
        %3123 = vmatprep.mubr.f32.mxu0 0.0
        %3124 = vmatmul.mubr.f32.gmra.mrb[0].mxu0 %v2842
        %v3125 = vpop.f32.mrb[0].mxu0
        %v3126 = vadd.f32 0.0, %v3125
        %v3127 = vpop.f32.mrb[0].mxu0
        %3128 = vmatprep.mubr.f32.mxu0 0.0
        %3129 = vmatmul.mubr.f32.gmra.mrb[0].mxu0 %v2845
        %v3130 = vpop.f32.mrb[0].mxu0
        %v3131 = vadd.f32 0.0, %v3130
        %v3132 = vpop.f32.mrb[0].mxu0
        %3133 = vmatprep.mubr.f32.mxu0 0.0
        %3134 = vmatmul.mubr.f32.gmra.mrb[0].mxu0 %v2848
        %v3135 = vpop.f32.mrb[0].mxu0
        %v3136 = vadd.f32 0.0, %v3135
        %v3137 = vpop.f32.mrb[0].mxu0
        %3138 = vmatprep.mubr.f32.mxu0 0.0
        %3139 = vmatmul.mubr.f32.gmra.mrb[0].mxu0 %v2851
        %v3140 = vpop.f32.mrb[0].mxu0
        %v3141 = vadd.f32 0.0, %v3140
        %v3142 = vpop.f32.mrb[0].mxu0
        %3143 = vmatprep.mubr.f32.mxu0 0.0
        %3144 = vmatmul.mubr.f32.gmra.mrb[0].mxu0 %v2854
        %v3145 = vpop.f32.mrb[0].mxu0
        %v3146 = vadd.f32 0.0, %v3145
        %v3147 = vpop.f32.mrb[0].mxu0
        %3148 = vmatprep.mubr.f32.mxu0 0.0
        %3149 = vmatmul.mubr.f32.gmra.mrb[0].mxu0 %v2857
        %v3150 = vpop.f32.mrb[0].mxu0
        %v3151 = vadd.f32 0.0, %v3150
        %v3152 = vpop.f32.mrb[0].mxu0
        %3153 = vmatprep.mubr.f32.mxu0 0.0
        %3154 = vmatmul.mubr.f32.gmra.mrb[0].mxu0 %v2860
        %v3155 = vpop.f32.mrb[0].mxu0
        %v3156 = vadd.f32 0.0, %v3155
        %v3157 = vpop.f32.mrb[0].mxu0
        %3158 = vmatprep.mubr.f32.mxu0 0.0
        %3159 = vmatmul.mubr.f32.gmra.mrb[0].mxu0 %v2863
        %v3160 = vpop.f32.mrb[0].mxu0
        %v3161 = vadd.f32 0.0, %v3160
        %v3162 = vpop.f32.mrb[0].mxu0
        %3163 = vmatprep.mubr.f32.mxu0 0.0
        %3164 = vmatmul.mubr.f32.gmra.mrb[0].mxu0 %v2866
        %v3165 = vpop.f32.mrb[0].mxu0
        %v3166 = vadd.f32 0.0, %v3165
        %v3167 = vpop.f32.mrb[0].mxu0
        %3168 = vmatprep.mubr.f32.mxu0 0.0
        %3169 = vmatmul.mubr.f32.gmra.mrb[0].mxu0 %v2869
        %v3170 = vpop.f32.mrb[0].mxu0
        %v3171 = vadd.f32 0.0, %v3170
        %v3172 = vpop.f32.mrb[0].mxu0
        %3173 = vmatprep.mubr.f32.mxu0 0.0
        %3174 = vmatmul.mubr.f32.gmra.mrb[0].mxu0 %v2872
        %v3175 = vpop.f32.mrb[0].mxu0
        %v3176 = vadd.f32 0.0, %v3175
        %v3177 = vpop.f32.mrb[0].mxu0
        %3178 = vmatprep.mubr.f32.mxu0 0.0
        %3179 = vmatmul.mubr.f32.gmra.mrb[0].mxu0 %v2875
        %v3180 = vpop.f32.mrb[0].mxu0
        %v3181 = vadd.f32 0.0, %v3180
        %v3182 = vpop.f32.mrb[0].mxu0
        %3183 = vmatprep.mubr.f32.mxu0 0.0
        %3184 = vmatmul.mubr.f32.gmra.mrb[0].mxu0 %v2878
        %v3185 = vpop.f32.mrb[0].mxu0
        %v3186 = vadd.f32 0.0, %v3185
        %v3187 = vpop.f32.mrb[0].mxu0
        %3188 = vmatprep.mubr.f32.mxu0 0.0
        %3189 = vmatmul.mubr.f32.gmra.mrb[0].mxu0 %v2881
        %v3190 = vpop.f32.mrb[0].mxu0
        %v3191 = vadd.f32 0.0, %v3190
        %v3192 = vpop.f32.mrb[0].mxu0
        %3193 = vmatprep.mubr.f32.mxu0 0.0
        %3194 = vmatmul.mubr.f32.gmra.mrb[0].mxu0 %v2884
        %v3195 = vpop.f32.mrb[0].mxu0
        %v3196 = vadd.f32 0.0, %v3195
        %v3197 = vpop.f32.mrb[0].mxu0
        %3198 = vmatprep.mubr.f32.mxu0 0.0
        %3199 = vmatmul.mubr.f32.gmra.mrb[0].mxu0 %v2887
        %v3200 = vpop.f32.mrb[0].mxu0
        %v3201 = vadd.f32 0.0, %v3200
        %v3202 = vpop.f32.mrb[0].mxu0
        %3203 = vmatprep.mubr.f32.mxu0 0.0
        %3204 = vmatmul.mubr.f32.gmra.mrb[0].mxu0 %v2890
        %v3205 = vpop.f32.mrb[0].mxu0
        %v3206 = vadd.f32 0.0, %v3205
        %v3207 = vpop.f32.mrb[0].mxu0
        %3208 = vmatprep.mubr.f32.mxu0 0.0
        %3209 = vmatmul.mubr.f32.gmra.mrb[0].mxu0 %v2893
        %v3210 = vpop.f32.mrb[0].mxu0
        %v3211 = vadd.f32 0.0, %v3210
        %v3212 = vpop.f32.mrb[0].mxu0
        %3213 = vmatprep.mubr.f32.mxu0 0.0
        %3214 = vmatmul.mubr.f32.gmra.mrb[0].mxu0 %v2896
        %v3215 = vpop.f32.mrb[0].mxu0
        %v3216 = vadd.f32 0.0, %v3215
        %v3217 = vpop.f32.mrb[0].mxu0
        %3218 = vmatprep.mubr.f32.mxu0 0.0
        %3219 = vmatmul.mubr.f32.gmra.mrb[0].mxu0 %v2899
        %v3220 = vpop.f32.mrb[0].mxu0
        %v3221 = vadd.f32 0.0, %v3220
        %v3222 = vpop.f32.mrb[0].mxu0
        %3223 = vmatprep.mubr.f32.mxu0 0.0
        %3224 = vmatmul.mubr.f32.gmra.mrb[0].mxu0 %v2902
        %v3225 = vpop.f32.mrb[0].mxu0
        %v3226 = vadd.f32 0.0, %v3225
        %v3227 = vpop.f32.mrb[0].mxu0
        %3228 = vmatprep.mubr.f32.mxu0 0.0
        %3229 = vmatmul.mubr.f32.gmra.mrb[0].mxu0 %v2905
        %v3230 = vpop.f32.mrb[0].mxu0
        %v3231 = vadd.f32 0.0, %v3230
        %v3232 = vpop.f32.mrb[0].mxu0
        %3233 = vmatprep.mubr.f32.mxu0 0.0
        %3234 = vmatmul.mubr.f32.gmra.mrb[0].mxu0 %v2908
        %v3235 = vpop.f32.mrb[0].mxu0
        %v3236 = vadd.f32 0.0, %v3235
        %v3237 = vpop.f32.mrb[0].mxu0
        %3238 = vmatprep.mubr.f32.mxu0 0.0
        %3239 = vmatmul.mubr.f32.gmra.mrb[0].mxu0 %v2911
        %v3240 = vpop.f32.mrb[0].mxu0
        %v3241 = vadd.f32 0.0, %v3240
        %v3242 = vpop.f32.mrb[0].mxu0
        %3243 = vmatprep.mubr.f32.mxu0 0.0
        %3244 = vmatmul.mubr.f32.gmra.mrb[0].mxu0 %v2914
        %v3245 = vpop.f32.mrb[0].mxu0
        %v3246 = vadd.f32 0.0, %v3245
        %v3247 = vpop.f32.mrb[0].mxu0
        %3248 = vmatprep.mubr.f32.mxu0 0.0
        %3249 = vmatmul.mubr.f32.gmra.mrb[0].mxu0 %v2917
        %v3250 = vpop.f32.mrb[0].mxu0
        %v3251 = vadd.f32 0.0, %v3250
        %v3252 = vpop.f32.mrb[0].mxu0
        %3253 = vmatprep.mubr.f32.mxu0 0.0
        %3254 = vmatmul.mubr.f32.gmra.mrb[0].mxu0 %v2920
        %v3255 = vpop.f32.mrb[0].mxu0
        %v3256 = vadd.f32 0.0, %v3255
        %v3257 = vpop.f32.mrb[0].mxu0
        %3258 = vmatprep.mubr.f32.mxu0 0.0
        %3259 = vmatmul.mubr.f32.gmra.mrb[0].mxu0 %v2923
        %v3260 = vpop.f32.mrb[0].mxu0
        %v3261 = vadd.f32 0.0, %v3260
        %v3262 = vpop.f32.mrb[0].mxu0
        %3263 = vmatprep.mubr.f32.mxu0 0.0
        %3264 = vmatmul.mubr.f32.gmra.mrb[0].mxu0 %v2926
        %v3265 = vpop.f32.mrb[0].mxu0
        %v3266 = vadd.f32 0.0, %v3265
        %v3267 = vpop.f32.mrb[0].mxu0
        %3268 = vmatprep.mubr.f32.mxu0 0.0
        %3269 = vmatmul.mubr.f32.gmra.mrb[0].mxu0 %v2929
        %v3270 = vpop.f32.mrb[0].mxu0
        %v3271 = vadd.f32 0.0, %v3270
        %v3272 = vpop.f32.mrb[0].mxu0
        %3273 = vmatprep.mubr.f32.mxu0 0.0
        %3274 = vmatmul.mubr.f32.gmra.mrb[0].mxu0 %v2932
        %v3275 = vpop.f32.mrb[0].mxu0
        %v3276 = vadd.f32 0.0, %v3275
        %v3277 = vpop.f32.mrb[0].mxu0
        %3278 = vmatprep.mubr.f32.mxu0 0.0
        %3279 = vmatmul.mubr.f32.gmra.mrb[0].mxu0 %v2935
        %v3280 = vpop.f32.mrb[0].mxu0
        %v3281 = vadd.f32 0.0, %v3280
        %v3282 = vpop.f32.mrb[0].mxu0
        %3283 = vmatprep.mubr.f32.mxu0 0.0
        %3284 = vmatmul.mubr.f32.gmra.mrb[0].mxu0 %v2938
        %v3285 = vpop.f32.mrb[0].mxu0
        %v3286 = vadd.f32 0.0, %v3285
        %v3287 = vpop.f32.mrb[0].mxu0
        %3288 = vmatprep.mubr.f32.mxu0 0.0
        %3289 = vmatmul.mubr.f32.gmra.mrb[0].mxu0 %v2941
        %v3290 = vpop.f32.mrb[0].mxu0
        %v3291 = vadd.f32 0.0, %v3290
        %v3292 = vpop.f32.mrb[0].mxu0
        %3293 = vmatprep.mubr.f32.mxu0 0.0
        %3294 = vmatmul.mubr.f32.gmra.mrb[0].mxu0 %v2944
        %v3295 = vpop.f32.mrb[0].mxu0
        %v3296 = vadd.f32 0.0, %v3295
        %v3297 = vpop.f32.mrb[0].mxu0
        %3298 = vmatprep.mubr.f32.mxu0 0.0
        %3299 = vmatmul.mubr.f32.gmra.mrb[0].mxu0 %v2947
        %v3300 = vpop.f32.mrb[0].mxu0
        %v3301 = vadd.f32 0.0, %v3300
        %v3302 = vpop.f32.mrb[0].mxu0
        %3303 = vmatprep.mubr.f32.mxu0 0.0
        %3304 = vmatmul.mubr.f32.gmra.mrb[0].mxu0 %v2950
        %v3305 = vpop.f32.mrb[0].mxu0
        %v3306 = vadd.f32 0.0, %v3305
        %v3307 = vpop.f32.mrb[0].mxu0
        %3308 = vmatprep.mubr.f32.mxu0 0.0
        %3309 = vmatmul.mubr.f32.gmra.mrb[0].mxu0 %v2953
        %v3310 = vpop.f32.mrb[0].mxu0
        %v3311 = vadd.f32 0.0, %v3310
        %v3312 = vpop.f32.mrb[0].mxu0
        %3313 = vmatprep.mubr.f32.mxu0 0.0
        %3314 = vmatmul.mubr.f32.gmra.mrb[0].mxu0 %v2956
        %v3315 = vpop.f32.mrb[0].mxu0
        %v3316 = vadd.f32 0.0, %v3315
        %v3317 = vpop.f32.mrb[0].mxu0
        %3318 = vmatprep.mubr.f32.mxu0 0.0
        %3319 = vmatmul.mubr.f32.gmra.mrb[0].mxu0 %v2959
        %v3320 = vpop.f32.mrb[0].mxu0
        %v3321 = vadd.f32 0.0, %v3320
        %v3322 = vpop.f32.mrb[0].mxu0
        %3323 = vmatprep.mubr.f32.mxu0 0.0
        %3324 = vmatmul.mubr.f32.gmra.mrb[0].mxu0 %v2962
        %v3325 = vpop.f32.mrb[0].mxu0
        %v3326 = vadd.f32 0.0, %v3325
        %v3327 = vpop.f32.mrb[0].mxu0
        %3328 = vmatprep.mubr.f32.mxu0 0.0
        %3329 = vmatmul.mubr.f32.gmra.mrb[0].mxu0 %v2965
        %v3330 = vpop.f32.mrb[0].mxu0
        %v3331 = vadd.f32 0.0, %v3330
        %v3332 = vpop.f32.mrb[0].mxu0
        %3333 = vmatprep.mubr.f32.mxu0 0.0
        %3334 = vmatmul.mubr.f32.gmra.mrb[0].mxu0 %v2968
        %v3335 = vpop.f32.mrb[0].mxu0
        %v3336 = vadd.f32 0.0, %v3335
        %v3337 = vpop.f32.mrb[0].mxu0
        %3338 = vmatprep.mubr.f32.mxu0 0.0
        %3339 = vmatmul.mubr.f32.gmra.mrb[0].mxu0 %v2971
        %v3340 = vpop.f32.mrb[0].mxu0
        %v3341 = vadd.f32 0.0, %v3340
        %v3342 = vpop.f32.mrb[0].mxu0
        %3343 = vmatprep.mubr.f32.mxu0 0.0
        %3344 = vmatmul.mubr.f32.gmra.mrb[0].mxu0 %v2974
        %v3345 = vpop.f32.mrb[0].mxu0
        %v3346 = vadd.f32 0.0, %v3345
        %v3347 = vpop.f32.mrb[0].mxu0
        %3348 = vmatprep.mubr.f32.mxu0 0.0
        %3349 = vmatmul.mubr.f32.gmra.mrb[0].mxu0 %v2977
        %v3350 = vpop.f32.mrb[0].mxu0
        %v3351 = vadd.f32 0.0, %v3350
        %v3352 = vpop.f32.mrb[0].mxu0
        %3353 = vmatprep.mubr.f32.mxu0 0.0
        %3354 = vmatmul.mubr.f32.gmra.mrb[0].mxu0 %v2980
        %v3355 = vpop.f32.mrb[0].mxu0
        %v3356 = vadd.f32 0.0, %v3355
        %v3357 = vpop.f32.mrb[0].mxu0
        %3358 = vmatprep.mubr.f32.mxu0 0.0
        %3359 = vmatmul.mubr.f32.gmra.mrb[0].mxu0 %v2983
        %v3360 = vpop.f32.mrb[0].mxu0
        %v3361 = vadd.f32 0.0, %v3360
        %v3362 = vpop.f32.mrb[0].mxu0
        %3363 = vmatprep.mubr.f32.mxu0 0.0
        %3364 = vmatmul.mubr.f32.gmra.mrb[0].mxu0 %v2986
        %v3365 = vpop.f32.mrb[0].mxu0
        %v3366 = vadd.f32 0.0, %v3365
        %v3367 = vpop.f32.mrb[0].mxu0
        %3368 = vmatprep.mubr.f32.mxu0 0.0
        %3369 = vmatmul.mubr.f32.gmra.mrb[0].mxu0 %v2989
        %v3370 = vpop.f32.mrb[0].mxu0
        %v3371 = vadd.f32 0.0, %v3370
        %v3372 = vpop.f32.mrb[0].mxu0
        %3373 = vmatprep.mubr.f32.mxu0 0.0
        %3374 = vmatmul.mubr.f32.gmra.mrb[0].mxu0 %v2992
        %v3375 = vpop.f32.mrb[0].mxu0
        %v3376 = vadd.f32 0.0, %v3375
        %v3377 = vpop.f32.mrb[0].mxu0
        %3378 = vdwg.mxu0
        %v3379 = vtanh.pop %v3061
        %v3380 = vtanh.pop %v3066
        %v3381 = vtanh.pop %v3071
        %v3382 = vtanh.pop %v3076
        %v3383 = vtanh.pop %v3081
        %v3384 = vtanh.pop %v3086
        %v3385 = vtanh.pop %v3091
        %v3386 = vtanh.pop %v3096
        %v3387 = vtanh.pop %v3101
        %v3388 = vtanh.pop %v3106
        %v3389 = vtanh.pop %v3111
        %v3390 = vtanh.pop %v3116
        %v3391 = vtanh.pop %v3121
        %v3392 = vtanh.pop %v3126
        %v3393 = vtanh.pop %v3131
        %v3394 = vtanh.pop %v3136
        %v3395 = vtanh.pop %v3141
        %v3396 = vtanh.pop %v3146
        %v3397 = vtanh.pop %v3151
        %v3398 = vtanh.pop %v3156
        %v3399 = vtanh.pop %v3161
        %v3400 = vtanh.pop %v3166
        %v3401 = vtanh.pop %v3171
        %v3402 = vtanh.pop %v3176
        %v3403 = vtanh.pop %v3181
        %v3404 = vtanh.pop %v3186
        %v3405 = vtanh.pop %v3191
        %v3406 = vtanh.pop %v3196
        %v3407 = vtanh.pop %v3201
        %v3408 = vtanh.pop %v3206
        %v3409 = vtanh.pop %v3211
        %v3410 = vtanh.pop %v3216
        %v3411 = vtanh.pop %v3221
        %v3412 = vtanh.pop %v3226
        %v3413 = vtanh.pop %v3231
        %v3414 = vtanh.pop %v3236
        %v3415 = vtanh.pop %v3241
        %v3416 = vtanh.pop %v3246
        %v3417 = vtanh.pop %v3251
        %v3418 = vtanh.pop %v3256
        %v3419 = vtanh.pop %v3261
        %v3420 = vtanh.pop %v3266
        %v3421 = vtanh.pop %v3271
        %v3422 = vtanh.pop %v3276
        %v3423 = vtanh.pop %v3281
        %v3424 = vtanh.pop %v3286
        %v3425 = vtanh.pop %v3291
        %v3426 = vtanh.pop %v3296
        %v3427 = vtanh.pop %v3301
        %v3428 = vtanh.pop %v3306
        %v3429 = vtanh.pop %v3311
        %v3430 = vtanh.pop %v3316
        %v3431 = vtanh.pop %v3321
        %v3432 = vtanh.pop %v3326
        %v3433 = vtanh.pop %v3331
        %v3434 = vtanh.pop %v3336
        %v3435 = vtanh.pop %v3341
        %v3436 = vtanh.pop %v3346
        %v3437 = vtanh.pop %v3351
        %v3438 = vtanh.pop %v3356
        %v3439 = vtanh.pop %v3361
        %v3440 = vtanh.pop %v3366
        %v3441 = vtanh.pop %v3371
        %v3442 = vtanh.pop %v3376
        %v3445 = vunpack.c.l.s4 1966171168
        %v3446 = vunpack.c.0.s8 %v3445
        %v3447 = vlaneseq
        %v3448 = vshrl.u32 %v3447, 7
        %v3449 = vsub.s32 %v3446, %v3448
        %v3450 = vrot.slane %v2093, %v3449
        %v3451 = vcombine.high %v3450, %v3450
        %v3453 = vunpack.c.l.s4 1966171168
        %v3454 = vunpack.c.0.s8 %v3453
        %v3455 = vlaneseq
        %v3456 = vshrl.u32 %v3455, 7
        %v3457 = vsub.s32 %v3454, %v3456
        %v3458 = vrot.slane %v3450, %v3457
        %v3460 = vunpack.c.l.s4 1966171168
        %v3461 = vunpack.c.0.s8 %v3460
        %v3462 = vlaneseq
        %v3463 = vshrl.u32 %v3462, 7
        %v3464 = vsub.s32 %v3461, %v3463
        %v3465 = vrot.slane %v3451, %v3464
        %v3466 = vcombine.high %v3458, %v3458
        %v3467 = vcombine.high %v3465, %v3465
        %v3468 = vlaneseq
        %v3469 = vshrl.u32 %v3468, 7
        %v3470 = vsub.s32 0, %v3469
        %v3471 = vrot.slane %v3458, %v3470
        %v3472 = vlaneseq
        %v3473 = vshrl.u32 %v3472, 7
        %v3474 = vsub.s32 0, %v3473
        %v3475 = vrot.slane %v3465, %v3474
        %v3476 = vlaneseq
        %v3477 = vshrl.u32 %v3476, 7
        %v3478 = vsub.s32 0, %v3477
        %v3479 = vrot.slane %v3466, %v3478
        %v3480 = vlaneseq
        %v3481 = vshrl.u32 %v3480, 7
        %v3482 = vsub.s32 0, %v3481
        %v3483 = vrot.slane %v3467, %v3482
        %v3488 = vmul.f32 %v3379, %v3471
        %v3489 = vmul.f32 %v3380, %v3471
        %v3490 = vmul.f32 %v3381, %v3471
        %v3491 = vmul.f32 %v3382, %v3471
        %v3492 = vmul.f32 %v3383, %v3471
        %v3493 = vmul.f32 %v3384, %v3471
        %v3494 = vmul.f32 %v3385, %v3471
        %v3495 = vmul.f32 %v3386, %v3471
        %v3496 = vmul.f32 %v3387, %v3471
        %v3497 = vmul.f32 %v3388, %v3471
        %v3498 = vmul.f32 %v3389, %v3471
        %v3499 = vmul.f32 %v3390, %v3471
        %v3500 = vmul.f32 %v3391, %v3471
        %v3501 = vmul.f32 %v3392, %v3471
        %v3502 = vmul.f32 %v3393, %v3471
        %v3503 = vmul.f32 %v3394, %v3471
        %v3504 = vmul.f32 %v3395, %v3475
        %v3505 = vmul.f32 %v3396, %v3475
        %v3506 = vmul.f32 %v3397, %v3475
        %v3507 = vmul.f32 %v3398, %v3475
        %v3508 = vmul.f32 %v3399, %v3475
        %v3509 = vmul.f32 %v3400, %v3475
        %v3510 = vmul.f32 %v3401, %v3475
        %v3511 = vmul.f32 %v3402, %v3475
        %v3512 = vmul.f32 %v3403, %v3475
        %v3513 = vmul.f32 %v3404, %v3475
        %v3514 = vmul.f32 %v3405, %v3475
        %v3515 = vmul.f32 %v3406, %v3475
        %v3516 = vmul.f32 %v3407, %v3475
        %v3517 = vmul.f32 %v3408, %v3475
        %v3518 = vmul.f32 %v3409, %v3475
        %v3519 = vmul.f32 %v3410, %v3475
        %v3520 = vmul.f32 %v3411, %v3479
        %v3521 = vmul.f32 %v3412, %v3479
        %v3522 = vmul.f32 %v3413, %v3479
        %v3523 = vmul.f32 %v3414, %v3479
        %v3524 = vmul.f32 %v3415, %v3479
        %v3525 = vmul.f32 %v3416, %v3479
        %v3526 = vmul.f32 %v3417, %v3479
        %v3527 = vmul.f32 %v3418, %v3479
        %v3528 = vmul.f32 %v3419, %v3479
        %v3529 = vmul.f32 %v3420, %v3479
        %v3530 = vmul.f32 %v3421, %v3479
        %v3531 = vmul.f32 %v3422, %v3479
        %v3532 = vmul.f32 %v3423, %v3479
        %v3533 = vmul.f32 %v3424, %v3479
        %v3534 = vmul.f32 %v3425, %v3479
        %v3535 = vmul.f32 %v3426, %v3479
        %v3536 = vmul.f32 %v3427, %v3483
        %v3537 = vmul.f32 %v3428, %v3483
        %v3538 = vmul.f32 %v3429, %v3483
        %v3539 = vmul.f32 %v3430, %v3483
        %v3540 = vmul.f32 %v3431, %v3483
        %v3541 = vmul.f32 %v3432, %v3483
        %v3542 = vmul.f32 %v3433, %v3483
        %v3543 = vmul.f32 %v3434, %v3483
        %v3544 = vmul.f32 %v3435, %v3483
        %v3545 = vmul.f32 %v3436, %v3483
        %v3546 = vmul.f32 %v3437, %v3483
        %v3547 = vmul.f32 %v3438, %v3483
        %v3548 = vmul.f32 %v3439, %v3483
        %v3549 = vmul.f32 %v3440, %v3483
        %v3550 = vmul.f32 %v3441, %v3483
        %v3551 = vmul.f32 %v3442, %v3483
        %vm3552 = vcmask 64512
        %v3554 = vsel %vm3552, %v3488, 0
        %v3557 = vsel %vm3552, %v3489, 0
        %v3560 = vsel %vm3552, %v3490, 0
        %v3563 = vsel %vm3552, %v3491, 0
        %v3566 = vsel %vm3552, %v3492, 0
        %v3569 = vsel %vm3552, %v3493, 0
        %v3572 = vsel %vm3552, %v3494, 0
        %v3575 = vsel %vm3552, %v3495, 0
        %v3578 = vsel %vm3552, %v3496, 0
        %v3581 = vsel %vm3552, %v3497, 0
        %v3584 = vsel %vm3552, %v3498, 0
        %v3587 = vsel %vm3552, %v3499, 0
        %v3590 = vsel %vm3552, %v3500, 0
        %v3593 = vsel %vm3552, %v3501, 0
        %v3596 = vsel %vm3552, %v3502, 0
        %v3599 = vsel %vm3552, %v3503, 0
        %v3602 = vsel %vm3552, %v3504, 0
        %v3605 = vsel %vm3552, %v3505, 0
        %v3608 = vsel %vm3552, %v3506, 0
        %v3611 = vsel %vm3552, %v3507, 0
        %v3614 = vsel %vm3552, %v3508, 0
        %v3617 = vsel %vm3552, %v3509, 0
        %v3620 = vsel %vm3552, %v3510, 0
        %v3623 = vsel %vm3552, %v3511, 0
        %v3626 = vsel %vm3552, %v3512, 0
        %v3629 = vsel %vm3552, %v3513, 0
        %v3632 = vsel %vm3552, %v3514, 0
        %v3635 = vsel %vm3552, %v3515, 0
        %v3638 = vsel %vm3552, %v3516, 0
        %v3641 = vsel %vm3552, %v3517, 0
        %v3644 = vsel %vm3552, %v3518, 0
        %v3647 = vsel %vm3552, %v3519, 0
        %v3650 = vsel %vm3552, %v3520, 0
        %v3653 = vsel %vm3552, %v3521, 0
        %v3656 = vsel %vm3552, %v3522, 0
        %v3659 = vsel %vm3552, %v3523, 0
        %v3662 = vsel %vm3552, %v3524, 0
        %v3665 = vsel %vm3552, %v3525, 0
        %v3668 = vsel %vm3552, %v3526, 0
        %v3671 = vsel %vm3552, %v3527, 0
        %v3674 = vsel %vm3552, %v3528, 0
        %v3677 = vsel %vm3552, %v3529, 0
        %v3680 = vsel %vm3552, %v3530, 0
        %v3683 = vsel %vm3552, %v3531, 0
        %v3686 = vsel %vm3552, %v3532, 0
        %v3689 = vsel %vm3552, %v3533, 0
        %v3692 = vsel %vm3552, %v3534, 0
        %v3695 = vsel %vm3552, %v3535, 0
        %v3698 = vsel %vm3552, %v3536, 0
        %v3701 = vsel %vm3552, %v3537, 0
        %v3704 = vsel %vm3552, %v3538, 0
        %v3707 = vsel %vm3552, %v3539, 0
        %v3710 = vsel %vm3552, %v3540, 0
        %v3713 = vsel %vm3552, %v3541, 0
        %v3716 = vsel %vm3552, %v3542, 0
        %v3719 = vsel %vm3552, %v3543, 0
        %v3722 = vsel %vm3552, %v3544, 0
        %v3725 = vsel %vm3552, %v3545, 0
        %v3728 = vsel %vm3552, %v3546, 0
        %v3731 = vsel %vm3552, %v3547, 0
        %v3734 = vsel %vm3552, %v3548, 0
        %v3737 = vsel %vm3552, %v3549, 0
        %v3740 = vsel %vm3552, %v3550, 0
        %v3743 = vsel %vm3552, %v3551, 0
        %3745 = vmatprep.subr.mxu0 0.0
        %3746 = vmatpush1.msra.mxu0 %v2092
        %3747 = vmatprep.subr.mxu0 0.0
        %3748 = vmatpush1.msra.mxu0 0.0
        %3749 = vmatprep.subr.mxu0 0.0
        %3750 = vmatpush1.msra.mxu0 0.0
        %3751 = vmatprep.subr.mxu0 0.0
        %3752 = vmatpush1.msra.mxu0 0.0
        %3753 = vmatprep.subr.mxu0 0.0
        %3754 = vmatpush1.msra.mxu0 0.0
        %3755 = vmatprep.subr.mxu0 0.0
        %3756 = vmatpush1.msra.mxu0 0.0
        %3757 = vmatprep.subr.mxu0 0.0
        %3758 = vmatpush1.msra.mxu0 0.0
        %3759 = vmatprep.subr.mxu0 0.0
        %3760 = vmatpush1.msra.mxu0 0.0
        %3761 = vmatprep.subr.mxu0 0.0
        %3762 = vmatpush1.msra.mxu0 0.0
        %3763 = vmatprep.subr.mxu0 0.0
        %3764 = vmatpush1.msra.mxu0 0.0
        %3765 = vmatprep.subr.mxu0 0.0
        %3766 = vmatpush1.msra.mxu0 0.0
        %3767 = vmatprep.subr.mxu0 0.0
        %3768 = vmatpush1.msra.mxu0 0.0
        %3769 = vmatprep.subr.mxu0 0.0
        %3770 = vmatpush1.msra.mxu0 0.0
        %3771 = vmatprep.subr.mxu0 0.0
        %3772 = vmatpush1.msra.mxu0 0.0
        %3773 = vmatprep.subr.mxu0 0.0
        %3774 = vmatpush1.msra.mxu0 0.0
        %3775 = vmatprep.subr.mxu0 0.0
        %3776 = vmatpush1.msra.mxu0 0.0
        %3777 = vmatprep.subr.mxu0 0.0
        %3778 = vmatpush1.msra.mxu0 0.0
        %3779 = vmatprep.subr.mxu0 0.0
        %3780 = vmatpush1.msra.mxu0 0.0
        %3781 = vmatprep.subr.mxu0 0.0
        %3782 = vmatpush1.msra.mxu0 0.0
        %3783 = vmatprep.subr.mxu0 0.0
        %3784 = vmatpush1.msra.mxu0 0.0
        %3785 = vmatprep.subr.mxu0 0.0
        %3786 = vmatpush1.msra.mxu0 0.0
        %3787 = vmatprep.subr.mxu0 0.0
        %3788 = vmatpush1.msra.mxu0 0.0
        %3789 = vmatprep.subr.mxu0 0.0
        %3790 = vmatpush1.msra.mxu0 0.0
        %3791 = vmatprep.subr.mxu0 0.0
        %3792 = vmatpush1.msra.mxu0 0.0
        %3793 = vmatprep.subr.mxu0 0.0
        %3794 = vmatpush1.msra.mxu0 0.0
        %3795 = vmatprep.subr.mxu0 0.0
        %3796 = vmatpush1.msra.mxu0 0.0
        %3797 = vmatprep.subr.mxu0 0.0
        %3798 = vmatpush1.msra.mxu0 0.0
        %3799 = vmatprep.subr.mxu0 0.0
        %3800 = vmatpush1.msra.mxu0 0.0
        %3801 = vmatprep.subr.mxu0 0.0
        %3802 = vmatpush1.msra.mxu0 0.0
        %3803 = vmatprep.subr.mxu0 0.0
        %3804 = vmatpush1.msra.mxu0 0.0
        %3805 = vmatprep.subr.mxu0 0.0
        %3806 = vmatpush1.msra.mxu0 0.0
        %3807 = vmatprep.subr.mxu0 0.0
        %3808 = vmatpush1.msra.mxu0 0.0
        %3809 = vmatprep.mubr.f32.mxu0 0.0
        %3810 = vmatmul.mubr.f32.gmra.mrb[0].mxu0 %v3554
        %v3811 = vpop.f32.mrb[0].mxu0
        %v3812 = vadd.f32 0.0, %v3811
        %v3813 = vpop.f32.mrb[0].mxu0
        %3814 = vmatprep.mubr.f32.mxu0 0.0
        %3815 = vmatmul.mubr.f32.gmra.mrb[0].mxu0 %v3557
        %v3816 = vpop.f32.mrb[0].mxu0
        %v3817 = vadd.f32 0.0, %v3816
        %v3818 = vpop.f32.mrb[0].mxu0
        %3819 = vmatprep.mubr.f32.mxu0 0.0
        %3820 = vmatmul.mubr.f32.gmra.mrb[0].mxu0 %v3560
        %v3821 = vpop.f32.mrb[0].mxu0
        %v3822 = vadd.f32 0.0, %v3821
        %v3823 = vpop.f32.mrb[0].mxu0
        %3824 = vmatprep.mubr.f32.mxu0 0.0
        %3825 = vmatmul.mubr.f32.gmra.mrb[0].mxu0 %v3563
        %v3826 = vpop.f32.mrb[0].mxu0
        %v3827 = vadd.f32 0.0, %v3826
        %v3828 = vpop.f32.mrb[0].mxu0
        %3829 = vmatprep.mubr.f32.mxu0 0.0
        %3830 = vmatmul.mubr.f32.gmra.mrb[0].mxu0 %v3566
        %v3831 = vpop.f32.mrb[0].mxu0
        %v3832 = vadd.f32 0.0, %v3831
        %v3833 = vpop.f32.mrb[0].mxu0
        %3834 = vmatprep.mubr.f32.mxu0 0.0
        %3835 = vmatmul.mubr.f32.gmra.mrb[0].mxu0 %v3569
        %v3836 = vpop.f32.mrb[0].mxu0
        %v3837 = vadd.f32 0.0, %v3836
        %v3838 = vpop.f32.mrb[0].mxu0
        %3839 = vmatprep.mubr.f32.mxu0 0.0
        %3840 = vmatmul.mubr.f32.gmra.mrb[0].mxu0 %v3572
        %v3841 = vpop.f32.mrb[0].mxu0
        %v3842 = vadd.f32 0.0, %v3841
        %v3843 = vpop.f32.mrb[0].mxu0
        %3844 = vmatprep.mubr.f32.mxu0 0.0
        %3845 = vmatmul.mubr.f32.gmra.mrb[0].mxu0 %v3575
        %v3846 = vpop.f32.mrb[0].mxu0
        %v3847 = vadd.f32 0.0, %v3846
        %v3848 = vpop.f32.mrb[0].mxu0
        %3849 = vmatprep.mubr.f32.mxu0 0.0
        %3850 = vmatmul.mubr.f32.gmra.mrb[0].mxu0 %v3578
        %v3851 = vpop.f32.mrb[0].mxu0
        %v3852 = vadd.f32 0.0, %v3851
        %v3853 = vpop.f32.mrb[0].mxu0
        %3854 = vmatprep.mubr.f32.mxu0 0.0
        %3855 = vmatmul.mubr.f32.gmra.mrb[0].mxu0 %v3581
        %v3856 = vpop.f32.mrb[0].mxu0
        %v3857 = vadd.f32 0.0, %v3856
        %v3858 = vpop.f32.mrb[0].mxu0
        %3859 = vmatprep.mubr.f32.mxu0 0.0
        %3860 = vmatmul.mubr.f32.gmra.mrb[0].mxu0 %v3584
        %v3861 = vpop.f32.mrb[0].mxu0
        %v3862 = vadd.f32 0.0, %v3861
        %v3863 = vpop.f32.mrb[0].mxu0
        %3864 = vmatprep.mubr.f32.mxu0 0.0
        %3865 = vmatmul.mubr.f32.gmra.mrb[0].mxu0 %v3587
        %v3866 = vpop.f32.mrb[0].mxu0
        %v3867 = vadd.f32 0.0, %v3866
        %v3868 = vpop.f32.mrb[0].mxu0
        %3869 = vmatprep.mubr.f32.mxu0 0.0
        %3870 = vmatmul.mubr.f32.gmra.mrb[0].mxu0 %v3590
        %v3871 = vpop.f32.mrb[0].mxu0
        %v3872 = vadd.f32 0.0, %v3871
        %v3873 = vpop.f32.mrb[0].mxu0
        %3874 = vmatprep.mubr.f32.mxu0 0.0
        %3875 = vmatmul.mubr.f32.gmra.mrb[0].mxu0 %v3593
        %v3876 = vpop.f32.mrb[0].mxu0
        %v3877 = vadd.f32 0.0, %v3876
        %v3878 = vpop.f32.mrb[0].mxu0
        %3879 = vmatprep.mubr.f32.mxu0 0.0
        %3880 = vmatmul.mubr.f32.gmra.mrb[0].mxu0 %v3596
        %v3881 = vpop.f32.mrb[0].mxu0
        %v3882 = vadd.f32 0.0, %v3881
        %v3883 = vpop.f32.mrb[0].mxu0
        %3884 = vmatprep.mubr.f32.mxu0 0.0
        %3885 = vmatmul.mubr.f32.gmra.mrb[0].mxu0 %v3599
        %v3886 = vpop.f32.mrb[0].mxu0
        %v3887 = vadd.f32 0.0, %v3886
        %v3888 = vpop.f32.mrb[0].mxu0
        %3889 = vmatprep.mubr.f32.mxu0 0.0
        %3890 = vmatmul.mubr.f32.gmra.mrb[0].mxu0 %v3602
        %v3891 = vpop.f32.mrb[0].mxu0
        %v3892 = vadd.f32 0.0, %v3891
        %v3893 = vpop.f32.mrb[0].mxu0
        %3894 = vmatprep.mubr.f32.mxu0 0.0
        %3895 = vmatmul.mubr.f32.gmra.mrb[0].mxu0 %v3605
        %v3896 = vpop.f32.mrb[0].mxu0
        %v3897 = vadd.f32 0.0, %v3896
        %v3898 = vpop.f32.mrb[0].mxu0
        %3899 = vmatprep.mubr.f32.mxu0 0.0
        %3900 = vmatmul.mubr.f32.gmra.mrb[0].mxu0 %v3608
        %v3901 = vpop.f32.mrb[0].mxu0
        %v3902 = vadd.f32 0.0, %v3901
        %v3903 = vpop.f32.mrb[0].mxu0
        %3904 = vmatprep.mubr.f32.mxu0 0.0
        %3905 = vmatmul.mubr.f32.gmra.mrb[0].mxu0 %v3611
        %v3906 = vpop.f32.mrb[0].mxu0
        %v3907 = vadd.f32 0.0, %v3906
        %v3908 = vpop.f32.mrb[0].mxu0
        %3909 = vmatprep.mubr.f32.mxu0 0.0
        %3910 = vmatmul.mubr.f32.gmra.mrb[0].mxu0 %v3614
        %v3911 = vpop.f32.mrb[0].mxu0
        %v3912 = vadd.f32 0.0, %v3911
        %v3913 = vpop.f32.mrb[0].mxu0
        %3914 = vmatprep.mubr.f32.mxu0 0.0
        %3915 = vmatmul.mubr.f32.gmra.mrb[0].mxu0 %v3617
        %v3916 = vpop.f32.mrb[0].mxu0
        %v3917 = vadd.f32 0.0, %v3916
        %v3918 = vpop.f32.mrb[0].mxu0
        %3919 = vmatprep.mubr.f32.mxu0 0.0
        %3920 = vmatmul.mubr.f32.gmra.mrb[0].mxu0 %v3620
        %v3921 = vpop.f32.mrb[0].mxu0
        %v3922 = vadd.f32 0.0, %v3921
        %v3923 = vpop.f32.mrb[0].mxu0
        %3924 = vmatprep.mubr.f32.mxu0 0.0
        %3925 = vmatmul.mubr.f32.gmra.mrb[0].mxu0 %v3623
        %v3926 = vpop.f32.mrb[0].mxu0
        %v3927 = vadd.f32 0.0, %v3926
        %v3928 = vpop.f32.mrb[0].mxu0
        %3929 = vmatprep.mubr.f32.mxu0 0.0
        %3930 = vmatmul.mubr.f32.gmra.mrb[0].mxu0 %v3626
        %v3931 = vpop.f32.mrb[0].mxu0
        %v3932 = vadd.f32 0.0, %v3931
        %v3933 = vpop.f32.mrb[0].mxu0
        %3934 = vmatprep.mubr.f32.mxu0 0.0
        %3935 = vmatmul.mubr.f32.gmra.mrb[0].mxu0 %v3629
        %v3936 = vpop.f32.mrb[0].mxu0
        %v3937 = vadd.f32 0.0, %v3936
        %v3938 = vpop.f32.mrb[0].mxu0
        %3939 = vmatprep.mubr.f32.mxu0 0.0
        %3940 = vmatmul.mubr.f32.gmra.mrb[0].mxu0 %v3632
        %v3941 = vpop.f32.mrb[0].mxu0
        %v3942 = vadd.f32 0.0, %v3941
        %v3943 = vpop.f32.mrb[0].mxu0
        %3944 = vmatprep.mubr.f32.mxu0 0.0
        %3945 = vmatmul.mubr.f32.gmra.mrb[0].mxu0 %v3635
        %v3946 = vpop.f32.mrb[0].mxu0
        %v3947 = vadd.f32 0.0, %v3946
        %v3948 = vpop.f32.mrb[0].mxu0
        %3949 = vmatprep.mubr.f32.mxu0 0.0
        %3950 = vmatmul.mubr.f32.gmra.mrb[0].mxu0 %v3638
        %v3951 = vpop.f32.mrb[0].mxu0
        %v3952 = vadd.f32 0.0, %v3951
        %v3953 = vpop.f32.mrb[0].mxu0
        %3954 = vmatprep.mubr.f32.mxu0 0.0
        %3955 = vmatmul.mubr.f32.gmra.mrb[0].mxu0 %v3641
        %v3956 = vpop.f32.mrb[0].mxu0
        %v3957 = vadd.f32 0.0, %v3956
        %v3958 = vpop.f32.mrb[0].mxu0
        %3959 = vmatprep.mubr.f32.mxu0 0.0
        %3960 = vmatmul.mubr.f32.gmra.mrb[0].mxu0 %v3644
        %v3961 = vpop.f32.mrb[0].mxu0
        %v3962 = vadd.f32 0.0, %v3961
        %v3963 = vpop.f32.mrb[0].mxu0
        %3964 = vmatprep.mubr.f32.mxu0 0.0
        %3965 = vmatmul.mubr.f32.gmra.mrb[0].mxu0 %v3647
        %v3966 = vpop.f32.mrb[0].mxu0
        %v3967 = vadd.f32 0.0, %v3966
        %v3968 = vpop.f32.mrb[0].mxu0
        %3969 = vmatprep.mubr.f32.mxu0 0.0
        %3970 = vmatmul.mubr.f32.gmra.mrb[0].mxu0 %v3650
        %v3971 = vpop.f32.mrb[0].mxu0
        %v3972 = vadd.f32 0.0, %v3971
        %v3973 = vpop.f32.mrb[0].mxu0
        %3974 = vmatprep.mubr.f32.mxu0 0.0
        %3975 = vmatmul.mubr.f32.gmra.mrb[0].mxu0 %v3653
        %v3976 = vpop.f32.mrb[0].mxu0
        %v3977 = vadd.f32 0.0, %v3976
        %v3978 = vpop.f32.mrb[0].mxu0
        %3979 = vmatprep.mubr.f32.mxu0 0.0
        %3980 = vmatmul.mubr.f32.gmra.mrb[0].mxu0 %v3656
        %v3981 = vpop.f32.mrb[0].mxu0
        %v3982 = vadd.f32 0.0, %v3981
        %v3983 = vpop.f32.mrb[0].mxu0
        %3984 = vmatprep.mubr.f32.mxu0 0.0
        %3985 = vmatmul.mubr.f32.gmra.mrb[0].mxu0 %v3659
        %v3986 = vpop.f32.mrb[0].mxu0
        %v3987 = vadd.f32 0.0, %v3986
        %v3988 = vpop.f32.mrb[0].mxu0
        %3989 = vmatprep.mubr.f32.mxu0 0.0
        %3990 = vmatmul.mubr.f32.gmra.mrb[0].mxu0 %v3662
        %v3991 = vpop.f32.mrb[0].mxu0
        %v3992 = vadd.f32 0.0, %v3991
        %v3993 = vpop.f32.mrb[0].mxu0
        %3994 = vmatprep.mubr.f32.mxu0 0.0
        %3995 = vmatmul.mubr.f32.gmra.mrb[0].mxu0 %v3665
        %v3996 = vpop.f32.mrb[0].mxu0
        %v3997 = vadd.f32 0.0, %v3996
        %v3998 = vpop.f32.mrb[0].mxu0
        %3999 = vmatprep.mubr.f32.mxu0 0.0
        %4000 = vmatmul.mubr.f32.gmra.mrb[0].mxu0 %v3668
        %v4001 = vpop.f32.mrb[0].mxu0
        %v4002 = vadd.f32 0.0, %v4001
        %v4003 = vpop.f32.mrb[0].mxu0
        %4004 = vmatprep.mubr.f32.mxu0 0.0
        %4005 = vmatmul.mubr.f32.gmra.mrb[0].mxu0 %v3671
        %v4006 = vpop.f32.mrb[0].mxu0
        %v4007 = vadd.f32 0.0, %v4006
        %v4008 = vpop.f32.mrb[0].mxu0
        %4009 = vmatprep.mubr.f32.mxu0 0.0
        %4010 = vmatmul.mubr.f32.gmra.mrb[0].mxu0 %v3674
        %v4011 = vpop.f32.mrb[0].mxu0
        %v4012 = vadd.f32 0.0, %v4011
        %v4013 = vpop.f32.mrb[0].mxu0
        %4014 = vmatprep.mubr.f32.mxu0 0.0
        %4015 = vmatmul.mubr.f32.gmra.mrb[0].mxu0 %v3677
        %v4016 = vpop.f32.mrb[0].mxu0
        %v4017 = vadd.f32 0.0, %v4016
        %v4018 = vpop.f32.mrb[0].mxu0
        %4019 = vmatprep.mubr.f32.mxu0 0.0
        %4020 = vmatmul.mubr.f32.gmra.mrb[0].mxu0 %v3680
        %v4021 = vpop.f32.mrb[0].mxu0
        %v4022 = vadd.f32 0.0, %v4021
        %v4023 = vpop.f32.mrb[0].mxu0
        %4024 = vmatprep.mubr.f32.mxu0 0.0
        %4025 = vmatmul.mubr.f32.gmra.mrb[0].mxu0 %v3683
        %v4026 = vpop.f32.mrb[0].mxu0
        %v4027 = vadd.f32 0.0, %v4026
        %v4028 = vpop.f32.mrb[0].mxu0
        %4029 = vmatprep.mubr.f32.mxu0 0.0
        %4030 = vmatmul.mubr.f32.gmra.mrb[0].mxu0 %v3686
        %v4031 = vpop.f32.mrb[0].mxu0
        %v4032 = vadd.f32 0.0, %v4031
        %v4033 = vpop.f32.mrb[0].mxu0
        %4034 = vmatprep.mubr.f32.mxu0 0.0
        %4035 = vmatmul.mubr.f32.gmra.mrb[0].mxu0 %v3689
        %v4036 = vpop.f32.mrb[0].mxu0
        %v4037 = vadd.f32 0.0, %v4036
        %v4038 = vpop.f32.mrb[0].mxu0
        %4039 = vmatprep.mubr.f32.mxu0 0.0
        %4040 = vmatmul.mubr.f32.gmra.mrb[0].mxu0 %v3692
        %v4041 = vpop.f32.mrb[0].mxu0
        %v4042 = vadd.f32 0.0, %v4041
        %v4043 = vpop.f32.mrb[0].mxu0
        %4044 = vmatprep.mubr.f32.mxu0 0.0
        %4045 = vmatmul.mubr.f32.gmra.mrb[0].mxu0 %v3695
        %v4046 = vpop.f32.mrb[0].mxu0
        %v4047 = vadd.f32 0.0, %v4046
        %v4048 = vpop.f32.mrb[0].mxu0
        %4049 = vmatprep.mubr.f32.mxu0 0.0
        %4050 = vmatmul.mubr.f32.gmra.mrb[0].mxu0 %v3698
        %v4051 = vpop.f32.mrb[0].mxu0
        %v4052 = vadd.f32 0.0, %v4051
        %v4053 = vpop.f32.mrb[0].mxu0
        %4054 = vmatprep.mubr.f32.mxu0 0.0
        %4055 = vmatmul.mubr.f32.gmra.mrb[0].mxu0 %v3701
        %v4056 = vpop.f32.mrb[0].mxu0
        %v4057 = vadd.f32 0.0, %v4056
        %v4058 = vpop.f32.mrb[0].mxu0
        %4059 = vmatprep.mubr.f32.mxu0 0.0
        %4060 = vmatmul.mubr.f32.gmra.mrb[0].mxu0 %v3704
        %v4061 = vpop.f32.mrb[0].mxu0
        %v4062 = vadd.f32 0.0, %v4061
        %v4063 = vpop.f32.mrb[0].mxu0
        %4064 = vmatprep.mubr.f32.mxu0 0.0
        %4065 = vmatmul.mubr.f32.gmra.mrb[0].mxu0 %v3707
        %v4066 = vpop.f32.mrb[0].mxu0
        %v4067 = vadd.f32 0.0, %v4066
        %v4068 = vpop.f32.mrb[0].mxu0
        %4069 = vmatprep.mubr.f32.mxu0 0.0
        %4070 = vmatmul.mubr.f32.gmra.mrb[0].mxu0 %v3710
        %v4071 = vpop.f32.mrb[0].mxu0
        %v4072 = vadd.f32 0.0, %v4071
        %v4073 = vpop.f32.mrb[0].mxu0
        %4074 = vmatprep.mubr.f32.mxu0 0.0
        %4075 = vmatmul.mubr.f32.gmra.mrb[0].mxu0 %v3713
        %v4076 = vpop.f32.mrb[0].mxu0
        %v4077 = vadd.f32 0.0, %v4076
        %v4078 = vpop.f32.mrb[0].mxu0
        %4079 = vmatprep.mubr.f32.mxu0 0.0
        %4080 = vmatmul.mubr.f32.gmra.mrb[0].mxu0 %v3716
        %v4081 = vpop.f32.mrb[0].mxu0
        %v4082 = vadd.f32 0.0, %v4081
        %v4083 = vpop.f32.mrb[0].mxu0
        %4084 = vmatprep.mubr.f32.mxu0 0.0
        %4085 = vmatmul.mubr.f32.gmra.mrb[0].mxu0 %v3719
        %v4086 = vpop.f32.mrb[0].mxu0
        %v4087 = vadd.f32 0.0, %v4086
        %v4088 = vpop.f32.mrb[0].mxu0
        %4089 = vmatprep.mubr.f32.mxu0 0.0
        %4090 = vmatmul.mubr.f32.gmra.mrb[0].mxu0 %v3722
        %v4091 = vpop.f32.mrb[0].mxu0
        %v4092 = vadd.f32 0.0, %v4091
        %v4093 = vpop.f32.mrb[0].mxu0
        %4094 = vmatprep.mubr.f32.mxu0 0.0
        %4095 = vmatmul.mubr.f32.gmra.mrb[0].mxu0 %v3725
        %v4096 = vpop.f32.mrb[0].mxu0
        %v4097 = vadd.f32 0.0, %v4096
        %v4098 = vpop.f32.mrb[0].mxu0
        %4099 = vmatprep.mubr.f32.mxu0 0.0
        %4100 = vmatmul.mubr.f32.gmra.mrb[0].mxu0 %v3728
        %v4101 = vpop.f32.mrb[0].mxu0
        %v4102 = vadd.f32 0.0, %v4101
        %v4103 = vpop.f32.mrb[0].mxu0
        %4104 = vmatprep.mubr.f32.mxu0 0.0
        %4105 = vmatmul.mubr.f32.gmra.mrb[0].mxu0 %v3731
        %v4106 = vpop.f32.mrb[0].mxu0
        %v4107 = vadd.f32 0.0, %v4106
        %v4108 = vpop.f32.mrb[0].mxu0
        %4109 = vmatprep.mubr.f32.mxu0 0.0
        %4110 = vmatmul.mubr.f32.gmra.mrb[0].mxu0 %v3734
        %v4111 = vpop.f32.mrb[0].mxu0
        %v4112 = vadd.f32 0.0, %v4111
        %v4113 = vpop.f32.mrb[0].mxu0
        %4114 = vmatprep.mubr.f32.mxu0 0.0
        %4115 = vmatmul.mubr.f32.gmra.mrb[0].mxu0 %v3737
        %v4116 = vpop.f32.mrb[0].mxu0
        %v4117 = vadd.f32 0.0, %v4116
        %v4118 = vpop.f32.mrb[0].mxu0
        %4119 = vmatprep.mubr.f32.mxu0 0.0
        %4120 = vmatmul.mubr.f32.gmra.mrb[0].mxu0 %v3740
        %v4121 = vpop.f32.mrb[0].mxu0
        %v4122 = vadd.f32 0.0, %v4121
        %v4123 = vpop.f32.mrb[0].mxu0
        %4124 = vmatprep.mubr.f32.mxu0 0.0
        %4125 = vmatmul.mubr.f32.gmra.mrb[0].mxu0 %v3743
        %v4126 = vpop.f32.mrb[0].mxu0
        %v4127 = vadd.f32 0.0, %v4126
        %v4128 = vpop.f32.mrb[0].mxu0
        %4129 = vdwg.mxu0
        %v4130 = vadd.f32 %v3812, 0.0
        %v4131 = vadd.f32 %v3817, 0.0
        %v4132 = vadd.f32 %v3822, 0.0
        %v4133 = vadd.f32 %v3827, 0.0
        %v4134 = vadd.f32 %v3832, 0.0
        %v4135 = vadd.f32 %v3837, 0.0
        %v4136 = vadd.f32 %v3842, 0.0
        %v4137 = vadd.f32 %v3847, 0.0
        %v4138 = vadd.f32 %v3852, 0.0
        %v4139 = vadd.f32 %v3857, 0.0
        %v4140 = vadd.f32 %v3862, 0.0
        %v4141 = vadd.f32 %v3867, 0.0
        %v4142 = vadd.f32 %v3872, 0.0
        %v4143 = vadd.f32 %v3877, 0.0
        %v4144 = vadd.f32 %v3882, 0.0
        %v4145 = vadd.f32 %v3887, 0.0
        %v4146 = vadd.f32 %v3892, 0.0
        %v4147 = vadd.f32 %v3897, 0.0
        %v4148 = vadd.f32 %v3902, 0.0
        %v4149 = vadd.f32 %v3907, 0.0
        %v4150 = vadd.f32 %v3912, 0.0
        %v4151 = vadd.f32 %v3917, 0.0
        %v4152 = vadd.f32 %v3922, 0.0
        %v4153 = vadd.f32 %v3927, 0.0
        %v4154 = vadd.f32 %v3932, 0.0
        %v4155 = vadd.f32 %v3937, 0.0
        %v4156 = vadd.f32 %v3942, 0.0
        %v4157 = vadd.f32 %v3947, 0.0
        %v4158 = vadd.f32 %v3952, 0.0
        %v4159 = vadd.f32 %v3957, 0.0
        %v4160 = vadd.f32 %v3962, 0.0
        %v4161 = vadd.f32 %v3967, 0.0
        %v4162 = vadd.f32 %v3972, 0.0
        %v4163 = vadd.f32 %v3977, 0.0
        %v4164 = vadd.f32 %v3982, 0.0
        %v4165 = vadd.f32 %v3987, 0.0
        %v4166 = vadd.f32 %v3992, 0.0
        %v4167 = vadd.f32 %v3997, 0.0
        %v4168 = vadd.f32 %v4002, 0.0
        %v4169 = vadd.f32 %v4007, 0.0
        %v4170 = vadd.f32 %v4012, 0.0
        %v4171 = vadd.f32 %v4017, 0.0
        %v4172 = vadd.f32 %v4022, 0.0
        %v4173 = vadd.f32 %v4027, 0.0
        %v4174 = vadd.f32 %v4032, 0.0
        %v4175 = vadd.f32 %v4037, 0.0
        %v4176 = vadd.f32 %v4042, 0.0
        %v4177 = vadd.f32 %v4047, 0.0
        %v4178 = vadd.f32 %v4052, 0.0
        %v4179 = vadd.f32 %v4057, 0.0
        %v4180 = vadd.f32 %v4062, 0.0
        %v4181 = vadd.f32 %v4067, 0.0
        %v4182 = vadd.f32 %v4072, 0.0
        %v4183 = vadd.f32 %v4077, 0.0
        %v4184 = vadd.f32 %v4082, 0.0
        %v4185 = vadd.f32 %v4087, 0.0
        %v4186 = vadd.f32 %v4092, 0.0
        %v4187 = vadd.f32 %v4097, 0.0
        %v4188 = vadd.f32 %v4102, 0.0
        %v4189 = vadd.f32 %v4107, 0.0
        %v4190 = vadd.f32 %v4112, 0.0
        %v4191 = vadd.f32 %v4117, 0.0
        %v4192 = vadd.f32 %v4122, 0.0
        %v4193 = vadd.f32 %v4127, 0.0
        %v4194 = vsub.f32 %v2012, %v2044
        %v4195 = vsub.f32 %v2013, %v2045
        %v4196 = vsub.f32 %v2014, %v2046
        %v4197 = vsub.f32 %v2015, %v2047
        %v4198 = vsub.f32 %v2016, %v2048
        %v4199 = vsub.f32 %v2017, %v2049
        %v4200 = vsub.f32 %v2018, %v2050
        %v4201 = vsub.f32 %v2019, %v2051
        %v4202 = vsub.f32 %v2020, %v2052
        %v4203 = vsub.f32 %v2021, %v2053
        %v4204 = vsub.f32 %v2022, %v2054
        %v4205 = vsub.f32 %v2023, %v2055
        %v4206 = vsub.f32 %v2024, %v2056
        %v4207 = vsub.f32 %v2025, %v2057
        %v4208 = vsub.f32 %v2026, %v2058
        %v4209 = vsub.f32 %v2027, %v2059
        %v4210 = vsub.f32 %v2028, %v2060
        %v4211 = vsub.f32 %v2029, %v2061
        %v4212 = vsub.f32 %v2030, %v2062
        %v4213 = vsub.f32 %v2031, %v2063
        %v4214 = vsub.f32 %v2032, %v2064
        %v4215 = vsub.f32 %v2033, %v2065
        %v4216 = vsub.f32 %v2034, %v2066
        %v4217 = vsub.f32 %v2035, %v2067
        %v4218 = vsub.f32 %v2036, %v2068
        %v4219 = vsub.f32 %v2037, %v2069
        %v4220 = vsub.f32 %v2038, %v2070
        %v4221 = vsub.f32 %v2039, %v2071
        %v4222 = vsub.f32 %v2040, %v2072
        %v4223 = vsub.f32 %v2041, %v2073
        %v4224 = vsub.f32 %v2042, %v2074
        %v4225 = vsub.f32 %v2043, %v2075
        %v4226 = vsub.f32 %v2044, %v2012
        %v4227 = vsub.f32 %v2045, %v2013
        %v4228 = vsub.f32 %v2046, %v2014
        %v4229 = vsub.f32 %v2047, %v2015
        %v4230 = vsub.f32 %v2048, %v2016
        %v4231 = vsub.f32 %v2049, %v2017
        %v4232 = vsub.f32 %v2050, %v2018
        %v4233 = vsub.f32 %v2051, %v2019
        %v4234 = vsub.f32 %v2052, %v2020
        %v4235 = vsub.f32 %v2053, %v2021
        %v4236 = vsub.f32 %v2054, %v2022
        %v4237 = vsub.f32 %v2055, %v2023
        %v4238 = vsub.f32 %v2056, %v2024
        %v4239 = vsub.f32 %v2057, %v2025
        %v4240 = vsub.f32 %v2058, %v2026
        %v4241 = vsub.f32 %v2059, %v2027
        %v4242 = vsub.f32 %v2060, %v2028
        %v4243 = vsub.f32 %v2061, %v2029
        %v4244 = vsub.f32 %v2062, %v2030
        %v4245 = vsub.f32 %v2063, %v2031
        %v4246 = vsub.f32 %v2064, %v2032
        %v4247 = vsub.f32 %v2065, %v2033
        %v4248 = vsub.f32 %v2066, %v2034
        %v4249 = vsub.f32 %v2067, %v2035
        %v4250 = vsub.f32 %v2068, %v2036
        %v4251 = vsub.f32 %v2069, %v2037
        %v4252 = vsub.f32 %v2070, %v2038
        %v4253 = vsub.f32 %v2071, %v2039
        %v4254 = vsub.f32 %v2072, %v2040
        %v4255 = vsub.f32 %v2073, %v2041
        %v4256 = vsub.f32 %v2074, %v2042
        %v4257 = vsub.f32 %v2075, %v2043
        %v4259 = vsel %vm2160, %v4194, 0
        %v4262 = vsel %vm2160, %v4195, 0
        %v4265 = vsel %vm2160, %v4196, 0
        %v4268 = vsel %vm2160, %v4197, 0
        %v4271 = vsel %vm2160, %v4198, 0
        %v4274 = vsel %vm2160, %v4199, 0
        %v4277 = vsel %vm2160, %v4200, 0
        %v4280 = vsel %vm2160, %v4201, 0
        %v4283 = vsel %vm2160, %v4202, 0
        %v4286 = vsel %vm2160, %v4203, 0
        %v4289 = vsel %vm2160, %v4204, 0
        %v4292 = vsel %vm2160, %v4205, 0
        %v4295 = vsel %vm2160, %v4206, 0
        %v4298 = vsel %vm2160, %v4207, 0
        %v4301 = vsel %vm2160, %v4208, 0
        %v4304 = vsel %vm2160, %v4209, 0
        %v4307 = vsel %vm2160, %v4210, 0
        %v4310 = vsel %vm2160, %v4211, 0
        %v4313 = vsel %vm2160, %v4212, 0
        %v4316 = vsel %vm2160, %v4213, 0
        %v4319 = vsel %vm2160, %v4214, 0
        %v4322 = vsel %vm2160, %v4215, 0
        %v4325 = vsel %vm2160, %v4216, 0
        %v4328 = vsel %vm2160, %v4217, 0
        %v4331 = vsel %vm2160, %v4218, 0
        %v4334 = vsel %vm2160, %v4219, 0
        %v4337 = vsel %vm2160, %v4220, 0
        %v4340 = vsel %vm2160, %v4221, 0
        %v4343 = vsel %vm2160, %v4222, 0
        %v4346 = vsel %vm2160, %v4223, 0
        %v4349 = vsel %vm2160, %v4224, 0
        %v4352 = vsel %vm2160, %v4225, 0
        %v4355 = vsel %vm2160, %v4226, 0
        %v4358 = vsel %vm2160, %v4227, 0
        %v4361 = vsel %vm2160, %v4228, 0
        %v4364 = vsel %vm2160, %v4229, 0
        %v4367 = vsel %vm2160, %v4230, 0
        %v4370 = vsel %vm2160, %v4231, 0
        %v4373 = vsel %vm2160, %v4232, 0
        %v4376 = vsel %vm2160, %v4233, 0
        %v4379 = vsel %vm2160, %v4234, 0
        %v4382 = vsel %vm2160, %v4235, 0
        %v4385 = vsel %vm2160, %v4236, 0
        %v4388 = vsel %vm2160, %v4237, 0
        %v4391 = vsel %vm2160, %v4238, 0
        %v4394 = vsel %vm2160, %v4239, 0
        %v4397 = vsel %vm2160, %v4240, 0
        %v4400 = vsel %vm2160, %v4241, 0
        %v4403 = vsel %vm2160, %v4242, 0
        %v4406 = vsel %vm2160, %v4243, 0
        %v4409 = vsel %vm2160, %v4244, 0
        %v4412 = vsel %vm2160, %v4245, 0
        %v4415 = vsel %vm2160, %v4246, 0
        %v4418 = vsel %vm2160, %v4247, 0
        %v4421 = vsel %vm2160, %v4248, 0
        %v4424 = vsel %vm2160, %v4249, 0
        %v4427 = vsel %vm2160, %v4250, 0
        %v4430 = vsel %vm2160, %v4251, 0
        %v4433 = vsel %vm2160, %v4252, 0
        %v4436 = vsel %vm2160, %v4253, 0
        %v4439 = vsel %vm2160, %v4254, 0
        %v4442 = vsel %vm2160, %v4255, 0
        %v4445 = vsel %vm2160, %v4256, 0
        %v4448 = vsel %vm2160, %v4257, 0
        %4450 = vmatprep.subr.mxu0 0.0
        %4451 = vmatpush1.msra.mxu0 %v2076
        %4452 = vmatprep.subr.mxu0 0.0
        %4453 = vmatpush1.msra.mxu0 %v2077
        %4454 = vmatprep.subr.mxu0 0.0
        %4455 = vmatpush1.msra.mxu0 %v2078
        %4456 = vmatprep.subr.mxu0 0.0
        %4457 = vmatpush1.msra.mxu0 %v2079
        %4458 = vmatprep.subr.mxu0 0.0
        %4459 = vmatpush1.msra.mxu0 %v2080
        %4460 = vmatprep.subr.mxu0 0.0
        %4461 = vmatpush1.msra.mxu0 %v2081
        %4462 = vmatprep.subr.mxu0 0.0
        %4463 = vmatpush1.msra.mxu0 %v2082
        %4464 = vmatprep.subr.mxu0 0.0
        %4465 = vmatpush1.msra.mxu0 %v2083
        %4466 = vmatprep.subr.mxu0 0.0
        %4467 = vmatpush1.msra.mxu0 0.0
        %4468 = vmatprep.subr.mxu0 0.0
        %4469 = vmatpush1.msra.mxu0 0.0
        %4470 = vmatprep.subr.mxu0 0.0
        %4471 = vmatpush1.msra.mxu0 0.0
        %4472 = vmatprep.subr.mxu0 0.0
        %4473 = vmatpush1.msra.mxu0 0.0
        %4474 = vmatprep.subr.mxu0 0.0
        %4475 = vmatpush1.msra.mxu0 0.0
        %4476 = vmatprep.subr.mxu0 0.0
        %4477 = vmatpush1.msra.mxu0 0.0
        %4478 = vmatprep.subr.mxu0 0.0
        %4479 = vmatpush1.msra.mxu0 0.0
        %4480 = vmatprep.subr.mxu0 0.0
        %4481 = vmatpush1.msra.mxu0 0.0
        %4482 = vmatprep.subr.mxu0 0.0
        %4483 = vmatpush1.msra.mxu0 0.0
        %4484 = vmatprep.subr.mxu0 0.0
        %4485 = vmatpush1.msra.mxu0 0.0
        %4486 = vmatprep.subr.mxu0 0.0
        %4487 = vmatpush1.msra.mxu0 0.0
        %4488 = vmatprep.subr.mxu0 0.0
        %4489 = vmatpush1.msra.mxu0 0.0
        %4490 = vmatprep.subr.mxu0 0.0
        %4491 = vmatpush1.msra.mxu0 0.0
        %4492 = vmatprep.subr.mxu0 0.0
        %4493 = vmatpush1.msra.mxu0 0.0
        %4494 = vmatprep.subr.mxu0 0.0
        %4495 = vmatpush1.msra.mxu0 0.0
        %4496 = vmatprep.subr.mxu0 0.0
        %4497 = vmatpush1.msra.mxu0 0.0
        %4498 = vmatprep.subr.mxu0 0.0
        %4499 = vmatpush1.msra.mxu0 0.0
        %4500 = vmatprep.subr.mxu0 0.0
        %4501 = vmatpush1.msra.mxu0 0.0
        %4502 = vmatprep.subr.mxu0 0.0
        %4503 = vmatpush1.msra.mxu0 0.0
        %4504 = vmatprep.subr.mxu0 0.0
        %4505 = vmatpush1.msra.mxu0 0.0
        %4506 = vmatprep.subr.mxu0 0.0
        %4507 = vmatpush1.msra.mxu0 0.0
        %4508 = vmatprep.subr.mxu0 0.0
        %4509 = vmatpush1.msra.mxu0 0.0
        %4510 = vmatprep.subr.mxu0 0.0
        %4511 = vmatpush1.msra.mxu0 0.0
        %4512 = vmatprep.subr.mxu0 0.0
        %4513 = vmatpush1.msra.mxu0 0.0
        %4514 = vmatprep.mubr.f32.mxu0 0.0
        %4515 = vmatmul.mubr.f32.gmra.mrb[0].mxu0 %v4259
        %v4516 = vpop.f32.mrb[0].mxu0
        %v4517 = vadd.f32 0.0, %v4516
        %v4518 = vpop.f32.mrb[0].mxu0
        %4519 = vmatprep.mubr.f32.mxu0 0.0
        %4520 = vmatmul.mubr.f32.gmra.mrb[0].mxu0 %v4262
        %v4521 = vpop.f32.mrb[0].mxu0
        %v4522 = vadd.f32 0.0, %v4521
        %v4523 = vpop.f32.mrb[0].mxu0
        %4524 = vmatprep.mubr.f32.mxu0 0.0
        %4525 = vmatmul.mubr.f32.gmra.mrb[0].mxu0 %v4265
        %v4526 = vpop.f32.mrb[0].mxu0
        %v4527 = vadd.f32 0.0, %v4526
        %v4528 = vpop.f32.mrb[0].mxu0
        %4529 = vmatprep.mubr.f32.mxu0 0.0
        %4530 = vmatmul.mubr.f32.gmra.mrb[0].mxu0 %v4268
        %v4531 = vpop.f32.mrb[0].mxu0
        %v4532 = vadd.f32 0.0, %v4531
        %v4533 = vpop.f32.mrb[0].mxu0
        %4534 = vmatprep.mubr.f32.mxu0 0.0
        %4535 = vmatmul.mubr.f32.gmra.mrb[0].mxu0 %v4271
        %v4536 = vpop.f32.mrb[0].mxu0
        %v4537 = vadd.f32 0.0, %v4536
        %v4538 = vpop.f32.mrb[0].mxu0
        %4539 = vmatprep.mubr.f32.mxu0 0.0
        %4540 = vmatmul.mubr.f32.gmra.mrb[0].mxu0 %v4274
        %v4541 = vpop.f32.mrb[0].mxu0
        %v4542 = vadd.f32 0.0, %v4541
        %v4543 = vpop.f32.mrb[0].mxu0
        %4544 = vmatprep.mubr.f32.mxu0 0.0
        %4545 = vmatmul.mubr.f32.gmra.mrb[0].mxu0 %v4277
        %v4546 = vpop.f32.mrb[0].mxu0
        %v4547 = vadd.f32 0.0, %v4546
        %v4548 = vpop.f32.mrb[0].mxu0
        %4549 = vmatprep.mubr.f32.mxu0 0.0
        %4550 = vmatmul.mubr.f32.gmra.mrb[0].mxu0 %v4280
        %v4551 = vpop.f32.mrb[0].mxu0
        %v4552 = vadd.f32 0.0, %v4551
        %v4553 = vpop.f32.mrb[0].mxu0
        %4554 = vmatprep.mubr.f32.mxu0 0.0
        %4555 = vmatmul.mubr.f32.gmra.mrb[0].mxu0 %v4283
        %v4556 = vpop.f32.mrb[0].mxu0
        %v4557 = vadd.f32 0.0, %v4556
        %v4558 = vpop.f32.mrb[0].mxu0
        %4559 = vmatprep.mubr.f32.mxu0 0.0
        %4560 = vmatmul.mubr.f32.gmra.mrb[0].mxu0 %v4286
        %v4561 = vpop.f32.mrb[0].mxu0
        %v4562 = vadd.f32 0.0, %v4561
        %v4563 = vpop.f32.mrb[0].mxu0
        %4564 = vmatprep.mubr.f32.mxu0 0.0
        %4565 = vmatmul.mubr.f32.gmra.mrb[0].mxu0 %v4289
        %v4566 = vpop.f32.mrb[0].mxu0
        %v4567 = vadd.f32 0.0, %v4566
        %v4568 = vpop.f32.mrb[0].mxu0
        %4569 = vmatprep.mubr.f32.mxu0 0.0
        %4570 = vmatmul.mubr.f32.gmra.mrb[0].mxu0 %v4292
        %v4571 = vpop.f32.mrb[0].mxu0
        %v4572 = vadd.f32 0.0, %v4571
        %v4573 = vpop.f32.mrb[0].mxu0
        %4574 = vmatprep.mubr.f32.mxu0 0.0
        %4575 = vmatmul.mubr.f32.gmra.mrb[0].mxu0 %v4295
        %v4576 = vpop.f32.mrb[0].mxu0
        %v4577 = vadd.f32 0.0, %v4576
        %v4578 = vpop.f32.mrb[0].mxu0
        %4579 = vmatprep.mubr.f32.mxu0 0.0
        %4580 = vmatmul.mubr.f32.gmra.mrb[0].mxu0 %v4298
        %v4581 = vpop.f32.mrb[0].mxu0
        %v4582 = vadd.f32 0.0, %v4581
        %v4583 = vpop.f32.mrb[0].mxu0
        %4584 = vmatprep.mubr.f32.mxu0 0.0
        %4585 = vmatmul.mubr.f32.gmra.mrb[0].mxu0 %v4301
        %v4586 = vpop.f32.mrb[0].mxu0
        %v4587 = vadd.f32 0.0, %v4586
        %v4588 = vpop.f32.mrb[0].mxu0
        %4589 = vmatprep.mubr.f32.mxu0 0.0
        %4590 = vmatmul.mubr.f32.gmra.mrb[0].mxu0 %v4304
        %v4591 = vpop.f32.mrb[0].mxu0
        %v4592 = vadd.f32 0.0, %v4591
        %v4593 = vpop.f32.mrb[0].mxu0
        %4594 = vmatprep.mubr.f32.mxu0 0.0
        %4595 = vmatmul.mubr.f32.gmra.mrb[0].mxu0 %v4307
        %v4596 = vpop.f32.mrb[0].mxu0
        %v4597 = vadd.f32 0.0, %v4596
        %v4598 = vpop.f32.mrb[0].mxu0
        %4599 = vmatprep.mubr.f32.mxu0 0.0
        %4600 = vmatmul.mubr.f32.gmra.mrb[0].mxu0 %v4310
        %v4601 = vpop.f32.mrb[0].mxu0
        %v4602 = vadd.f32 0.0, %v4601
        %v4603 = vpop.f32.mrb[0].mxu0
        %4604 = vmatprep.mubr.f32.mxu0 0.0
        %4605 = vmatmul.mubr.f32.gmra.mrb[0].mxu0 %v4313
        %v4606 = vpop.f32.mrb[0].mxu0
        %v4607 = vadd.f32 0.0, %v4606
        %v4608 = vpop.f32.mrb[0].mxu0
        %4609 = vmatprep.mubr.f32.mxu0 0.0
        %4610 = vmatmul.mubr.f32.gmra.mrb[0].mxu0 %v4316
        %v4611 = vpop.f32.mrb[0].mxu0
        %v4612 = vadd.f32 0.0, %v4611
        %v4613 = vpop.f32.mrb[0].mxu0
        %4614 = vmatprep.mubr.f32.mxu0 0.0
        %4615 = vmatmul.mubr.f32.gmra.mrb[0].mxu0 %v4319
        %v4616 = vpop.f32.mrb[0].mxu0
        %v4617 = vadd.f32 0.0, %v4616
        %v4618 = vpop.f32.mrb[0].mxu0
        %4619 = vmatprep.mubr.f32.mxu0 0.0
        %4620 = vmatmul.mubr.f32.gmra.mrb[0].mxu0 %v4322
        %v4621 = vpop.f32.mrb[0].mxu0
        %v4622 = vadd.f32 0.0, %v4621
        %v4623 = vpop.f32.mrb[0].mxu0
        %4624 = vmatprep.mubr.f32.mxu0 0.0
        %4625 = vmatmul.mubr.f32.gmra.mrb[0].mxu0 %v4325
        %v4626 = vpop.f32.mrb[0].mxu0
        %v4627 = vadd.f32 0.0, %v4626
        %v4628 = vpop.f32.mrb[0].mxu0
        %4629 = vmatprep.mubr.f32.mxu0 0.0
        %4630 = vmatmul.mubr.f32.gmra.mrb[0].mxu0 %v4328
        %v4631 = vpop.f32.mrb[0].mxu0
        %v4632 = vadd.f32 0.0, %v4631
        %v4633 = vpop.f32.mrb[0].mxu0
        %4634 = vmatprep.mubr.f32.mxu0 0.0
        %4635 = vmatmul.mubr.f32.gmra.mrb[0].mxu0 %v4331
        %v4636 = vpop.f32.mrb[0].mxu0
        %v4637 = vadd.f32 0.0, %v4636
        %v4638 = vpop.f32.mrb[0].mxu0
        %4639 = vmatprep.mubr.f32.mxu0 0.0
        %4640 = vmatmul.mubr.f32.gmra.mrb[0].mxu0 %v4334
        %v4641 = vpop.f32.mrb[0].mxu0
        %v4642 = vadd.f32 0.0, %v4641
        %v4643 = vpop.f32.mrb[0].mxu0
        %4644 = vmatprep.mubr.f32.mxu0 0.0
        %4645 = vmatmul.mubr.f32.gmra.mrb[0].mxu0 %v4337
        %v4646 = vpop.f32.mrb[0].mxu0
        %v4647 = vadd.f32 0.0, %v4646
        %v4648 = vpop.f32.mrb[0].mxu0
        %4649 = vmatprep.mubr.f32.mxu0 0.0
        %4650 = vmatmul.mubr.f32.gmra.mrb[0].mxu0 %v4340
        %v4651 = vpop.f32.mrb[0].mxu0
        %v4652 = vadd.f32 0.0, %v4651
        %v4653 = vpop.f32.mrb[0].mxu0
        %4654 = vmatprep.mubr.f32.mxu0 0.0
        %4655 = vmatmul.mubr.f32.gmra.mrb[0].mxu0 %v4343
        %v4656 = vpop.f32.mrb[0].mxu0
        %v4657 = vadd.f32 0.0, %v4656
        %v4658 = vpop.f32.mrb[0].mxu0
        %4659 = vmatprep.mubr.f32.mxu0 0.0
        %4660 = vmatmul.mubr.f32.gmra.mrb[0].mxu0 %v4346
        %v4661 = vpop.f32.mrb[0].mxu0
        %v4662 = vadd.f32 0.0, %v4661
        %v4663 = vpop.f32.mrb[0].mxu0
        %4664 = vmatprep.mubr.f32.mxu0 0.0
        %4665 = vmatmul.mubr.f32.gmra.mrb[0].mxu0 %v4349
        %v4666 = vpop.f32.mrb[0].mxu0
        %v4667 = vadd.f32 0.0, %v4666
        %v4668 = vpop.f32.mrb[0].mxu0
        %4669 = vmatprep.mubr.f32.mxu0 0.0
        %4670 = vmatmul.mubr.f32.gmra.mrb[0].mxu0 %v4352
        %v4671 = vpop.f32.mrb[0].mxu0
        %v4672 = vadd.f32 0.0, %v4671
        %v4673 = vpop.f32.mrb[0].mxu0
        %4674 = vmatprep.mubr.f32.mxu0 0.0
        %4675 = vmatmul.mubr.f32.gmra.mrb[0].mxu0 %v4355
        %v4676 = vpop.f32.mrb[0].mxu0
        %v4677 = vadd.f32 0.0, %v4676
        %v4678 = vpop.f32.mrb[0].mxu0
        %4679 = vmatprep.mubr.f32.mxu0 0.0
        %4680 = vmatmul.mubr.f32.gmra.mrb[0].mxu0 %v4358
        %v4681 = vpop.f32.mrb[0].mxu0
        %v4682 = vadd.f32 0.0, %v4681
        %v4683 = vpop.f32.mrb[0].mxu0
        %4684 = vmatprep.mubr.f32.mxu0 0.0
        %4685 = vmatmul.mubr.f32.gmra.mrb[0].mxu0 %v4361
        %v4686 = vpop.f32.mrb[0].mxu0
        %v4687 = vadd.f32 0.0, %v4686
        %v4688 = vpop.f32.mrb[0].mxu0
        %4689 = vmatprep.mubr.f32.mxu0 0.0
        %4690 = vmatmul.mubr.f32.gmra.mrb[0].mxu0 %v4364
        %v4691 = vpop.f32.mrb[0].mxu0
        %v4692 = vadd.f32 0.0, %v4691
        %v4693 = vpop.f32.mrb[0].mxu0
        %4694 = vmatprep.mubr.f32.mxu0 0.0
        %4695 = vmatmul.mubr.f32.gmra.mrb[0].mxu0 %v4367
        %v4696 = vpop.f32.mrb[0].mxu0
        %v4697 = vadd.f32 0.0, %v4696
        %v4698 = vpop.f32.mrb[0].mxu0
        %4699 = vmatprep.mubr.f32.mxu0 0.0
        %4700 = vmatmul.mubr.f32.gmra.mrb[0].mxu0 %v4370
        %v4701 = vpop.f32.mrb[0].mxu0
        %v4702 = vadd.f32 0.0, %v4701
        %v4703 = vpop.f32.mrb[0].mxu0
        %4704 = vmatprep.mubr.f32.mxu0 0.0
        %4705 = vmatmul.mubr.f32.gmra.mrb[0].mxu0 %v4373
        %v4706 = vpop.f32.mrb[0].mxu0
        %v4707 = vadd.f32 0.0, %v4706
        %v4708 = vpop.f32.mrb[0].mxu0
        %4709 = vmatprep.mubr.f32.mxu0 0.0
        %4710 = vmatmul.mubr.f32.gmra.mrb[0].mxu0 %v4376
        %v4711 = vpop.f32.mrb[0].mxu0
        %v4712 = vadd.f32 0.0, %v4711
        %v4713 = vpop.f32.mrb[0].mxu0
        %4714 = vmatprep.mubr.f32.mxu0 0.0
        %4715 = vmatmul.mubr.f32.gmra.mrb[0].mxu0 %v4379
        %v4716 = vpop.f32.mrb[0].mxu0
        %v4717 = vadd.f32 0.0, %v4716
        %v4718 = vpop.f32.mrb[0].mxu0
        %4719 = vmatprep.mubr.f32.mxu0 0.0
        %4720 = vmatmul.mubr.f32.gmra.mrb[0].mxu0 %v4382
        %v4721 = vpop.f32.mrb[0].mxu0
        %v4722 = vadd.f32 0.0, %v4721
        %v4723 = vpop.f32.mrb[0].mxu0
        %4724 = vmatprep.mubr.f32.mxu0 0.0
        %4725 = vmatmul.mubr.f32.gmra.mrb[0].mxu0 %v4385
        %v4726 = vpop.f32.mrb[0].mxu0
        %v4727 = vadd.f32 0.0, %v4726
        %v4728 = vpop.f32.mrb[0].mxu0
        %4729 = vmatprep.mubr.f32.mxu0 0.0
        %4730 = vmatmul.mubr.f32.gmra.mrb[0].mxu0 %v4388
        %v4731 = vpop.f32.mrb[0].mxu0
        %v4732 = vadd.f32 0.0, %v4731
        %v4733 = vpop.f32.mrb[0].mxu0
        %4734 = vmatprep.mubr.f32.mxu0 0.0
        %4735 = vmatmul.mubr.f32.gmra.mrb[0].mxu0 %v4391
        %v4736 = vpop.f32.mrb[0].mxu0
        %v4737 = vadd.f32 0.0, %v4736
        %v4738 = vpop.f32.mrb[0].mxu0
        %4739 = vmatprep.mubr.f32.mxu0 0.0
        %4740 = vmatmul.mubr.f32.gmra.mrb[0].mxu0 %v4394
        %v4741 = vpop.f32.mrb[0].mxu0
        %v4742 = vadd.f32 0.0, %v4741
        %v4743 = vpop.f32.mrb[0].mxu0
        %4744 = vmatprep.mubr.f32.mxu0 0.0
        %4745 = vmatmul.mubr.f32.gmra.mrb[0].mxu0 %v4397
        %v4746 = vpop.f32.mrb[0].mxu0
        %v4747 = vadd.f32 0.0, %v4746
        %v4748 = vpop.f32.mrb[0].mxu0
        %4749 = vmatprep.mubr.f32.mxu0 0.0
        %4750 = vmatmul.mubr.f32.gmra.mrb[0].mxu0 %v4400
        %v4751 = vpop.f32.mrb[0].mxu0
        %v4752 = vadd.f32 0.0, %v4751
        %v4753 = vpop.f32.mrb[0].mxu0
        %4754 = vmatprep.mubr.f32.mxu0 0.0
        %4755 = vmatmul.mubr.f32.gmra.mrb[0].mxu0 %v4403
        %v4756 = vpop.f32.mrb[0].mxu0
        %v4757 = vadd.f32 0.0, %v4756
        %v4758 = vpop.f32.mrb[0].mxu0
        %4759 = vmatprep.mubr.f32.mxu0 0.0
        %4760 = vmatmul.mubr.f32.gmra.mrb[0].mxu0 %v4406
        %v4761 = vpop.f32.mrb[0].mxu0
        %v4762 = vadd.f32 0.0, %v4761
        %v4763 = vpop.f32.mrb[0].mxu0
        %4764 = vmatprep.mubr.f32.mxu0 0.0
        %4765 = vmatmul.mubr.f32.gmra.mrb[0].mxu0 %v4409
        %v4766 = vpop.f32.mrb[0].mxu0
        %v4767 = vadd.f32 0.0, %v4766
        %v4768 = vpop.f32.mrb[0].mxu0
        %4769 = vmatprep.mubr.f32.mxu0 0.0
        %4770 = vmatmul.mubr.f32.gmra.mrb[0].mxu0 %v4412
        %v4771 = vpop.f32.mrb[0].mxu0
        %v4772 = vadd.f32 0.0, %v4771
        %v4773 = vpop.f32.mrb[0].mxu0
        %4774 = vmatprep.mubr.f32.mxu0 0.0
        %4775 = vmatmul.mubr.f32.gmra.mrb[0].mxu0 %v4415
        %v4776 = vpop.f32.mrb[0].mxu0
        %v4777 = vadd.f32 0.0, %v4776
        %v4778 = vpop.f32.mrb[0].mxu0
        %4779 = vmatprep.mubr.f32.mxu0 0.0
        %4780 = vmatmul.mubr.f32.gmra.mrb[0].mxu0 %v4418
        %v4781 = vpop.f32.mrb[0].mxu0
        %v4782 = vadd.f32 0.0, %v4781
        %v4783 = vpop.f32.mrb[0].mxu0
        %4784 = vmatprep.mubr.f32.mxu0 0.0
        %4785 = vmatmul.mubr.f32.gmra.mrb[0].mxu0 %v4421
        %v4786 = vpop.f32.mrb[0].mxu0
        %v4787 = vadd.f32 0.0, %v4786
        %v4788 = vpop.f32.mrb[0].mxu0
        %4789 = vmatprep.mubr.f32.mxu0 0.0
        %4790 = vmatmul.mubr.f32.gmra.mrb[0].mxu0 %v4424
        %v4791 = vpop.f32.mrb[0].mxu0
        %v4792 = vadd.f32 0.0, %v4791
        %v4793 = vpop.f32.mrb[0].mxu0
        %4794 = vmatprep.mubr.f32.mxu0 0.0
        %4795 = vmatmul.mubr.f32.gmra.mrb[0].mxu0 %v4427
        %v4796 = vpop.f32.mrb[0].mxu0
        %v4797 = vadd.f32 0.0, %v4796
        %v4798 = vpop.f32.mrb[0].mxu0
        %4799 = vmatprep.mubr.f32.mxu0 0.0
        %4800 = vmatmul.mubr.f32.gmra.mrb[0].mxu0 %v4430
        %v4801 = vpop.f32.mrb[0].mxu0
        %v4802 = vadd.f32 0.0, %v4801
        %v4803 = vpop.f32.mrb[0].mxu0
        %4804 = vmatprep.mubr.f32.mxu0 0.0
        %4805 = vmatmul.mubr.f32.gmra.mrb[0].mxu0 %v4433
        %v4806 = vpop.f32.mrb[0].mxu0
        %v4807 = vadd.f32 0.0, %v4806
        %v4808 = vpop.f32.mrb[0].mxu0
        %4809 = vmatprep.mubr.f32.mxu0 0.0
        %4810 = vmatmul.mubr.f32.gmra.mrb[0].mxu0 %v4436
        %v4811 = vpop.f32.mrb[0].mxu0
        %v4812 = vadd.f32 0.0, %v4811
        %v4813 = vpop.f32.mrb[0].mxu0
        %4814 = vmatprep.mubr.f32.mxu0 0.0
        %4815 = vmatmul.mubr.f32.gmra.mrb[0].mxu0 %v4439
        %v4816 = vpop.f32.mrb[0].mxu0
        %v4817 = vadd.f32 0.0, %v4816
        %v4818 = vpop.f32.mrb[0].mxu0
        %4819 = vmatprep.mubr.f32.mxu0 0.0
        %4820 = vmatmul.mubr.f32.gmra.mrb[0].mxu0 %v4442
        %v4821 = vpop.f32.mrb[0].mxu0
        %v4822 = vadd.f32 0.0, %v4821
        %v4823 = vpop.f32.mrb[0].mxu0
        %4824 = vmatprep.mubr.f32.mxu0 0.0
        %4825 = vmatmul.mubr.f32.gmra.mrb[0].mxu0 %v4445
        %v4826 = vpop.f32.mrb[0].mxu0
        %v4827 = vadd.f32 0.0, %v4826
        %v4828 = vpop.f32.mrb[0].mxu0
        %4829 = vmatprep.mubr.f32.mxu0 0.0
        %4830 = vmatmul.mubr.f32.gmra.mrb[0].mxu0 %v4448
        %v4831 = vpop.f32.mrb[0].mxu0
        %v4832 = vadd.f32 0.0, %v4831
        %v4833 = vpop.f32.mrb[0].mxu0
        %4834 = vdwg.mxu0
        %v4835 = vtanh.pop %v4517
        %v4836 = vtanh.pop %v4522
        %v4837 = vtanh.pop %v4527
        %v4838 = vtanh.pop %v4532
        %v4839 = vtanh.pop %v4537
        %v4840 = vtanh.pop %v4542
        %v4841 = vtanh.pop %v4547
        %v4842 = vtanh.pop %v4552
        %v4843 = vtanh.pop %v4557
        %v4844 = vtanh.pop %v4562
        %v4845 = vtanh.pop %v4567
        %v4846 = vtanh.pop %v4572
        %v4847 = vtanh.pop %v4577
        %v4848 = vtanh.pop %v4582
        %v4849 = vtanh.pop %v4587
        %v4850 = vtanh.pop %v4592
        %v4851 = vtanh.pop %v4597
        %v4852 = vtanh.pop %v4602
        %v4853 = vtanh.pop %v4607
        %v4854 = vtanh.pop %v4612
        %v4855 = vtanh.pop %v4617
        %v4856 = vtanh.pop %v4622
        %v4857 = vtanh.pop %v4627
        %v4858 = vtanh.pop %v4632
        %v4859 = vtanh.pop %v4637
        %v4860 = vtanh.pop %v4642
        %v4861 = vtanh.pop %v4647
        %v4862 = vtanh.pop %v4652
        %v4863 = vtanh.pop %v4657
        %v4864 = vtanh.pop %v4662
        %v4865 = vtanh.pop %v4667
        %v4866 = vtanh.pop %v4672
        %v4867 = vtanh.pop %v4677
        %v4868 = vtanh.pop %v4682
        %v4869 = vtanh.pop %v4687
        %v4870 = vtanh.pop %v4692
        %v4871 = vtanh.pop %v4697
        %v4872 = vtanh.pop %v4702
        %v4873 = vtanh.pop %v4707
        %v4874 = vtanh.pop %v4712
        %v4875 = vtanh.pop %v4717
        %v4876 = vtanh.pop %v4722
        %v4877 = vtanh.pop %v4727
        %v4878 = vtanh.pop %v4732
        %v4879 = vtanh.pop %v4737
        %v4880 = vtanh.pop %v4742
        %v4881 = vtanh.pop %v4747
        %v4882 = vtanh.pop %v4752
        %v4883 = vtanh.pop %v4757
        %v4884 = vtanh.pop %v4762
        %v4885 = vtanh.pop %v4767
        %v4886 = vtanh.pop %v4772
        %v4887 = vtanh.pop %v4777
        %v4888 = vtanh.pop %v4782
        %v4889 = vtanh.pop %v4787
        %v4890 = vtanh.pop %v4792
        %v4891 = vtanh.pop %v4797
        %v4892 = vtanh.pop %v4802
        %v4893 = vtanh.pop %v4807
        %v4894 = vtanh.pop %v4812
        %v4895 = vtanh.pop %v4817
        %v4896 = vtanh.pop %v4822
        %v4897 = vtanh.pop %v4827
        %v4898 = vtanh.pop %v4832
        %v4900 = vsel %vm2160, %v4835, 0
        %v4903 = vsel %vm2160, %v4836, 0
        %v4906 = vsel %vm2160, %v4837, 0
        %v4909 = vsel %vm2160, %v4838, 0
        %v4912 = vsel %vm2160, %v4839, 0
        %v4915 = vsel %vm2160, %v4840, 0
        %v4918 = vsel %vm2160, %v4841, 0
        %v4921 = vsel %vm2160, %v4842, 0
        %v4924 = vsel %vm2160, %v4843, 0
        %v4927 = vsel %vm2160, %v4844, 0
        %v4930 = vsel %vm2160, %v4845, 0
        %v4933 = vsel %vm2160, %v4846, 0
        %v4936 = vsel %vm2160, %v4847, 0
        %v4939 = vsel %vm2160, %v4848, 0
        %v4942 = vsel %vm2160, %v4849, 0
        %v4945 = vsel %vm2160, %v4850, 0
        %v4948 = vsel %vm2160, %v4851, 0
        %v4951 = vsel %vm2160, %v4852, 0
        %v4954 = vsel %vm2160, %v4853, 0
        %v4957 = vsel %vm2160, %v4854, 0
        %v4960 = vsel %vm2160, %v4855, 0
        %v4963 = vsel %vm2160, %v4856, 0
        %v4966 = vsel %vm2160, %v4857, 0
        %v4969 = vsel %vm2160, %v4858, 0
        %v4972 = vsel %vm2160, %v4859, 0
        %v4975 = vsel %vm2160, %v4860, 0
        %v4978 = vsel %vm2160, %v4861, 0
        %v4981 = vsel %vm2160, %v4862, 0
        %v4984 = vsel %vm2160, %v4863, 0
        %v4987 = vsel %vm2160, %v4864, 0
        %v4990 = vsel %vm2160, %v4865, 0
        %v4993 = vsel %vm2160, %v4866, 0
        %v4996 = vsel %vm2160, %v4867, 0
        %v4999 = vsel %vm2160, %v4868, 0
        %v5002 = vsel %vm2160, %v4869, 0
        %v5005 = vsel %vm2160, %v4870, 0
        %v5008 = vsel %vm2160, %v4871, 0
        %v5011 = vsel %vm2160, %v4872, 0
        %v5014 = vsel %vm2160, %v4873, 0
        %v5017 = vsel %vm2160, %v4874, 0
        %v5020 = vsel %vm2160, %v4875, 0
        %v5023 = vsel %vm2160, %v4876, 0
        %v5026 = vsel %vm2160, %v4877, 0
        %v5029 = vsel %vm2160, %v4878, 0
        %v5032 = vsel %vm2160, %v4879, 0
        %v5035 = vsel %vm2160, %v4880, 0
        %v5038 = vsel %vm2160, %v4881, 0
        %v5041 = vsel %vm2160, %v4882, 0
        %v5044 = vsel %vm2160, %v4883, 0
        %v5047 = vsel %vm2160, %v4884, 0
        %v5050 = vsel %vm2160, %v4885, 0
        %v5053 = vsel %vm2160, %v4886, 0
        %v5056 = vsel %vm2160, %v4887, 0
        %v5059 = vsel %vm2160, %v4888, 0
        %v5062 = vsel %vm2160, %v4889, 0
        %v5065 = vsel %vm2160, %v4890, 0
        %v5068 = vsel %vm2160, %v4891, 0
        %v5071 = vsel %vm2160, %v4892, 0
        %v5074 = vsel %vm2160, %v4893, 0
        %v5077 = vsel %vm2160, %v4894, 0
        %v5080 = vsel %vm2160, %v4895, 0
        %v5083 = vsel %vm2160, %v4896, 0
        %v5086 = vsel %vm2160, %v4897, 0
        %v5089 = vsel %vm2160, %v4898, 0
        %5091 = vmatprep.subr.mxu0 0.0
        %5092 = vmatpush1.msra.mxu0 %v2084
        %5093 = vmatprep.subr.mxu0 0.0
        %5094 = vmatpush1.msra.mxu0 %v2085
        %5095 = vmatprep.subr.mxu0 0.0
        %5096 = vmatpush1.msra.mxu0 %v2086
        %5097 = vmatprep.subr.mxu0 0.0
        %5098 = vmatpush1.msra.mxu0 %v2087
        %5099 = vmatprep.subr.mxu0 0.0
        %5100 = vmatpush1.msra.mxu0 %v2088
        %5101 = vmatprep.subr.mxu0 0.0
        %5102 = vmatpush1.msra.mxu0 %v2089
        %5103 = vmatprep.subr.mxu0 0.0
        %5104 = vmatpush1.msra.mxu0 %v2090
        %5105 = vmatprep.subr.mxu0 0.0
        %5106 = vmatpush1.msra.mxu0 %v2091
        %5107 = vmatprep.subr.mxu0 0.0
        %5108 = vmatpush1.msra.mxu0 0.0
        %5109 = vmatprep.subr.mxu0 0.0
        %5110 = vmatpush1.msra.mxu0 0.0
        %5111 = vmatprep.subr.mxu0 0.0
        %5112 = vmatpush1.msra.mxu0 0.0
        %5113 = vmatprep.subr.mxu0 0.0
        %5114 = vmatpush1.msra.mxu0 0.0
        %5115 = vmatprep.subr.mxu0 0.0
        %5116 = vmatpush1.msra.mxu0 0.0
        %5117 = vmatprep.subr.mxu0 0.0
        %5118 = vmatpush1.msra.mxu0 0.0
        %5119 = vmatprep.subr.mxu0 0.0
        %5120 = vmatpush1.msra.mxu0 0.0
        %5121 = vmatprep.subr.mxu0 0.0
        %5122 = vmatpush1.msra.mxu0 0.0
        %5123 = vmatprep.subr.mxu0 0.0
        %5124 = vmatpush1.msra.mxu0 0.0
        %5125 = vmatprep.subr.mxu0 0.0
        %5126 = vmatpush1.msra.mxu0 0.0
        %5127 = vmatprep.subr.mxu0 0.0
        %5128 = vmatpush1.msra.mxu0 0.0
        %5129 = vmatprep.subr.mxu0 0.0
        %5130 = vmatpush1.msra.mxu0 0.0
        %5131 = vmatprep.subr.mxu0 0.0
        %5132 = vmatpush1.msra.mxu0 0.0
        %5133 = vmatprep.subr.mxu0 0.0
        %5134 = vmatpush1.msra.mxu0 0.0
        %5135 = vmatprep.subr.mxu0 0.0
        %5136 = vmatpush1.msra.mxu0 0.0
        %5137 = vmatprep.subr.mxu0 0.0
        %5138 = vmatpush1.msra.mxu0 0.0
        %5139 = vmatprep.subr.mxu0 0.0
        %5140 = vmatpush1.msra.mxu0 0.0
        %5141 = vmatprep.subr.mxu0 0.0
        %5142 = vmatpush1.msra.mxu0 0.0
        %5143 = vmatprep.subr.mxu0 0.0
        %5144 = vmatpush1.msra.mxu0 0.0
        %5145 = vmatprep.subr.mxu0 0.0
        %5146 = vmatpush1.msra.mxu0 0.0
        %5147 = vmatprep.subr.mxu0 0.0
        %5148 = vmatpush1.msra.mxu0 0.0
        %5149 = vmatprep.subr.mxu0 0.0
        %5150 = vmatpush1.msra.mxu0 0.0
        %5151 = vmatprep.subr.mxu0 0.0
        %5152 = vmatpush1.msra.mxu0 0.0
        %5153 = vmatprep.subr.mxu0 0.0
        %5154 = vmatpush1.msra.mxu0 0.0
        %5155 = vmatprep.mubr.f32.mxu0 0.0
        %5156 = vmatmul.mubr.f32.gmra.mrb[0].mxu0 %v4900
        %v5157 = vpop.f32.mrb[0].mxu0
        %v5158 = vadd.f32 0.0, %v5157
        %v5159 = vpop.f32.mrb[0].mxu0
        %5160 = vmatprep.mubr.f32.mxu0 0.0
        %5161 = vmatmul.mubr.f32.gmra.mrb[0].mxu0 %v4903
        %v5162 = vpop.f32.mrb[0].mxu0
        %v5163 = vadd.f32 0.0, %v5162
        %v5164 = vpop.f32.mrb[0].mxu0
        %5165 = vmatprep.mubr.f32.mxu0 0.0
        %5166 = vmatmul.mubr.f32.gmra.mrb[0].mxu0 %v4906
        %v5167 = vpop.f32.mrb[0].mxu0
        %v5168 = vadd.f32 0.0, %v5167
        %v5169 = vpop.f32.mrb[0].mxu0
        %5170 = vmatprep.mubr.f32.mxu0 0.0
        %5171 = vmatmul.mubr.f32.gmra.mrb[0].mxu0 %v4909
        %v5172 = vpop.f32.mrb[0].mxu0
        %v5173 = vadd.f32 0.0, %v5172
        %v5174 = vpop.f32.mrb[0].mxu0
        %5175 = vmatprep.mubr.f32.mxu0 0.0
        %5176 = vmatmul.mubr.f32.gmra.mrb[0].mxu0 %v4912
        %v5177 = vpop.f32.mrb[0].mxu0
        %v5178 = vadd.f32 0.0, %v5177
        %v5179 = vpop.f32.mrb[0].mxu0
        %5180 = vmatprep.mubr.f32.mxu0 0.0
        %5181 = vmatmul.mubr.f32.gmra.mrb[0].mxu0 %v4915
        %v5182 = vpop.f32.mrb[0].mxu0
        %v5183 = vadd.f32 0.0, %v5182
        %v5184 = vpop.f32.mrb[0].mxu0
        %5185 = vmatprep.mubr.f32.mxu0 0.0
        %5186 = vmatmul.mubr.f32.gmra.mrb[0].mxu0 %v4918
        %v5187 = vpop.f32.mrb[0].mxu0
        %v5188 = vadd.f32 0.0, %v5187
        %v5189 = vpop.f32.mrb[0].mxu0
        %5190 = vmatprep.mubr.f32.mxu0 0.0
        %5191 = vmatmul.mubr.f32.gmra.mrb[0].mxu0 %v4921
        %v5192 = vpop.f32.mrb[0].mxu0
        %v5193 = vadd.f32 0.0, %v5192
        %v5194 = vpop.f32.mrb[0].mxu0
        %5195 = vmatprep.mubr.f32.mxu0 0.0
        %5196 = vmatmul.mubr.f32.gmra.mrb[0].mxu0 %v4924
        %v5197 = vpop.f32.mrb[0].mxu0
        %v5198 = vadd.f32 0.0, %v5197
        %v5199 = vpop.f32.mrb[0].mxu0
        %5200 = vmatprep.mubr.f32.mxu0 0.0
        %5201 = vmatmul.mubr.f32.gmra.mrb[0].mxu0 %v4927
        %v5202 = vpop.f32.mrb[0].mxu0
        %v5203 = vadd.f32 0.0, %v5202
        %v5204 = vpop.f32.mrb[0].mxu0
        %5205 = vmatprep.mubr.f32.mxu0 0.0
        %5206 = vmatmul.mubr.f32.gmra.mrb[0].mxu0 %v4930
        %v5207 = vpop.f32.mrb[0].mxu0
        %v5208 = vadd.f32 0.0, %v5207
        %v5209 = vpop.f32.mrb[0].mxu0
        %5210 = vmatprep.mubr.f32.mxu0 0.0
        %5211 = vmatmul.mubr.f32.gmra.mrb[0].mxu0 %v4933
        %v5212 = vpop.f32.mrb[0].mxu0
        %v5213 = vadd.f32 0.0, %v5212
        %v5214 = vpop.f32.mrb[0].mxu0
        %5215 = vmatprep.mubr.f32.mxu0 0.0
        %5216 = vmatmul.mubr.f32.gmra.mrb[0].mxu0 %v4936
        %v5217 = vpop.f32.mrb[0].mxu0
        %v5218 = vadd.f32 0.0, %v5217
        %v5219 = vpop.f32.mrb[0].mxu0
        %5220 = vmatprep.mubr.f32.mxu0 0.0
        %5221 = vmatmul.mubr.f32.gmra.mrb[0].mxu0 %v4939
        %v5222 = vpop.f32.mrb[0].mxu0
        %v5223 = vadd.f32 0.0, %v5222
        %v5224 = vpop.f32.mrb[0].mxu0
        %5225 = vmatprep.mubr.f32.mxu0 0.0
        %5226 = vmatmul.mubr.f32.gmra.mrb[0].mxu0 %v4942
        %v5227 = vpop.f32.mrb[0].mxu0
        %v5228 = vadd.f32 0.0, %v5227
        %v5229 = vpop.f32.mrb[0].mxu0
        %5230 = vmatprep.mubr.f32.mxu0 0.0
        %5231 = vmatmul.mubr.f32.gmra.mrb[0].mxu0 %v4945
        %v5232 = vpop.f32.mrb[0].mxu0
        %v5233 = vadd.f32 0.0, %v5232
        %v5234 = vpop.f32.mrb[0].mxu0
        %5235 = vmatprep.mubr.f32.mxu0 0.0
        %5236 = vmatmul.mubr.f32.gmra.mrb[0].mxu0 %v4948
        %v5237 = vpop.f32.mrb[0].mxu0
        %v5238 = vadd.f32 0.0, %v5237
        %v5239 = vpop.f32.mrb[0].mxu0
        %5240 = vmatprep.mubr.f32.mxu0 0.0
        %5241 = vmatmul.mubr.f32.gmra.mrb[0].mxu0 %v4951
        %v5242 = vpop.f32.mrb[0].mxu0
        %v5243 = vadd.f32 0.0, %v5242
        %v5244 = vpop.f32.mrb[0].mxu0
        %5245 = vmatprep.mubr.f32.mxu0 0.0
        %5246 = vmatmul.mubr.f32.gmra.mrb[0].mxu0 %v4954
        %v5247 = vpop.f32.mrb[0].mxu0
        %v5248 = vadd.f32 0.0, %v5247
        %v5249 = vpop.f32.mrb[0].mxu0
        %5250 = vmatprep.mubr.f32.mxu0 0.0
        %5251 = vmatmul.mubr.f32.gmra.mrb[0].mxu0 %v4957
        %v5252 = vpop.f32.mrb[0].mxu0
        %v5253 = vadd.f32 0.0, %v5252
        %v5254 = vpop.f32.mrb[0].mxu0
        %5255 = vmatprep.mubr.f32.mxu0 0.0
        %5256 = vmatmul.mubr.f32.gmra.mrb[0].mxu0 %v4960
        %v5257 = vpop.f32.mrb[0].mxu0
        %v5258 = vadd.f32 0.0, %v5257
        %v5259 = vpop.f32.mrb[0].mxu0
        %5260 = vmatprep.mubr.f32.mxu0 0.0
        %5261 = vmatmul.mubr.f32.gmra.mrb[0].mxu0 %v4963
        %v5262 = vpop.f32.mrb[0].mxu0
        %v5263 = vadd.f32 0.0, %v5262
        %v5264 = vpop.f32.mrb[0].mxu0
        %5265 = vmatprep.mubr.f32.mxu0 0.0
        %5266 = vmatmul.mubr.f32.gmra.mrb[0].mxu0 %v4966
        %v5267 = vpop.f32.mrb[0].mxu0
        %v5268 = vadd.f32 0.0, %v5267
        %v5269 = vpop.f32.mrb[0].mxu0
        %5270 = vmatprep.mubr.f32.mxu0 0.0
        %5271 = vmatmul.mubr.f32.gmra.mrb[0].mxu0 %v4969
        %v5272 = vpop.f32.mrb[0].mxu0
        %v5273 = vadd.f32 0.0, %v5272
        %v5274 = vpop.f32.mrb[0].mxu0
        %5275 = vmatprep.mubr.f32.mxu0 0.0
        %5276 = vmatmul.mubr.f32.gmra.mrb[0].mxu0 %v4972
        %v5277 = vpop.f32.mrb[0].mxu0
        %v5278 = vadd.f32 0.0, %v5277
        %v5279 = vpop.f32.mrb[0].mxu0
        %5280 = vmatprep.mubr.f32.mxu0 0.0
        %5281 = vmatmul.mubr.f32.gmra.mrb[0].mxu0 %v4975
        %v5282 = vpop.f32.mrb[0].mxu0
        %v5283 = vadd.f32 0.0, %v5282
        %v5284 = vpop.f32.mrb[0].mxu0
        %5285 = vmatprep.mubr.f32.mxu0 0.0
        %5286 = vmatmul.mubr.f32.gmra.mrb[0].mxu0 %v4978
        %v5287 = vpop.f32.mrb[0].mxu0
        %v5288 = vadd.f32 0.0, %v5287
        %v5289 = vpop.f32.mrb[0].mxu0
        %5290 = vmatprep.mubr.f32.mxu0 0.0
        %5291 = vmatmul.mubr.f32.gmra.mrb[0].mxu0 %v4981
        %v5292 = vpop.f32.mrb[0].mxu0
        %v5293 = vadd.f32 0.0, %v5292
        %v5294 = vpop.f32.mrb[0].mxu0
        %5295 = vmatprep.mubr.f32.mxu0 0.0
        %5296 = vmatmul.mubr.f32.gmra.mrb[0].mxu0 %v4984
        %v5297 = vpop.f32.mrb[0].mxu0
        %v5298 = vadd.f32 0.0, %v5297
        %v5299 = vpop.f32.mrb[0].mxu0
        %5300 = vmatprep.mubr.f32.mxu0 0.0
        %5301 = vmatmul.mubr.f32.gmra.mrb[0].mxu0 %v4987
        %v5302 = vpop.f32.mrb[0].mxu0
        %v5303 = vadd.f32 0.0, %v5302
        %v5304 = vpop.f32.mrb[0].mxu0
        %5305 = vmatprep.mubr.f32.mxu0 0.0
        %5306 = vmatmul.mubr.f32.gmra.mrb[0].mxu0 %v4990
        %v5307 = vpop.f32.mrb[0].mxu0
        %v5308 = vadd.f32 0.0, %v5307
        %v5309 = vpop.f32.mrb[0].mxu0
        %5310 = vmatprep.mubr.f32.mxu0 0.0
        %5311 = vmatmul.mubr.f32.gmra.mrb[0].mxu0 %v4993
        %v5312 = vpop.f32.mrb[0].mxu0
        %v5313 = vadd.f32 0.0, %v5312
        %v5314 = vpop.f32.mrb[0].mxu0
        %5315 = vmatprep.mubr.f32.mxu0 0.0
        %5316 = vmatmul.mubr.f32.gmra.mrb[0].mxu0 %v4996
        %v5317 = vpop.f32.mrb[0].mxu0
        %v5318 = vadd.f32 0.0, %v5317
        %v5319 = vpop.f32.mrb[0].mxu0
        %5320 = vmatprep.mubr.f32.mxu0 0.0
        %5321 = vmatmul.mubr.f32.gmra.mrb[0].mxu0 %v4999
        %v5322 = vpop.f32.mrb[0].mxu0
        %v5323 = vadd.f32 0.0, %v5322
        %v5324 = vpop.f32.mrb[0].mxu0
        %5325 = vmatprep.mubr.f32.mxu0 0.0
        %5326 = vmatmul.mubr.f32.gmra.mrb[0].mxu0 %v5002
        %v5327 = vpop.f32.mrb[0].mxu0
        %v5328 = vadd.f32 0.0, %v5327
        %v5329 = vpop.f32.mrb[0].mxu0
        %5330 = vmatprep.mubr.f32.mxu0 0.0
        %5331 = vmatmul.mubr.f32.gmra.mrb[0].mxu0 %v5005
        %v5332 = vpop.f32.mrb[0].mxu0
        %v5333 = vadd.f32 0.0, %v5332
        %v5334 = vpop.f32.mrb[0].mxu0
        %5335 = vmatprep.mubr.f32.mxu0 0.0
        %5336 = vmatmul.mubr.f32.gmra.mrb[0].mxu0 %v5008
        %v5337 = vpop.f32.mrb[0].mxu0
        %v5338 = vadd.f32 0.0, %v5337
        %v5339 = vpop.f32.mrb[0].mxu0
        %5340 = vmatprep.mubr.f32.mxu0 0.0
        %5341 = vmatmul.mubr.f32.gmra.mrb[0].mxu0 %v5011
        %v5342 = vpop.f32.mrb[0].mxu0
        %v5343 = vadd.f32 0.0, %v5342
        %v5344 = vpop.f32.mrb[0].mxu0
        %5345 = vmatprep.mubr.f32.mxu0 0.0
        %5346 = vmatmul.mubr.f32.gmra.mrb[0].mxu0 %v5014
        %v5347 = vpop.f32.mrb[0].mxu0
        %v5348 = vadd.f32 0.0, %v5347
        %v5349 = vpop.f32.mrb[0].mxu0
        %5350 = vmatprep.mubr.f32.mxu0 0.0
        %5351 = vmatmul.mubr.f32.gmra.mrb[0].mxu0 %v5017
        %v5352 = vpop.f32.mrb[0].mxu0
        %v5353 = vadd.f32 0.0, %v5352
        %v5354 = vpop.f32.mrb[0].mxu0
        %5355 = vmatprep.mubr.f32.mxu0 0.0
        %5356 = vmatmul.mubr.f32.gmra.mrb[0].mxu0 %v5020
        %v5357 = vpop.f32.mrb[0].mxu0
        %v5358 = vadd.f32 0.0, %v5357
        %v5359 = vpop.f32.mrb[0].mxu0
        %5360 = vmatprep.mubr.f32.mxu0 0.0
        %5361 = vmatmul.mubr.f32.gmra.mrb[0].mxu0 %v5023
        %v5362 = vpop.f32.mrb[0].mxu0
        %v5363 = vadd.f32 0.0, %v5362
        %v5364 = vpop.f32.mrb[0].mxu0
        %5365 = vmatprep.mubr.f32.mxu0 0.0
        %5366 = vmatmul.mubr.f32.gmra.mrb[0].mxu0 %v5026
        %v5367 = vpop.f32.mrb[0].mxu0
        %v5368 = vadd.f32 0.0, %v5367
        %v5369 = vpop.f32.mrb[0].mxu0
        %5370 = vmatprep.mubr.f32.mxu0 0.0
        %5371 = vmatmul.mubr.f32.gmra.mrb[0].mxu0 %v5029
        %v5372 = vpop.f32.mrb[0].mxu0
        %v5373 = vadd.f32 0.0, %v5372
        %v5374 = vpop.f32.mrb[0].mxu0
        %5375 = vmatprep.mubr.f32.mxu0 0.0
        %5376 = vmatmul.mubr.f32.gmra.mrb[0].mxu0 %v5032
        %v5377 = vpop.f32.mrb[0].mxu0
        %v5378 = vadd.f32 0.0, %v5377
        %v5379 = vpop.f32.mrb[0].mxu0
        %5380 = vmatprep.mubr.f32.mxu0 0.0
        %5381 = vmatmul.mubr.f32.gmra.mrb[0].mxu0 %v5035
        %v5382 = vpop.f32.mrb[0].mxu0
        %v5383 = vadd.f32 0.0, %v5382
        %v5384 = vpop.f32.mrb[0].mxu0
        %5385 = vmatprep.mubr.f32.mxu0 0.0
        %5386 = vmatmul.mubr.f32.gmra.mrb[0].mxu0 %v5038
        %v5387 = vpop.f32.mrb[0].mxu0
        %v5388 = vadd.f32 0.0, %v5387
        %v5389 = vpop.f32.mrb[0].mxu0
        %5390 = vmatprep.mubr.f32.mxu0 0.0
        %5391 = vmatmul.mubr.f32.gmra.mrb[0].mxu0 %v5041
        %v5392 = vpop.f32.mrb[0].mxu0
        %v5393 = vadd.f32 0.0, %v5392
        %v5394 = vpop.f32.mrb[0].mxu0
        %5395 = vmatprep.mubr.f32.mxu0 0.0
        %5396 = vmatmul.mubr.f32.gmra.mrb[0].mxu0 %v5044
        %v5397 = vpop.f32.mrb[0].mxu0
        %v5398 = vadd.f32 0.0, %v5397
        %v5399 = vpop.f32.mrb[0].mxu0
        %5400 = vmatprep.mubr.f32.mxu0 0.0
        %5401 = vmatmul.mubr.f32.gmra.mrb[0].mxu0 %v5047
        %v5402 = vpop.f32.mrb[0].mxu0
        %v5403 = vadd.f32 0.0, %v5402
        %v5404 = vpop.f32.mrb[0].mxu0
        %5405 = vmatprep.mubr.f32.mxu0 0.0
        %5406 = vmatmul.mubr.f32.gmra.mrb[0].mxu0 %v5050
        %v5407 = vpop.f32.mrb[0].mxu0
        %v5408 = vadd.f32 0.0, %v5407
        %v5409 = vpop.f32.mrb[0].mxu0
        %5410 = vmatprep.mubr.f32.mxu0 0.0
        %5411 = vmatmul.mubr.f32.gmra.mrb[0].mxu0 %v5053
        %v5412 = vpop.f32.mrb[0].mxu0
        %v5413 = vadd.f32 0.0, %v5412
        %v5414 = vpop.f32.mrb[0].mxu0
        %5415 = vmatprep.mubr.f32.mxu0 0.0
        %5416 = vmatmul.mubr.f32.gmra.mrb[0].mxu0 %v5056
        %v5417 = vpop.f32.mrb[0].mxu0
        %v5418 = vadd.f32 0.0, %v5417
        %v5419 = vpop.f32.mrb[0].mxu0
        %5420 = vmatprep.mubr.f32.mxu0 0.0
        %5421 = vmatmul.mubr.f32.gmra.mrb[0].mxu0 %v5059
        %v5422 = vpop.f32.mrb[0].mxu0
        %v5423 = vadd.f32 0.0, %v5422
        %v5424 = vpop.f32.mrb[0].mxu0
        %5425 = vmatprep.mubr.f32.mxu0 0.0
        %5426 = vmatmul.mubr.f32.gmra.mrb[0].mxu0 %v5062
        %v5427 = vpop.f32.mrb[0].mxu0
        %v5428 = vadd.f32 0.0, %v5427
        %v5429 = vpop.f32.mrb[0].mxu0
        %5430 = vmatprep.mubr.f32.mxu0 0.0
        %5431 = vmatmul.mubr.f32.gmra.mrb[0].mxu0 %v5065
        %v5432 = vpop.f32.mrb[0].mxu0
        %v5433 = vadd.f32 0.0, %v5432
        %v5434 = vpop.f32.mrb[0].mxu0
        %5435 = vmatprep.mubr.f32.mxu0 0.0
        %5436 = vmatmul.mubr.f32.gmra.mrb[0].mxu0 %v5068
        %v5437 = vpop.f32.mrb[0].mxu0
        %v5438 = vadd.f32 0.0, %v5437
        %v5439 = vpop.f32.mrb[0].mxu0
        %5440 = vmatprep.mubr.f32.mxu0 0.0
        %5441 = vmatmul.mubr.f32.gmra.mrb[0].mxu0 %v5071
        %v5442 = vpop.f32.mrb[0].mxu0
        %v5443 = vadd.f32 0.0, %v5442
        %v5444 = vpop.f32.mrb[0].mxu0
        %5445 = vmatprep.mubr.f32.mxu0 0.0
        %5446 = vmatmul.mubr.f32.gmra.mrb[0].mxu0 %v5074
        %v5447 = vpop.f32.mrb[0].mxu0
        %v5448 = vadd.f32 0.0, %v5447
        %v5449 = vpop.f32.mrb[0].mxu0
        %5450 = vmatprep.mubr.f32.mxu0 0.0
        %5451 = vmatmul.mubr.f32.gmra.mrb[0].mxu0 %v5077
        %v5452 = vpop.f32.mrb[0].mxu0
        %v5453 = vadd.f32 0.0, %v5452
        %v5454 = vpop.f32.mrb[0].mxu0
        %5455 = vmatprep.mubr.f32.mxu0 0.0
        %5456 = vmatmul.mubr.f32.gmra.mrb[0].mxu0 %v5080
        %v5457 = vpop.f32.mrb[0].mxu0
        %v5458 = vadd.f32 0.0, %v5457
        %v5459 = vpop.f32.mrb[0].mxu0
        %5460 = vmatprep.mubr.f32.mxu0 0.0
        %5461 = vmatmul.mubr.f32.gmra.mrb[0].mxu0 %v5083
        %v5462 = vpop.f32.mrb[0].mxu0
        %v5463 = vadd.f32 0.0, %v5462
        %v5464 = vpop.f32.mrb[0].mxu0
        %5465 = vmatprep.mubr.f32.mxu0 0.0
        %5466 = vmatmul.mubr.f32.gmra.mrb[0].mxu0 %v5086
        %v5467 = vpop.f32.mrb[0].mxu0
        %v5468 = vadd.f32 0.0, %v5467
        %v5469 = vpop.f32.mrb[0].mxu0
        %5470 = vmatprep.mubr.f32.mxu0 0.0
        %5471 = vmatmul.mubr.f32.gmra.mrb[0].mxu0 %v5089
        %v5472 = vpop.f32.mrb[0].mxu0
        %v5473 = vadd.f32 0.0, %v5472
        %v5474 = vpop.f32.mrb[0].mxu0
        %5475 = vdwg.mxu0
        %v5476 = vtanh.pop %v5158
        %v5477 = vtanh.pop %v5163
        %v5478 = vtanh.pop %v5168
        %v5479 = vtanh.pop %v5173
        %v5480 = vtanh.pop %v5178
        %v5481 = vtanh.pop %v5183
        %v5482 = vtanh.pop %v5188
        %v5483 = vtanh.pop %v5193
        %v5484 = vtanh.pop %v5198
        %v5485 = vtanh.pop %v5203
        %v5486 = vtanh.pop %v5208
        %v5487 = vtanh.pop %v5213
        %v5488 = vtanh.pop %v5218
        %v5489 = vtanh.pop %v5223
        %v5490 = vtanh.pop %v5228
        %v5491 = vtanh.pop %v5233
        %v5492 = vtanh.pop %v5238
        %v5493 = vtanh.pop %v5243
        %v5494 = vtanh.pop %v5248
        %v5495 = vtanh.pop %v5253
        %v5496 = vtanh.pop %v5258
        %v5497 = vtanh.pop %v5263
        %v5498 = vtanh.pop %v5268
        %v5499 = vtanh.pop %v5273
        %v5500 = vtanh.pop %v5278
        %v5501 = vtanh.pop %v5283
        %v5502 = vtanh.pop %v5288
        %v5503 = vtanh.pop %v5293
        %v5504 = vtanh.pop %v5298
        %v5505 = vtanh.pop %v5303
        %v5506 = vtanh.pop %v5308
        %v5507 = vtanh.pop %v5313
        %v5508 = vtanh.pop %v5318
        %v5509 = vtanh.pop %v5323
        %v5510 = vtanh.pop %v5328
        %v5511 = vtanh.pop %v5333
        %v5512 = vtanh.pop %v5338
        %v5513 = vtanh.pop %v5343
        %v5514 = vtanh.pop %v5348
        %v5515 = vtanh.pop %v5353
        %v5516 = vtanh.pop %v5358
        %v5517 = vtanh.pop %v5363
        %v5518 = vtanh.pop %v5368
        %v5519 = vtanh.pop %v5373
        %v5520 = vtanh.pop %v5378
        %v5521 = vtanh.pop %v5383
        %v5522 = vtanh.pop %v5388
        %v5523 = vtanh.pop %v5393
        %v5524 = vtanh.pop %v5398
        %v5525 = vtanh.pop %v5403
        %v5526 = vtanh.pop %v5408
        %v5527 = vtanh.pop %v5413
        %v5528 = vtanh.pop %v5418
        %v5529 = vtanh.pop %v5423
        %v5530 = vtanh.pop %v5428
        %v5531 = vtanh.pop %v5433
        %v5532 = vtanh.pop %v5438
        %v5533 = vtanh.pop %v5443
        %v5534 = vtanh.pop %v5448
        %v5535 = vtanh.pop %v5453
        %v5536 = vtanh.pop %v5458
        %v5537 = vtanh.pop %v5463
        %v5538 = vtanh.pop %v5468
        %v5539 = vtanh.pop %v5473
        %v5542 = vunpack.c.l.s4 1966171168
        %v5543 = vunpack.c.0.s8 %v5542
        %v5544 = vlaneseq
        %v5545 = vshrl.u32 %v5544, 7
        %v5546 = vsub.s32 %v5543, %v5545
        %v5547 = vrot.slane %v2094, %v5546
        %v5548 = vcombine.high %v5547, %v5547
        %v5550 = vunpack.c.l.s4 1966171168
        %v5551 = vunpack.c.0.s8 %v5550
        %v5552 = vlaneseq
        %v5553 = vshrl.u32 %v5552, 7
        %v5554 = vsub.s32 %v5551, %v5553
        %v5555 = vrot.slane %v5547, %v5554
        %v5557 = vunpack.c.l.s4 1966171168
        %v5558 = vunpack.c.0.s8 %v5557
        %v5559 = vlaneseq
        %v5560 = vshrl.u32 %v5559, 7
        %v5561 = vsub.s32 %v5558, %v5560
        %v5562 = vrot.slane %v5548, %v5561
        %v5563 = vcombine.high %v5555, %v5555
        %v5564 = vcombine.high %v5562, %v5562
        %v5565 = vlaneseq
        %v5566 = vshrl.u32 %v5565, 7
        %v5567 = vsub.s32 0, %v5566
        %v5568 = vrot.slane %v5555, %v5567
        %v5569 = vlaneseq
        %v5570 = vshrl.u32 %v5569, 7
        %v5571 = vsub.s32 0, %v5570
        %v5572 = vrot.slane %v5562, %v5571
        %v5573 = vlaneseq
        %v5574 = vshrl.u32 %v5573, 7
        %v5575 = vsub.s32 0, %v5574
        %v5576 = vrot.slane %v5563, %v5575
        %v5577 = vlaneseq
        %v5578 = vshrl.u32 %v5577, 7
        %v5579 = vsub.s32 0, %v5578
        %v5580 = vrot.slane %v5564, %v5579
        %v5585 = vmul.f32 %v5476, %v5568
        %v5586 = vmul.f32 %v5477, %v5568
        %v5587 = vmul.f32 %v5478, %v5568
        %v5588 = vmul.f32 %v5479, %v5568
        %v5589 = vmul.f32 %v5480, %v5568
        %v5590 = vmul.f32 %v5481, %v5568
        %v5591 = vmul.f32 %v5482, %v5568
        %v5592 = vmul.f32 %v5483, %v5568
        %v5593 = vmul.f32 %v5484, %v5568
        %v5594 = vmul.f32 %v5485, %v5568
        %v5595 = vmul.f32 %v5486, %v5568
        %v5596 = vmul.f32 %v5487, %v5568
        %v5597 = vmul.f32 %v5488, %v5568
        %v5598 = vmul.f32 %v5489, %v5568
        %v5599 = vmul.f32 %v5490, %v5568
        %v5600 = vmul.f32 %v5491, %v5568
        %v5601 = vmul.f32 %v5492, %v5572
        %v5602 = vmul.f32 %v5493, %v5572
        %v5603 = vmul.f32 %v5494, %v5572
        %v5604 = vmul.f32 %v5495, %v5572
        %v5605 = vmul.f32 %v5496, %v5572
        %v5606 = vmul.f32 %v5497, %v5572
        %v5607 = vmul.f32 %v5498, %v5572
        %v5608 = vmul.f32 %v5499, %v5572
        %v5609 = vmul.f32 %v5500, %v5572
        %v5610 = vmul.f32 %v5501, %v5572
        %v5611 = vmul.f32 %v5502, %v5572
        %v5612 = vmul.f32 %v5503, %v5572
        %v5613 = vmul.f32 %v5504, %v5572
        %v5614 = vmul.f32 %v5505, %v5572
        %v5615 = vmul.f32 %v5506, %v5572
        %v5616 = vmul.f32 %v5507, %v5572
        %v5617 = vmul.f32 %v5508, %v5576
        %v5618 = vmul.f32 %v5509, %v5576
        %v5619 = vmul.f32 %v5510, %v5576
        %v5620 = vmul.f32 %v5511, %v5576
        %v5621 = vmul.f32 %v5512, %v5576
        %v5622 = vmul.f32 %v5513, %v5576
        %v5623 = vmul.f32 %v5514, %v5576
        %v5624 = vmul.f32 %v5515, %v5576
        %v5625 = vmul.f32 %v5516, %v5576
        %v5626 = vmul.f32 %v5517, %v5576
        %v5627 = vmul.f32 %v5518, %v5576
        %v5628 = vmul.f32 %v5519, %v5576
        %v5629 = vmul.f32 %v5520, %v5576
        %v5630 = vmul.f32 %v5521, %v5576
        %v5631 = vmul.f32 %v5522, %v5576
        %v5632 = vmul.f32 %v5523, %v5576
        %v5633 = vmul.f32 %v5524, %v5580
        %v5634 = vmul.f32 %v5525, %v5580
        %v5635 = vmul.f32 %v5526, %v5580
        %v5636 = vmul.f32 %v5527, %v5580
        %v5637 = vmul.f32 %v5528, %v5580
        %v5638 = vmul.f32 %v5529, %v5580
        %v5639 = vmul.f32 %v5530, %v5580
        %v5640 = vmul.f32 %v5531, %v5580
        %v5641 = vmul.f32 %v5532, %v5580
        %v5642 = vmul.f32 %v5533, %v5580
        %v5643 = vmul.f32 %v5534, %v5580
        %v5644 = vmul.f32 %v5535, %v5580
        %v5645 = vmul.f32 %v5536, %v5580
        %v5646 = vmul.f32 %v5537, %v5580
        %v5647 = vmul.f32 %v5538, %v5580
        %v5648 = vmul.f32 %v5539, %v5580
        %v5650 = vsel %vm3552, %v5585, 0
        %v5653 = vsel %vm3552, %v5586, 0
        %v5656 = vsel %vm3552, %v5587, 0
        %v5659 = vsel %vm3552, %v5588, 0
        %v5662 = vsel %vm3552, %v5589, 0
        %v5665 = vsel %vm3552, %v5590, 0
        %v5668 = vsel %vm3552, %v5591, 0
        %v5671 = vsel %vm3552, %v5592, 0
        %v5674 = vsel %vm3552, %v5593, 0
        %v5677 = vsel %vm3552, %v5594, 0
        %v5680 = vsel %vm3552, %v5595, 0
        %v5683 = vsel %vm3552, %v5596, 0
        %v5686 = vsel %vm3552, %v5597, 0
        %v5689 = vsel %vm3552, %v5598, 0
        %v5692 = vsel %vm3552, %v5599, 0
        %v5695 = vsel %vm3552, %v5600, 0
        %v5698 = vsel %vm3552, %v5601, 0
        %v5701 = vsel %vm3552, %v5602, 0
        %v5704 = vsel %vm3552, %v5603, 0
        %v5707 = vsel %vm3552, %v5604, 0
        %v5710 = vsel %vm3552, %v5605, 0
        %v5713 = vsel %vm3552, %v5606, 0
        %v5716 = vsel %vm3552, %v5607, 0
        %v5719 = vsel %vm3552, %v5608, 0
        %v5722 = vsel %vm3552, %v5609, 0
        %v5725 = vsel %vm3552, %v5610, 0
        %v5728 = vsel %vm3552, %v5611, 0
        %v5731 = vsel %vm3552, %v5612, 0
        %v5734 = vsel %vm3552, %v5613, 0
        %v5737 = vsel %vm3552, %v5614, 0
        %v5740 = vsel %vm3552, %v5615, 0
        %v5743 = vsel %vm3552, %v5616, 0
        %v5746 = vsel %vm3552, %v5617, 0
        %v5749 = vsel %vm3552, %v5618, 0
        %v5752 = vsel %vm3552, %v5619, 0
        %v5755 = vsel %vm3552, %v5620, 0
        %v5758 = vsel %vm3552, %v5621, 0
        %v5761 = vsel %vm3552, %v5622, 0
        %v5764 = vsel %vm3552, %v5623, 0
        %v5767 = vsel %vm3552, %v5624, 0
        %v5770 = vsel %vm3552, %v5625, 0
        %v5773 = vsel %vm3552, %v5626, 0
        %v5776 = vsel %vm3552, %v5627, 0
        %v5779 = vsel %vm3552, %v5628, 0
        %v5782 = vsel %vm3552, %v5629, 0
        %v5785 = vsel %vm3552, %v5630, 0
        %v5788 = vsel %vm3552, %v5631, 0
        %v5791 = vsel %vm3552, %v5632, 0
        %v5794 = vsel %vm3552, %v5633, 0
        %v5797 = vsel %vm3552, %v5634, 0
        %v5800 = vsel %vm3552, %v5635, 0
        %v5803 = vsel %vm3552, %v5636, 0
        %v5806 = vsel %vm3552, %v5637, 0
        %v5809 = vsel %vm3552, %v5638, 0
        %v5812 = vsel %vm3552, %v5639, 0
        %v5815 = vsel %vm3552, %v5640, 0
        %v5818 = vsel %vm3552, %v5641, 0
        %v5821 = vsel %vm3552, %v5642, 0
        %v5824 = vsel %vm3552, %v5643, 0
        %v5827 = vsel %vm3552, %v5644, 0
        %v5830 = vsel %vm3552, %v5645, 0
        %v5833 = vsel %vm3552, %v5646, 0
        %v5836 = vsel %vm3552, %v5647, 0
        %v5839 = vsel %vm3552, %v5648, 0
        %5841 = vmatprep.subr.mxu0 0.0
        %5842 = vmatpush1.msra.mxu0 %v2092
        %5843 = vmatprep.subr.mxu0 0.0
        %5844 = vmatpush1.msra.mxu0 0.0
        %5845 = vmatprep.subr.mxu0 0.0
        %5846 = vmatpush1.msra.mxu0 0.0
        %5847 = vmatprep.subr.mxu0 0.0
        %5848 = vmatpush1.msra.mxu0 0.0
        %5849 = vmatprep.subr.mxu0 0.0
        %5850 = vmatpush1.msra.mxu0 0.0
        %5851 = vmatprep.subr.mxu0 0.0
        %5852 = vmatpush1.msra.mxu0 0.0
        %5853 = vmatprep.subr.mxu0 0.0
        %5854 = vmatpush1.msra.mxu0 0.0
        %5855 = vmatprep.subr.mxu0 0.0
        %5856 = vmatpush1.msra.mxu0 0.0
        %5857 = vmatprep.subr.mxu0 0.0
        %5858 = vmatpush1.msra.mxu0 0.0
        %5859 = vmatprep.subr.mxu0 0.0
        %5860 = vmatpush1.msra.mxu0 0.0
        %5861 = vmatprep.subr.mxu0 0.0
        %5862 = vmatpush1.msra.mxu0 0.0
        %5863 = vmatprep.subr.mxu0 0.0
        %5864 = vmatpush1.msra.mxu0 0.0
        %5865 = vmatprep.subr.mxu0 0.0
        %5866 = vmatpush1.msra.mxu0 0.0
        %5867 = vmatprep.subr.mxu0 0.0
        %5868 = vmatpush1.msra.mxu0 0.0
        %5869 = vmatprep.subr.mxu0 0.0
        %5870 = vmatpush1.msra.mxu0 0.0
        %5871 = vmatprep.subr.mxu0 0.0
        %5872 = vmatpush1.msra.mxu0 0.0
        %5873 = vmatprep.subr.mxu0 0.0
        %5874 = vmatpush1.msra.mxu0 0.0
        %5875 = vmatprep.subr.mxu0 0.0
        %5876 = vmatpush1.msra.mxu0 0.0
        %5877 = vmatprep.subr.mxu0 0.0
        %5878 = vmatpush1.msra.mxu0 0.0
        %5879 = vmatprep.subr.mxu0 0.0
        %5880 = vmatpush1.msra.mxu0 0.0
        %5881 = vmatprep.subr.mxu0 0.0
        %5882 = vmatpush1.msra.mxu0 0.0
        %5883 = vmatprep.subr.mxu0 0.0
        %5884 = vmatpush1.msra.mxu0 0.0
        %5885 = vmatprep.subr.mxu0 0.0
        %5886 = vmatpush1.msra.mxu0 0.0
        %5887 = vmatprep.subr.mxu0 0.0
        %5888 = vmatpush1.msra.mxu0 0.0
        %5889 = vmatprep.subr.mxu0 0.0
        %5890 = vmatpush1.msra.mxu0 0.0
        %5891 = vmatprep.subr.mxu0 0.0
        %5892 = vmatpush1.msra.mxu0 0.0
        %5893 = vmatprep.subr.mxu0 0.0
        %5894 = vmatpush1.msra.mxu0 0.0
        %5895 = vmatprep.subr.mxu0 0.0
        %5896 = vmatpush1.msra.mxu0 0.0
        %5897 = vmatprep.subr.mxu0 0.0
        %5898 = vmatpush1.msra.mxu0 0.0
        %5899 = vmatprep.subr.mxu0 0.0
        %5900 = vmatpush1.msra.mxu0 0.0
        %5901 = vmatprep.subr.mxu0 0.0
        %5902 = vmatpush1.msra.mxu0 0.0
        %5903 = vmatprep.subr.mxu0 0.0
        %5904 = vmatpush1.msra.mxu0 0.0
        %5905 = vmatprep.mubr.f32.mxu0 0.0
        %5906 = vmatmul.mubr.f32.gmra.mrb[0].mxu0 %v5650
        %v5907 = vpop.f32.mrb[0].mxu0
        %v5908 = vadd.f32 0.0, %v5907
        %v5909 = vpop.f32.mrb[0].mxu0
        %5910 = vmatprep.mubr.f32.mxu0 0.0
        %5911 = vmatmul.mubr.f32.gmra.mrb[0].mxu0 %v5653
        %v5912 = vpop.f32.mrb[0].mxu0
        %v5913 = vadd.f32 0.0, %v5912
        %v5914 = vpop.f32.mrb[0].mxu0
        %5915 = vmatprep.mubr.f32.mxu0 0.0
        %5916 = vmatmul.mubr.f32.gmra.mrb[0].mxu0 %v5656
        %v5917 = vpop.f32.mrb[0].mxu0
        %v5918 = vadd.f32 0.0, %v5917
        %v5919 = vpop.f32.mrb[0].mxu0
        %5920 = vmatprep.mubr.f32.mxu0 0.0
        %5921 = vmatmul.mubr.f32.gmra.mrb[0].mxu0 %v5659
        %v5922 = vpop.f32.mrb[0].mxu0
        %v5923 = vadd.f32 0.0, %v5922
        %v5924 = vpop.f32.mrb[0].mxu0
        %5925 = vmatprep.mubr.f32.mxu0 0.0
        %5926 = vmatmul.mubr.f32.gmra.mrb[0].mxu0 %v5662
        %v5927 = vpop.f32.mrb[0].mxu0
        %v5928 = vadd.f32 0.0, %v5927
        %v5929 = vpop.f32.mrb[0].mxu0
        %5930 = vmatprep.mubr.f32.mxu0 0.0
        %5931 = vmatmul.mubr.f32.gmra.mrb[0].mxu0 %v5665
        %v5932 = vpop.f32.mrb[0].mxu0
        %v5933 = vadd.f32 0.0, %v5932
        %v5934 = vpop.f32.mrb[0].mxu0
        %5935 = vmatprep.mubr.f32.mxu0 0.0
        %5936 = vmatmul.mubr.f32.gmra.mrb[0].mxu0 %v5668
        %v5937 = vpop.f32.mrb[0].mxu0
        %v5938 = vadd.f32 0.0, %v5937
        %v5939 = vpop.f32.mrb[0].mxu0
        %5940 = vmatprep.mubr.f32.mxu0 0.0
        %5941 = vmatmul.mubr.f32.gmra.mrb[0].mxu0 %v5671
        %v5942 = vpop.f32.mrb[0].mxu0
        %v5943 = vadd.f32 0.0, %v5942
        %v5944 = vpop.f32.mrb[0].mxu0
        %5945 = vmatprep.mubr.f32.mxu0 0.0
        %5946 = vmatmul.mubr.f32.gmra.mrb[0].mxu0 %v5674
        %v5947 = vpop.f32.mrb[0].mxu0
        %v5948 = vadd.f32 0.0, %v5947
        %v5949 = vpop.f32.mrb[0].mxu0
        %5950 = vmatprep.mubr.f32.mxu0 0.0
        %5951 = vmatmul.mubr.f32.gmra.mrb[0].mxu0 %v5677
        %v5952 = vpop.f32.mrb[0].mxu0
        %v5953 = vadd.f32 0.0, %v5952
        %v5954 = vpop.f32.mrb[0].mxu0
        %5955 = vmatprep.mubr.f32.mxu0 0.0
        %5956 = vmatmul.mubr.f32.gmra.mrb[0].mxu0 %v5680
        %v5957 = vpop.f32.mrb[0].mxu0
        %v5958 = vadd.f32 0.0, %v5957
        %v5959 = vpop.f32.mrb[0].mxu0
        %5960 = vmatprep.mubr.f32.mxu0 0.0
        %5961 = vmatmul.mubr.f32.gmra.mrb[0].mxu0 %v5683
        %v5962 = vpop.f32.mrb[0].mxu0
        %v5963 = vadd.f32 0.0, %v5962
        %v5964 = vpop.f32.mrb[0].mxu0
        %5965 = vmatprep.mubr.f32.mxu0 0.0
        %5966 = vmatmul.mubr.f32.gmra.mrb[0].mxu0 %v5686
        %v5967 = vpop.f32.mrb[0].mxu0
        %v5968 = vadd.f32 0.0, %v5967
        %v5969 = vpop.f32.mrb[0].mxu0
        %5970 = vmatprep.mubr.f32.mxu0 0.0
        %5971 = vmatmul.mubr.f32.gmra.mrb[0].mxu0 %v5689
        %v5972 = vpop.f32.mrb[0].mxu0
        %v5973 = vadd.f32 0.0, %v5972
        %v5974 = vpop.f32.mrb[0].mxu0
        %5975 = vmatprep.mubr.f32.mxu0 0.0
        %5976 = vmatmul.mubr.f32.gmra.mrb[0].mxu0 %v5692
        %v5977 = vpop.f32.mrb[0].mxu0
        %v5978 = vadd.f32 0.0, %v5977
        %v5979 = vpop.f32.mrb[0].mxu0
        %5980 = vmatprep.mubr.f32.mxu0 0.0
        %5981 = vmatmul.mubr.f32.gmra.mrb[0].mxu0 %v5695
        %v5982 = vpop.f32.mrb[0].mxu0
        %v5983 = vadd.f32 0.0, %v5982
        %v5984 = vpop.f32.mrb[0].mxu0
        %5985 = vmatprep.mubr.f32.mxu0 0.0
        %5986 = vmatmul.mubr.f32.gmra.mrb[0].mxu0 %v5698
        %v5987 = vpop.f32.mrb[0].mxu0
        %v5988 = vadd.f32 0.0, %v5987
        %v5989 = vpop.f32.mrb[0].mxu0
        %5990 = vmatprep.mubr.f32.mxu0 0.0
        %5991 = vmatmul.mubr.f32.gmra.mrb[0].mxu0 %v5701
        %v5992 = vpop.f32.mrb[0].mxu0
        %v5993 = vadd.f32 0.0, %v5992
        %v5994 = vpop.f32.mrb[0].mxu0
        %5995 = vmatprep.mubr.f32.mxu0 0.0
        %5996 = vmatmul.mubr.f32.gmra.mrb[0].mxu0 %v5704
        %v5997 = vpop.f32.mrb[0].mxu0
        %v5998 = vadd.f32 0.0, %v5997
        %v5999 = vpop.f32.mrb[0].mxu0
        %6000 = vmatprep.mubr.f32.mxu0 0.0
        %6001 = vmatmul.mubr.f32.gmra.mrb[0].mxu0 %v5707
        %v6002 = vpop.f32.mrb[0].mxu0
        %v6003 = vadd.f32 0.0, %v6002
        %v6004 = vpop.f32.mrb[0].mxu0
        %6005 = vmatprep.mubr.f32.mxu0 0.0
        %6006 = vmatmul.mubr.f32.gmra.mrb[0].mxu0 %v5710
        %v6007 = vpop.f32.mrb[0].mxu0
        %v6008 = vadd.f32 0.0, %v6007
        %v6009 = vpop.f32.mrb[0].mxu0
        %6010 = vmatprep.mubr.f32.mxu0 0.0
        %6011 = vmatmul.mubr.f32.gmra.mrb[0].mxu0 %v5713
        %v6012 = vpop.f32.mrb[0].mxu0
        %v6013 = vadd.f32 0.0, %v6012
        %v6014 = vpop.f32.mrb[0].mxu0
        %6015 = vmatprep.mubr.f32.mxu0 0.0
        %6016 = vmatmul.mubr.f32.gmra.mrb[0].mxu0 %v5716
        %v6017 = vpop.f32.mrb[0].mxu0
        %v6018 = vadd.f32 0.0, %v6017
        %v6019 = vpop.f32.mrb[0].mxu0
        %6020 = vmatprep.mubr.f32.mxu0 0.0
        %6021 = vmatmul.mubr.f32.gmra.mrb[0].mxu0 %v5719
        %v6022 = vpop.f32.mrb[0].mxu0
        %v6023 = vadd.f32 0.0, %v6022
        %v6024 = vpop.f32.mrb[0].mxu0
        %6025 = vmatprep.mubr.f32.mxu0 0.0
        %6026 = vmatmul.mubr.f32.gmra.mrb[0].mxu0 %v5722
        %v6027 = vpop.f32.mrb[0].mxu0
        %v6028 = vadd.f32 0.0, %v6027
        %v6029 = vpop.f32.mrb[0].mxu0
        %6030 = vmatprep.mubr.f32.mxu0 0.0
        %6031 = vmatmul.mubr.f32.gmra.mrb[0].mxu0 %v5725
        %v6032 = vpop.f32.mrb[0].mxu0
        %v6033 = vadd.f32 0.0, %v6032
        %v6034 = vpop.f32.mrb[0].mxu0
        %6035 = vmatprep.mubr.f32.mxu0 0.0
        %6036 = vmatmul.mubr.f32.gmra.mrb[0].mxu0 %v5728
        %v6037 = vpop.f32.mrb[0].mxu0
        %v6038 = vadd.f32 0.0, %v6037
        %v6039 = vpop.f32.mrb[0].mxu0
        %6040 = vmatprep.mubr.f32.mxu0 0.0
        %6041 = vmatmul.mubr.f32.gmra.mrb[0].mxu0 %v5731
        %v6042 = vpop.f32.mrb[0].mxu0
        %v6043 = vadd.f32 0.0, %v6042
        %v6044 = vpop.f32.mrb[0].mxu0
        %6045 = vmatprep.mubr.f32.mxu0 0.0
        %6046 = vmatmul.mubr.f32.gmra.mrb[0].mxu0 %v5734
        %v6047 = vpop.f32.mrb[0].mxu0
        %v6048 = vadd.f32 0.0, %v6047
        %v6049 = vpop.f32.mrb[0].mxu0
        %6050 = vmatprep.mubr.f32.mxu0 0.0
        %6051 = vmatmul.mubr.f32.gmra.mrb[0].mxu0 %v5737
        %v6052 = vpop.f32.mrb[0].mxu0
        %v6053 = vadd.f32 0.0, %v6052
        %v6054 = vpop.f32.mrb[0].mxu0
        %6055 = vmatprep.mubr.f32.mxu0 0.0
        %6056 = vmatmul.mubr.f32.gmra.mrb[0].mxu0 %v5740
        %v6057 = vpop.f32.mrb[0].mxu0
        %v6058 = vadd.f32 0.0, %v6057
        %v6059 = vpop.f32.mrb[0].mxu0
        %6060 = vmatprep.mubr.f32.mxu0 0.0
        %6061 = vmatmul.mubr.f32.gmra.mrb[0].mxu0 %v5743
        %v6062 = vpop.f32.mrb[0].mxu0
        %v6063 = vadd.f32 0.0, %v6062
        %v6064 = vpop.f32.mrb[0].mxu0
        %6065 = vmatprep.mubr.f32.mxu0 0.0
        %6066 = vmatmul.mubr.f32.gmra.mrb[0].mxu0 %v5746
        %v6067 = vpop.f32.mrb[0].mxu0
        %v6068 = vadd.f32 0.0, %v6067
        %v6069 = vpop.f32.mrb[0].mxu0
        %6070 = vmatprep.mubr.f32.mxu0 0.0
        %6071 = vmatmul.mubr.f32.gmra.mrb[0].mxu0 %v5749
        %v6072 = vpop.f32.mrb[0].mxu0
        %v6073 = vadd.f32 0.0, %v6072
        %v6074 = vpop.f32.mrb[0].mxu0
        %6075 = vmatprep.mubr.f32.mxu0 0.0
        %6076 = vmatmul.mubr.f32.gmra.mrb[0].mxu0 %v5752
        %v6077 = vpop.f32.mrb[0].mxu0
        %v6078 = vadd.f32 0.0, %v6077
        %v6079 = vpop.f32.mrb[0].mxu0
        %6080 = vmatprep.mubr.f32.mxu0 0.0
        %6081 = vmatmul.mubr.f32.gmra.mrb[0].mxu0 %v5755
        %v6082 = vpop.f32.mrb[0].mxu0
        %v6083 = vadd.f32 0.0, %v6082
        %v6084 = vpop.f32.mrb[0].mxu0
        %6085 = vmatprep.mubr.f32.mxu0 0.0
        %6086 = vmatmul.mubr.f32.gmra.mrb[0].mxu0 %v5758
        %v6087 = vpop.f32.mrb[0].mxu0
        %v6088 = vadd.f32 0.0, %v6087
        %v6089 = vpop.f32.mrb[0].mxu0
        %6090 = vmatprep.mubr.f32.mxu0 0.0
        %6091 = vmatmul.mubr.f32.gmra.mrb[0].mxu0 %v5761
        %v6092 = vpop.f32.mrb[0].mxu0
        %v6093 = vadd.f32 0.0, %v6092
        %v6094 = vpop.f32.mrb[0].mxu0
        %6095 = vmatprep.mubr.f32.mxu0 0.0
        %6096 = vmatmul.mubr.f32.gmra.mrb[0].mxu0 %v5764
        %v6097 = vpop.f32.mrb[0].mxu0
        %v6098 = vadd.f32 0.0, %v6097
        %v6099 = vpop.f32.mrb[0].mxu0
        %6100 = vmatprep.mubr.f32.mxu0 0.0
        %6101 = vmatmul.mubr.f32.gmra.mrb[0].mxu0 %v5767
        %v6102 = vpop.f32.mrb[0].mxu0
        %v6103 = vadd.f32 0.0, %v6102
        %v6104 = vpop.f32.mrb[0].mxu0
        %6105 = vmatprep.mubr.f32.mxu0 0.0
        %6106 = vmatmul.mubr.f32.gmra.mrb[0].mxu0 %v5770
        %v6107 = vpop.f32.mrb[0].mxu0
        %v6108 = vadd.f32 0.0, %v6107
        %v6109 = vpop.f32.mrb[0].mxu0
        %6110 = vmatprep.mubr.f32.mxu0 0.0
        %6111 = vmatmul.mubr.f32.gmra.mrb[0].mxu0 %v5773
        %v6112 = vpop.f32.mrb[0].mxu0
        %v6113 = vadd.f32 0.0, %v6112
        %v6114 = vpop.f32.mrb[0].mxu0
        %6115 = vmatprep.mubr.f32.mxu0 0.0
        %6116 = vmatmul.mubr.f32.gmra.mrb[0].mxu0 %v5776
        %v6117 = vpop.f32.mrb[0].mxu0
        %v6118 = vadd.f32 0.0, %v6117
        %v6119 = vpop.f32.mrb[0].mxu0
        %6120 = vmatprep.mubr.f32.mxu0 0.0
        %6121 = vmatmul.mubr.f32.gmra.mrb[0].mxu0 %v5779
        %v6122 = vpop.f32.mrb[0].mxu0
        %v6123 = vadd.f32 0.0, %v6122
        %v6124 = vpop.f32.mrb[0].mxu0
        %6125 = vmatprep.mubr.f32.mxu0 0.0
        %6126 = vmatmul.mubr.f32.gmra.mrb[0].mxu0 %v5782
        %v6127 = vpop.f32.mrb[0].mxu0
        %v6128 = vadd.f32 0.0, %v6127
        %v6129 = vpop.f32.mrb[0].mxu0
        %6130 = vmatprep.mubr.f32.mxu0 0.0
        %6131 = vmatmul.mubr.f32.gmra.mrb[0].mxu0 %v5785
        %v6132 = vpop.f32.mrb[0].mxu0
        %v6133 = vadd.f32 0.0, %v6132
        %v6134 = vpop.f32.mrb[0].mxu0
        %6135 = vmatprep.mubr.f32.mxu0 0.0
        %6136 = vmatmul.mubr.f32.gmra.mrb[0].mxu0 %v5788
        %v6137 = vpop.f32.mrb[0].mxu0
        %v6138 = vadd.f32 0.0, %v6137
        %v6139 = vpop.f32.mrb[0].mxu0
        %6140 = vmatprep.mubr.f32.mxu0 0.0
        %6141 = vmatmul.mubr.f32.gmra.mrb[0].mxu0 %v5791
        %v6142 = vpop.f32.mrb[0].mxu0
        %v6143 = vadd.f32 0.0, %v6142
        %v6144 = vpop.f32.mrb[0].mxu0
        %6145 = vmatprep.mubr.f32.mxu0 0.0
        %6146 = vmatmul.mubr.f32.gmra.mrb[0].mxu0 %v5794
        %v6147 = vpop.f32.mrb[0].mxu0
        %v6148 = vadd.f32 0.0, %v6147
        %v6149 = vpop.f32.mrb[0].mxu0
        %6150 = vmatprep.mubr.f32.mxu0 0.0
        %6151 = vmatmul.mubr.f32.gmra.mrb[0].mxu0 %v5797
        %v6152 = vpop.f32.mrb[0].mxu0
        %v6153 = vadd.f32 0.0, %v6152
        %v6154 = vpop.f32.mrb[0].mxu0
        %6155 = vmatprep.mubr.f32.mxu0 0.0
        %6156 = vmatmul.mubr.f32.gmra.mrb[0].mxu0 %v5800
        %v6157 = vpop.f32.mrb[0].mxu0
        %v6158 = vadd.f32 0.0, %v6157
        %v6159 = vpop.f32.mrb[0].mxu0
        %6160 = vmatprep.mubr.f32.mxu0 0.0
        %6161 = vmatmul.mubr.f32.gmra.mrb[0].mxu0 %v5803
        %v6162 = vpop.f32.mrb[0].mxu0
        %v6163 = vadd.f32 0.0, %v6162
        %v6164 = vpop.f32.mrb[0].mxu0
        %6165 = vmatprep.mubr.f32.mxu0 0.0
        %6166 = vmatmul.mubr.f32.gmra.mrb[0].mxu0 %v5806
        %v6167 = vpop.f32.mrb[0].mxu0
        %v6168 = vadd.f32 0.0, %v6167
        %v6169 = vpop.f32.mrb[0].mxu0
        %6170 = vmatprep.mubr.f32.mxu0 0.0
        %6171 = vmatmul.mubr.f32.gmra.mrb[0].mxu0 %v5809
        %v6172 = vpop.f32.mrb[0].mxu0
        %v6173 = vadd.f32 0.0, %v6172
        %v6174 = vpop.f32.mrb[0].mxu0
        %6175 = vmatprep.mubr.f32.mxu0 0.0
        %6176 = vmatmul.mubr.f32.gmra.mrb[0].mxu0 %v5812
        %v6177 = vpop.f32.mrb[0].mxu0
        %v6178 = vadd.f32 0.0, %v6177
        %v6179 = vpop.f32.mrb[0].mxu0
        %6180 = vmatprep.mubr.f32.mxu0 0.0
        %6181 = vmatmul.mubr.f32.gmra.mrb[0].mxu0 %v5815
        %v6182 = vpop.f32.mrb[0].mxu0
        %v6183 = vadd.f32 0.0, %v6182
        %v6184 = vpop.f32.mrb[0].mxu0
        %6185 = vmatprep.mubr.f32.mxu0 0.0
        %6186 = vmatmul.mubr.f32.gmra.mrb[0].mxu0 %v5818
        %v6187 = vpop.f32.mrb[0].mxu0
        %v6188 = vadd.f32 0.0, %v6187
        %v6189 = vpop.f32.mrb[0].mxu0
        %6190 = vmatprep.mubr.f32.mxu0 0.0
        %6191 = vmatmul.mubr.f32.gmra.mrb[0].mxu0 %v5821
        %v6192 = vpop.f32.mrb[0].mxu0
        %v6193 = vadd.f32 0.0, %v6192
        %v6194 = vpop.f32.mrb[0].mxu0
        %6195 = vmatprep.mubr.f32.mxu0 0.0
        %6196 = vmatmul.mubr.f32.gmra.mrb[0].mxu0 %v5824
        %v6197 = vpop.f32.mrb[0].mxu0
        %v6198 = vadd.f32 0.0, %v6197
        %v6199 = vpop.f32.mrb[0].mxu0
        %6200 = vmatprep.mubr.f32.mxu0 0.0
        %6201 = vmatmul.mubr.f32.gmra.mrb[0].mxu0 %v5827
        %v6202 = vpop.f32.mrb[0].mxu0
        %v6203 = vadd.f32 0.0, %v6202
        %v6204 = vpop.f32.mrb[0].mxu0
        %6205 = vmatprep.mubr.f32.mxu0 0.0
        %6206 = vmatmul.mubr.f32.gmra.mrb[0].mxu0 %v5830
        %v6207 = vpop.f32.mrb[0].mxu0
        %v6208 = vadd.f32 0.0, %v6207
        %v6209 = vpop.f32.mrb[0].mxu0
        %6210 = vmatprep.mubr.f32.mxu0 0.0
        %6211 = vmatmul.mubr.f32.gmra.mrb[0].mxu0 %v5833
        %v6212 = vpop.f32.mrb[0].mxu0
        %v6213 = vadd.f32 0.0, %v6212
        %v6214 = vpop.f32.mrb[0].mxu0
        %6215 = vmatprep.mubr.f32.mxu0 0.0
        %6216 = vmatmul.mubr.f32.gmra.mrb[0].mxu0 %v5836
        %v6217 = vpop.f32.mrb[0].mxu0
        %v6218 = vadd.f32 0.0, %v6217
        %v6219 = vpop.f32.mrb[0].mxu0
        %6220 = vmatprep.mubr.f32.mxu0 0.0
        %6221 = vmatmul.mubr.f32.gmra.mrb[0].mxu0 %v5839
        %v6222 = vpop.f32.mrb[0].mxu0
        %v6223 = vadd.f32 0.0, %v6222
        %v6224 = vpop.f32.mrb[0].mxu0
        %6225 = vdwg.mxu0
        %v6226 = vadd.f32 %v4130, %v5908
        %v6227 = vadd.f32 %v4131, %v5913
        %v6228 = vadd.f32 %v4132, %v5918
        %v6229 = vadd.f32 %v4133, %v5923
        %v6230 = vadd.f32 %v4134, %v5928
        %v6231 = vadd.f32 %v4135, %v5933
        %v6232 = vadd.f32 %v4136, %v5938
        %v6233 = vadd.f32 %v4137, %v5943
        %v6234 = vadd.f32 %v4138, %v5948
        %v6235 = vadd.f32 %v4139, %v5953
        %v6236 = vadd.f32 %v4140, %v5958
        %v6237 = vadd.f32 %v4141, %v5963
        %v6238 = vadd.f32 %v4142, %v5968
        %v6239 = vadd.f32 %v4143, %v5973
        %v6240 = vadd.f32 %v4144, %v5978
        %v6241 = vadd.f32 %v4145, %v5983
        %v6242 = vadd.f32 %v4146, %v5988
        %v6243 = vadd.f32 %v4147, %v5993
        %v6244 = vadd.f32 %v4148, %v5998
        %v6245 = vadd.f32 %v4149, %v6003
        %v6246 = vadd.f32 %v4150, %v6008
        %v6247 = vadd.f32 %v4151, %v6013
        %v6248 = vadd.f32 %v4152, %v6018
        %v6249 = vadd.f32 %v4153, %v6023
        %v6250 = vadd.f32 %v4154, %v6028
        %v6251 = vadd.f32 %v4155, %v6033
        %v6252 = vadd.f32 %v4156, %v6038
        %v6253 = vadd.f32 %v4157, %v6043
        %v6254 = vadd.f32 %v4158, %v6048
        %v6255 = vadd.f32 %v4159, %v6053
        %v6256 = vadd.f32 %v4160, %v6058
        %v6257 = vadd.f32 %v4161, %v6063
        %v6258 = vadd.f32 %v4162, %v6068
        %v6259 = vadd.f32 %v4163, %v6073
        %v6260 = vadd.f32 %v4164, %v6078
        %v6261 = vadd.f32 %v4165, %v6083
        %v6262 = vadd.f32 %v4166, %v6088
        %v6263 = vadd.f32 %v4167, %v6093
        %v6264 = vadd.f32 %v4168, %v6098
        %v6265 = vadd.f32 %v4169, %v6103
        %v6266 = vadd.f32 %v4170, %v6108
        %v6267 = vadd.f32 %v4171, %v6113
        %v6268 = vadd.f32 %v4172, %v6118
        %v6269 = vadd.f32 %v4173, %v6123
        %v6270 = vadd.f32 %v4174, %v6128
        %v6271 = vadd.f32 %v4175, %v6133
        %v6272 = vadd.f32 %v4176, %v6138
        %v6273 = vadd.f32 %v4177, %v6143
        %v6274 = vadd.f32 %v4178, %v6148
        %v6275 = vadd.f32 %v4179, %v6153
        %v6276 = vadd.f32 %v4180, %v6158
        %v6277 = vadd.f32 %v4181, %v6163
        %v6278 = vadd.f32 %v4182, %v6168
        %v6279 = vadd.f32 %v4183, %v6173
        %v6280 = vadd.f32 %v4184, %v6178
        %v6281 = vadd.f32 %v4185, %v6183
        %v6282 = vadd.f32 %v4186, %v6188
        %v6283 = vadd.f32 %v4187, %v6193
        %v6284 = vadd.f32 %v4188, %v6198
        %v6285 = vadd.f32 %v4189, %v6203
        %v6286 = vadd.f32 %v4190, %v6208
        %v6287 = vadd.f32 %v4191, %v6213
        %v6288 = vadd.f32 %v4192, %v6218
        %v6289 = vadd.f32 %v4193, %v6223
        %v6290 = vsub.f32 %v2012, %v2060
        %v6291 = vsub.f32 %v2013, %v2061
        %v6292 = vsub.f32 %v2014, %v2062
        %v6293 = vsub.f32 %v2015, %v2063
        %v6294 = vsub.f32 %v2016, %v2064
        %v6295 = vsub.f32 %v2017, %v2065
        %v6296 = vsub.f32 %v2018, %v2066
        %v6297 = vsub.f32 %v2019, %v2067
        %v6298 = vsub.f32 %v2020, %v2068
        %v6299 = vsub.f32 %v2021, %v2069
        %v6300 = vsub.f32 %v2022, %v2070
        %v6301 = vsub.f32 %v2023, %v2071
        %v6302 = vsub.f32 %v2024, %v2072
        %v6303 = vsub.f32 %v2025, %v2073
        %v6304 = vsub.f32 %v2026, %v2074
        %v6305 = vsub.f32 %v2027, %v2075
        %v6306 = vsub.f32 %v2028, %v2012
        %v6307 = vsub.f32 %v2029, %v2013
        %v6308 = vsub.f32 %v2030, %v2014
        %v6309 = vsub.f32 %v2031, %v2015
        %v6310 = vsub.f32 %v2032, %v2016
        %v6311 = vsub.f32 %v2033, %v2017
        %v6312 = vsub.f32 %v2034, %v2018
        %v6313 = vsub.f32 %v2035, %v2019
        %v6314 = vsub.f32 %v2036, %v2020
        %v6315 = vsub.f32 %v2037, %v2021
        %v6316 = vsub.f32 %v2038, %v2022
        %v6317 = vsub.f32 %v2039, %v2023
        %v6318 = vsub.f32 %v2040, %v2024
        %v6319 = vsub.f32 %v2041, %v2025
        %v6320 = vsub.f32 %v2042, %v2026
        %v6321 = vsub.f32 %v2043, %v2027
        %v6322 = vsub.f32 %v2044, %v2028
        %v6323 = vsub.f32 %v2045, %v2029
        %v6324 = vsub.f32 %v2046, %v2030
        %v6325 = vsub.f32 %v2047, %v2031
        %v6326 = vsub.f32 %v2048, %v2032
        %v6327 = vsub.f32 %v2049, %v2033
        %v6328 = vsub.f32 %v2050, %v2034
        %v6329 = vsub.f32 %v2051, %v2035
        %v6330 = vsub.f32 %v2052, %v2036
        %v6331 = vsub.f32 %v2053, %v2037
        %v6332 = vsub.f32 %v2054, %v2038
        %v6333 = vsub.f32 %v2055, %v2039
        %v6334 = vsub.f32 %v2056, %v2040
        %v6335 = vsub.f32 %v2057, %v2041
        %v6336 = vsub.f32 %v2058, %v2042
        %v6337 = vsub.f32 %v2059, %v2043
        %v6338 = vsub.f32 %v2060, %v2044
        %v6339 = vsub.f32 %v2061, %v2045
        %v6340 = vsub.f32 %v2062, %v2046
        %v6341 = vsub.f32 %v2063, %v2047
        %v6342 = vsub.f32 %v2064, %v2048
        %v6343 = vsub.f32 %v2065, %v2049
        %v6344 = vsub.f32 %v2066, %v2050
        %v6345 = vsub.f32 %v2067, %v2051
        %v6346 = vsub.f32 %v2068, %v2052
        %v6347 = vsub.f32 %v2069, %v2053
        %v6348 = vsub.f32 %v2070, %v2054
        %v6349 = vsub.f32 %v2071, %v2055
        %v6350 = vsub.f32 %v2072, %v2056
        %v6351 = vsub.f32 %v2073, %v2057
        %v6352 = vsub.f32 %v2074, %v2058
        %v6353 = vsub.f32 %v2075, %v2059
        %v6355 = vsel %vm2160, %v6290, 0
        %v6358 = vsel %vm2160, %v6291, 0
        %v6361 = vsel %vm2160, %v6292, 0
        %v6364 = vsel %vm2160, %v6293, 0
        %v6367 = vsel %vm2160, %v6294, 0
        %v6370 = vsel %vm2160, %v6295, 0
        %v6373 = vsel %vm2160, %v6296, 0
        %v6376 = vsel %vm2160, %v6297, 0
        %v6379 = vsel %vm2160, %v6298, 0
        %v6382 = vsel %vm2160, %v6299, 0
        %v6385 = vsel %vm2160, %v6300, 0
        %v6388 = vsel %vm2160, %v6301, 0
        %v6391 = vsel %vm2160, %v6302, 0
        %v6394 = vsel %vm2160, %v6303, 0
        %v6397 = vsel %vm2160, %v6304, 0
        %v6400 = vsel %vm2160, %v6305, 0
        %v6403 = vsel %vm2160, %v6306, 0
        %v6406 = vsel %vm2160, %v6307, 0
        %v6409 = vsel %vm2160, %v6308, 0
        %v6412 = vsel %vm2160, %v6309, 0
        %v6415 = vsel %vm2160, %v6310, 0
        %v6418 = vsel %vm2160, %v6311, 0
        %v6421 = vsel %vm2160, %v6312, 0
        %v6424 = vsel %vm2160, %v6313, 0
        %v6427 = vsel %vm2160, %v6314, 0
        %v6430 = vsel %vm2160, %v6315, 0
        %v6433 = vsel %vm2160, %v6316, 0
        %v6436 = vsel %vm2160, %v6317, 0
        %v6439 = vsel %vm2160, %v6318, 0
        %v6442 = vsel %vm2160, %v6319, 0
        %v6445 = vsel %vm2160, %v6320, 0
        %v6448 = vsel %vm2160, %v6321, 0
        %v6451 = vsel %vm2160, %v6322, 0
        %v6454 = vsel %vm2160, %v6323, 0
        %v6457 = vsel %vm2160, %v6324, 0
        %v6460 = vsel %vm2160, %v6325, 0
        %v6463 = vsel %vm2160, %v6326, 0
        %v6466 = vsel %vm2160, %v6327, 0
        %v6469 = vsel %vm2160, %v6328, 0
        %v6472 = vsel %vm2160, %v6329, 0
        %v6475 = vsel %vm2160, %v6330, 0
        %v6478 = vsel %vm2160, %v6331, 0
        %v6481 = vsel %vm2160, %v6332, 0
        %v6484 = vsel %vm2160, %v6333, 0
        %v6487 = vsel %vm2160, %v6334, 0
        %v6490 = vsel %vm2160, %v6335, 0
        %v6493 = vsel %vm2160, %v6336, 0
        %v6496 = vsel %vm2160, %v6337, 0
        %v6499 = vsel %vm2160, %v6338, 0
        %v6502 = vsel %vm2160, %v6339, 0
        %v6505 = vsel %vm2160, %v6340, 0
        %v6508 = vsel %vm2160, %v6341, 0
        %v6511 = vsel %vm2160, %v6342, 0
        %v6514 = vsel %vm2160, %v6343, 0
        %v6517 = vsel %vm2160, %v6344, 0
        %v6520 = vsel %vm2160, %v6345, 0
        %v6523 = vsel %vm2160, %v6346, 0
        %v6526 = vsel %vm2160, %v6347, 0
        %v6529 = vsel %vm2160, %v6348, 0
        %v6532 = vsel %vm2160, %v6349, 0
        %v6535 = vsel %vm2160, %v6350, 0
        %v6538 = vsel %vm2160, %v6351, 0
        %v6541 = vsel %vm2160, %v6352, 0
        %v6544 = vsel %vm2160, %v6353, 0
        %6546 = vmatprep.subr.mxu0 0.0
        %6547 = vmatpush1.msra.mxu0 %v2076
        %6548 = vmatprep.subr.mxu0 0.0
        %6549 = vmatpush1.msra.mxu0 %v2077
        %6550 = vmatprep.subr.mxu0 0.0
        %6551 = vmatpush1.msra.mxu0 %v2078
        %6552 = vmatprep.subr.mxu0 0.0
        %6553 = vmatpush1.msra.mxu0 %v2079
        %6554 = vmatprep.subr.mxu0 0.0
        %6555 = vmatpush1.msra.mxu0 %v2080
        %6556 = vmatprep.subr.mxu0 0.0
        %6557 = vmatpush1.msra.mxu0 %v2081
        %6558 = vmatprep.subr.mxu0 0.0
        %6559 = vmatpush1.msra.mxu0 %v2082
        %6560 = vmatprep.subr.mxu0 0.0
        %6561 = vmatpush1.msra.mxu0 %v2083
        %6562 = vmatprep.subr.mxu0 0.0
        %6563 = vmatpush1.msra.mxu0 0.0
        %6564 = vmatprep.subr.mxu0 0.0
        %6565 = vmatpush1.msra.mxu0 0.0
        %6566 = vmatprep.subr.mxu0 0.0
        %6567 = vmatpush1.msra.mxu0 0.0
        %6568 = vmatprep.subr.mxu0 0.0
        %6569 = vmatpush1.msra.mxu0 0.0
        %6570 = vmatprep.subr.mxu0 0.0
        %6571 = vmatpush1.msra.mxu0 0.0
        %6572 = vmatprep.subr.mxu0 0.0
        %6573 = vmatpush1.msra.mxu0 0.0
        %6574 = vmatprep.subr.mxu0 0.0
        %6575 = vmatpush1.msra.mxu0 0.0
        %6576 = vmatprep.subr.mxu0 0.0
        %6577 = vmatpush1.msra.mxu0 0.0
        %6578 = vmatprep.subr.mxu0 0.0
        %6579 = vmatpush1.msra.mxu0 0.0
        %6580 = vmatprep.subr.mxu0 0.0
        %6581 = vmatpush1.msra.mxu0 0.0
        %6582 = vmatprep.subr.mxu0 0.0
        %6583 = vmatpush1.msra.mxu0 0.0
        %6584 = vmatprep.subr.mxu0 0.0
        %6585 = vmatpush1.msra.mxu0 0.0
        %6586 = vmatprep.subr.mxu0 0.0
        %6587 = vmatpush1.msra.mxu0 0.0
        %6588 = vmatprep.subr.mxu0 0.0
        %6589 = vmatpush1.msra.mxu0 0.0
        %6590 = vmatprep.subr.mxu0 0.0
        %6591 = vmatpush1.msra.mxu0 0.0
        %6592 = vmatprep.subr.mxu0 0.0
        %6593 = vmatpush1.msra.mxu0 0.0
        %6594 = vmatprep.subr.mxu0 0.0
        %6595 = vmatpush1.msra.mxu0 0.0
        %6596 = vmatprep.subr.mxu0 0.0
        %6597 = vmatpush1.msra.mxu0 0.0
        %6598 = vmatprep.subr.mxu0 0.0
        %6599 = vmatpush1.msra.mxu0 0.0
        %6600 = vmatprep.subr.mxu0 0.0
        %6601 = vmatpush1.msra.mxu0 0.0
        %6602 = vmatprep.subr.mxu0 0.0
        %6603 = vmatpush1.msra.mxu0 0.0
        %6604 = vmatprep.subr.mxu0 0.0
        %6605 = vmatpush1.msra.mxu0 0.0
        %6606 = vmatprep.subr.mxu0 0.0
        %6607 = vmatpush1.msra.mxu0 0.0
        %6608 = vmatprep.subr.mxu0 0.0
        %6609 = vmatpush1.msra.mxu0 0.0
        %6610 = vmatprep.mubr.f32.mxu0 0.0
        %6611 = vmatmul.mubr.f32.gmra.mrb[0].mxu0 %v6355
        %v6612 = vpop.f32.mrb[0].mxu0
        %v6613 = vadd.f32 0.0, %v6612
        %v6614 = vpop.f32.mrb[0].mxu0
        %6615 = vmatprep.mubr.f32.mxu0 0.0
        %6616 = vmatmul.mubr.f32.gmra.mrb[0].mxu0 %v6358
        %v6617 = vpop.f32.mrb[0].mxu0
        %v6618 = vadd.f32 0.0, %v6617
        %v6619 = vpop.f32.mrb[0].mxu0
        %6620 = vmatprep.mubr.f32.mxu0 0.0
        %6621 = vmatmul.mubr.f32.gmra.mrb[0].mxu0 %v6361
        %v6622 = vpop.f32.mrb[0].mxu0
        %v6623 = vadd.f32 0.0, %v6622
        %v6624 = vpop.f32.mrb[0].mxu0
        %6625 = vmatprep.mubr.f32.mxu0 0.0
        %6626 = vmatmul.mubr.f32.gmra.mrb[0].mxu0 %v6364
        %v6627 = vpop.f32.mrb[0].mxu0
        %v6628 = vadd.f32 0.0, %v6627
        %v6629 = vpop.f32.mrb[0].mxu0
        %6630 = vmatprep.mubr.f32.mxu0 0.0
        %6631 = vmatmul.mubr.f32.gmra.mrb[0].mxu0 %v6367
        %v6632 = vpop.f32.mrb[0].mxu0
        %v6633 = vadd.f32 0.0, %v6632
        %v6634 = vpop.f32.mrb[0].mxu0
        %6635 = vmatprep.mubr.f32.mxu0 0.0
        %6636 = vmatmul.mubr.f32.gmra.mrb[0].mxu0 %v6370
        %v6637 = vpop.f32.mrb[0].mxu0
        %v6638 = vadd.f32 0.0, %v6637
        %v6639 = vpop.f32.mrb[0].mxu0
        %6640 = vmatprep.mubr.f32.mxu0 0.0
        %6641 = vmatmul.mubr.f32.gmra.mrb[0].mxu0 %v6373
        %v6642 = vpop.f32.mrb[0].mxu0
        %v6643 = vadd.f32 0.0, %v6642
        %v6644 = vpop.f32.mrb[0].mxu0
        %6645 = vmatprep.mubr.f32.mxu0 0.0
        %6646 = vmatmul.mubr.f32.gmra.mrb[0].mxu0 %v6376
        %v6647 = vpop.f32.mrb[0].mxu0
        %v6648 = vadd.f32 0.0, %v6647
        %v6649 = vpop.f32.mrb[0].mxu0
        %6650 = vmatprep.mubr.f32.mxu0 0.0
        %6651 = vmatmul.mubr.f32.gmra.mrb[0].mxu0 %v6379
        %v6652 = vpop.f32.mrb[0].mxu0
        %v6653 = vadd.f32 0.0, %v6652
        %v6654 = vpop.f32.mrb[0].mxu0
        %6655 = vmatprep.mubr.f32.mxu0 0.0
        %6656 = vmatmul.mubr.f32.gmra.mrb[0].mxu0 %v6382
        %v6657 = vpop.f32.mrb[0].mxu0
        %v6658 = vadd.f32 0.0, %v6657
        %v6659 = vpop.f32.mrb[0].mxu0
        %6660 = vmatprep.mubr.f32.mxu0 0.0
        %6661 = vmatmul.mubr.f32.gmra.mrb[0].mxu0 %v6385
        %v6662 = vpop.f32.mrb[0].mxu0
        %v6663 = vadd.f32 0.0, %v6662
        %v6664 = vpop.f32.mrb[0].mxu0
        %6665 = vmatprep.mubr.f32.mxu0 0.0
        %6666 = vmatmul.mubr.f32.gmra.mrb[0].mxu0 %v6388
        %v6667 = vpop.f32.mrb[0].mxu0
        %v6668 = vadd.f32 0.0, %v6667
        %v6669 = vpop.f32.mrb[0].mxu0
        %6670 = vmatprep.mubr.f32.mxu0 0.0
        %6671 = vmatmul.mubr.f32.gmra.mrb[0].mxu0 %v6391
        %v6672 = vpop.f32.mrb[0].mxu0
        %v6673 = vadd.f32 0.0, %v6672
        %v6674 = vpop.f32.mrb[0].mxu0
        %6675 = vmatprep.mubr.f32.mxu0 0.0
        %6676 = vmatmul.mubr.f32.gmra.mrb[0].mxu0 %v6394
        %v6677 = vpop.f32.mrb[0].mxu0
        %v6678 = vadd.f32 0.0, %v6677
        %v6679 = vpop.f32.mrb[0].mxu0
        %6680 = vmatprep.mubr.f32.mxu0 0.0
        %6681 = vmatmul.mubr.f32.gmra.mrb[0].mxu0 %v6397
        %v6682 = vpop.f32.mrb[0].mxu0
        %v6683 = vadd.f32 0.0, %v6682
        %v6684 = vpop.f32.mrb[0].mxu0
        %6685 = vmatprep.mubr.f32.mxu0 0.0
        %6686 = vmatmul.mubr.f32.gmra.mrb[0].mxu0 %v6400
        %v6687 = vpop.f32.mrb[0].mxu0
        %v6688 = vadd.f32 0.0, %v6687
        %v6689 = vpop.f32.mrb[0].mxu0
        %6690 = vmatprep.mubr.f32.mxu0 0.0
        %6691 = vmatmul.mubr.f32.gmra.mrb[0].mxu0 %v6403
        %v6692 = vpop.f32.mrb[0].mxu0
        %v6693 = vadd.f32 0.0, %v6692
        %v6694 = vpop.f32.mrb[0].mxu0
        %6695 = vmatprep.mubr.f32.mxu0 0.0
        %6696 = vmatmul.mubr.f32.gmra.mrb[0].mxu0 %v6406
        %v6697 = vpop.f32.mrb[0].mxu0
        %v6698 = vadd.f32 0.0, %v6697
        %v6699 = vpop.f32.mrb[0].mxu0
        %6700 = vmatprep.mubr.f32.mxu0 0.0
        %6701 = vmatmul.mubr.f32.gmra.mrb[0].mxu0 %v6409
        %v6702 = vpop.f32.mrb[0].mxu0
        %v6703 = vadd.f32 0.0, %v6702
        %v6704 = vpop.f32.mrb[0].mxu0
        %6705 = vmatprep.mubr.f32.mxu0 0.0
        %6706 = vmatmul.mubr.f32.gmra.mrb[0].mxu0 %v6412
        %v6707 = vpop.f32.mrb[0].mxu0
        %v6708 = vadd.f32 0.0, %v6707
        %v6709 = vpop.f32.mrb[0].mxu0
        %6710 = vmatprep.mubr.f32.mxu0 0.0
        %6711 = vmatmul.mubr.f32.gmra.mrb[0].mxu0 %v6415
        %v6712 = vpop.f32.mrb[0].mxu0
        %v6713 = vadd.f32 0.0, %v6712
        %v6714 = vpop.f32.mrb[0].mxu0
        %6715 = vmatprep.mubr.f32.mxu0 0.0
        %6716 = vmatmul.mubr.f32.gmra.mrb[0].mxu0 %v6418
        %v6717 = vpop.f32.mrb[0].mxu0
        %v6718 = vadd.f32 0.0, %v6717
        %v6719 = vpop.f32.mrb[0].mxu0
        %6720 = vmatprep.mubr.f32.mxu0 0.0
        %6721 = vmatmul.mubr.f32.gmra.mrb[0].mxu0 %v6421
        %v6722 = vpop.f32.mrb[0].mxu0
        %v6723 = vadd.f32 0.0, %v6722
        %v6724 = vpop.f32.mrb[0].mxu0
        %6725 = vmatprep.mubr.f32.mxu0 0.0
        %6726 = vmatmul.mubr.f32.gmra.mrb[0].mxu0 %v6424
        %v6727 = vpop.f32.mrb[0].mxu0
        %v6728 = vadd.f32 0.0, %v6727
        %v6729 = vpop.f32.mrb[0].mxu0
        %6730 = vmatprep.mubr.f32.mxu0 0.0
        %6731 = vmatmul.mubr.f32.gmra.mrb[0].mxu0 %v6427
        %v6732 = vpop.f32.mrb[0].mxu0
        %v6733 = vadd.f32 0.0, %v6732
        %v6734 = vpop.f32.mrb[0].mxu0
        %6735 = vmatprep.mubr.f32.mxu0 0.0
        %6736 = vmatmul.mubr.f32.gmra.mrb[0].mxu0 %v6430
        %v6737 = vpop.f32.mrb[0].mxu0
        %v6738 = vadd.f32 0.0, %v6737
        %v6739 = vpop.f32.mrb[0].mxu0
        %6740 = vmatprep.mubr.f32.mxu0 0.0
        %6741 = vmatmul.mubr.f32.gmra.mrb[0].mxu0 %v6433
        %v6742 = vpop.f32.mrb[0].mxu0
        %v6743 = vadd.f32 0.0, %v6742
        %v6744 = vpop.f32.mrb[0].mxu0
        %6745 = vmatprep.mubr.f32.mxu0 0.0
        %6746 = vmatmul.mubr.f32.gmra.mrb[0].mxu0 %v6436
        %v6747 = vpop.f32.mrb[0].mxu0
        %v6748 = vadd.f32 0.0, %v6747
        %v6749 = vpop.f32.mrb[0].mxu0
        %6750 = vmatprep.mubr.f32.mxu0 0.0
        %6751 = vmatmul.mubr.f32.gmra.mrb[0].mxu0 %v6439
        %v6752 = vpop.f32.mrb[0].mxu0
        %v6753 = vadd.f32 0.0, %v6752
        %v6754 = vpop.f32.mrb[0].mxu0
        %6755 = vmatprep.mubr.f32.mxu0 0.0
        %6756 = vmatmul.mubr.f32.gmra.mrb[0].mxu0 %v6442
        %v6757 = vpop.f32.mrb[0].mxu0
        %v6758 = vadd.f32 0.0, %v6757
        %v6759 = vpop.f32.mrb[0].mxu0
        %6760 = vmatprep.mubr.f32.mxu0 0.0
        %6761 = vmatmul.mubr.f32.gmra.mrb[0].mxu0 %v6445
        %v6762 = vpop.f32.mrb[0].mxu0
        %v6763 = vadd.f32 0.0, %v6762
        %v6764 = vpop.f32.mrb[0].mxu0
        %6765 = vmatprep.mubr.f32.mxu0 0.0
        %6766 = vmatmul.mubr.f32.gmra.mrb[0].mxu0 %v6448
        %v6767 = vpop.f32.mrb[0].mxu0
        %v6768 = vadd.f32 0.0, %v6767
        %v6769 = vpop.f32.mrb[0].mxu0
        %6770 = vmatprep.mubr.f32.mxu0 0.0
        %6771 = vmatmul.mubr.f32.gmra.mrb[0].mxu0 %v6451
        %v6772 = vpop.f32.mrb[0].mxu0
        %v6773 = vadd.f32 0.0, %v6772
        %v6774 = vpop.f32.mrb[0].mxu0
        %6775 = vmatprep.mubr.f32.mxu0 0.0
        %6776 = vmatmul.mubr.f32.gmra.mrb[0].mxu0 %v6454
        %v6777 = vpop.f32.mrb[0].mxu0
        %v6778 = vadd.f32 0.0, %v6777
        %v6779 = vpop.f32.mrb[0].mxu0
        %6780 = vmatprep.mubr.f32.mxu0 0.0
        %6781 = vmatmul.mubr.f32.gmra.mrb[0].mxu0 %v6457
        %v6782 = vpop.f32.mrb[0].mxu0
        %v6783 = vadd.f32 0.0, %v6782
        %v6784 = vpop.f32.mrb[0].mxu0
        %6785 = vmatprep.mubr.f32.mxu0 0.0
        %6786 = vmatmul.mubr.f32.gmra.mrb[0].mxu0 %v6460
        %v6787 = vpop.f32.mrb[0].mxu0
        %v6788 = vadd.f32 0.0, %v6787
        %v6789 = vpop.f32.mrb[0].mxu0
        %6790 = vmatprep.mubr.f32.mxu0 0.0
        %6791 = vmatmul.mubr.f32.gmra.mrb[0].mxu0 %v6463
        %v6792 = vpop.f32.mrb[0].mxu0
        %v6793 = vadd.f32 0.0, %v6792
        %v6794 = vpop.f32.mrb[0].mxu0
        %6795 = vmatprep.mubr.f32.mxu0 0.0
        %6796 = vmatmul.mubr.f32.gmra.mrb[0].mxu0 %v6466
        %v6797 = vpop.f32.mrb[0].mxu0
        %v6798 = vadd.f32 0.0, %v6797
        %v6799 = vpop.f32.mrb[0].mxu0
        %6800 = vmatprep.mubr.f32.mxu0 0.0
        %6801 = vmatmul.mubr.f32.gmra.mrb[0].mxu0 %v6469
        %v6802 = vpop.f32.mrb[0].mxu0
        %v6803 = vadd.f32 0.0, %v6802
        %v6804 = vpop.f32.mrb[0].mxu0
        %6805 = vmatprep.mubr.f32.mxu0 0.0
        %6806 = vmatmul.mubr.f32.gmra.mrb[0].mxu0 %v6472
        %v6807 = vpop.f32.mrb[0].mxu0
        %v6808 = vadd.f32 0.0, %v6807
        %v6809 = vpop.f32.mrb[0].mxu0
        %6810 = vmatprep.mubr.f32.mxu0 0.0
        %6811 = vmatmul.mubr.f32.gmra.mrb[0].mxu0 %v6475
        %v6812 = vpop.f32.mrb[0].mxu0
        %v6813 = vadd.f32 0.0, %v6812
        %v6814 = vpop.f32.mrb[0].mxu0
        %6815 = vmatprep.mubr.f32.mxu0 0.0
        %6816 = vmatmul.mubr.f32.gmra.mrb[0].mxu0 %v6478
        %v6817 = vpop.f32.mrb[0].mxu0
        %v6818 = vadd.f32 0.0, %v6817
        %v6819 = vpop.f32.mrb[0].mxu0
        %6820 = vmatprep.mubr.f32.mxu0 0.0
        %6821 = vmatmul.mubr.f32.gmra.mrb[0].mxu0 %v6481
        %v6822 = vpop.f32.mrb[0].mxu0
        %v6823 = vadd.f32 0.0, %v6822
        %v6824 = vpop.f32.mrb[0].mxu0
        %6825 = vmatprep.mubr.f32.mxu0 0.0
        %6826 = vmatmul.mubr.f32.gmra.mrb[0].mxu0 %v6484
        %v6827 = vpop.f32.mrb[0].mxu0
        %v6828 = vadd.f32 0.0, %v6827
        %v6829 = vpop.f32.mrb[0].mxu0
        %6830 = vmatprep.mubr.f32.mxu0 0.0
        %6831 = vmatmul.mubr.f32.gmra.mrb[0].mxu0 %v6487
        %v6832 = vpop.f32.mrb[0].mxu0
        %v6833 = vadd.f32 0.0, %v6832
        %v6834 = vpop.f32.mrb[0].mxu0
        %6835 = vmatprep.mubr.f32.mxu0 0.0
        %6836 = vmatmul.mubr.f32.gmra.mrb[0].mxu0 %v6490
        %v6837 = vpop.f32.mrb[0].mxu0
        %v6838 = vadd.f32 0.0, %v6837
        %v6839 = vpop.f32.mrb[0].mxu0
        %6840 = vmatprep.mubr.f32.mxu0 0.0
        %6841 = vmatmul.mubr.f32.gmra.mrb[0].mxu0 %v6493
        %v6842 = vpop.f32.mrb[0].mxu0
        %v6843 = vadd.f32 0.0, %v6842
        %v6844 = vpop.f32.mrb[0].mxu0
        %6845 = vmatprep.mubr.f32.mxu0 0.0
        %6846 = vmatmul.mubr.f32.gmra.mrb[0].mxu0 %v6496
        %v6847 = vpop.f32.mrb[0].mxu0
        %v6848 = vadd.f32 0.0, %v6847
        %v6849 = vpop.f32.mrb[0].mxu0
        %6850 = vmatprep.mubr.f32.mxu0 0.0
        %6851 = vmatmul.mubr.f32.gmra.mrb[0].mxu0 %v6499
        %v6852 = vpop.f32.mrb[0].mxu0
        %v6853 = vadd.f32 0.0, %v6852
        %v6854 = vpop.f32.mrb[0].mxu0
        %6855 = vmatprep.mubr.f32.mxu0 0.0
        %6856 = vmatmul.mubr.f32.gmra.mrb[0].mxu0 %v6502
        %v6857 = vpop.f32.mrb[0].mxu0
        %v6858 = vadd.f32 0.0, %v6857
        %v6859 = vpop.f32.mrb[0].mxu0
        %6860 = vmatprep.mubr.f32.mxu0 0.0
        %6861 = vmatmul.mubr.f32.gmra.mrb[0].mxu0 %v6505
        %v6862 = vpop.f32.mrb[0].mxu0
        %v6863 = vadd.f32 0.0, %v6862
        %v6864 = vpop.f32.mrb[0].mxu0
        %6865 = vmatprep.mubr.f32.mxu0 0.0
        %6866 = vmatmul.mubr.f32.gmra.mrb[0].mxu0 %v6508
        %v6867 = vpop.f32.mrb[0].mxu0
        %v6868 = vadd.f32 0.0, %v6867
        %v6869 = vpop.f32.mrb[0].mxu0
        %6870 = vmatprep.mubr.f32.mxu0 0.0
        %6871 = vmatmul.mubr.f32.gmra.mrb[0].mxu0 %v6511
        %v6872 = vpop.f32.mrb[0].mxu0
        %v6873 = vadd.f32 0.0, %v6872
        %v6874 = vpop.f32.mrb[0].mxu0
        %6875 = vmatprep.mubr.f32.mxu0 0.0
        %6876 = vmatmul.mubr.f32.gmra.mrb[0].mxu0 %v6514
        %v6877 = vpop.f32.mrb[0].mxu0
        %v6878 = vadd.f32 0.0, %v6877
        %v6879 = vpop.f32.mrb[0].mxu0
        %6880 = vmatprep.mubr.f32.mxu0 0.0
        %6881 = vmatmul.mubr.f32.gmra.mrb[0].mxu0 %v6517
        %v6882 = vpop.f32.mrb[0].mxu0
        %v6883 = vadd.f32 0.0, %v6882
        %v6884 = vpop.f32.mrb[0].mxu0
        %6885 = vmatprep.mubr.f32.mxu0 0.0
        %6886 = vmatmul.mubr.f32.gmra.mrb[0].mxu0 %v6520
        %v6887 = vpop.f32.mrb[0].mxu0
        %v6888 = vadd.f32 0.0, %v6887
        %v6889 = vpop.f32.mrb[0].mxu0
        %6890 = vmatprep.mubr.f32.mxu0 0.0
        %6891 = vmatmul.mubr.f32.gmra.mrb[0].mxu0 %v6523
        %v6892 = vpop.f32.mrb[0].mxu0
        %v6893 = vadd.f32 0.0, %v6892
        %v6894 = vpop.f32.mrb[0].mxu0
        %6895 = vmatprep.mubr.f32.mxu0 0.0
        %6896 = vmatmul.mubr.f32.gmra.mrb[0].mxu0 %v6526
        %v6897 = vpop.f32.mrb[0].mxu0
        %v6898 = vadd.f32 0.0, %v6897
        %v6899 = vpop.f32.mrb[0].mxu0
        %6900 = vmatprep.mubr.f32.mxu0 0.0
        %6901 = vmatmul.mubr.f32.gmra.mrb[0].mxu0 %v6529
        %v6902 = vpop.f32.mrb[0].mxu0
        %v6903 = vadd.f32 0.0, %v6902
        %v6904 = vpop.f32.mrb[0].mxu0
        %6905 = vmatprep.mubr.f32.mxu0 0.0
        %6906 = vmatmul.mubr.f32.gmra.mrb[0].mxu0 %v6532
        %v6907 = vpop.f32.mrb[0].mxu0
        %v6908 = vadd.f32 0.0, %v6907
        %v6909 = vpop.f32.mrb[0].mxu0
        %6910 = vmatprep.mubr.f32.mxu0 0.0
        %6911 = vmatmul.mubr.f32.gmra.mrb[0].mxu0 %v6535
        %v6912 = vpop.f32.mrb[0].mxu0
        %v6913 = vadd.f32 0.0, %v6912
        %v6914 = vpop.f32.mrb[0].mxu0
        %6915 = vmatprep.mubr.f32.mxu0 0.0
        %6916 = vmatmul.mubr.f32.gmra.mrb[0].mxu0 %v6538
        %v6917 = vpop.f32.mrb[0].mxu0
        %v6918 = vadd.f32 0.0, %v6917
        %v6919 = vpop.f32.mrb[0].mxu0
        %6920 = vmatprep.mubr.f32.mxu0 0.0
        %6921 = vmatmul.mubr.f32.gmra.mrb[0].mxu0 %v6541
        %v6922 = vpop.f32.mrb[0].mxu0
        %v6923 = vadd.f32 0.0, %v6922
        %v6924 = vpop.f32.mrb[0].mxu0
        %6925 = vmatprep.mubr.f32.mxu0 0.0
        %6926 = vmatmul.mubr.f32.gmra.mrb[0].mxu0 %v6544
        %v6927 = vpop.f32.mrb[0].mxu0
        %v6928 = vadd.f32 0.0, %v6927
        %v6929 = vpop.f32.mrb[0].mxu0
        %6930 = vdwg.mxu0
        %v6931 = vtanh.pop %v6613
        %v6932 = vtanh.pop %v6618
        %v6933 = vtanh.pop %v6623
        %v6934 = vtanh.pop %v6628
        %v6935 = vtanh.pop %v6633
        %v6936 = vtanh.pop %v6638
        %v6937 = vtanh.pop %v6643
        %v6938 = vtanh.pop %v6648
        %v6939 = vtanh.pop %v6653
        %v6940 = vtanh.pop %v6658
        %v6941 = vtanh.pop %v6663
        %v6942 = vtanh.pop %v6668
        %v6943 = vtanh.pop %v6673
        %v6944 = vtanh.pop %v6678
        %v6945 = vtanh.pop %v6683
        %v6946 = vtanh.pop %v6688
        %v6947 = vtanh.pop %v6693
        %v6948 = vtanh.pop %v6698
        %v6949 = vtanh.pop %v6703
        %v6950 = vtanh.pop %v6708
        %v6951 = vtanh.pop %v6713
        %v6952 = vtanh.pop %v6718
        %v6953 = vtanh.pop %v6723
        %v6954 = vtanh.pop %v6728
        %v6955 = vtanh.pop %v6733
        %v6956 = vtanh.pop %v6738
        %v6957 = vtanh.pop %v6743
        %v6958 = vtanh.pop %v6748
        %v6959 = vtanh.pop %v6753
        %v6960 = vtanh.pop %v6758
        %v6961 = vtanh.pop %v6763
        %v6962 = vtanh.pop %v6768
        %v6963 = vtanh.pop %v6773
        %v6964 = vtanh.pop %v6778
        %v6965 = vtanh.pop %v6783
        %v6966 = vtanh.pop %v6788
        %v6967 = vtanh.pop %v6793
        %v6968 = vtanh.pop %v6798
        %v6969 = vtanh.pop %v6803
        %v6970 = vtanh.pop %v6808
        %v6971 = vtanh.pop %v6813
        %v6972 = vtanh.pop %v6818
        %v6973 = vtanh.pop %v6823
        %v6974 = vtanh.pop %v6828
        %v6975 = vtanh.pop %v6833
        %v6976 = vtanh.pop %v6838
        %v6977 = vtanh.pop %v6843
        %v6978 = vtanh.pop %v6848
        %v6979 = vtanh.pop %v6853
        %v6980 = vtanh.pop %v6858
        %v6981 = vtanh.pop %v6863
        %v6982 = vtanh.pop %v6868
        %v6983 = vtanh.pop %v6873
        %v6984 = vtanh.pop %v6878
        %v6985 = vtanh.pop %v6883
        %v6986 = vtanh.pop %v6888
        %v6987 = vtanh.pop %v6893
        %v6988 = vtanh.pop %v6898
        %v6989 = vtanh.pop %v6903
        %v6990 = vtanh.pop %v6908
        %v6991 = vtanh.pop %v6913
        %v6992 = vtanh.pop %v6918
        %v6993 = vtanh.pop %v6923
        %v6994 = vtanh.pop %v6928
        %v6996 = vsel %vm2160, %v6931, 0
        %v6999 = vsel %vm2160, %v6932, 0
        %v7002 = vsel %vm2160, %v6933, 0
        %v7005 = vsel %vm2160, %v6934, 0
        %v7008 = vsel %vm2160, %v6935, 0
        %v7011 = vsel %vm2160, %v6936, 0
        %v7014 = vsel %vm2160, %v6937, 0
        %v7017 = vsel %vm2160, %v6938, 0
        %v7020 = vsel %vm2160, %v6939, 0
        %v7023 = vsel %vm2160, %v6940, 0
        %v7026 = vsel %vm2160, %v6941, 0
        %v7029 = vsel %vm2160, %v6942, 0
        %v7032 = vsel %vm2160, %v6943, 0
        %v7035 = vsel %vm2160, %v6944, 0
        %v7038 = vsel %vm2160, %v6945, 0
        %v7041 = vsel %vm2160, %v6946, 0
        %v7044 = vsel %vm2160, %v6947, 0
        %v7047 = vsel %vm2160, %v6948, 0
        %v7050 = vsel %vm2160, %v6949, 0
        %v7053 = vsel %vm2160, %v6950, 0
        %v7056 = vsel %vm2160, %v6951, 0
        %v7059 = vsel %vm2160, %v6952, 0
        %v7062 = vsel %vm2160, %v6953, 0
        %v7065 = vsel %vm2160, %v6954, 0
        %v7068 = vsel %vm2160, %v6955, 0
        %v7071 = vsel %vm2160, %v6956, 0
        %v7074 = vsel %vm2160, %v6957, 0
        %v7077 = vsel %vm2160, %v6958, 0
        %v7080 = vsel %vm2160, %v6959, 0
        %v7083 = vsel %vm2160, %v6960, 0
        %v7086 = vsel %vm2160, %v6961, 0
        %v7089 = vsel %vm2160, %v6962, 0
        %v7092 = vsel %vm2160, %v6963, 0
        %v7095 = vsel %vm2160, %v6964, 0
        %v7098 = vsel %vm2160, %v6965, 0
        %v7101 = vsel %vm2160, %v6966, 0
        %v7104 = vsel %vm2160, %v6967, 0
        %v7107 = vsel %vm2160, %v6968, 0
        %v7110 = vsel %vm2160, %v6969, 0
        %v7113 = vsel %vm2160, %v6970, 0
        %v7116 = vsel %vm2160, %v6971, 0
        %v7119 = vsel %vm2160, %v6972, 0
        %v7122 = vsel %vm2160, %v6973, 0
        %v7125 = vsel %vm2160, %v6974, 0
        %v7128 = vsel %vm2160, %v6975, 0
        %v7131 = vsel %vm2160, %v6976, 0
        %v7134 = vsel %vm2160, %v6977, 0
        %v7137 = vsel %vm2160, %v6978, 0
        %v7140 = vsel %vm2160, %v6979, 0
        %v7143 = vsel %vm2160, %v6980, 0
        %v7146 = vsel %vm2160, %v6981, 0
        %v7149 = vsel %vm2160, %v6982, 0
        %v7152 = vsel %vm2160, %v6983, 0
        %v7155 = vsel %vm2160, %v6984, 0
        %v7158 = vsel %vm2160, %v6985, 0
        %v7161 = vsel %vm2160, %v6986, 0
        %v7164 = vsel %vm2160, %v6987, 0
        %v7167 = vsel %vm2160, %v6988, 0
        %v7170 = vsel %vm2160, %v6989, 0
        %v7173 = vsel %vm2160, %v6990, 0
        %v7176 = vsel %vm2160, %v6991, 0
        %v7179 = vsel %vm2160, %v6992, 0
        %v7182 = vsel %vm2160, %v6993, 0
        %v7185 = vsel %vm2160, %v6994, 0
        %7187 = vmatprep.subr.mxu0 0.0
        %7188 = vmatpush1.msra.mxu0 %v2084
        %7189 = vmatprep.subr.mxu0 0.0
        %7190 = vmatpush1.msra.mxu0 %v2085
        %7191 = vmatprep.subr.mxu0 0.0
        %7192 = vmatpush1.msra.mxu0 %v2086
        %7193 = vmatprep.subr.mxu0 0.0
        %7194 = vmatpush1.msra.mxu0 %v2087
        %7195 = vmatprep.subr.mxu0 0.0
        %7196 = vmatpush1.msra.mxu0 %v2088
        %7197 = vmatprep.subr.mxu0 0.0
        %7198 = vmatpush1.msra.mxu0 %v2089
        %7199 = vmatprep.subr.mxu0 0.0
        %7200 = vmatpush1.msra.mxu0 %v2090
        %7201 = vmatprep.subr.mxu0 0.0
        %7202 = vmatpush1.msra.mxu0 %v2091
        %7203 = vmatprep.subr.mxu0 0.0
        %7204 = vmatpush1.msra.mxu0 0.0
        %7205 = vmatprep.subr.mxu0 0.0
        %7206 = vmatpush1.msra.mxu0 0.0
        %7207 = vmatprep.subr.mxu0 0.0
        %7208 = vmatpush1.msra.mxu0 0.0
        %7209 = vmatprep.subr.mxu0 0.0
        %7210 = vmatpush1.msra.mxu0 0.0
        %7211 = vmatprep.subr.mxu0 0.0
        %7212 = vmatpush1.msra.mxu0 0.0
        %7213 = vmatprep.subr.mxu0 0.0
        %7214 = vmatpush1.msra.mxu0 0.0
        %7215 = vmatprep.subr.mxu0 0.0
        %7216 = vmatpush1.msra.mxu0 0.0
        %7217 = vmatprep.subr.mxu0 0.0
        %7218 = vmatpush1.msra.mxu0 0.0
        %7219 = vmatprep.subr.mxu0 0.0
        %7220 = vmatpush1.msra.mxu0 0.0
        %7221 = vmatprep.subr.mxu0 0.0
        %7222 = vmatpush1.msra.mxu0 0.0
        %7223 = vmatprep.subr.mxu0 0.0
        %7224 = vmatpush1.msra.mxu0 0.0
        %7225 = vmatprep.subr.mxu0 0.0
        %7226 = vmatpush1.msra.mxu0 0.0
        %7227 = vmatprep.subr.mxu0 0.0
        %7228 = vmatpush1.msra.mxu0 0.0
        %7229 = vmatprep.subr.mxu0 0.0
        %7230 = vmatpush1.msra.mxu0 0.0
        %7231 = vmatprep.subr.mxu0 0.0
        %7232 = vmatpush1.msra.mxu0 0.0
        %7233 = vmatprep.subr.mxu0 0.0
        %7234 = vmatpush1.msra.mxu0 0.0
        %7235 = vmatprep.subr.mxu0 0.0
        %7236 = vmatpush1.msra.mxu0 0.0
        %7237 = vmatprep.subr.mxu0 0.0
        %7238 = vmatpush1.msra.mxu0 0.0
        %7239 = vmatprep.subr.mxu0 0.0
        %7240 = vmatpush1.msra.mxu0 0.0
        %7241 = vmatprep.subr.mxu0 0.0
        %7242 = vmatpush1.msra.mxu0 0.0
        %7243 = vmatprep.subr.mxu0 0.0
        %7244 = vmatpush1.msra.mxu0 0.0
        %7245 = vmatprep.subr.mxu0 0.0
        %7246 = vmatpush1.msra.mxu0 0.0
        %7247 = vmatprep.subr.mxu0 0.0
        %7248 = vmatpush1.msra.mxu0 0.0
        %7249 = vmatprep.subr.mxu0 0.0
        %7250 = vmatpush1.msra.mxu0 0.0
        %7251 = vmatprep.mubr.f32.mxu0 0.0
        %7252 = vmatmul.mubr.f32.gmra.mrb[0].mxu0 %v6996
        %v7253 = vpop.f32.mrb[0].mxu0
        %v7254 = vadd.f32 0.0, %v7253
        %v7255 = vpop.f32.mrb[0].mxu0
        %7256 = vmatprep.mubr.f32.mxu0 0.0
        %7257 = vmatmul.mubr.f32.gmra.mrb[0].mxu0 %v6999
        %v7258 = vpop.f32.mrb[0].mxu0
        %v7259 = vadd.f32 0.0, %v7258
        %v7260 = vpop.f32.mrb[0].mxu0
        %7261 = vmatprep.mubr.f32.mxu0 0.0
        %7262 = vmatmul.mubr.f32.gmra.mrb[0].mxu0 %v7002
        %v7263 = vpop.f32.mrb[0].mxu0
        %v7264 = vadd.f32 0.0, %v7263
        %v7265 = vpop.f32.mrb[0].mxu0
        %7266 = vmatprep.mubr.f32.mxu0 0.0
        %7267 = vmatmul.mubr.f32.gmra.mrb[0].mxu0 %v7005
        %v7268 = vpop.f32.mrb[0].mxu0
        %v7269 = vadd.f32 0.0, %v7268
        %v7270 = vpop.f32.mrb[0].mxu0
        %7271 = vmatprep.mubr.f32.mxu0 0.0
        %7272 = vmatmul.mubr.f32.gmra.mrb[0].mxu0 %v7008
        %v7273 = vpop.f32.mrb[0].mxu0
        %v7274 = vadd.f32 0.0, %v7273
        %v7275 = vpop.f32.mrb[0].mxu0
        %7276 = vmatprep.mubr.f32.mxu0 0.0
        %7277 = vmatmul.mubr.f32.gmra.mrb[0].mxu0 %v7011
        %v7278 = vpop.f32.mrb[0].mxu0
        %v7279 = vadd.f32 0.0, %v7278
        %v7280 = vpop.f32.mrb[0].mxu0
        %7281 = vmatprep.mubr.f32.mxu0 0.0
        %7282 = vmatmul.mubr.f32.gmra.mrb[0].mxu0 %v7014
        %v7283 = vpop.f32.mrb[0].mxu0
        %v7284 = vadd.f32 0.0, %v7283
        %v7285 = vpop.f32.mrb[0].mxu0
        %7286 = vmatprep.mubr.f32.mxu0 0.0
        %7287 = vmatmul.mubr.f32.gmra.mrb[0].mxu0 %v7017
        %v7288 = vpop.f32.mrb[0].mxu0
        %v7289 = vadd.f32 0.0, %v7288
        %v7290 = vpop.f32.mrb[0].mxu0
        %7291 = vmatprep.mubr.f32.mxu0 0.0
        %7292 = vmatmul.mubr.f32.gmra.mrb[0].mxu0 %v7020
        %v7293 = vpop.f32.mrb[0].mxu0
        %v7294 = vadd.f32 0.0, %v7293
        %v7295 = vpop.f32.mrb[0].mxu0
        %7296 = vmatprep.mubr.f32.mxu0 0.0
        %7297 = vmatmul.mubr.f32.gmra.mrb[0].mxu0 %v7023
        %v7298 = vpop.f32.mrb[0].mxu0
        %v7299 = vadd.f32 0.0, %v7298
        %v7300 = vpop.f32.mrb[0].mxu0
        %7301 = vmatprep.mubr.f32.mxu0 0.0
        %7302 = vmatmul.mubr.f32.gmra.mrb[0].mxu0 %v7026
        %v7303 = vpop.f32.mrb[0].mxu0
        %v7304 = vadd.f32 0.0, %v7303
        %v7305 = vpop.f32.mrb[0].mxu0
        %7306 = vmatprep.mubr.f32.mxu0 0.0
        %7307 = vmatmul.mubr.f32.gmra.mrb[0].mxu0 %v7029
        %v7308 = vpop.f32.mrb[0].mxu0
        %v7309 = vadd.f32 0.0, %v7308
        %v7310 = vpop.f32.mrb[0].mxu0
        %7311 = vmatprep.mubr.f32.mxu0 0.0
        %7312 = vmatmul.mubr.f32.gmra.mrb[0].mxu0 %v7032
        %v7313 = vpop.f32.mrb[0].mxu0
        %v7314 = vadd.f32 0.0, %v7313
        %v7315 = vpop.f32.mrb[0].mxu0
        %7316 = vmatprep.mubr.f32.mxu0 0.0
        %7317 = vmatmul.mubr.f32.gmra.mrb[0].mxu0 %v7035
        %v7318 = vpop.f32.mrb[0].mxu0
        %v7319 = vadd.f32 0.0, %v7318
        %v7320 = vpop.f32.mrb[0].mxu0
        %7321 = vmatprep.mubr.f32.mxu0 0.0
        %7322 = vmatmul.mubr.f32.gmra.mrb[0].mxu0 %v7038
        %v7323 = vpop.f32.mrb[0].mxu0
        %v7324 = vadd.f32 0.0, %v7323
        %v7325 = vpop.f32.mrb[0].mxu0
        %7326 = vmatprep.mubr.f32.mxu0 0.0
        %7327 = vmatmul.mubr.f32.gmra.mrb[0].mxu0 %v7041
        %v7328 = vpop.f32.mrb[0].mxu0
        %v7329 = vadd.f32 0.0, %v7328
        %v7330 = vpop.f32.mrb[0].mxu0
        %7331 = vmatprep.mubr.f32.mxu0 0.0
        %7332 = vmatmul.mubr.f32.gmra.mrb[0].mxu0 %v7044
        %v7333 = vpop.f32.mrb[0].mxu0
        %v7334 = vadd.f32 0.0, %v7333
        %v7335 = vpop.f32.mrb[0].mxu0
        %7336 = vmatprep.mubr.f32.mxu0 0.0
        %7337 = vmatmul.mubr.f32.gmra.mrb[0].mxu0 %v7047
        %v7338 = vpop.f32.mrb[0].mxu0
        %v7339 = vadd.f32 0.0, %v7338
        %v7340 = vpop.f32.mrb[0].mxu0
        %7341 = vmatprep.mubr.f32.mxu0 0.0
        %7342 = vmatmul.mubr.f32.gmra.mrb[0].mxu0 %v7050
        %v7343 = vpop.f32.mrb[0].mxu0
        %v7344 = vadd.f32 0.0, %v7343
        %v7345 = vpop.f32.mrb[0].mxu0
        %7346 = vmatprep.mubr.f32.mxu0 0.0
        %7347 = vmatmul.mubr.f32.gmra.mrb[0].mxu0 %v7053
        %v7348 = vpop.f32.mrb[0].mxu0
        %v7349 = vadd.f32 0.0, %v7348
        %v7350 = vpop.f32.mrb[0].mxu0
        %7351 = vmatprep.mubr.f32.mxu0 0.0
        %7352 = vmatmul.mubr.f32.gmra.mrb[0].mxu0 %v7056
        %v7353 = vpop.f32.mrb[0].mxu0
        %v7354 = vadd.f32 0.0, %v7353
        %v7355 = vpop.f32.mrb[0].mxu0
        %7356 = vmatprep.mubr.f32.mxu0 0.0
        %7357 = vmatmul.mubr.f32.gmra.mrb[0].mxu0 %v7059
        %v7358 = vpop.f32.mrb[0].mxu0
        %v7359 = vadd.f32 0.0, %v7358
        %v7360 = vpop.f32.mrb[0].mxu0
        %7361 = vmatprep.mubr.f32.mxu0 0.0
        %7362 = vmatmul.mubr.f32.gmra.mrb[0].mxu0 %v7062
        %v7363 = vpop.f32.mrb[0].mxu0
        %v7364 = vadd.f32 0.0, %v7363
        %v7365 = vpop.f32.mrb[0].mxu0
        %7366 = vmatprep.mubr.f32.mxu0 0.0
        %7367 = vmatmul.mubr.f32.gmra.mrb[0].mxu0 %v7065
        %v7368 = vpop.f32.mrb[0].mxu0
        %v7369 = vadd.f32 0.0, %v7368
        %v7370 = vpop.f32.mrb[0].mxu0
        %7371 = vmatprep.mubr.f32.mxu0 0.0
        %7372 = vmatmul.mubr.f32.gmra.mrb[0].mxu0 %v7068
        %v7373 = vpop.f32.mrb[0].mxu0
        %v7374 = vadd.f32 0.0, %v7373
        %v7375 = vpop.f32.mrb[0].mxu0
        %7376 = vmatprep.mubr.f32.mxu0 0.0
        %7377 = vmatmul.mubr.f32.gmra.mrb[0].mxu0 %v7071
        %v7378 = vpop.f32.mrb[0].mxu0
        %v7379 = vadd.f32 0.0, %v7378
        %v7380 = vpop.f32.mrb[0].mxu0
        %7381 = vmatprep.mubr.f32.mxu0 0.0
        %7382 = vmatmul.mubr.f32.gmra.mrb[0].mxu0 %v7074
        %v7383 = vpop.f32.mrb[0].mxu0
        %v7384 = vadd.f32 0.0, %v7383
        %v7385 = vpop.f32.mrb[0].mxu0
        %7386 = vmatprep.mubr.f32.mxu0 0.0
        %7387 = vmatmul.mubr.f32.gmra.mrb[0].mxu0 %v7077
        %v7388 = vpop.f32.mrb[0].mxu0
        %v7389 = vadd.f32 0.0, %v7388
        %v7390 = vpop.f32.mrb[0].mxu0
        %7391 = vmatprep.mubr.f32.mxu0 0.0
        %7392 = vmatmul.mubr.f32.gmra.mrb[0].mxu0 %v7080
        %v7393 = vpop.f32.mrb[0].mxu0
        %v7394 = vadd.f32 0.0, %v7393
        %v7395 = vpop.f32.mrb[0].mxu0
        %7396 = vmatprep.mubr.f32.mxu0 0.0
        %7397 = vmatmul.mubr.f32.gmra.mrb[0].mxu0 %v7083
        %v7398 = vpop.f32.mrb[0].mxu0
        %v7399 = vadd.f32 0.0, %v7398
        %v7400 = vpop.f32.mrb[0].mxu0
        %7401 = vmatprep.mubr.f32.mxu0 0.0
        %7402 = vmatmul.mubr.f32.gmra.mrb[0].mxu0 %v7086
        %v7403 = vpop.f32.mrb[0].mxu0
        %v7404 = vadd.f32 0.0, %v7403
        %v7405 = vpop.f32.mrb[0].mxu0
        %7406 = vmatprep.mubr.f32.mxu0 0.0
        %7407 = vmatmul.mubr.f32.gmra.mrb[0].mxu0 %v7089
        %v7408 = vpop.f32.mrb[0].mxu0
        %v7409 = vadd.f32 0.0, %v7408
        %v7410 = vpop.f32.mrb[0].mxu0
        %7411 = vmatprep.mubr.f32.mxu0 0.0
        %7412 = vmatmul.mubr.f32.gmra.mrb[0].mxu0 %v7092
        %v7413 = vpop.f32.mrb[0].mxu0
        %v7414 = vadd.f32 0.0, %v7413
        %v7415 = vpop.f32.mrb[0].mxu0
        %7416 = vmatprep.mubr.f32.mxu0 0.0
        %7417 = vmatmul.mubr.f32.gmra.mrb[0].mxu0 %v7095
        %v7418 = vpop.f32.mrb[0].mxu0
        %v7419 = vadd.f32 0.0, %v7418
        %v7420 = vpop.f32.mrb[0].mxu0
        %7421 = vmatprep.mubr.f32.mxu0 0.0
        %7422 = vmatmul.mubr.f32.gmra.mrb[0].mxu0 %v7098
        %v7423 = vpop.f32.mrb[0].mxu0
        %v7424 = vadd.f32 0.0, %v7423
        %v7425 = vpop.f32.mrb[0].mxu0
        %7426 = vmatprep.mubr.f32.mxu0 0.0
        %7427 = vmatmul.mubr.f32.gmra.mrb[0].mxu0 %v7101
        %v7428 = vpop.f32.mrb[0].mxu0
        %v7429 = vadd.f32 0.0, %v7428
        %v7430 = vpop.f32.mrb[0].mxu0
        %7431 = vmatprep.mubr.f32.mxu0 0.0
        %7432 = vmatmul.mubr.f32.gmra.mrb[0].mxu0 %v7104
        %v7433 = vpop.f32.mrb[0].mxu0
        %v7434 = vadd.f32 0.0, %v7433
        %v7435 = vpop.f32.mrb[0].mxu0
        %7436 = vmatprep.mubr.f32.mxu0 0.0
        %7437 = vmatmul.mubr.f32.gmra.mrb[0].mxu0 %v7107
        %v7438 = vpop.f32.mrb[0].mxu0
        %v7439 = vadd.f32 0.0, %v7438
        %v7440 = vpop.f32.mrb[0].mxu0
        %7441 = vmatprep.mubr.f32.mxu0 0.0
        %7442 = vmatmul.mubr.f32.gmra.mrb[0].mxu0 %v7110
        %v7443 = vpop.f32.mrb[0].mxu0
        %v7444 = vadd.f32 0.0, %v7443
        %v7445 = vpop.f32.mrb[0].mxu0
        %7446 = vmatprep.mubr.f32.mxu0 0.0
        %7447 = vmatmul.mubr.f32.gmra.mrb[0].mxu0 %v7113
        %v7448 = vpop.f32.mrb[0].mxu0
        %v7449 = vadd.f32 0.0, %v7448
        %v7450 = vpop.f32.mrb[0].mxu0
        %7451 = vmatprep.mubr.f32.mxu0 0.0
        %7452 = vmatmul.mubr.f32.gmra.mrb[0].mxu0 %v7116
        %v7453 = vpop.f32.mrb[0].mxu0
        %v7454 = vadd.f32 0.0, %v7453
        %v7455 = vpop.f32.mrb[0].mxu0
        %7456 = vmatprep.mubr.f32.mxu0 0.0
        %7457 = vmatmul.mubr.f32.gmra.mrb[0].mxu0 %v7119
        %v7458 = vpop.f32.mrb[0].mxu0
        %v7459 = vadd.f32 0.0, %v7458
        %v7460 = vpop.f32.mrb[0].mxu0
        %7461 = vmatprep.mubr.f32.mxu0 0.0
        %7462 = vmatmul.mubr.f32.gmra.mrb[0].mxu0 %v7122
        %v7463 = vpop.f32.mrb[0].mxu0
        %v7464 = vadd.f32 0.0, %v7463
        %v7465 = vpop.f32.mrb[0].mxu0
        %7466 = vmatprep.mubr.f32.mxu0 0.0
        %7467 = vmatmul.mubr.f32.gmra.mrb[0].mxu0 %v7125
        %v7468 = vpop.f32.mrb[0].mxu0
        %v7469 = vadd.f32 0.0, %v7468
        %v7470 = vpop.f32.mrb[0].mxu0
        %7471 = vmatprep.mubr.f32.mxu0 0.0
        %7472 = vmatmul.mubr.f32.gmra.mrb[0].mxu0 %v7128
        %v7473 = vpop.f32.mrb[0].mxu0
        %v7474 = vadd.f32 0.0, %v7473
        %v7475 = vpop.f32.mrb[0].mxu0
        %7476 = vmatprep.mubr.f32.mxu0 0.0
        %7477 = vmatmul.mubr.f32.gmra.mrb[0].mxu0 %v7131
        %v7478 = vpop.f32.mrb[0].mxu0
        %v7479 = vadd.f32 0.0, %v7478
        %v7480 = vpop.f32.mrb[0].mxu0
        %7481 = vmatprep.mubr.f32.mxu0 0.0
        %7482 = vmatmul.mubr.f32.gmra.mrb[0].mxu0 %v7134
        %v7483 = vpop.f32.mrb[0].mxu0
        %v7484 = vadd.f32 0.0, %v7483
        %v7485 = vpop.f32.mrb[0].mxu0
        %7486 = vmatprep.mubr.f32.mxu0 0.0
        %7487 = vmatmul.mubr.f32.gmra.mrb[0].mxu0 %v7137
        %v7488 = vpop.f32.mrb[0].mxu0
        %v7489 = vadd.f32 0.0, %v7488
        %v7490 = vpop.f32.mrb[0].mxu0
        %7491 = vmatprep.mubr.f32.mxu0 0.0
        %7492 = vmatmul.mubr.f32.gmra.mrb[0].mxu0 %v7140
        %v7493 = vpop.f32.mrb[0].mxu0
        %v7494 = vadd.f32 0.0, %v7493
        %v7495 = vpop.f32.mrb[0].mxu0
        %7496 = vmatprep.mubr.f32.mxu0 0.0
        %7497 = vmatmul.mubr.f32.gmra.mrb[0].mxu0 %v7143
        %v7498 = vpop.f32.mrb[0].mxu0
        %v7499 = vadd.f32 0.0, %v7498
        %v7500 = vpop.f32.mrb[0].mxu0
        %7501 = vmatprep.mubr.f32.mxu0 0.0
        %7502 = vmatmul.mubr.f32.gmra.mrb[0].mxu0 %v7146
        %v7503 = vpop.f32.mrb[0].mxu0
        %v7504 = vadd.f32 0.0, %v7503
        %v7505 = vpop.f32.mrb[0].mxu0
        %7506 = vmatprep.mubr.f32.mxu0 0.0
        %7507 = vmatmul.mubr.f32.gmra.mrb[0].mxu0 %v7149
        %v7508 = vpop.f32.mrb[0].mxu0
        %v7509 = vadd.f32 0.0, %v7508
        %v7510 = vpop.f32.mrb[0].mxu0
        %7511 = vmatprep.mubr.f32.mxu0 0.0
        %7512 = vmatmul.mubr.f32.gmra.mrb[0].mxu0 %v7152
        %v7513 = vpop.f32.mrb[0].mxu0
        %v7514 = vadd.f32 0.0, %v7513
        %v7515 = vpop.f32.mrb[0].mxu0
        %7516 = vmatprep.mubr.f32.mxu0 0.0
        %7517 = vmatmul.mubr.f32.gmra.mrb[0].mxu0 %v7155
        %v7518 = vpop.f32.mrb[0].mxu0
        %v7519 = vadd.f32 0.0, %v7518
        %v7520 = vpop.f32.mrb[0].mxu0
        %7521 = vmatprep.mubr.f32.mxu0 0.0
        %7522 = vmatmul.mubr.f32.gmra.mrb[0].mxu0 %v7158
        %v7523 = vpop.f32.mrb[0].mxu0
        %v7524 = vadd.f32 0.0, %v7523
        %v7525 = vpop.f32.mrb[0].mxu0
        %7526 = vmatprep.mubr.f32.mxu0 0.0
        %7527 = vmatmul.mubr.f32.gmra.mrb[0].mxu0 %v7161
        %v7528 = vpop.f32.mrb[0].mxu0
        %v7529 = vadd.f32 0.0, %v7528
        %v7530 = vpop.f32.mrb[0].mxu0
        %7531 = vmatprep.mubr.f32.mxu0 0.0
        %7532 = vmatmul.mubr.f32.gmra.mrb[0].mxu0 %v7164
        %v7533 = vpop.f32.mrb[0].mxu0
        %v7534 = vadd.f32 0.0, %v7533
        %v7535 = vpop.f32.mrb[0].mxu0
        %7536 = vmatprep.mubr.f32.mxu0 0.0
        %7537 = vmatmul.mubr.f32.gmra.mrb[0].mxu0 %v7167
        %v7538 = vpop.f32.mrb[0].mxu0
        %v7539 = vadd.f32 0.0, %v7538
        %v7540 = vpop.f32.mrb[0].mxu0
        %7541 = vmatprep.mubr.f32.mxu0 0.0
        %7542 = vmatmul.mubr.f32.gmra.mrb[0].mxu0 %v7170
        %v7543 = vpop.f32.mrb[0].mxu0
        %v7544 = vadd.f32 0.0, %v7543
        %v7545 = vpop.f32.mrb[0].mxu0
        %7546 = vmatprep.mubr.f32.mxu0 0.0
        %7547 = vmatmul.mubr.f32.gmra.mrb[0].mxu0 %v7173
        %v7548 = vpop.f32.mrb[0].mxu0
        %v7549 = vadd.f32 0.0, %v7548
        %v7550 = vpop.f32.mrb[0].mxu0
        %7551 = vmatprep.mubr.f32.mxu0 0.0
        %7552 = vmatmul.mubr.f32.gmra.mrb[0].mxu0 %v7176
        %v7553 = vpop.f32.mrb[0].mxu0
        %v7554 = vadd.f32 0.0, %v7553
        %v7555 = vpop.f32.mrb[0].mxu0
        %7556 = vmatprep.mubr.f32.mxu0 0.0
        %7557 = vmatmul.mubr.f32.gmra.mrb[0].mxu0 %v7179
        %v7558 = vpop.f32.mrb[0].mxu0
        %v7559 = vadd.f32 0.0, %v7558
        %v7560 = vpop.f32.mrb[0].mxu0
        %7561 = vmatprep.mubr.f32.mxu0 0.0
        %7562 = vmatmul.mubr.f32.gmra.mrb[0].mxu0 %v7182
        %v7563 = vpop.f32.mrb[0].mxu0
        %v7564 = vadd.f32 0.0, %v7563
        %v7565 = vpop.f32.mrb[0].mxu0
        %7566 = vmatprep.mubr.f32.mxu0 0.0
        %7567 = vmatmul.mubr.f32.gmra.mrb[0].mxu0 %v7185
        %v7568 = vpop.f32.mrb[0].mxu0
        %v7569 = vadd.f32 0.0, %v7568
        %v7570 = vpop.f32.mrb[0].mxu0
        %7571 = vdwg.mxu0
        %v7572 = vtanh.pop %v7254
        %v7573 = vtanh.pop %v7259
        %v7574 = vtanh.pop %v7264
        %v7575 = vtanh.pop %v7269
        %v7576 = vtanh.pop %v7274
        %v7577 = vtanh.pop %v7279
        %v7578 = vtanh.pop %v7284
        %v7579 = vtanh.pop %v7289
        %v7580 = vtanh.pop %v7294
        %v7581 = vtanh.pop %v7299
        %v7582 = vtanh.pop %v7304
        %v7583 = vtanh.pop %v7309
        %v7584 = vtanh.pop %v7314
        %v7585 = vtanh.pop %v7319
        %v7586 = vtanh.pop %v7324
        %v7587 = vtanh.pop %v7329
        %v7588 = vtanh.pop %v7334
        %v7589 = vtanh.pop %v7339
        %v7590 = vtanh.pop %v7344
        %v7591 = vtanh.pop %v7349
        %v7592 = vtanh.pop %v7354
        %v7593 = vtanh.pop %v7359
        %v7594 = vtanh.pop %v7364
        %v7595 = vtanh.pop %v7369
        %v7596 = vtanh.pop %v7374
        %v7597 = vtanh.pop %v7379
        %v7598 = vtanh.pop %v7384
        %v7599 = vtanh.pop %v7389
        %v7600 = vtanh.pop %v7394
        %v7601 = vtanh.pop %v7399
        %v7602 = vtanh.pop %v7404
        %v7603 = vtanh.pop %v7409
        %v7604 = vtanh.pop %v7414
        %v7605 = vtanh.pop %v7419
        %v7606 = vtanh.pop %v7424
        %v7607 = vtanh.pop %v7429
        %v7608 = vtanh.pop %v7434
        %v7609 = vtanh.pop %v7439
        %v7610 = vtanh.pop %v7444
        %v7611 = vtanh.pop %v7449
        %v7612 = vtanh.pop %v7454
        %v7613 = vtanh.pop %v7459
        %v7614 = vtanh.pop %v7464
        %v7615 = vtanh.pop %v7469
        %v7616 = vtanh.pop %v7474
        %v7617 = vtanh.pop %v7479
        %v7618 = vtanh.pop %v7484
        %v7619 = vtanh.pop %v7489
        %v7620 = vtanh.pop %v7494
        %v7621 = vtanh.pop %v7499
        %v7622 = vtanh.pop %v7504
        %v7623 = vtanh.pop %v7509
        %v7624 = vtanh.pop %v7514
        %v7625 = vtanh.pop %v7519
        %v7626 = vtanh.pop %v7524
        %v7627 = vtanh.pop %v7529
        %v7628 = vtanh.pop %v7534
        %v7629 = vtanh.pop %v7539
        %v7630 = vtanh.pop %v7544
        %v7631 = vtanh.pop %v7549
        %v7632 = vtanh.pop %v7554
        %v7633 = vtanh.pop %v7559
        %v7634 = vtanh.pop %v7564
        %v7635 = vtanh.pop %v7569
        %v7638 = vunpack.c.l.s4 1966171168
        %v7639 = vunpack.c.0.s8 %v7638
        %v7640 = vlaneseq
        %v7641 = vshrl.u32 %v7640, 7
        %v7642 = vsub.s32 %v7639, %v7641
        %v7643 = vrot.slane %v2095, %v7642
        %v7644 = vcombine.high %v7643, %v7643
        %v7646 = vunpack.c.l.s4 1966171168
        %v7647 = vunpack.c.0.s8 %v7646
        %v7648 = vlaneseq
        %v7649 = vshrl.u32 %v7648, 7
        %v7650 = vsub.s32 %v7647, %v7649
        %v7651 = vrot.slane %v7643, %v7650
        %v7653 = vunpack.c.l.s4 1966171168
        %v7654 = vunpack.c.0.s8 %v7653
        %v7655 = vlaneseq
        %v7656 = vshrl.u32 %v7655, 7
        %v7657 = vsub.s32 %v7654, %v7656
        %v7658 = vrot.slane %v7644, %v7657
        %v7659 = vcombine.high %v7651, %v7651
        %v7660 = vcombine.high %v7658, %v7658
        %v7661 = vlaneseq
        %v7662 = vshrl.u32 %v7661, 7
        %v7663 = vsub.s32 0, %v7662
        %v7664 = vrot.slane %v7651, %v7663
        %v7665 = vlaneseq
        %v7666 = vshrl.u32 %v7665, 7
        %v7667 = vsub.s32 0, %v7666
        %v7668 = vrot.slane %v7658, %v7667
        %v7669 = vlaneseq
        %v7670 = vshrl.u32 %v7669, 7
        %v7671 = vsub.s32 0, %v7670
        %v7672 = vrot.slane %v7659, %v7671
        %v7673 = vlaneseq
        %v7674 = vshrl.u32 %v7673, 7
        %v7675 = vsub.s32 0, %v7674
        %v7676 = vrot.slane %v7660, %v7675
        %v7681 = vmul.f32 %v7572, %v7664
        %v7682 = vmul.f32 %v7573, %v7664
        %v7683 = vmul.f32 %v7574, %v7664
        %v7684 = vmul.f32 %v7575, %v7664
        %v7685 = vmul.f32 %v7576, %v7664
        %v7686 = vmul.f32 %v7577, %v7664
        %v7687 = vmul.f32 %v7578, %v7664
        %v7688 = vmul.f32 %v7579, %v7664
        %v7689 = vmul.f32 %v7580, %v7664
        %v7690 = vmul.f32 %v7581, %v7664
        %v7691 = vmul.f32 %v7582, %v7664
        %v7692 = vmul.f32 %v7583, %v7664
        %v7693 = vmul.f32 %v7584, %v7664
        %v7694 = vmul.f32 %v7585, %v7664
        %v7695 = vmul.f32 %v7586, %v7664
        %v7696 = vmul.f32 %v7587, %v7664
        %v7697 = vmul.f32 %v7588, %v7668
        %v7698 = vmul.f32 %v7589, %v7668
        %v7699 = vmul.f32 %v7590, %v7668
        %v7700 = vmul.f32 %v7591, %v7668
        %v7701 = vmul.f32 %v7592, %v7668
        %v7702 = vmul.f32 %v7593, %v7668
        %v7703 = vmul.f32 %v7594, %v7668
        %v7704 = vmul.f32 %v7595, %v7668
        %v7705 = vmul.f32 %v7596, %v7668
        %v7706 = vmul.f32 %v7597, %v7668
        %v7707 = vmul.f32 %v7598, %v7668
        %v7708 = vmul.f32 %v7599, %v7668
        %v7709 = vmul.f32 %v7600, %v7668
        %v7710 = vmul.f32 %v7601, %v7668
        %v7711 = vmul.f32 %v7602, %v7668
        %v7712 = vmul.f32 %v7603, %v7668
        %v7713 = vmul.f32 %v7604, %v7672
        %v7714 = vmul.f32 %v7605, %v7672
        %v7715 = vmul.f32 %v7606, %v7672
        %v7716 = vmul.f32 %v7607, %v7672
        %v7717 = vmul.f32 %v7608, %v7672
        %v7718 = vmul.f32 %v7609, %v7672
        %v7719 = vmul.f32 %v7610, %v7672
        %v7720 = vmul.f32 %v7611, %v7672
        %v7721 = vmul.f32 %v7612, %v7672
        %v7722 = vmul.f32 %v7613, %v7672
        %v7723 = vmul.f32 %v7614, %v7672
        %v7724 = vmul.f32 %v7615, %v7672
        %v7725 = vmul.f32 %v7616, %v7672
        %v7726 = vmul.f32 %v7617, %v7672
        %v7727 = vmul.f32 %v7618, %v7672
        %v7728 = vmul.f32 %v7619, %v7672
        %v7729 = vmul.f32 %v7620, %v7676
        %v7730 = vmul.f32 %v7621, %v7676
        %v7731 = vmul.f32 %v7622, %v7676
        %v7732 = vmul.f32 %v7623, %v7676
        %v7733 = vmul.f32 %v7624, %v7676
        %v7734 = vmul.f32 %v7625, %v7676
        %v7735 = vmul.f32 %v7626, %v7676
        %v7736 = vmul.f32 %v7627, %v7676
        %v7737 = vmul.f32 %v7628, %v7676
        %v7738 = vmul.f32 %v7629, %v7676
        %v7739 = vmul.f32 %v7630, %v7676
        %v7740 = vmul.f32 %v7631, %v7676
        %v7741 = vmul.f32 %v7632, %v7676
        %v7742 = vmul.f32 %v7633, %v7676
        %v7743 = vmul.f32 %v7634, %v7676
        %v7744 = vmul.f32 %v7635, %v7676
        %v7746 = vsel %vm3552, %v7681, 0
        %v7749 = vsel %vm3552, %v7682, 0
        %v7752 = vsel %vm3552, %v7683, 0
        %v7755 = vsel %vm3552, %v7684, 0
        %v7758 = vsel %vm3552, %v7685, 0
        %v7761 = vsel %vm3552, %v7686, 0
        %v7764 = vsel %vm3552, %v7687, 0
        %v7767 = vsel %vm3552, %v7688, 0
        %v7770 = vsel %vm3552, %v7689, 0
        %v7773 = vsel %vm3552, %v7690, 0
        %v7776 = vsel %vm3552, %v7691, 0
        %v7779 = vsel %vm3552, %v7692, 0
        %v7782 = vsel %vm3552, %v7693, 0
        %v7785 = vsel %vm3552, %v7694, 0
        %v7788 = vsel %vm3552, %v7695, 0
        %v7791 = vsel %vm3552, %v7696, 0
        %v7794 = vsel %vm3552, %v7697, 0
        %v7797 = vsel %vm3552, %v7698, 0
        %v7800 = vsel %vm3552, %v7699, 0
        %v7803 = vsel %vm3552, %v7700, 0
        %v7806 = vsel %vm3552, %v7701, 0
        %v7809 = vsel %vm3552, %v7702, 0
        %v7812 = vsel %vm3552, %v7703, 0
        %v7815 = vsel %vm3552, %v7704, 0
        %v7818 = vsel %vm3552, %v7705, 0
        %v7821 = vsel %vm3552, %v7706, 0
        %v7824 = vsel %vm3552, %v7707, 0
        %v7827 = vsel %vm3552, %v7708, 0
        %v7830 = vsel %vm3552, %v7709, 0
        %v7833 = vsel %vm3552, %v7710, 0
        %v7836 = vsel %vm3552, %v7711, 0
        %v7839 = vsel %vm3552, %v7712, 0
        %v7842 = vsel %vm3552, %v7713, 0
        %v7845 = vsel %vm3552, %v7714, 0
        %v7848 = vsel %vm3552, %v7715, 0
        %v7851 = vsel %vm3552, %v7716, 0
        %v7854 = vsel %vm3552, %v7717, 0
        %v7857 = vsel %vm3552, %v7718, 0
        %v7860 = vsel %vm3552, %v7719, 0
        %v7863 = vsel %vm3552, %v7720, 0
        %v7866 = vsel %vm3552, %v7721, 0
        %v7869 = vsel %vm3552, %v7722, 0
        %v7872 = vsel %vm3552, %v7723, 0
        %v7875 = vsel %vm3552, %v7724, 0
        %v7878 = vsel %vm3552, %v7725, 0
        %v7881 = vsel %vm3552, %v7726, 0
        %v7884 = vsel %vm3552, %v7727, 0
        %v7887 = vsel %vm3552, %v7728, 0
        %v7890 = vsel %vm3552, %v7729, 0
        %v7893 = vsel %vm3552, %v7730, 0
        %v7896 = vsel %vm3552, %v7731, 0
        %v7899 = vsel %vm3552, %v7732, 0
        %v7902 = vsel %vm3552, %v7733, 0
        %v7905 = vsel %vm3552, %v7734, 0
        %v7908 = vsel %vm3552, %v7735, 0
        %v7911 = vsel %vm3552, %v7736, 0
        %v7914 = vsel %vm3552, %v7737, 0
        %v7917 = vsel %vm3552, %v7738, 0
        %v7920 = vsel %vm3552, %v7739, 0
        %v7923 = vsel %vm3552, %v7740, 0
        %v7926 = vsel %vm3552, %v7741, 0
        %v7929 = vsel %vm3552, %v7742, 0
        %v7932 = vsel %vm3552, %v7743, 0
        %v7935 = vsel %vm3552, %v7744, 0
        %7937 = vmatprep.subr.mxu0 0.0
        %7938 = vmatpush1.msra.mxu0 %v2092
        %7939 = vmatprep.subr.mxu0 0.0
        %7940 = vmatpush1.msra.mxu0 0.0
        %7941 = vmatprep.subr.mxu0 0.0
        %7942 = vmatpush1.msra.mxu0 0.0
        %7943 = vmatprep.subr.mxu0 0.0
        %7944 = vmatpush1.msra.mxu0 0.0
        %7945 = vmatprep.subr.mxu0 0.0
        %7946 = vmatpush1.msra.mxu0 0.0
        %7947 = vmatprep.subr.mxu0 0.0
        %7948 = vmatpush1.msra.mxu0 0.0
        %7949 = vmatprep.subr.mxu0 0.0
        %7950 = vmatpush1.msra.mxu0 0.0
        %7951 = vmatprep.subr.mxu0 0.0
        %7952 = vmatpush1.msra.mxu0 0.0
        %7953 = vmatprep.subr.mxu0 0.0
        %7954 = vmatpush1.msra.mxu0 0.0
        %7955 = vmatprep.subr.mxu0 0.0
        %7956 = vmatpush1.msra.mxu0 0.0
        %7957 = vmatprep.subr.mxu0 0.0
        %7958 = vmatpush1.msra.mxu0 0.0
        %7959 = vmatprep.subr.mxu0 0.0
        %7960 = vmatpush1.msra.mxu0 0.0
        %7961 = vmatprep.subr.mxu0 0.0
        %7962 = vmatpush1.msra.mxu0 0.0
        %7963 = vmatprep.subr.mxu0 0.0
        %7964 = vmatpush1.msra.mxu0 0.0
        %7965 = vmatprep.subr.mxu0 0.0
        %7966 = vmatpush1.msra.mxu0 0.0
        %7967 = vmatprep.subr.mxu0 0.0
        %7968 = vmatpush1.msra.mxu0 0.0
        %7969 = vmatprep.subr.mxu0 0.0
        %7970 = vmatpush1.msra.mxu0 0.0
        %7971 = vmatprep.subr.mxu0 0.0
        %7972 = vmatpush1.msra.mxu0 0.0
        %7973 = vmatprep.subr.mxu0 0.0
        %7974 = vmatpush1.msra.mxu0 0.0
        %7975 = vmatprep.subr.mxu0 0.0
        %7976 = vmatpush1.msra.mxu0 0.0
        %7977 = vmatprep.subr.mxu0 0.0
        %7978 = vmatpush1.msra.mxu0 0.0
        %7979 = vmatprep.subr.mxu0 0.0
        %7980 = vmatpush1.msra.mxu0 0.0
        %7981 = vmatprep.subr.mxu0 0.0
        %7982 = vmatpush1.msra.mxu0 0.0
        %7983 = vmatprep.subr.mxu0 0.0
        %7984 = vmatpush1.msra.mxu0 0.0
        %7985 = vmatprep.subr.mxu0 0.0
        %7986 = vmatpush1.msra.mxu0 0.0
        %7987 = vmatprep.subr.mxu0 0.0
        %7988 = vmatpush1.msra.mxu0 0.0
        %7989 = vmatprep.subr.mxu0 0.0
        %7990 = vmatpush1.msra.mxu0 0.0
        %7991 = vmatprep.subr.mxu0 0.0
        %7992 = vmatpush1.msra.mxu0 0.0
        %7993 = vmatprep.subr.mxu0 0.0
        %7994 = vmatpush1.msra.mxu0 0.0
        %7995 = vmatprep.subr.mxu0 0.0
        %7996 = vmatpush1.msra.mxu0 0.0
        %7997 = vmatprep.subr.mxu0 0.0
        %7998 = vmatpush1.msra.mxu0 0.0
        %7999 = vmatprep.subr.mxu0 0.0
        %8000 = vmatpush1.msra.mxu0 0.0
        %8001 = vmatprep.mubr.f32.mxu0 0.0
        %8002 = vmatmul.mubr.f32.gmra.mrb[0].mxu0 %v7746
        %v8003 = vpop.f32.mrb[0].mxu0
        %v8004 = vadd.f32 0.0, %v8003
        %v8005 = vpop.f32.mrb[0].mxu0
        %8006 = vmatprep.mubr.f32.mxu0 0.0
        %8007 = vmatmul.mubr.f32.gmra.mrb[0].mxu0 %v7749
        %v8008 = vpop.f32.mrb[0].mxu0
        %v8009 = vadd.f32 0.0, %v8008
        %v8010 = vpop.f32.mrb[0].mxu0
        %8011 = vmatprep.mubr.f32.mxu0 0.0
        %8012 = vmatmul.mubr.f32.gmra.mrb[0].mxu0 %v7752
        %v8013 = vpop.f32.mrb[0].mxu0
        %v8014 = vadd.f32 0.0, %v8013
        %v8015 = vpop.f32.mrb[0].mxu0
        %8016 = vmatprep.mubr.f32.mxu0 0.0
        %8017 = vmatmul.mubr.f32.gmra.mrb[0].mxu0 %v7755
        %v8018 = vpop.f32.mrb[0].mxu0
        %v8019 = vadd.f32 0.0, %v8018
        %v8020 = vpop.f32.mrb[0].mxu0
        %8021 = vmatprep.mubr.f32.mxu0 0.0
        %8022 = vmatmul.mubr.f32.gmra.mrb[0].mxu0 %v7758
        %v8023 = vpop.f32.mrb[0].mxu0
        %v8024 = vadd.f32 0.0, %v8023
        %v8025 = vpop.f32.mrb[0].mxu0
        %8026 = vmatprep.mubr.f32.mxu0 0.0
        %8027 = vmatmul.mubr.f32.gmra.mrb[0].mxu0 %v7761
        %v8028 = vpop.f32.mrb[0].mxu0
        %v8029 = vadd.f32 0.0, %v8028
        %v8030 = vpop.f32.mrb[0].mxu0
        %8031 = vmatprep.mubr.f32.mxu0 0.0
        %8032 = vmatmul.mubr.f32.gmra.mrb[0].mxu0 %v7764
        %v8033 = vpop.f32.mrb[0].mxu0
        %v8034 = vadd.f32 0.0, %v8033
        %v8035 = vpop.f32.mrb[0].mxu0
        %8036 = vmatprep.mubr.f32.mxu0 0.0
        %8037 = vmatmul.mubr.f32.gmra.mrb[0].mxu0 %v7767
        %v8038 = vpop.f32.mrb[0].mxu0
        %v8039 = vadd.f32 0.0, %v8038
        %v8040 = vpop.f32.mrb[0].mxu0
        %8041 = vmatprep.mubr.f32.mxu0 0.0
        %8042 = vmatmul.mubr.f32.gmra.mrb[0].mxu0 %v7770
        %v8043 = vpop.f32.mrb[0].mxu0
        %v8044 = vadd.f32 0.0, %v8043
        %v8045 = vpop.f32.mrb[0].mxu0
        %8046 = vmatprep.mubr.f32.mxu0 0.0
        %8047 = vmatmul.mubr.f32.gmra.mrb[0].mxu0 %v7773
        %v8048 = vpop.f32.mrb[0].mxu0
        %v8049 = vadd.f32 0.0, %v8048
        %v8050 = vpop.f32.mrb[0].mxu0
        %8051 = vmatprep.mubr.f32.mxu0 0.0
        %8052 = vmatmul.mubr.f32.gmra.mrb[0].mxu0 %v7776
        %v8053 = vpop.f32.mrb[0].mxu0
        %v8054 = vadd.f32 0.0, %v8053
        %v8055 = vpop.f32.mrb[0].mxu0
        %8056 = vmatprep.mubr.f32.mxu0 0.0
        %8057 = vmatmul.mubr.f32.gmra.mrb[0].mxu0 %v7779
        %v8058 = vpop.f32.mrb[0].mxu0
        %v8059 = vadd.f32 0.0, %v8058
        %v8060 = vpop.f32.mrb[0].mxu0
        %8061 = vmatprep.mubr.f32.mxu0 0.0
        %8062 = vmatmul.mubr.f32.gmra.mrb[0].mxu0 %v7782
        %v8063 = vpop.f32.mrb[0].mxu0
        %v8064 = vadd.f32 0.0, %v8063
        %v8065 = vpop.f32.mrb[0].mxu0
        %8066 = vmatprep.mubr.f32.mxu0 0.0
        %8067 = vmatmul.mubr.f32.gmra.mrb[0].mxu0 %v7785
        %v8068 = vpop.f32.mrb[0].mxu0
        %v8069 = vadd.f32 0.0, %v8068
        %v8070 = vpop.f32.mrb[0].mxu0
        %8071 = vmatprep.mubr.f32.mxu0 0.0
        %8072 = vmatmul.mubr.f32.gmra.mrb[0].mxu0 %v7788
        %v8073 = vpop.f32.mrb[0].mxu0
        %v8074 = vadd.f32 0.0, %v8073
        %v8075 = vpop.f32.mrb[0].mxu0
        %8076 = vmatprep.mubr.f32.mxu0 0.0
        %8077 = vmatmul.mubr.f32.gmra.mrb[0].mxu0 %v7791
        %v8078 = vpop.f32.mrb[0].mxu0
        %v8079 = vadd.f32 0.0, %v8078
        %v8080 = vpop.f32.mrb[0].mxu0
        %8081 = vmatprep.mubr.f32.mxu0 0.0
        %8082 = vmatmul.mubr.f32.gmra.mrb[0].mxu0 %v7794
        %v8083 = vpop.f32.mrb[0].mxu0
        %v8084 = vadd.f32 0.0, %v8083
        %v8085 = vpop.f32.mrb[0].mxu0
        %8086 = vmatprep.mubr.f32.mxu0 0.0
        %8087 = vmatmul.mubr.f32.gmra.mrb[0].mxu0 %v7797
        %v8088 = vpop.f32.mrb[0].mxu0
        %v8089 = vadd.f32 0.0, %v8088
        %v8090 = vpop.f32.mrb[0].mxu0
        %8091 = vmatprep.mubr.f32.mxu0 0.0
        %8092 = vmatmul.mubr.f32.gmra.mrb[0].mxu0 %v7800
        %v8093 = vpop.f32.mrb[0].mxu0
        %v8094 = vadd.f32 0.0, %v8093
        %v8095 = vpop.f32.mrb[0].mxu0
        %8096 = vmatprep.mubr.f32.mxu0 0.0
        %8097 = vmatmul.mubr.f32.gmra.mrb[0].mxu0 %v7803
        %v8098 = vpop.f32.mrb[0].mxu0
        %v8099 = vadd.f32 0.0, %v8098
        %v8100 = vpop.f32.mrb[0].mxu0
        %8101 = vmatprep.mubr.f32.mxu0 0.0
        %8102 = vmatmul.mubr.f32.gmra.mrb[0].mxu0 %v7806
        %v8103 = vpop.f32.mrb[0].mxu0
        %v8104 = vadd.f32 0.0, %v8103
        %v8105 = vpop.f32.mrb[0].mxu0
        %8106 = vmatprep.mubr.f32.mxu0 0.0
        %8107 = vmatmul.mubr.f32.gmra.mrb[0].mxu0 %v7809
        %v8108 = vpop.f32.mrb[0].mxu0
        %v8109 = vadd.f32 0.0, %v8108
        %v8110 = vpop.f32.mrb[0].mxu0
        %8111 = vmatprep.mubr.f32.mxu0 0.0
        %8112 = vmatmul.mubr.f32.gmra.mrb[0].mxu0 %v7812
        %v8113 = vpop.f32.mrb[0].mxu0
        %v8114 = vadd.f32 0.0, %v8113
        %v8115 = vpop.f32.mrb[0].mxu0
        %8116 = vmatprep.mubr.f32.mxu0 0.0
        %8117 = vmatmul.mubr.f32.gmra.mrb[0].mxu0 %v7815
        %v8118 = vpop.f32.mrb[0].mxu0
        %v8119 = vadd.f32 0.0, %v8118
        %v8120 = vpop.f32.mrb[0].mxu0
        %8121 = vmatprep.mubr.f32.mxu0 0.0
        %8122 = vmatmul.mubr.f32.gmra.mrb[0].mxu0 %v7818
        %v8123 = vpop.f32.mrb[0].mxu0
        %v8124 = vadd.f32 0.0, %v8123
        %v8125 = vpop.f32.mrb[0].mxu0
        %8126 = vmatprep.mubr.f32.mxu0 0.0
        %8127 = vmatmul.mubr.f32.gmra.mrb[0].mxu0 %v7821
        %v8128 = vpop.f32.mrb[0].mxu0
        %v8129 = vadd.f32 0.0, %v8128
        %v8130 = vpop.f32.mrb[0].mxu0
        %8131 = vmatprep.mubr.f32.mxu0 0.0
        %8132 = vmatmul.mubr.f32.gmra.mrb[0].mxu0 %v7824
        %v8133 = vpop.f32.mrb[0].mxu0
        %v8134 = vadd.f32 0.0, %v8133
        %v8135 = vpop.f32.mrb[0].mxu0
        %8136 = vmatprep.mubr.f32.mxu0 0.0
        %8137 = vmatmul.mubr.f32.gmra.mrb[0].mxu0 %v7827
        %v8138 = vpop.f32.mrb[0].mxu0
        %v8139 = vadd.f32 0.0, %v8138
        %v8140 = vpop.f32.mrb[0].mxu0
        %8141 = vmatprep.mubr.f32.mxu0 0.0
        %8142 = vmatmul.mubr.f32.gmra.mrb[0].mxu0 %v7830
        %v8143 = vpop.f32.mrb[0].mxu0
        %v8144 = vadd.f32 0.0, %v8143
        %v8145 = vpop.f32.mrb[0].mxu0
        %8146 = vmatprep.mubr.f32.mxu0 0.0
        %8147 = vmatmul.mubr.f32.gmra.mrb[0].mxu0 %v7833
        %v8148 = vpop.f32.mrb[0].mxu0
        %v8149 = vadd.f32 0.0, %v8148
        %v8150 = vpop.f32.mrb[0].mxu0
        %8151 = vmatprep.mubr.f32.mxu0 0.0
        %8152 = vmatmul.mubr.f32.gmra.mrb[0].mxu0 %v7836
        %v8153 = vpop.f32.mrb[0].mxu0
        %v8154 = vadd.f32 0.0, %v8153
        %v8155 = vpop.f32.mrb[0].mxu0
        %8156 = vmatprep.mubr.f32.mxu0 0.0
        %8157 = vmatmul.mubr.f32.gmra.mrb[0].mxu0 %v7839
        %v8158 = vpop.f32.mrb[0].mxu0
        %v8159 = vadd.f32 0.0, %v8158
        %v8160 = vpop.f32.mrb[0].mxu0
        %8161 = vmatprep.mubr.f32.mxu0 0.0
        %8162 = vmatmul.mubr.f32.gmra.mrb[0].mxu0 %v7842
        %v8163 = vpop.f32.mrb[0].mxu0
        %v8164 = vadd.f32 0.0, %v8163
        %v8165 = vpop.f32.mrb[0].mxu0
        %8166 = vmatprep.mubr.f32.mxu0 0.0
        %8167 = vmatmul.mubr.f32.gmra.mrb[0].mxu0 %v7845
        %v8168 = vpop.f32.mrb[0].mxu0
        %v8169 = vadd.f32 0.0, %v8168
        %v8170 = vpop.f32.mrb[0].mxu0
        %8171 = vmatprep.mubr.f32.mxu0 0.0
        %8172 = vmatmul.mubr.f32.gmra.mrb[0].mxu0 %v7848
        %v8173 = vpop.f32.mrb[0].mxu0
        %v8174 = vadd.f32 0.0, %v8173
        %v8175 = vpop.f32.mrb[0].mxu0
        %8176 = vmatprep.mubr.f32.mxu0 0.0
        %8177 = vmatmul.mubr.f32.gmra.mrb[0].mxu0 %v7851
        %v8178 = vpop.f32.mrb[0].mxu0
        %v8179 = vadd.f32 0.0, %v8178
        %v8180 = vpop.f32.mrb[0].mxu0
        %8181 = vmatprep.mubr.f32.mxu0 0.0
        %8182 = vmatmul.mubr.f32.gmra.mrb[0].mxu0 %v7854
        %v8183 = vpop.f32.mrb[0].mxu0
        %v8184 = vadd.f32 0.0, %v8183
        %v8185 = vpop.f32.mrb[0].mxu0
        %8186 = vmatprep.mubr.f32.mxu0 0.0
        %8187 = vmatmul.mubr.f32.gmra.mrb[0].mxu0 %v7857
        %v8188 = vpop.f32.mrb[0].mxu0
        %v8189 = vadd.f32 0.0, %v8188
        %v8190 = vpop.f32.mrb[0].mxu0
        %8191 = vmatprep.mubr.f32.mxu0 0.0
        %8192 = vmatmul.mubr.f32.gmra.mrb[0].mxu0 %v7860
        %v8193 = vpop.f32.mrb[0].mxu0
        %v8194 = vadd.f32 0.0, %v8193
        %v8195 = vpop.f32.mrb[0].mxu0
        %8196 = vmatprep.mubr.f32.mxu0 0.0
        %8197 = vmatmul.mubr.f32.gmra.mrb[0].mxu0 %v7863
        %v8198 = vpop.f32.mrb[0].mxu0
        %v8199 = vadd.f32 0.0, %v8198
        %v8200 = vpop.f32.mrb[0].mxu0
        %8201 = vmatprep.mubr.f32.mxu0 0.0
        %8202 = vmatmul.mubr.f32.gmra.mrb[0].mxu0 %v7866
        %v8203 = vpop.f32.mrb[0].mxu0
        %v8204 = vadd.f32 0.0, %v8203
        %v8205 = vpop.f32.mrb[0].mxu0
        %8206 = vmatprep.mubr.f32.mxu0 0.0
        %8207 = vmatmul.mubr.f32.gmra.mrb[0].mxu0 %v7869
        %v8208 = vpop.f32.mrb[0].mxu0
        %v8209 = vadd.f32 0.0, %v8208
        %v8210 = vpop.f32.mrb[0].mxu0
        %8211 = vmatprep.mubr.f32.mxu0 0.0
        %8212 = vmatmul.mubr.f32.gmra.mrb[0].mxu0 %v7872
        %v8213 = vpop.f32.mrb[0].mxu0
        %v8214 = vadd.f32 0.0, %v8213
        %v8215 = vpop.f32.mrb[0].mxu0
        %8216 = vmatprep.mubr.f32.mxu0 0.0
        %8217 = vmatmul.mubr.f32.gmra.mrb[0].mxu0 %v7875
        %v8218 = vpop.f32.mrb[0].mxu0
        %v8219 = vadd.f32 0.0, %v8218
        %v8220 = vpop.f32.mrb[0].mxu0
        %8221 = vmatprep.mubr.f32.mxu0 0.0
        %8222 = vmatmul.mubr.f32.gmra.mrb[0].mxu0 %v7878
        %v8223 = vpop.f32.mrb[0].mxu0
        %v8224 = vadd.f32 0.0, %v8223
        %v8225 = vpop.f32.mrb[0].mxu0
        %8226 = vmatprep.mubr.f32.mxu0 0.0
        %8227 = vmatmul.mubr.f32.gmra.mrb[0].mxu0 %v7881
        %v8228 = vpop.f32.mrb[0].mxu0
        %v8229 = vadd.f32 0.0, %v8228
        %v8230 = vpop.f32.mrb[0].mxu0
        %8231 = vmatprep.mubr.f32.mxu0 0.0
        %8232 = vmatmul.mubr.f32.gmra.mrb[0].mxu0 %v7884
        %v8233 = vpop.f32.mrb[0].mxu0
        %v8234 = vadd.f32 0.0, %v8233
        %v8235 = vpop.f32.mrb[0].mxu0
        %8236 = vmatprep.mubr.f32.mxu0 0.0
        %8237 = vmatmul.mubr.f32.gmra.mrb[0].mxu0 %v7887
        %v8238 = vpop.f32.mrb[0].mxu0
        %v8239 = vadd.f32 0.0, %v8238
        %v8240 = vpop.f32.mrb[0].mxu0
        %8241 = vmatprep.mubr.f32.mxu0 0.0
        %8242 = vmatmul.mubr.f32.gmra.mrb[0].mxu0 %v7890
        %v8243 = vpop.f32.mrb[0].mxu0
        %v8244 = vadd.f32 0.0, %v8243
        %v8245 = vpop.f32.mrb[0].mxu0
        %8246 = vmatprep.mubr.f32.mxu0 0.0
        %8247 = vmatmul.mubr.f32.gmra.mrb[0].mxu0 %v7893
        %v8248 = vpop.f32.mrb[0].mxu0
        %v8249 = vadd.f32 0.0, %v8248
        %v8250 = vpop.f32.mrb[0].mxu0
        %8251 = vmatprep.mubr.f32.mxu0 0.0
        %8252 = vmatmul.mubr.f32.gmra.mrb[0].mxu0 %v7896
        %v8253 = vpop.f32.mrb[0].mxu0
        %v8254 = vadd.f32 0.0, %v8253
        %v8255 = vpop.f32.mrb[0].mxu0
        %8256 = vmatprep.mubr.f32.mxu0 0.0
        %8257 = vmatmul.mubr.f32.gmra.mrb[0].mxu0 %v7899
        %v8258 = vpop.f32.mrb[0].mxu0
        %v8259 = vadd.f32 0.0, %v8258
        %v8260 = vpop.f32.mrb[0].mxu0
        %8261 = vmatprep.mubr.f32.mxu0 0.0
        %8262 = vmatmul.mubr.f32.gmra.mrb[0].mxu0 %v7902
        %v8263 = vpop.f32.mrb[0].mxu0
        %v8264 = vadd.f32 0.0, %v8263
        %v8265 = vpop.f32.mrb[0].mxu0
        %8266 = vmatprep.mubr.f32.mxu0 0.0
        %8267 = vmatmul.mubr.f32.gmra.mrb[0].mxu0 %v7905
        %v8268 = vpop.f32.mrb[0].mxu0
        %v8269 = vadd.f32 0.0, %v8268
        %v8270 = vpop.f32.mrb[0].mxu0
        %8271 = vmatprep.mubr.f32.mxu0 0.0
        %8272 = vmatmul.mubr.f32.gmra.mrb[0].mxu0 %v7908
        %v8273 = vpop.f32.mrb[0].mxu0
        %v8274 = vadd.f32 0.0, %v8273
        %v8275 = vpop.f32.mrb[0].mxu0
        %8276 = vmatprep.mubr.f32.mxu0 0.0
        %8277 = vmatmul.mubr.f32.gmra.mrb[0].mxu0 %v7911
        %v8278 = vpop.f32.mrb[0].mxu0
        %v8279 = vadd.f32 0.0, %v8278
        %v8280 = vpop.f32.mrb[0].mxu0
        %8281 = vmatprep.mubr.f32.mxu0 0.0
        %8282 = vmatmul.mubr.f32.gmra.mrb[0].mxu0 %v7914
        %v8283 = vpop.f32.mrb[0].mxu0
        %v8284 = vadd.f32 0.0, %v8283
        %v8285 = vpop.f32.mrb[0].mxu0
        %8286 = vmatprep.mubr.f32.mxu0 0.0
        %8287 = vmatmul.mubr.f32.gmra.mrb[0].mxu0 %v7917
        %v8288 = vpop.f32.mrb[0].mxu0
        %v8289 = vadd.f32 0.0, %v8288
        %v8290 = vpop.f32.mrb[0].mxu0
        %8291 = vmatprep.mubr.f32.mxu0 0.0
        %8292 = vmatmul.mubr.f32.gmra.mrb[0].mxu0 %v7920
        %v8293 = vpop.f32.mrb[0].mxu0
        %v8294 = vadd.f32 0.0, %v8293
        %v8295 = vpop.f32.mrb[0].mxu0
        %8296 = vmatprep.mubr.f32.mxu0 0.0
        %8297 = vmatmul.mubr.f32.gmra.mrb[0].mxu0 %v7923
        %v8298 = vpop.f32.mrb[0].mxu0
        %v8299 = vadd.f32 0.0, %v8298
        %v8300 = vpop.f32.mrb[0].mxu0
        %8301 = vmatprep.mubr.f32.mxu0 0.0
        %8302 = vmatmul.mubr.f32.gmra.mrb[0].mxu0 %v7926
        %v8303 = vpop.f32.mrb[0].mxu0
        %v8304 = vadd.f32 0.0, %v8303
        %v8305 = vpop.f32.mrb[0].mxu0
        %8306 = vmatprep.mubr.f32.mxu0 0.0
        %8307 = vmatmul.mubr.f32.gmra.mrb[0].mxu0 %v7929
        %v8308 = vpop.f32.mrb[0].mxu0
        %v8309 = vadd.f32 0.0, %v8308
        %v8310 = vpop.f32.mrb[0].mxu0
        %8311 = vmatprep.mubr.f32.mxu0 0.0
        %8312 = vmatmul.mubr.f32.gmra.mrb[0].mxu0 %v7932
        %v8313 = vpop.f32.mrb[0].mxu0
        %v8314 = vadd.f32 0.0, %v8313
        %v8315 = vpop.f32.mrb[0].mxu0
        %8316 = vmatprep.mubr.f32.mxu0 0.0
        %8317 = vmatmul.mubr.f32.gmra.mrb[0].mxu0 %v7935
        %v8318 = vpop.f32.mrb[0].mxu0
        %v8319 = vadd.f32 0.0, %v8318
        %v8320 = vpop.f32.mrb[0].mxu0
        %8321 = vdwg.mxu0
        %v8322 = vadd.f32 %v6226, %v8004
        %v8323 = vadd.f32 %v6227, %v8009
        %v8324 = vadd.f32 %v6228, %v8014
        %v8325 = vadd.f32 %v6229, %v8019
        %v8326 = vadd.f32 %v6230, %v8024
        %v8327 = vadd.f32 %v6231, %v8029
        %v8328 = vadd.f32 %v6232, %v8034
        %v8329 = vadd.f32 %v6233, %v8039
        %v8330 = vadd.f32 %v6234, %v8044
        %v8331 = vadd.f32 %v6235, %v8049
        %v8332 = vadd.f32 %v6236, %v8054
        %v8333 = vadd.f32 %v6237, %v8059
        %v8334 = vadd.f32 %v6238, %v8064
        %v8335 = vadd.f32 %v6239, %v8069
        %v8336 = vadd.f32 %v6240, %v8074
        %v8337 = vadd.f32 %v6241, %v8079
        %v8338 = vadd.f32 %v6242, %v8084
        %v8339 = vadd.f32 %v6243, %v8089
        %v8340 = vadd.f32 %v6244, %v8094
        %v8341 = vadd.f32 %v6245, %v8099
        %v8342 = vadd.f32 %v6246, %v8104
        %v8343 = vadd.f32 %v6247, %v8109
        %v8344 = vadd.f32 %v6248, %v8114
        %v8345 = vadd.f32 %v6249, %v8119
        %v8346 = vadd.f32 %v6250, %v8124
        %v8347 = vadd.f32 %v6251, %v8129
        %v8348 = vadd.f32 %v6252, %v8134
        %v8349 = vadd.f32 %v6253, %v8139
        %v8350 = vadd.f32 %v6254, %v8144
        %v8351 = vadd.f32 %v6255, %v8149
        %v8352 = vadd.f32 %v6256, %v8154
        %v8353 = vadd.f32 %v6257, %v8159
        %v8354 = vadd.f32 %v6258, %v8164
        %v8355 = vadd.f32 %v6259, %v8169
        %v8356 = vadd.f32 %v6260, %v8174
        %v8357 = vadd.f32 %v6261, %v8179
        %v8358 = vadd.f32 %v6262, %v8184
        %v8359 = vadd.f32 %v6263, %v8189
        %v8360 = vadd.f32 %v6264, %v8194
        %v8361 = vadd.f32 %v6265, %v8199
        %v8362 = vadd.f32 %v6266, %v8204
        %v8363 = vadd.f32 %v6267, %v8209
        %v8364 = vadd.f32 %v6268, %v8214
        %v8365 = vadd.f32 %v6269, %v8219
        %v8366 = vadd.f32 %v6270, %v8224
        %v8367 = vadd.f32 %v6271, %v8229
        %v8368 = vadd.f32 %v6272, %v8234
        %v8369 = vadd.f32 %v6273, %v8239
        %v8370 = vadd.f32 %v6274, %v8244
        %v8371 = vadd.f32 %v6275, %v8249
        %v8372 = vadd.f32 %v6276, %v8254
        %v8373 = vadd.f32 %v6277, %v8259
        %v8374 = vadd.f32 %v6278, %v8264
        %v8375 = vadd.f32 %v6279, %v8269
        %v8376 = vadd.f32 %v6280, %v8274
        %v8377 = vadd.f32 %v6281, %v8279
        %v8378 = vadd.f32 %v6282, %v8284
        %v8379 = vadd.f32 %v6283, %v8289
        %v8380 = vadd.f32 %v6284, %v8294
        %v8381 = vadd.f32 %v6285, %v8299
        %v8382 = vadd.f32 %v6286, %v8304
        %v8383 = vadd.f32 %v6287, %v8309
        %v8384 = vadd.f32 %v6288, %v8314
        %v8385 = vadd.f32 %v6289, %v8319
        %v8386 = vld [vmem:[%s9] sm:$0xf]
        %v8389 = vunpack.c.l.s4 1966171168
        %v8390 = vunpack.c.0.s8 %v8389
        %v8391 = vlaneseq
        %v8392 = vshrl.u32 %v8391, 7
        %v8393 = vsub.s32 %v8390, %v8392
        %v8394 = vrot.slane %v8386, %v8393
        %v8395 = vcombine.high %v8394, %v8394
        %v8397 = vunpack.c.l.s4 1966171168
        %v8398 = vunpack.c.0.s8 %v8397
        %v8399 = vlaneseq
        %v8400 = vshrl.u32 %v8399, 7
        %v8401 = vsub.s32 %v8398, %v8400
        %v8402 = vrot.slane %v8394, %v8401
        %v8404 = vunpack.c.l.s4 1966171168
        %v8405 = vunpack.c.0.s8 %v8404
        %v8406 = vlaneseq
        %v8407 = vshrl.u32 %v8406, 7
        %v8408 = vsub.s32 %v8405, %v8407
        %v8409 = vrot.slane %v8395, %v8408
        %v8410 = vcombine.high %v8402, %v8402
        %v8411 = vcombine.high %v8409, %v8409
        %v8412 = vlaneseq
        %v8413 = vshrl.u32 %v8412, 7
        %v8414 = vsub.s32 0, %v8413
        %v8415 = vrot.slane %v8402, %v8414
        %v8416 = vlaneseq
        %v8417 = vshrl.u32 %v8416, 7
        %v8418 = vsub.s32 0, %v8417
        %v8419 = vrot.slane %v8409, %v8418
        %v8420 = vlaneseq
        %v8421 = vshrl.u32 %v8420, 7
        %v8422 = vsub.s32 0, %v8421
        %v8423 = vrot.slane %v8410, %v8422
        %v8424 = vlaneseq
        %v8425 = vshrl.u32 %v8424, 7
        %v8426 = vsub.s32 0, %v8425
        %v8427 = vrot.slane %v8411, %v8426
        %v8432 = vmul.f32 %v1351, %v8415
        %v8433 = vmul.f32 %v1352, %v8415
        %v8434 = vmul.f32 %v1353, %v8415
        %v8435 = vmul.f32 %v1354, %v8415
        %v8436 = vmul.f32 %v1355, %v8415
        %v8437 = vmul.f32 %v1356, %v8415
        %v8438 = vmul.f32 %v1357, %v8415
        %v8439 = vmul.f32 %v1358, %v8415
        %v8440 = vmul.f32 %v1359, %v8415
        %v8441 = vmul.f32 %v1360, %v8415
        %v8442 = vmul.f32 %v1361, %v8415
        %v8443 = vmul.f32 %v1362, %v8415
        %v8444 = vmul.f32 %v1363, %v8415
        %v8445 = vmul.f32 %v1364, %v8415
        %v8446 = vmul.f32 %v1365, %v8415
        %v8447 = vmul.f32 %v1366, %v8415
        %v8448 = vmul.f32 %v1367, %v8419
        %v8449 = vmul.f32 %v1368, %v8419
        %v8450 = vmul.f32 %v1369, %v8419
        %v8451 = vmul.f32 %v1370, %v8419
        %v8452 = vmul.f32 %v1371, %v8419
        %v8453 = vmul.f32 %v1372, %v8419
        %v8454 = vmul.f32 %v1373, %v8419
        %v8455 = vmul.f32 %v1374, %v8419
        %v8456 = vmul.f32 %v1375, %v8419
        %v8457 = vmul.f32 %v1376, %v8419
        %v8458 = vmul.f32 %v1377, %v8419
        %v8459 = vmul.f32 %v1378, %v8419
        %v8460 = vmul.f32 %v1379, %v8419
        %v8461 = vmul.f32 %v1380, %v8419
        %v8462 = vmul.f32 %v1381, %v8419
        %v8463 = vmul.f32 %v1382, %v8419
        %v8464 = vmul.f32 %v1383, %v8423
        %v8465 = vmul.f32 %v1384, %v8423
        %v8466 = vmul.f32 %v1385, %v8423
        %v8467 = vmul.f32 %v1386, %v8423
        %v8468 = vmul.f32 %v1387, %v8423
        %v8469 = vmul.f32 %v1388, %v8423
        %v8470 = vmul.f32 %v1389, %v8423
        %v8471 = vmul.f32 %v1390, %v8423
        %v8472 = vmul.f32 %v1391, %v8423
        %v8473 = vmul.f32 %v1392, %v8423
        %v8474 = vmul.f32 %v1393, %v8423
        %v8475 = vmul.f32 %v1394, %v8423
        %v8476 = vmul.f32 %v1395, %v8423
        %v8477 = vmul.f32 %v1396, %v8423
        %v8478 = vmul.f32 %v1397, %v8423
        %v8479 = vmul.f32 %v1398, %v8423
        %v8480 = vmul.f32 %v1399, %v8427
        %v8481 = vmul.f32 %v1400, %v8427
        %v8482 = vmul.f32 %v1401, %v8427
        %v8483 = vmul.f32 %v1402, %v8427
        %v8484 = vmul.f32 %v1403, %v8427
        %v8485 = vmul.f32 %v1404, %v8427
        %v8486 = vmul.f32 %v1405, %v8427
        %v8487 = vmul.f32 %v1406, %v8427
        %v8488 = vmul.f32 %v1407, %v8427
        %v8489 = vmul.f32 %v1408, %v8427
        %v8490 = vmul.f32 %v1409, %v8427
        %v8491 = vmul.f32 %v1410, %v8427
        %v8492 = vmul.f32 %v1411, %v8427
        %v8493 = vmul.f32 %v1412, %v8427
        %v8494 = vmul.f32 %v1413, %v8427
        %v8495 = vmul.f32 %v1414, %v8427
        %v8496 = vld [vmem:[%s10] sm:$0xff]
        %v8497 = vld [vmem:[%s10 + $0x8] sm:$0xff]
        %v8498 = vld [vmem:[%s10 + $0x10] sm:$0xff]
        %v8499 = vld [vmem:[%s10 + $0x18] sm:$0xff]
        %v8500 = vld [vmem:[%s10 + $0x20] sm:$0xff]
        %v8501 = vld [vmem:[%s10 + $0x28] sm:$0xff]
        %v8502 = vld [vmem:[%s10 + $0x30] sm:$0xff]
        %v8503 = vld [vmem:[%s10 + $0x38] sm:$0xff]
        %v8504 = vld [vmem:[%s10 + $0x40] sm:$0xf]
        %v8506 = vsel %vm1431, %v8432, 0
        %v8509 = vsel %vm1431, %v8433, 0
        %v8512 = vsel %vm1431, %v8434, 0
        %v8515 = vsel %vm1431, %v8435, 0
        %v8518 = vsel %vm1431, %v8436, 0
        %v8521 = vsel %vm1431, %v8437, 0
        %v8524 = vsel %vm1431, %v8438, 0
        %v8527 = vsel %vm1431, %v8439, 0
        %v8530 = vsel %vm1431, %v8440, 0
        %v8533 = vsel %vm1431, %v8441, 0
        %v8536 = vsel %vm1431, %v8442, 0
        %v8539 = vsel %vm1431, %v8443, 0
        %v8542 = vsel %vm1431, %v8444, 0
        %v8545 = vsel %vm1431, %v8445, 0
        %v8548 = vsel %vm1431, %v8446, 0
        %v8551 = vsel %vm1431, %v8447, 0
        %v8554 = vsel %vm1431, %v8448, 0
        %v8557 = vsel %vm1431, %v8449, 0
        %v8560 = vsel %vm1431, %v8450, 0
        %v8563 = vsel %vm1431, %v8451, 0
        %v8566 = vsel %vm1431, %v8452, 0
        %v8569 = vsel %vm1431, %v8453, 0
        %v8572 = vsel %vm1431, %v8454, 0
        %v8575 = vsel %vm1431, %v8455, 0
        %v8578 = vsel %vm1431, %v8456, 0
        %v8581 = vsel %vm1431, %v8457, 0
        %v8584 = vsel %vm1431, %v8458, 0
        %v8587 = vsel %vm1431, %v8459, 0
        %v8590 = vsel %vm1431, %v8460, 0
        %v8593 = vsel %vm1431, %v8461, 0
        %v8596 = vsel %vm1431, %v8462, 0
        %v8599 = vsel %vm1431, %v8463, 0
        %v8602 = vsel %vm1431, %v8464, 0
        %v8605 = vsel %vm1431, %v8465, 0
        %v8608 = vsel %vm1431, %v8466, 0
        %v8611 = vsel %vm1431, %v8467, 0
        %v8614 = vsel %vm1431, %v8468, 0
        %v8617 = vsel %vm1431, %v8469, 0
        %v8620 = vsel %vm1431, %v8470, 0
        %v8623 = vsel %vm1431, %v8471, 0
        %v8626 = vsel %vm1431, %v8472, 0
        %v8629 = vsel %vm1431, %v8473, 0
        %v8632 = vsel %vm1431, %v8474, 0
        %v8635 = vsel %vm1431, %v8475, 0
        %v8638 = vsel %vm1431, %v8476, 0
        %v8641 = vsel %vm1431, %v8477, 0
        %v8644 = vsel %vm1431, %v8478, 0
        %v8647 = vsel %vm1431, %v8479, 0
        %v8650 = vsel %vm1431, %v8480, 0
        %v8653 = vsel %vm1431, %v8481, 0
        %v8656 = vsel %vm1431, %v8482, 0
        %v8659 = vsel %vm1431, %v8483, 0
        %v8662 = vsel %vm1431, %v8484, 0
        %v8665 = vsel %vm1431, %v8485, 0
        %v8668 = vsel %vm1431, %v8486, 0
        %v8671 = vsel %vm1431, %v8487, 0
        %v8674 = vsel %vm1431, %v8488, 0
        %v8677 = vsel %vm1431, %v8489, 0
        %v8680 = vsel %vm1431, %v8490, 0
        %v8683 = vsel %vm1431, %v8491, 0
        %v8686 = vsel %vm1431, %v8492, 0
        %v8689 = vsel %vm1431, %v8493, 0
        %v8692 = vsel %vm1431, %v8494, 0
        %v8695 = vsel %vm1431, %v8495, 0
        %v8698 = vsel %vm962, %v8504, 0
        %8700 = vmatprep.subr.mxu0 0.0
        %8701 = vmatpush1.msra.mxu0 %v8496
        %8702 = vmatprep.subr.mxu0 0.0
        %8703 = vmatpush1.msra.mxu0 %v8497
        %8704 = vmatprep.subr.mxu0 0.0
        %8705 = vmatpush1.msra.mxu0 %v8498
        %8706 = vmatprep.subr.mxu0 0.0
        %8707 = vmatpush1.msra.mxu0 %v8499
        %8708 = vmatprep.subr.mxu0 0.0
        %8709 = vmatpush1.msra.mxu0 %v8500
        %8710 = vmatprep.subr.mxu0 0.0
        %8711 = vmatpush1.msra.mxu0 %v8501
        %8712 = vmatprep.subr.mxu0 0.0
        %8713 = vmatpush1.msra.mxu0 %v8502
        %8714 = vmatprep.subr.mxu0 0.0
        %8715 = vmatpush1.msra.mxu0 %v8503
        %8716 = vmatprep.subr.mxu0 0.0
        %8717 = vmatpush1.msra.mxu0 %v8698
        %8718 = vmatprep.subr.mxu0 0.0
        %8719 = vmatpush1.msra.mxu0 0.0
        %8720 = vmatprep.subr.mxu0 0.0
        %8721 = vmatpush1.msra.mxu0 0.0
        %8722 = vmatprep.subr.mxu0 0.0
        %8723 = vmatpush1.msra.mxu0 0.0
        %8724 = vmatprep.subr.mxu0 0.0
        %8725 = vmatpush1.msra.mxu0 0.0
        %8726 = vmatprep.subr.mxu0 0.0
        %8727 = vmatpush1.msra.mxu0 0.0
        %8728 = vmatprep.subr.mxu0 0.0
        %8729 = vmatpush1.msra.mxu0 0.0
        %8730 = vmatprep.subr.mxu0 0.0
        %8731 = vmatpush1.msra.mxu0 0.0
        %8732 = vmatprep.subr.mxu0 0.0
        %8733 = vmatpush1.msra.mxu0 0.0
        %8734 = vmatprep.subr.mxu0 0.0
        %8735 = vmatpush1.msra.mxu0 0.0
        %8736 = vmatprep.subr.mxu0 0.0
        %8737 = vmatpush1.msra.mxu0 0.0
        %8738 = vmatprep.subr.mxu0 0.0
        %8739 = vmatpush1.msra.mxu0 0.0
        %8740 = vmatprep.subr.mxu0 0.0
        %8741 = vmatpush1.msra.mxu0 0.0
        %8742 = vmatprep.subr.mxu0 0.0
        %8743 = vmatpush1.msra.mxu0 0.0
        %8744 = vmatprep.subr.mxu0 0.0
        %8745 = vmatpush1.msra.mxu0 0.0
        %8746 = vmatprep.subr.mxu0 0.0
        %8747 = vmatpush1.msra.mxu0 0.0
        %8748 = vmatprep.subr.mxu0 0.0
        %8749 = vmatpush1.msra.mxu0 0.0
        %8750 = vmatprep.subr.mxu0 0.0
        %8751 = vmatpush1.msra.mxu0 0.0
        %8752 = vmatprep.subr.mxu0 0.0
        %8753 = vmatpush1.msra.mxu0 0.0
        %8754 = vmatprep.subr.mxu0 0.0
        %8755 = vmatpush1.msra.mxu0 0.0
        %8756 = vmatprep.subr.mxu0 0.0
        %8757 = vmatpush1.msra.mxu0 0.0
        %8758 = vmatprep.subr.mxu0 0.0
        %8759 = vmatpush1.msra.mxu0 0.0
        %8760 = vmatprep.subr.mxu0 0.0
        %8761 = vmatpush1.msra.mxu0 0.0
        %8762 = vmatprep.subr.mxu0 0.0
        %8763 = vmatpush1.msra.mxu0 0.0
        %8764 = vmatprep.mubr.f32.mxu0 0.0
        %8765 = vmatmul.mubr.f32.gmra.mrb[0].mxu0 %v8506
        %v8766 = vpop.f32.mrb[0].mxu0
        %v8767 = vadd.f32 0.0, %v8766
        %v8768 = vpop.f32.mrb[0].mxu0
        %8769 = vmatprep.mubr.f32.mxu0 0.0
        %8770 = vmatmul.mubr.f32.gmra.mrb[0].mxu0 %v8509
        %v8771 = vpop.f32.mrb[0].mxu0
        %v8772 = vadd.f32 0.0, %v8771
        %v8773 = vpop.f32.mrb[0].mxu0
        %8774 = vmatprep.mubr.f32.mxu0 0.0
        %8775 = vmatmul.mubr.f32.gmra.mrb[0].mxu0 %v8512
        %v8776 = vpop.f32.mrb[0].mxu0
        %v8777 = vadd.f32 0.0, %v8776
        %v8778 = vpop.f32.mrb[0].mxu0
        %8779 = vmatprep.mubr.f32.mxu0 0.0
        %8780 = vmatmul.mubr.f32.gmra.mrb[0].mxu0 %v8515
        %v8781 = vpop.f32.mrb[0].mxu0
        %v8782 = vadd.f32 0.0, %v8781
        %v8783 = vpop.f32.mrb[0].mxu0
        %8784 = vmatprep.mubr.f32.mxu0 0.0
        %8785 = vmatmul.mubr.f32.gmra.mrb[0].mxu0 %v8518
        %v8786 = vpop.f32.mrb[0].mxu0
        %v8787 = vadd.f32 0.0, %v8786
        %v8788 = vpop.f32.mrb[0].mxu0
        %8789 = vmatprep.mubr.f32.mxu0 0.0
        %8790 = vmatmul.mubr.f32.gmra.mrb[0].mxu0 %v8521
        %v8791 = vpop.f32.mrb[0].mxu0
        %v8792 = vadd.f32 0.0, %v8791
        %v8793 = vpop.f32.mrb[0].mxu0
        %8794 = vmatprep.mubr.f32.mxu0 0.0
        %8795 = vmatmul.mubr.f32.gmra.mrb[0].mxu0 %v8524
        %v8796 = vpop.f32.mrb[0].mxu0
        %v8797 = vadd.f32 0.0, %v8796
        %v8798 = vpop.f32.mrb[0].mxu0
        %8799 = vmatprep.mubr.f32.mxu0 0.0
        %8800 = vmatmul.mubr.f32.gmra.mrb[0].mxu0 %v8527
        %v8801 = vpop.f32.mrb[0].mxu0
        %v8802 = vadd.f32 0.0, %v8801
        %v8803 = vpop.f32.mrb[0].mxu0
        %8804 = vmatprep.mubr.f32.mxu0 0.0
        %8805 = vmatmul.mubr.f32.gmra.mrb[0].mxu0 %v8530
        %v8806 = vpop.f32.mrb[0].mxu0
        %v8807 = vadd.f32 0.0, %v8806
        %v8808 = vpop.f32.mrb[0].mxu0
        %8809 = vmatprep.mubr.f32.mxu0 0.0
        %8810 = vmatmul.mubr.f32.gmra.mrb[0].mxu0 %v8533
        %v8811 = vpop.f32.mrb[0].mxu0
        %v8812 = vadd.f32 0.0, %v8811
        %v8813 = vpop.f32.mrb[0].mxu0
        %8814 = vmatprep.mubr.f32.mxu0 0.0
        %8815 = vmatmul.mubr.f32.gmra.mrb[0].mxu0 %v8536
        %v8816 = vpop.f32.mrb[0].mxu0
        %v8817 = vadd.f32 0.0, %v8816
        %v8818 = vpop.f32.mrb[0].mxu0
        %8819 = vmatprep.mubr.f32.mxu0 0.0
        %8820 = vmatmul.mubr.f32.gmra.mrb[0].mxu0 %v8539
        %v8821 = vpop.f32.mrb[0].mxu0
        %v8822 = vadd.f32 0.0, %v8821
        %v8823 = vpop.f32.mrb[0].mxu0
        %8824 = vmatprep.mubr.f32.mxu0 0.0
        %8825 = vmatmul.mubr.f32.gmra.mrb[0].mxu0 %v8542
        %v8826 = vpop.f32.mrb[0].mxu0
        %v8827 = vadd.f32 0.0, %v8826
        %v8828 = vpop.f32.mrb[0].mxu0
        %8829 = vmatprep.mubr.f32.mxu0 0.0
        %8830 = vmatmul.mubr.f32.gmra.mrb[0].mxu0 %v8545
        %v8831 = vpop.f32.mrb[0].mxu0
        %v8832 = vadd.f32 0.0, %v8831
        %v8833 = vpop.f32.mrb[0].mxu0
        %8834 = vmatprep.mubr.f32.mxu0 0.0
        %8835 = vmatmul.mubr.f32.gmra.mrb[0].mxu0 %v8548
        %v8836 = vpop.f32.mrb[0].mxu0
        %v8837 = vadd.f32 0.0, %v8836
        %v8838 = vpop.f32.mrb[0].mxu0
        %8839 = vmatprep.mubr.f32.mxu0 0.0
        %8840 = vmatmul.mubr.f32.gmra.mrb[0].mxu0 %v8551
        %v8841 = vpop.f32.mrb[0].mxu0
        %v8842 = vadd.f32 0.0, %v8841
        %v8843 = vpop.f32.mrb[0].mxu0
        %8844 = vmatprep.mubr.f32.mxu0 0.0
        %8845 = vmatmul.mubr.f32.gmra.mrb[0].mxu0 %v8554
        %v8846 = vpop.f32.mrb[0].mxu0
        %v8847 = vadd.f32 0.0, %v8846
        %v8848 = vpop.f32.mrb[0].mxu0
        %8849 = vmatprep.mubr.f32.mxu0 0.0
        %8850 = vmatmul.mubr.f32.gmra.mrb[0].mxu0 %v8557
        %v8851 = vpop.f32.mrb[0].mxu0
        %v8852 = vadd.f32 0.0, %v8851
        %v8853 = vpop.f32.mrb[0].mxu0
        %8854 = vmatprep.mubr.f32.mxu0 0.0
        %8855 = vmatmul.mubr.f32.gmra.mrb[0].mxu0 %v8560
        %v8856 = vpop.f32.mrb[0].mxu0
        %v8857 = vadd.f32 0.0, %v8856
        %v8858 = vpop.f32.mrb[0].mxu0
        %8859 = vmatprep.mubr.f32.mxu0 0.0
        %8860 = vmatmul.mubr.f32.gmra.mrb[0].mxu0 %v8563
        %v8861 = vpop.f32.mrb[0].mxu0
        %v8862 = vadd.f32 0.0, %v8861
        %v8863 = vpop.f32.mrb[0].mxu0
        %8864 = vmatprep.mubr.f32.mxu0 0.0
        %8865 = vmatmul.mubr.f32.gmra.mrb[0].mxu0 %v8566
        %v8866 = vpop.f32.mrb[0].mxu0
        %v8867 = vadd.f32 0.0, %v8866
        %v8868 = vpop.f32.mrb[0].mxu0
        %8869 = vmatprep.mubr.f32.mxu0 0.0
        %8870 = vmatmul.mubr.f32.gmra.mrb[0].mxu0 %v8569
        %v8871 = vpop.f32.mrb[0].mxu0
        %v8872 = vadd.f32 0.0, %v8871
        %v8873 = vpop.f32.mrb[0].mxu0
        %8874 = vmatprep.mubr.f32.mxu0 0.0
        %8875 = vmatmul.mubr.f32.gmra.mrb[0].mxu0 %v8572
        %v8876 = vpop.f32.mrb[0].mxu0
        %v8877 = vadd.f32 0.0, %v8876
        %v8878 = vpop.f32.mrb[0].mxu0
        %8879 = vmatprep.mubr.f32.mxu0 0.0
        %8880 = vmatmul.mubr.f32.gmra.mrb[0].mxu0 %v8575
        %v8881 = vpop.f32.mrb[0].mxu0
        %v8882 = vadd.f32 0.0, %v8881
        %v8883 = vpop.f32.mrb[0].mxu0
        %8884 = vmatprep.mubr.f32.mxu0 0.0
        %8885 = vmatmul.mubr.f32.gmra.mrb[0].mxu0 %v8578
        %v8886 = vpop.f32.mrb[0].mxu0
        %v8887 = vadd.f32 0.0, %v8886
        %v8888 = vpop.f32.mrb[0].mxu0
        %8889 = vmatprep.mubr.f32.mxu0 0.0
        %8890 = vmatmul.mubr.f32.gmra.mrb[0].mxu0 %v8581
        %v8891 = vpop.f32.mrb[0].mxu0
        %v8892 = vadd.f32 0.0, %v8891
        %v8893 = vpop.f32.mrb[0].mxu0
        %8894 = vmatprep.mubr.f32.mxu0 0.0
        %8895 = vmatmul.mubr.f32.gmra.mrb[0].mxu0 %v8584
        %v8896 = vpop.f32.mrb[0].mxu0
        %v8897 = vadd.f32 0.0, %v8896
        %v8898 = vpop.f32.mrb[0].mxu0
        %8899 = vmatprep.mubr.f32.mxu0 0.0
        %8900 = vmatmul.mubr.f32.gmra.mrb[0].mxu0 %v8587
        %v8901 = vpop.f32.mrb[0].mxu0
        %v8902 = vadd.f32 0.0, %v8901
        %v8903 = vpop.f32.mrb[0].mxu0
        %8904 = vmatprep.mubr.f32.mxu0 0.0
        %8905 = vmatmul.mubr.f32.gmra.mrb[0].mxu0 %v8590
        %v8906 = vpop.f32.mrb[0].mxu0
        %v8907 = vadd.f32 0.0, %v8906
        %v8908 = vpop.f32.mrb[0].mxu0
        %8909 = vmatprep.mubr.f32.mxu0 0.0
        %8910 = vmatmul.mubr.f32.gmra.mrb[0].mxu0 %v8593
        %v8911 = vpop.f32.mrb[0].mxu0
        %v8912 = vadd.f32 0.0, %v8911
        %v8913 = vpop.f32.mrb[0].mxu0
        %8914 = vmatprep.mubr.f32.mxu0 0.0
        %8915 = vmatmul.mubr.f32.gmra.mrb[0].mxu0 %v8596
        %v8916 = vpop.f32.mrb[0].mxu0
        %v8917 = vadd.f32 0.0, %v8916
        %v8918 = vpop.f32.mrb[0].mxu0
        %8919 = vmatprep.mubr.f32.mxu0 0.0
        %8920 = vmatmul.mubr.f32.gmra.mrb[0].mxu0 %v8599
        %v8921 = vpop.f32.mrb[0].mxu0
        %v8922 = vadd.f32 0.0, %v8921
        %v8923 = vpop.f32.mrb[0].mxu0
        %8924 = vmatprep.mubr.f32.mxu0 0.0
        %8925 = vmatmul.mubr.f32.gmra.mrb[0].mxu0 %v8602
        %v8926 = vpop.f32.mrb[0].mxu0
        %v8927 = vadd.f32 0.0, %v8926
        %v8928 = vpop.f32.mrb[0].mxu0
        %8929 = vmatprep.mubr.f32.mxu0 0.0
        %8930 = vmatmul.mubr.f32.gmra.mrb[0].mxu0 %v8605
        %v8931 = vpop.f32.mrb[0].mxu0
        %v8932 = vadd.f32 0.0, %v8931
        %v8933 = vpop.f32.mrb[0].mxu0
        %8934 = vmatprep.mubr.f32.mxu0 0.0
        %8935 = vmatmul.mubr.f32.gmra.mrb[0].mxu0 %v8608
        %v8936 = vpop.f32.mrb[0].mxu0
        %v8937 = vadd.f32 0.0, %v8936
        %v8938 = vpop.f32.mrb[0].mxu0
        %8939 = vmatprep.mubr.f32.mxu0 0.0
        %8940 = vmatmul.mubr.f32.gmra.mrb[0].mxu0 %v8611
        %v8941 = vpop.f32.mrb[0].mxu0
        %v8942 = vadd.f32 0.0, %v8941
        %v8943 = vpop.f32.mrb[0].mxu0
        %8944 = vmatprep.mubr.f32.mxu0 0.0
        %8945 = vmatmul.mubr.f32.gmra.mrb[0].mxu0 %v8614
        %v8946 = vpop.f32.mrb[0].mxu0
        %v8947 = vadd.f32 0.0, %v8946
        %v8948 = vpop.f32.mrb[0].mxu0
        %8949 = vmatprep.mubr.f32.mxu0 0.0
        %8950 = vmatmul.mubr.f32.gmra.mrb[0].mxu0 %v8617
        %v8951 = vpop.f32.mrb[0].mxu0
        %v8952 = vadd.f32 0.0, %v8951
        %v8953 = vpop.f32.mrb[0].mxu0
        %8954 = vmatprep.mubr.f32.mxu0 0.0
        %8955 = vmatmul.mubr.f32.gmra.mrb[0].mxu0 %v8620
        %v8956 = vpop.f32.mrb[0].mxu0
        %v8957 = vadd.f32 0.0, %v8956
        %v8958 = vpop.f32.mrb[0].mxu0
        %8959 = vmatprep.mubr.f32.mxu0 0.0
        %8960 = vmatmul.mubr.f32.gmra.mrb[0].mxu0 %v8623
        %v8961 = vpop.f32.mrb[0].mxu0
        %v8962 = vadd.f32 0.0, %v8961
        %v8963 = vpop.f32.mrb[0].mxu0
        %8964 = vmatprep.mubr.f32.mxu0 0.0
        %8965 = vmatmul.mubr.f32.gmra.mrb[0].mxu0 %v8626
        %v8966 = vpop.f32.mrb[0].mxu0
        %v8967 = vadd.f32 0.0, %v8966
        %v8968 = vpop.f32.mrb[0].mxu0
        %8969 = vmatprep.mubr.f32.mxu0 0.0
        %8970 = vmatmul.mubr.f32.gmra.mrb[0].mxu0 %v8629
        %v8971 = vpop.f32.mrb[0].mxu0
        %v8972 = vadd.f32 0.0, %v8971
        %v8973 = vpop.f32.mrb[0].mxu0
        %8974 = vmatprep.mubr.f32.mxu0 0.0
        %8975 = vmatmul.mubr.f32.gmra.mrb[0].mxu0 %v8632
        %v8976 = vpop.f32.mrb[0].mxu0
        %v8977 = vadd.f32 0.0, %v8976
        %v8978 = vpop.f32.mrb[0].mxu0
        %8979 = vmatprep.mubr.f32.mxu0 0.0
        %8980 = vmatmul.mubr.f32.gmra.mrb[0].mxu0 %v8635
        %v8981 = vpop.f32.mrb[0].mxu0
        %v8982 = vadd.f32 0.0, %v8981
        %v8983 = vpop.f32.mrb[0].mxu0
        %8984 = vmatprep.mubr.f32.mxu0 0.0
        %8985 = vmatmul.mubr.f32.gmra.mrb[0].mxu0 %v8638
        %v8986 = vpop.f32.mrb[0].mxu0
        %v8987 = vadd.f32 0.0, %v8986
        %v8988 = vpop.f32.mrb[0].mxu0
        %8989 = vmatprep.mubr.f32.mxu0 0.0
        %8990 = vmatmul.mubr.f32.gmra.mrb[0].mxu0 %v8641
        %v8991 = vpop.f32.mrb[0].mxu0
        %v8992 = vadd.f32 0.0, %v8991
        %v8993 = vpop.f32.mrb[0].mxu0
        %8994 = vmatprep.mubr.f32.mxu0 0.0
        %8995 = vmatmul.mubr.f32.gmra.mrb[0].mxu0 %v8644
        %v8996 = vpop.f32.mrb[0].mxu0
        %v8997 = vadd.f32 0.0, %v8996
        %v8998 = vpop.f32.mrb[0].mxu0
        %8999 = vmatprep.mubr.f32.mxu0 0.0
        %9000 = vmatmul.mubr.f32.gmra.mrb[0].mxu0 %v8647
        %v9001 = vpop.f32.mrb[0].mxu0
        %v9002 = vadd.f32 0.0, %v9001
        %v9003 = vpop.f32.mrb[0].mxu0
        %9004 = vmatprep.mubr.f32.mxu0 0.0
        %9005 = vmatmul.mubr.f32.gmra.mrb[0].mxu0 %v8650
        %v9006 = vpop.f32.mrb[0].mxu0
        %v9007 = vadd.f32 0.0, %v9006
        %v9008 = vpop.f32.mrb[0].mxu0
        %9009 = vmatprep.mubr.f32.mxu0 0.0
        %9010 = vmatmul.mubr.f32.gmra.mrb[0].mxu0 %v8653
        %v9011 = vpop.f32.mrb[0].mxu0
        %v9012 = vadd.f32 0.0, %v9011
        %v9013 = vpop.f32.mrb[0].mxu0
        %9014 = vmatprep.mubr.f32.mxu0 0.0
        %9015 = vmatmul.mubr.f32.gmra.mrb[0].mxu0 %v8656
        %v9016 = vpop.f32.mrb[0].mxu0
        %v9017 = vadd.f32 0.0, %v9016
        %v9018 = vpop.f32.mrb[0].mxu0
        %9019 = vmatprep.mubr.f32.mxu0 0.0
        %9020 = vmatmul.mubr.f32.gmra.mrb[0].mxu0 %v8659
        %v9021 = vpop.f32.mrb[0].mxu0
        %v9022 = vadd.f32 0.0, %v9021
        %v9023 = vpop.f32.mrb[0].mxu0
        %9024 = vmatprep.mubr.f32.mxu0 0.0
        %9025 = vmatmul.mubr.f32.gmra.mrb[0].mxu0 %v8662
        %v9026 = vpop.f32.mrb[0].mxu0
        %v9027 = vadd.f32 0.0, %v9026
        %v9028 = vpop.f32.mrb[0].mxu0
        %9029 = vmatprep.mubr.f32.mxu0 0.0
        %9030 = vmatmul.mubr.f32.gmra.mrb[0].mxu0 %v8665
        %v9031 = vpop.f32.mrb[0].mxu0
        %v9032 = vadd.f32 0.0, %v9031
        %v9033 = vpop.f32.mrb[0].mxu0
        %9034 = vmatprep.mubr.f32.mxu0 0.0
        %9035 = vmatmul.mubr.f32.gmra.mrb[0].mxu0 %v8668
        %v9036 = vpop.f32.mrb[0].mxu0
        %v9037 = vadd.f32 0.0, %v9036
        %v9038 = vpop.f32.mrb[0].mxu0
        %9039 = vmatprep.mubr.f32.mxu0 0.0
        %9040 = vmatmul.mubr.f32.gmra.mrb[0].mxu0 %v8671
        %v9041 = vpop.f32.mrb[0].mxu0
        %v9042 = vadd.f32 0.0, %v9041
        %v9043 = vpop.f32.mrb[0].mxu0
        %9044 = vmatprep.mubr.f32.mxu0 0.0
        %9045 = vmatmul.mubr.f32.gmra.mrb[0].mxu0 %v8674
        %v9046 = vpop.f32.mrb[0].mxu0
        %v9047 = vadd.f32 0.0, %v9046
        %v9048 = vpop.f32.mrb[0].mxu0
        %9049 = vmatprep.mubr.f32.mxu0 0.0
        %9050 = vmatmul.mubr.f32.gmra.mrb[0].mxu0 %v8677
        %v9051 = vpop.f32.mrb[0].mxu0
        %v9052 = vadd.f32 0.0, %v9051
        %v9053 = vpop.f32.mrb[0].mxu0
        %9054 = vmatprep.mubr.f32.mxu0 0.0
        %9055 = vmatmul.mubr.f32.gmra.mrb[0].mxu0 %v8680
        %v9056 = vpop.f32.mrb[0].mxu0
        %v9057 = vadd.f32 0.0, %v9056
        %v9058 = vpop.f32.mrb[0].mxu0
        %9059 = vmatprep.mubr.f32.mxu0 0.0
        %9060 = vmatmul.mubr.f32.gmra.mrb[0].mxu0 %v8683
        %v9061 = vpop.f32.mrb[0].mxu0
        %v9062 = vadd.f32 0.0, %v9061
        %v9063 = vpop.f32.mrb[0].mxu0
        %9064 = vmatprep.mubr.f32.mxu0 0.0
        %9065 = vmatmul.mubr.f32.gmra.mrb[0].mxu0 %v8686
        %v9066 = vpop.f32.mrb[0].mxu0
        %v9067 = vadd.f32 0.0, %v9066
        %v9068 = vpop.f32.mrb[0].mxu0
        %9069 = vmatprep.mubr.f32.mxu0 0.0
        %9070 = vmatmul.mubr.f32.gmra.mrb[0].mxu0 %v8689
        %v9071 = vpop.f32.mrb[0].mxu0
        %v9072 = vadd.f32 0.0, %v9071
        %v9073 = vpop.f32.mrb[0].mxu0
        %9074 = vmatprep.mubr.f32.mxu0 0.0
        %9075 = vmatmul.mubr.f32.gmra.mrb[0].mxu0 %v8692
        %v9076 = vpop.f32.mrb[0].mxu0
        %v9077 = vadd.f32 0.0, %v9076
        %v9078 = vpop.f32.mrb[0].mxu0
        %9079 = vmatprep.mubr.f32.mxu0 0.0
        %9080 = vmatmul.mubr.f32.gmra.mrb[0].mxu0 %v8695
        %v9081 = vpop.f32.mrb[0].mxu0
        %v9082 = vadd.f32 0.0, %v9081
        %v9083 = vpop.f32.mrb[0].mxu0
        %9084 = vdwg.mxu0
        %v9085 = vld [vmem:[%s11] sm:$0xf]
        %v9088 = vunpack.c.l.s4 1966171168
        %v9089 = vunpack.c.0.s8 %v9088
        %v9090 = vlaneseq
        %v9091 = vshrl.u32 %v9090, 7
        %v9092 = vsub.s32 %v9089, %v9091
        %v9093 = vrot.slane %v9085, %v9092
        %v9094 = vcombine.high %v9093, %v9093
        %v9096 = vunpack.c.l.s4 1966171168
        %v9097 = vunpack.c.0.s8 %v9096
        %v9098 = vlaneseq
        %v9099 = vshrl.u32 %v9098, 7
        %v9100 = vsub.s32 %v9097, %v9099
        %v9101 = vrot.slane %v9093, %v9100
        %v9103 = vunpack.c.l.s4 1966171168
        %v9104 = vunpack.c.0.s8 %v9103
        %v9105 = vlaneseq
        %v9106 = vshrl.u32 %v9105, 7
        %v9107 = vsub.s32 %v9104, %v9106
        %v9108 = vrot.slane %v9094, %v9107
        %v9109 = vcombine.high %v9101, %v9101
        %v9110 = vcombine.high %v9108, %v9108
        %v9111 = vlaneseq
        %v9112 = vshrl.u32 %v9111, 7
        %v9113 = vsub.s32 0, %v9112
        %v9114 = vrot.slane %v9101, %v9113
        %v9115 = vlaneseq
        %v9116 = vshrl.u32 %v9115, 7
        %v9117 = vsub.s32 0, %v9116
        %v9118 = vrot.slane %v9108, %v9117
        %v9119 = vlaneseq
        %v9120 = vshrl.u32 %v9119, 7
        %v9121 = vsub.s32 0, %v9120
        %v9122 = vrot.slane %v9109, %v9121
        %v9123 = vlaneseq
        %v9124 = vshrl.u32 %v9123, 7
        %v9125 = vsub.s32 0, %v9124
        %v9126 = vrot.slane %v9110, %v9125
        %v9131 = vadd.f32 %v8767, %v9114
        %v9132 = vadd.f32 %v8772, %v9114
        %v9133 = vadd.f32 %v8777, %v9114
        %v9134 = vadd.f32 %v8782, %v9114
        %v9135 = vadd.f32 %v8787, %v9114
        %v9136 = vadd.f32 %v8792, %v9114
        %v9137 = vadd.f32 %v8797, %v9114
        %v9138 = vadd.f32 %v8802, %v9114
        %v9139 = vadd.f32 %v8807, %v9114
        %v9140 = vadd.f32 %v8812, %v9114
        %v9141 = vadd.f32 %v8817, %v9114
        %v9142 = vadd.f32 %v8822, %v9114
        %v9143 = vadd.f32 %v8827, %v9114
        %v9144 = vadd.f32 %v8832, %v9114
        %v9145 = vadd.f32 %v8837, %v9114
        %v9146 = vadd.f32 %v8842, %v9114
        %v9147 = vadd.f32 %v8847, %v9118
        %v9148 = vadd.f32 %v8852, %v9118
        %v9149 = vadd.f32 %v8857, %v9118
        %v9150 = vadd.f32 %v8862, %v9118
        %v9151 = vadd.f32 %v8867, %v9118
        %v9152 = vadd.f32 %v8872, %v9118
        %v9153 = vadd.f32 %v8877, %v9118
        %v9154 = vadd.f32 %v8882, %v9118
        %v9155 = vadd.f32 %v8887, %v9118
        %v9156 = vadd.f32 %v8892, %v9118
        %v9157 = vadd.f32 %v8897, %v9118
        %v9158 = vadd.f32 %v8902, %v9118
        %v9159 = vadd.f32 %v8907, %v9118
        %v9160 = vadd.f32 %v8912, %v9118
        %v9161 = vadd.f32 %v8917, %v9118
        %v9162 = vadd.f32 %v8922, %v9118
        %v9163 = vadd.f32 %v8927, %v9122
        %v9164 = vadd.f32 %v8932, %v9122
        %v9165 = vadd.f32 %v8937, %v9122
        %v9166 = vadd.f32 %v8942, %v9122
        %v9167 = vadd.f32 %v8947, %v9122
        %v9168 = vadd.f32 %v8952, %v9122
        %v9169 = vadd.f32 %v8957, %v9122
        %v9170 = vadd.f32 %v8962, %v9122
        %v9171 = vadd.f32 %v8967, %v9122
        %v9172 = vadd.f32 %v8972, %v9122
        %v9173 = vadd.f32 %v8977, %v9122
        %v9174 = vadd.f32 %v8982, %v9122
        %v9175 = vadd.f32 %v8987, %v9122
        %v9176 = vadd.f32 %v8992, %v9122
        %v9177 = vadd.f32 %v8997, %v9122
        %v9178 = vadd.f32 %v9002, %v9122
        %v9179 = vadd.f32 %v9007, %v9126
        %v9180 = vadd.f32 %v9012, %v9126
        %v9181 = vadd.f32 %v9017, %v9126
        %v9182 = vadd.f32 %v9022, %v9126
        %v9183 = vadd.f32 %v9027, %v9126
        %v9184 = vadd.f32 %v9032, %v9126
        %v9185 = vadd.f32 %v9037, %v9126
        %v9186 = vadd.f32 %v9042, %v9126
        %v9187 = vadd.f32 %v9047, %v9126
        %v9188 = vadd.f32 %v9052, %v9126
        %v9189 = vadd.f32 %v9057, %v9126
        %v9190 = vadd.f32 %v9062, %v9126
        %v9191 = vadd.f32 %v9067, %v9126
        %v9192 = vadd.f32 %v9072, %v9126
        %v9193 = vadd.f32 %v9077, %v9126
        %v9194 = vadd.f32 %v9082, %v9126
        %v9195 = vadd.f32 %v8322, %v9131
        %v9196 = vadd.f32 %v8323, %v9132
        %v9197 = vadd.f32 %v8324, %v9133
        %v9198 = vadd.f32 %v8325, %v9134
        %v9199 = vadd.f32 %v8326, %v9135
        %v9200 = vadd.f32 %v8327, %v9136
        %v9201 = vadd.f32 %v8328, %v9137
        %v9202 = vadd.f32 %v8329, %v9138
        %v9203 = vadd.f32 %v8330, %v9139
        %v9204 = vadd.f32 %v8331, %v9140
        %v9205 = vadd.f32 %v8332, %v9141
        %v9206 = vadd.f32 %v8333, %v9142
        %v9207 = vadd.f32 %v8334, %v9143
        %v9208 = vadd.f32 %v8335, %v9144
        %v9209 = vadd.f32 %v8336, %v9145
        %v9210 = vadd.f32 %v8337, %v9146
        %v9211 = vadd.f32 %v8338, %v9147
        %v9212 = vadd.f32 %v8339, %v9148
        %v9213 = vadd.f32 %v8340, %v9149
        %v9214 = vadd.f32 %v8341, %v9150
        %v9215 = vadd.f32 %v8342, %v9151
        %v9216 = vadd.f32 %v8343, %v9152
        %v9217 = vadd.f32 %v8344, %v9153
        %v9218 = vadd.f32 %v8345, %v9154
        %v9219 = vadd.f32 %v8346, %v9155
        %v9220 = vadd.f32 %v8347, %v9156
        %v9221 = vadd.f32 %v8348, %v9157
        %v9222 = vadd.f32 %v8349, %v9158
        %v9223 = vadd.f32 %v8350, %v9159
        %v9224 = vadd.f32 %v8351, %v9160
        %v9225 = vadd.f32 %v8352, %v9161
        %v9226 = vadd.f32 %v8353, %v9162
        %v9227 = vadd.f32 %v8354, %v9163
        %v9228 = vadd.f32 %v8355, %v9164
        %v9229 = vadd.f32 %v8356, %v9165
        %v9230 = vadd.f32 %v8357, %v9166
        %v9231 = vadd.f32 %v8358, %v9167
        %v9232 = vadd.f32 %v8359, %v9168
        %v9233 = vadd.f32 %v8360, %v9169
        %v9234 = vadd.f32 %v8361, %v9170
        %v9235 = vadd.f32 %v8362, %v9171
        %v9236 = vadd.f32 %v8363, %v9172
        %v9237 = vadd.f32 %v8364, %v9173
        %v9238 = vadd.f32 %v8365, %v9174
        %v9239 = vadd.f32 %v8366, %v9175
        %v9240 = vadd.f32 %v8367, %v9176
        %v9241 = vadd.f32 %v8368, %v9177
        %v9242 = vadd.f32 %v8369, %v9178
        %v9243 = vadd.f32 %v8370, %v9179
        %v9244 = vadd.f32 %v8371, %v9180
        %v9245 = vadd.f32 %v8372, %v9181
        %v9246 = vadd.f32 %v8373, %v9182
        %v9247 = vadd.f32 %v8374, %v9183
        %v9248 = vadd.f32 %v8375, %v9184
        %v9249 = vadd.f32 %v8376, %v9185
        %v9250 = vadd.f32 %v8377, %v9186
        %v9251 = vadd.f32 %v8378, %v9187
        %v9252 = vadd.f32 %v8379, %v9188
        %v9253 = vadd.f32 %v8380, %v9189
        %v9254 = vadd.f32 %v8381, %v9190
        %v9255 = vadd.f32 %v8382, %v9191
        %v9256 = vadd.f32 %v8383, %v9192
        %v9257 = vadd.f32 %v8384, %v9193
        %v9258 = vadd.f32 %v8385, %v9194
        %vm9259 = vcmask 15360
        %9260 = vst.msk [vmem:[%s694] sm:$0xff] %vm9259, %v9195
        %9261 = vst.msk [vmem:[%s694 + $0x8] sm:$0xff] %vm9259, %v9196
        %9262 = vst.msk [vmem:[%s694 + $0x10] sm:$0xff] %vm9259, %v9197
        %9263 = vst.msk [vmem:[%s694 + $0x18] sm:$0xff] %vm9259, %v9198
        %9264 = vst.msk [vmem:[%s694 + $0x20] sm:$0xff] %vm9259, %v9199
        %9265 = vst.msk [vmem:[%s694 + $0x28] sm:$0xff] %vm9259, %v9200
        %9266 = vst.msk [vmem:[%s694 + $0x30] sm:$0xff] %vm9259, %v9201
        %9267 = vst.msk [vmem:[%s694 + $0x38] sm:$0xff] %vm9259, %v9202
        %9268 = vst.msk [vmem:[%s694 + $0x40] sm:$0xff] %vm9259, %v9203
        %9269 = vst.msk [vmem:[%s694 + $0x48] sm:$0xff] %vm9259, %v9204
        %9270 = vst.msk [vmem:[%s694 + $0x50] sm:$0xff] %vm9259, %v9205
        %9271 = vst.msk [vmem:[%s694 + $0x58] sm:$0xff] %vm9259, %v9206
        %9272 = vst.msk [vmem:[%s694 + $0x60] sm:$0xff] %vm9259, %v9207
        %9273 = vst.msk [vmem:[%s694 + $0x68] sm:$0xff] %vm9259, %v9208
        %9274 = vst.msk [vmem:[%s694 + $0x70] sm:$0xff] %vm9259, %v9209
        %9275 = vst.msk [vmem:[%s694 + $0x78] sm:$0xff] %vm9259, %v9210
        %9276 = vst.msk [vmem:[%s694 + $0x80] sm:$0xff] %vm9259, %v9211
        %9277 = vst.msk [vmem:[%s694 + $0x88] sm:$0xff] %vm9259, %v9212
        %9278 = vst.msk [vmem:[%s694 + $0x90] sm:$0xff] %vm9259, %v9213
        %9279 = vst.msk [vmem:[%s694 + $0x98] sm:$0xff] %vm9259, %v9214
        %9280 = vst.msk [vmem:[%s694 + $0xa0] sm:$0xff] %vm9259, %v9215
        %9281 = vst.msk [vmem:[%s694 + $0xa8] sm:$0xff] %vm9259, %v9216
        %9282 = vst.msk [vmem:[%s694 + $0xb0] sm:$0xff] %vm9259, %v9217
        %9283 = vst.msk [vmem:[%s694 + $0xb8] sm:$0xff] %vm9259, %v9218
        %9284 = vst.msk [vmem:[%s694 + $0xc0] sm:$0xff] %vm9259, %v9219
        %9285 = vst.msk [vmem:[%s694 + $0xc8] sm:$0xff] %vm9259, %v9220
        %9286 = vst.msk [vmem:[%s694 + $0xd0] sm:$0xff] %vm9259, %v9221
        %9287 = vst.msk [vmem:[%s694 + $0xd8] sm:$0xff] %vm9259, %v9222
        %9288 = vst.msk [vmem:[%s694 + $0xe0] sm:$0xff] %vm9259, %v9223
        %9289 = vst.msk [vmem:[%s694 + $0xe8] sm:$0xff] %vm9259, %v9224
        %9290 = vst.msk [vmem:[%s694 + $0xf0] sm:$0xff] %vm9259, %v9225
        %9291 = vst.msk [vmem:[%s694 + $0xf8] sm:$0xff] %vm9259, %v9226
        %9292 = vst.msk [vmem:[%s694 + $0x100] sm:$0xff] %vm9259, %v9227
        %9293 = vst.msk [vmem:[%s694 + $0x108] sm:$0xff] %vm9259, %v9228
        %9294 = vst.msk [vmem:[%s694 + $0x110] sm:$0xff] %vm9259, %v9229
        %9295 = vst.msk [vmem:[%s694 + $0x118] sm:$0xff] %vm9259, %v9230
        %9296 = vst.msk [vmem:[%s694 + $0x120] sm:$0xff] %vm9259, %v9231
        %9297 = vst.msk [vmem:[%s694 + $0x128] sm:$0xff] %vm9259, %v9232
        %9298 = vst.msk [vmem:[%s694 + $0x130] sm:$0xff] %vm9259, %v9233
        %9299 = vst.msk [vmem:[%s694 + $0x138] sm:$0xff] %vm9259, %v9234
        %9300 = vst.msk [vmem:[%s694 + $0x140] sm:$0xff] %vm9259, %v9235
        %9301 = vst.msk [vmem:[%s694 + $0x148] sm:$0xff] %vm9259, %v9236
        %9302 = vst.msk [vmem:[%s694 + $0x150] sm:$0xff] %vm9259, %v9237
        %9303 = vst.msk [vmem:[%s694 + $0x158] sm:$0xff] %vm9259, %v9238
        %9304 = vst.msk [vmem:[%s694 + $0x160] sm:$0xff] %vm9259, %v9239
        %9305 = vst.msk [vmem:[%s694 + $0x168] sm:$0xff] %vm9259, %v9240
        %9306 = vst.msk [vmem:[%s694 + $0x170] sm:$0xff] %vm9259, %v9241
        %9307 = vst.msk [vmem:[%s694 + $0x178] sm:$0xff] %vm9259, %v9242
        %9308 = vst.msk [vmem:[%s694 + $0x180] sm:$0xff] %vm9259, %v9243
        %9309 = vst.msk [vmem:[%s694 + $0x188] sm:$0xff] %vm9259, %v9244
        %9310 = vst.msk [vmem:[%s694 + $0x190] sm:$0xff] %vm9259, %v9245
        %9311 = vst.msk [vmem:[%s694 + $0x198] sm:$0xff] %vm9259, %v9246
        %9312 = vst.msk [vmem:[%s694 + $0x1a0] sm:$0xff] %vm9259, %v9247
        %9313 = vst.msk [vmem:[%s694 + $0x1a8] sm:$0xff] %vm9259, %v9248
        %9314 = vst.msk [vmem:[%s694 + $0x1b0] sm:$0xff] %vm9259, %v9249
        %9315 = vst.msk [vmem:[%s694 + $0x1b8] sm:$0xff] %vm9259, %v9250
        %9316 = vst.msk [vmem:[%s694 + $0x1c0] sm:$0xff] %vm9259, %v9251
        %9317 = vst.msk [vmem:[%s694 + $0x1c8] sm:$0xff] %vm9259, %v9252
        %9318 = vst.msk [vmem:[%s694 + $0x1d0] sm:$0xff] %vm9259, %v9253
        %9319 = vst.msk [vmem:[%s694 + $0x1d8] sm:$0xff] %vm9259, %v9254
        %9320 = vst.msk [vmem:[%s694 + $0x1e0] sm:$0xff] %vm9259, %v9255
        %9321 = vst.msk [vmem:[%s694 + $0x1e8] sm:$0xff] %vm9259, %v9256
        %9322 = vst.msk [vmem:[%s694 + $0x1f0] sm:$0xff] %vm9259, %v9257
        %9323 = vst.msk [vmem:[%s694 + $0x1f8] sm:$0xff] %vm9259, %v9258
        %s9324 = sand.u32 %s288, 1
        %s9325 = sand.u32 %s288, 1
        %s9326 = smul.addr %s9325, 512
        %s9327 = scalar_lea.vmem [#allocation3], %s9326
        // Predicated region
        $region107: #{forward.1} parent=101 // pred_check
          %p9328 = pneg %p298
        $region108: #{forward.1} parent=101 // pred_check_branch
          %9330 = sbr.rel (%p9328) target = $region110
        $region109: #{forward.1} parent=101 // pred_region
          %s9331 = smul.u32 16, %s23
          %s9332 = smul.addr %s9331, 8
          %s9333 = scalar_lea.vmem %s12, %s9332
          // Predicated region
          $region111: #{forward.1} parent=109 // pred_check
            _
          $region112: #{forward.1} parent=109 // pred_check_branch
            %9335 = sbr.rel (0) target = $region114
          $region113: #{forward.1} parent=109 // pred_region
            // Predicated region
            $region115: #{forward.1} parent=113 // pred_check
              _
            $region116: #{forward.1} parent=113 // pred_check_branch
              %9337 = sbr.rel (0) target = $region118
            $region117: #{forward.1} parent=113 // pred_region
              // Predicated region
              $region130: #{forward.1} parent=117 // pred_check
                _
              $region131: #{forward.1} parent=117 // pred_check_branch
                %9478 = sbr.rel (0) target = $region133
              $region132: #{forward.1} parent=117 // pred_region
                loop: start=0, step=1, limit=1
                $region134: #{forward.1} parent=132 // loop_pre_header
                  _
                $region135: #{forward.1} parent=132 // loop_header
                  %s9480 = sphi 0, %s9484
                  %p9481 = scmp.ge.s32.totalorder %s9480, 1
                  %s9485 = sphi %s9327, %s9327
                  %s9486 = sphi %s9333, %s9333
                $region136: #{forward.1} parent=132 // loop_header_branch
                  %9483 = sbr.rel (%p9481) target = $region140
                $region137: #{forward.1} parent=132 // loop_body
                  %v9487 = vld [vmem:[%s9485] sm:$0xff]
                  %9488 = vst [vmem:[%s9486] sm:$0xff] %v9487
                  %v9489 = vld [vmem:[%s9485 + $0x8] sm:$0xff]
                  %9490 = vst [vmem:[%s9486 + $0x8] sm:$0xff] %v9489
                  %v9491 = vld [vmem:[%s9485 + $0x10] sm:$0xff]
                  %9492 = vst [vmem:[%s9486 + $0x10] sm:$0xff] %v9491
                  %v9493 = vld [vmem:[%s9485 + $0x18] sm:$0xff]
                  %9494 = vst [vmem:[%s9486 + $0x18] sm:$0xff] %v9493
                  %v9495 = vld [vmem:[%s9485 + $0x20] sm:$0xff]
                  %9496 = vst [vmem:[%s9486 + $0x20] sm:$0xff] %v9495
                  %v9497 = vld [vmem:[%s9485 + $0x28] sm:$0xff]
                  %9498 = vst [vmem:[%s9486 + $0x28] sm:$0xff] %v9497
                  %v9499 = vld [vmem:[%s9485 + $0x30] sm:$0xff]
                  %9500 = vst [vmem:[%s9486 + $0x30] sm:$0xff] %v9499
                  %v9501 = vld [vmem:[%s9485 + $0x38] sm:$0xff]
                  %9502 = vst [vmem:[%s9486 + $0x38] sm:$0xff] %v9501
                  %v9503 = vld [vmem:[%s9485 + $0x40] sm:$0xff]
                  %9504 = vst [vmem:[%s9486 + $0x40] sm:$0xff] %v9503
                  %v9505 = vld [vmem:[%s9485 + $0x48] sm:$0xff]
                  %9506 = vst [vmem:[%s9486 + $0x48] sm:$0xff] %v9505
                  %v9507 = vld [vmem:[%s9485 + $0x50] sm:$0xff]
                  %9508 = vst [vmem:[%s9486 + $0x50] sm:$0xff] %v9507
                  %v9509 = vld [vmem:[%s9485 + $0x58] sm:$0xff]
                  %9510 = vst [vmem:[%s9486 + $0x58] sm:$0xff] %v9509
                  %v9511 = vld [vmem:[%s9485 + $0x60] sm:$0xff]
                  %9512 = vst [vmem:[%s9486 + $0x60] sm:$0xff] %v9511
                  %v9513 = vld [vmem:[%s9485 + $0x68] sm:$0xff]
                  %9514 = vst [vmem:[%s9486 + $0x68] sm:$0xff] %v9513
                  %v9515 = vld [vmem:[%s9485 + $0x70] sm:$0xff]
                  %9516 = vst [vmem:[%s9486 + $0x70] sm:$0xff] %v9515
                  %v9517 = vld [vmem:[%s9485 + $0x78] sm:$0xff]
                  %9518 = vst [vmem:[%s9486 + $0x78] sm:$0xff] %v9517
                  %v9519 = vld [vmem:[%s9485 + $0x80] sm:$0xff]
                  %9520 = vst [vmem:[%s9486 + $0x100] sm:$0xff] %v9519
                  %v9521 = vld [vmem:[%s9485 + $0x88] sm:$0xff]
                  %9522 = vst [vmem:[%s9486 + $0x108] sm:$0xff] %v9521
                  %v9523 = vld [vmem:[%s9485 + $0x90] sm:$0xff]
                  %9524 = vst [vmem:[%s9486 + $0x110] sm:$0xff] %v9523
                  %v9525 = vld [vmem:[%s9485 + $0x98] sm:$0xff]
                  %9526 = vst [vmem:[%s9486 + $0x118] sm:$0xff] %v9525
                  %v9527 = vld [vmem:[%s9485 + $0xa0] sm:$0xff]
                  %9528 = vst [vmem:[%s9486 + $0x120] sm:$0xff] %v9527
                  %v9529 = vld [vmem:[%s9485 + $0xa8] sm:$0xff]
                  %9530 = vst [vmem:[%s9486 + $0x128] sm:$0xff] %v9529
                  %v9531 = vld [vmem:[%s9485 + $0xb0] sm:$0xff]
                  %9532 = vst [vmem:[%s9486 + $0x130] sm:$0xff] %v9531
                  %v9533 = vld [vmem:[%s9485 + $0xb8] sm:$0xff]
                  %9534 = vst [vmem:[%s9486 + $0x138] sm:$0xff] %v9533
                  %v9535 = vld [vmem:[%s9485 + $0xc0] sm:$0xff]
                  %9536 = vst [vmem:[%s9486 + $0x140] sm:$0xff] %v9535
                  %v9537 = vld [vmem:[%s9485 + $0xc8] sm:$0xff]
                  %9538 = vst [vmem:[%s9486 + $0x148] sm:$0xff] %v9537
                  %v9539 = vld [vmem:[%s9485 + $0xd0] sm:$0xff]
                  %9540 = vst [vmem:[%s9486 + $0x150] sm:$0xff] %v9539
                  %v9541 = vld [vmem:[%s9485 + $0xd8] sm:$0xff]
                  %9542 = vst [vmem:[%s9486 + $0x158] sm:$0xff] %v9541
                  %v9543 = vld [vmem:[%s9485 + $0xe0] sm:$0xff]
                  %9544 = vst [vmem:[%s9486 + $0x160] sm:$0xff] %v9543
                  %v9545 = vld [vmem:[%s9485 + $0xe8] sm:$0xff]
                  %9546 = vst [vmem:[%s9486 + $0x168] sm:$0xff] %v9545
                  %v9547 = vld [vmem:[%s9485 + $0xf0] sm:$0xff]
                  %9548 = vst [vmem:[%s9486 + $0x170] sm:$0xff] %v9547
                  %v9549 = vld [vmem:[%s9485 + $0xf8] sm:$0xff]
                  %9550 = vst [vmem:[%s9486 + $0x178] sm:$0xff] %v9549
                  %v9551 = vld [vmem:[%s9485 + $0x100] sm:$0xff]
                  %9552 = vst [vmem:[%s9486 + $0x200] sm:$0xff] %v9551
                  %v9553 = vld [vmem:[%s9485 + $0x108] sm:$0xff]
                  %9554 = vst [vmem:[%s9486 + $0x208] sm:$0xff] %v9553
                  %v9555 = vld [vmem:[%s9485 + $0x110] sm:$0xff]
                  %9556 = vst [vmem:[%s9486 + $0x210] sm:$0xff] %v9555
                  %v9557 = vld [vmem:[%s9485 + $0x118] sm:$0xff]
                  %9558 = vst [vmem:[%s9486 + $0x218] sm:$0xff] %v9557
                  %v9559 = vld [vmem:[%s9485 + $0x120] sm:$0xff]
                  %9560 = vst [vmem:[%s9486 + $0x220] sm:$0xff] %v9559
                  %v9561 = vld [vmem:[%s9485 + $0x128] sm:$0xff]
                  %9562 = vst [vmem:[%s9486 + $0x228] sm:$0xff] %v9561
                  %v9563 = vld [vmem:[%s9485 + $0x130] sm:$0xff]
                  %9564 = vst [vmem:[%s9486 + $0x230] sm:$0xff] %v9563
                  %v9565 = vld [vmem:[%s9485 + $0x138] sm:$0xff]
                  %9566 = vst [vmem:[%s9486 + $0x238] sm:$0xff] %v9565
                  %v9567 = vld [vmem:[%s9485 + $0x140] sm:$0xff]
                  %9568 = vst [vmem:[%s9486 + $0x240] sm:$0xff] %v9567
                  %v9569 = vld [vmem:[%s9485 + $0x148] sm:$0xff]
                  %9570 = vst [vmem:[%s9486 + $0x248] sm:$0xff] %v9569
                  %v9571 = vld [vmem:[%s9485 + $0x150] sm:$0xff]
                  %9572 = vst [vmem:[%s9486 + $0x250] sm:$0xff] %v9571
                  %v9573 = vld [vmem:[%s9485 + $0x158] sm:$0xff]
                  %9574 = vst [vmem:[%s9486 + $0x258] sm:$0xff] %v9573
                  %v9575 = vld [vmem:[%s9485 + $0x160] sm:$0xff]
                  %9576 = vst [vmem:[%s9486 + $0x260] sm:$0xff] %v9575
                  %v9577 = vld [vmem:[%s9485 + $0x168] sm:$0xff]
                  %9578 = vst [vmem:[%s9486 + $0x268] sm:$0xff] %v9577
                  %v9579 = vld [vmem:[%s9485 + $0x170] sm:$0xff]
                  %9580 = vst [vmem:[%s9486 + $0x270] sm:$0xff] %v9579
                  %v9581 = vld [vmem:[%s9485 + $0x178] sm:$0xff]
                  %9582 = vst [vmem:[%s9486 + $0x278] sm:$0xff] %v9581
                  %v9583 = vld [vmem:[%s9485 + $0x180] sm:$0xff]
                  %9584 = vst [vmem:[%s9486 + $0x300] sm:$0xff] %v9583
                  %v9585 = vld [vmem:[%s9485 + $0x188] sm:$0xff]
                  %9586 = vst [vmem:[%s9486 + $0x308] sm:$0xff] %v9585
                  %v9587 = vld [vmem:[%s9485 + $0x190] sm:$0xff]
                  %9588 = vst [vmem:[%s9486 + $0x310] sm:$0xff] %v9587
                  %v9589 = vld [vmem:[%s9485 + $0x198] sm:$0xff]
                  %9590 = vst [vmem:[%s9486 + $0x318] sm:$0xff] %v9589
                  %v9591 = vld [vmem:[%s9485 + $0x1a0] sm:$0xff]
                  %9592 = vst [vmem:[%s9486 + $0x320] sm:$0xff] %v9591
                  %v9593 = vld [vmem:[%s9485 + $0x1a8] sm:$0xff]
                  %9594 = vst [vmem:[%s9486 + $0x328] sm:$0xff] %v9593
                  %v9595 = vld [vmem:[%s9485 + $0x1b0] sm:$0xff]
                  %9596 = vst [vmem:[%s9486 + $0x330] sm:$0xff] %v9595
                  %v9597 = vld [vmem:[%s9485 + $0x1b8] sm:$0xff]
                  %9598 = vst [vmem:[%s9486 + $0x338] sm:$0xff] %v9597
                  %v9599 = vld [vmem:[%s9485 + $0x1c0] sm:$0xff]
                  %9600 = vst [vmem:[%s9486 + $0x340] sm:$0xff] %v9599
                  %v9601 = vld [vmem:[%s9485 + $0x1c8] sm:$0xff]
                  %9602 = vst [vmem:[%s9486 + $0x348] sm:$0xff] %v9601
                  %v9603 = vld [vmem:[%s9485 + $0x1d0] sm:$0xff]
                  %9604 = vst [vmem:[%s9486 + $0x350] sm:$0xff] %v9603
                  %v9605 = vld [vmem:[%s9485 + $0x1d8] sm:$0xff]
                  %9606 = vst [vmem:[%s9486 + $0x358] sm:$0xff] %v9605
                  %v9607 = vld [vmem:[%s9485 + $0x1e0] sm:$0xff]
                  %9608 = vst [vmem:[%s9486 + $0x360] sm:$0xff] %v9607
                  %v9609 = vld [vmem:[%s9485 + $0x1e8] sm:$0xff]
                  %9610 = vst [vmem:[%s9486 + $0x368] sm:$0xff] %v9609
                  %v9611 = vld [vmem:[%s9485 + $0x1f0] sm:$0xff]
                  %9612 = vst [vmem:[%s9486 + $0x370] sm:$0xff] %v9611
                  %v9613 = vld [vmem:[%s9485 + $0x1f8] sm:$0xff]
                  %9614 = vst [vmem:[%s9486 + $0x378] sm:$0xff] %v9613
                $region138: #{forward.1} parent=132 // loop_footer
                  %s9484 = sadd.s32 1, %s9480
                $region139: #{forward.1} parent=132 // loop_footer_branch
                  %9479 = sbr.rel target = $region135
                $region140: #{forward.1} parent=132 // loop_exit
                  _
              $region133: #{forward.1} parent=117 // pred_fallthru
                _
              // Predicated region
              $region141: #{forward.1} parent=117 // pred_check
                _
              $region142: #{forward.1} parent=117 // pred_check_branch
                %9616 = sbr.rel target = $region144
              $region143: #{forward.1} parent=117 // pred_region
                _
              $region144: #{forward.1} parent=117 // pred_fallthru
                _
            $region118: #{forward.1} parent=113 // pred_fallthru
              _
            // Predicated region
            $region119: #{forward.1} parent=113 // pred_check
              _
            $region120: #{forward.1} parent=113 // pred_check_branch
              %9339 = sbr.rel target = $region122
            $region121: #{forward.1} parent=113 // pred_region
              loop: start=0, step=1, limit=1
              $region123: #{forward.1} parent=121 // loop_pre_header
                _
              $region124: #{forward.1} parent=121 // loop_header
                %s9342 = sphi 0, %s9346
                %p9343 = scmp.ge.s32.totalorder %s9342, 1
                %s9347 = sphi %s9327, %s9327
                %s9348 = sphi %s9333, %s9333
              $region125: #{forward.1} parent=121 // loop_header_branch
                %9345 = sbr.rel (%p9343) target = $region129
              $region126: #{forward.1} parent=121 // loop_body
                %v9349 = vld [vmem:[%s9347] sm:$0xff]
                %9350 = vst [vmem:[%s9348] sm:$0xff] %v9349
                %v9351 = vld [vmem:[%s9347 + $0x8] sm:$0xff]
                %9352 = vst [vmem:[%s9348 + $0x8] sm:$0xff] %v9351
                %v9353 = vld [vmem:[%s9347 + $0x10] sm:$0xff]
                %9354 = vst [vmem:[%s9348 + $0x10] sm:$0xff] %v9353
                %v9355 = vld [vmem:[%s9347 + $0x18] sm:$0xff]
                %9356 = vst [vmem:[%s9348 + $0x18] sm:$0xff] %v9355
                %v9357 = vld [vmem:[%s9347 + $0x20] sm:$0xff]
                %9358 = vst [vmem:[%s9348 + $0x20] sm:$0xff] %v9357
                %v9359 = vld [vmem:[%s9347 + $0x28] sm:$0xff]
                %9360 = vst [vmem:[%s9348 + $0x28] sm:$0xff] %v9359
                %v9361 = vld [vmem:[%s9347 + $0x30] sm:$0xff]
                %9362 = vst [vmem:[%s9348 + $0x30] sm:$0xff] %v9361
                %v9363 = vld [vmem:[%s9347 + $0x38] sm:$0xff]
                %9364 = vst [vmem:[%s9348 + $0x38] sm:$0xff] %v9363
                %v9365 = vld [vmem:[%s9347 + $0x40] sm:$0xff]
                %9366 = vst [vmem:[%s9348 + $0x40] sm:$0xff] %v9365
                %v9367 = vld [vmem:[%s9347 + $0x48] sm:$0xff]
                %9368 = vst [vmem:[%s9348 + $0x48] sm:$0xff] %v9367
                %v9369 = vld [vmem:[%s9347 + $0x50] sm:$0xff]
                %9370 = vst [vmem:[%s9348 + $0x50] sm:$0xff] %v9369
                %v9371 = vld [vmem:[%s9347 + $0x58] sm:$0xff]
                %9372 = vst [vmem:[%s9348 + $0x58] sm:$0xff] %v9371
                %v9373 = vld [vmem:[%s9347 + $0x60] sm:$0xff]
                %9374 = vst [vmem:[%s9348 + $0x60] sm:$0xff] %v9373
                %v9375 = vld [vmem:[%s9347 + $0x68] sm:$0xff]
                %9376 = vst [vmem:[%s9348 + $0x68] sm:$0xff] %v9375
                %v9377 = vld [vmem:[%s9347 + $0x70] sm:$0xff]
                %9378 = vst [vmem:[%s9348 + $0x70] sm:$0xff] %v9377
                %v9379 = vld [vmem:[%s9347 + $0x78] sm:$0xff]
                %9380 = vst [vmem:[%s9348 + $0x78] sm:$0xff] %v9379
                %v9381 = vld [vmem:[%s9347 + $0x80] sm:$0xff]
                %9382 = vst [vmem:[%s9348 + $0x100] sm:$0xff] %v9381
                %v9383 = vld [vmem:[%s9347 + $0x88] sm:$0xff]
                %9384 = vst [vmem:[%s9348 + $0x108] sm:$0xff] %v9383
                %v9385 = vld [vmem:[%s9347 + $0x90] sm:$0xff]
                %9386 = vst [vmem:[%s9348 + $0x110] sm:$0xff] %v9385
                %v9387 = vld [vmem:[%s9347 + $0x98] sm:$0xff]
                %9388 = vst [vmem:[%s9348 + $0x118] sm:$0xff] %v9387
                %v9389 = vld [vmem:[%s9347 + $0xa0] sm:$0xff]
                %9390 = vst [vmem:[%s9348 + $0x120] sm:$0xff] %v9389
                %v9391 = vld [vmem:[%s9347 + $0xa8] sm:$0xff]
                %9392 = vst [vmem:[%s9348 + $0x128] sm:$0xff] %v9391
                %v9393 = vld [vmem:[%s9347 + $0xb0] sm:$0xff]
                %9394 = vst [vmem:[%s9348 + $0x130] sm:$0xff] %v9393
                %v9395 = vld [vmem:[%s9347 + $0xb8] sm:$0xff]
                %9396 = vst [vmem:[%s9348 + $0x138] sm:$0xff] %v9395
                %v9397 = vld [vmem:[%s9347 + $0xc0] sm:$0xff]
                %9398 = vst [vmem:[%s9348 + $0x140] sm:$0xff] %v9397
                %v9399 = vld [vmem:[%s9347 + $0xc8] sm:$0xff]
                %9400 = vst [vmem:[%s9348 + $0x148] sm:$0xff] %v9399
                %v9401 = vld [vmem:[%s9347 + $0xd0] sm:$0xff]
                %9402 = vst [vmem:[%s9348 + $0x150] sm:$0xff] %v9401
                %v9403 = vld [vmem:[%s9347 + $0xd8] sm:$0xff]
                %9404 = vst [vmem:[%s9348 + $0x158] sm:$0xff] %v9403
                %v9405 = vld [vmem:[%s9347 + $0xe0] sm:$0xff]
                %9406 = vst [vmem:[%s9348 + $0x160] sm:$0xff] %v9405
                %v9407 = vld [vmem:[%s9347 + $0xe8] sm:$0xff]
                %9408 = vst [vmem:[%s9348 + $0x168] sm:$0xff] %v9407
                %v9409 = vld [vmem:[%s9347 + $0xf0] sm:$0xff]
                %9410 = vst [vmem:[%s9348 + $0x170] sm:$0xff] %v9409
                %v9411 = vld [vmem:[%s9347 + $0xf8] sm:$0xff]
                %9412 = vst [vmem:[%s9348 + $0x178] sm:$0xff] %v9411
                %v9413 = vld [vmem:[%s9347 + $0x100] sm:$0xff]
                %9414 = vst [vmem:[%s9348 + $0x200] sm:$0xff] %v9413
                %v9415 = vld [vmem:[%s9347 + $0x108] sm:$0xff]
                %9416 = vst [vmem:[%s9348 + $0x208] sm:$0xff] %v9415
                %v9417 = vld [vmem:[%s9347 + $0x110] sm:$0xff]
                %9418 = vst [vmem:[%s9348 + $0x210] sm:$0xff] %v9417
                %v9419 = vld [vmem:[%s9347 + $0x118] sm:$0xff]
                %9420 = vst [vmem:[%s9348 + $0x218] sm:$0xff] %v9419
                %v9421 = vld [vmem:[%s9347 + $0x120] sm:$0xff]
                %9422 = vst [vmem:[%s9348 + $0x220] sm:$0xff] %v9421
                %v9423 = vld [vmem:[%s9347 + $0x128] sm:$0xff]
                %9424 = vst [vmem:[%s9348 + $0x228] sm:$0xff] %v9423
                %v9425 = vld [vmem:[%s9347 + $0x130] sm:$0xff]
                %9426 = vst [vmem:[%s9348 + $0x230] sm:$0xff] %v9425
                %v9427 = vld [vmem:[%s9347 + $0x138] sm:$0xff]
                %9428 = vst [vmem:[%s9348 + $0x238] sm:$0xff] %v9427
                %v9429 = vld [vmem:[%s9347 + $0x140] sm:$0xff]
                %9430 = vst [vmem:[%s9348 + $0x240] sm:$0xff] %v9429
                %v9431 = vld [vmem:[%s9347 + $0x148] sm:$0xff]
                %9432 = vst [vmem:[%s9348 + $0x248] sm:$0xff] %v9431
                %v9433 = vld [vmem:[%s9347 + $0x150] sm:$0xff]
                %9434 = vst [vmem:[%s9348 + $0x250] sm:$0xff] %v9433
                %v9435 = vld [vmem:[%s9347 + $0x158] sm:$0xff]
                %9436 = vst [vmem:[%s9348 + $0x258] sm:$0xff] %v9435
                %v9437 = vld [vmem:[%s9347 + $0x160] sm:$0xff]
                %9438 = vst [vmem:[%s9348 + $0x260] sm:$0xff] %v9437
                %v9439 = vld [vmem:[%s9347 + $0x168] sm:$0xff]
                %9440 = vst [vmem:[%s9348 + $0x268] sm:$0xff] %v9439
                %v9441 = vld [vmem:[%s9347 + $0x170] sm:$0xff]
                %9442 = vst [vmem:[%s9348 + $0x270] sm:$0xff] %v9441
                %v9443 = vld [vmem:[%s9347 + $0x178] sm:$0xff]
                %9444 = vst [vmem:[%s9348 + $0x278] sm:$0xff] %v9443
                %v9445 = vld [vmem:[%s9347 + $0x180] sm:$0xff]
                %9446 = vst [vmem:[%s9348 + $0x300] sm:$0xff] %v9445
                %v9447 = vld [vmem:[%s9347 + $0x188] sm:$0xff]
                %9448 = vst [vmem:[%s9348 + $0x308] sm:$0xff] %v9447
                %v9449 = vld [vmem:[%s9347 + $0x190] sm:$0xff]
                %9450 = vst [vmem:[%s9348 + $0x310] sm:$0xff] %v9449
                %v9451 = vld [vmem:[%s9347 + $0x198] sm:$0xff]
                %9452 = vst [vmem:[%s9348 + $0x318] sm:$0xff] %v9451
                %v9453 = vld [vmem:[%s9347 + $0x1a0] sm:$0xff]
                %9454 = vst [vmem:[%s9348 + $0x320] sm:$0xff] %v9453
                %v9455 = vld [vmem:[%s9347 + $0x1a8] sm:$0xff]
                %9456 = vst [vmem:[%s9348 + $0x328] sm:$0xff] %v9455
                %v9457 = vld [vmem:[%s9347 + $0x1b0] sm:$0xff]
                %9458 = vst [vmem:[%s9348 + $0x330] sm:$0xff] %v9457
                %v9459 = vld [vmem:[%s9347 + $0x1b8] sm:$0xff]
                %9460 = vst [vmem:[%s9348 + $0x338] sm:$0xff] %v9459
                %v9461 = vld [vmem:[%s9347 + $0x1c0] sm:$0xff]
                %9462 = vst [vmem:[%s9348 + $0x340] sm:$0xff] %v9461
                %v9463 = vld [vmem:[%s9347 + $0x1c8] sm:$0xff]
                %9464 = vst [vmem:[%s9348 + $0x348] sm:$0xff] %v9463
                %v9465 = vld [vmem:[%s9347 + $0x1d0] sm:$0xff]
                %9466 = vst [vmem:[%s9348 + $0x350] sm:$0xff] %v9465
                %v9467 = vld [vmem:[%s9347 + $0x1d8] sm:$0xff]
                %9468 = vst [vmem:[%s9348 + $0x358] sm:$0xff] %v9467
                %v9469 = vld [vmem:[%s9347 + $0x1e0] sm:$0xff]
                %9470 = vst [vmem:[%s9348 + $0x360] sm:$0xff] %v9469
                %v9471 = vld [vmem:[%s9347 + $0x1e8] sm:$0xff]
                %9472 = vst [vmem:[%s9348 + $0x368] sm:$0xff] %v9471
                %v9473 = vld [vmem:[%s9347 + $0x1f0] sm:$0xff]
                %9474 = vst [vmem:[%s9348 + $0x370] sm:$0xff] %v9473
                %v9475 = vld [vmem:[%s9347 + $0x1f8] sm:$0xff]
                %9476 = vst [vmem:[%s9348 + $0x378] sm:$0xff] %v9475
              $region127: #{forward.1} parent=121 // loop_footer
                %s9346 = sadd.s32 1, %s9342
              $region128: #{forward.1} parent=121 // loop_footer_branch
                %9341 = sbr.rel target = $region124
              $region129: #{forward.1} parent=121 // loop_exit
                _
            $region122: #{forward.1} parent=113 // pred_fallthru
              _
          $region114: #{forward.1} parent=109 // pred_fallthru
            _
          %9617 = vnop
        $region110: #{forward.1} parent=101 // pred_fallthru
          _
      $region102: #{forward.1} parent=5 // pred_fallthru
        _
      %p9618 = scmp.le.s32.totalorder 2, %s18
      // Predicated region
      $region145: #{forward.1} parent=5 // pred_check
        %p9619 = pneg %p9618
      $region146: #{forward.1} parent=5 // pred_check_branch
        %9621 = sbr.rel (%p9619) target = $region148
      $region147: #{forward.1} parent=5 // pred_region
        %s9622 = ssub.s32 %s18, 2
        // Predicated region
        $region149: #{forward.1} parent=147 // pred_check
          %p9623 = pneg %p304
        $region150: #{forward.1} parent=147 // pred_check_branch
          %9625 = sbr.rel (%p9623) target = $region152
        $region151: #{forward.1} parent=147 // pred_region
          %s9626 = sand.u32 %s289, 1
          %s9627 = sand.u32 %s289, 1
          %s9628 = smul.addr %s9627, 512
          %s9629 = scalar_lea.vmem [#allocation3], %s9628
        $region152: #{forward.1} parent=147 // pred_fallthru
          _
      $region148: #{forward.1} parent=5 // pred_fallthru
        _
    $region6: #{forward.1} parent=1 // loop_footer
      %s22 = sadd.s32 1, %s18
    $region7: #{forward.1} parent=1 // loop_footer_branch
      %17 = sbr.rel target = $region3
    $region8: #{forward.1} parent=1 // loop_exit
      _

</llo_original>
